<compile_context>
chip_gen: v5e
topology: v5e:2x2
jax: 0.10.0
libtpu: 0.0.40
codegen_flags: <defaults>
</compile_context>

<pallas_src>
import jax
import jax.numpy as jnp
from jax.experimental import pallas as pl
from jax.experimental.pallas import tpu as pltpu

LANES = 128                      # all matmul N dims padded to a full lane tile
VMEM_LIMIT = 32 * 1024 * 1024    # fits every generation (v7x physical = 64MiB)


def _pick_bt(n, prefs):
    """Largest batch tile in `prefs` that divides n (n is a multiple of 8)."""
    for p in prefs:
        if n % p == 0:
            return p
    return 8


# ---------------------------------------------------------------------------
# Pallas kernels
# ---------------------------------------------------------------------------
def _conv_pool_relu_kernel(cols_ref, w_ref, b_ref, o_ref):
    """Fused conv-as-matmul + bias + 2x2 maxpool + ReLU for a batch tile.

    cols_ref: (BT, 4, M4p, K)  -- 4 pooling phases (dy,dx), M4p mult. of 8
    w_ref:    (K, 128)         -- K padded to multiple of 8, N padded to 128
    b_ref:    (1, 128)
    o_ref:    (BT, M4p, 128)
    """
    bt, p, m4p, k = cols_ref.shape
    # Single stacked-M matmul over all phases and images in the tile.
    x = cols_ref[...].reshape(bt * p * m4p, k)
    y = jnp.dot(x, w_ref[...], preferred_element_type=jnp.float32)
    y = y.reshape(bt, p, m4p, LANES)
    # bias is constant across the 4 phases, so max(y)+b == max(y+b); ReLU after
    # the max equals ReLU before the max (monotone) -> matches relu(pool(conv)).
    m = jnp.maximum(jnp.maximum(y[:, 0], y[:, 1]),
                    jnp.maximum(y[:, 2], y[:, 3])) + b_ref[...]
    o_ref[...] = jnp.maximum(m, 0.0)


def conv_pool_relu(cols, w_pad, b_pad, bt, *, n_real, k_real, m_real):
    """cols:(B,4,M4p,K)  w_pad:(K,128)  b_pad:(1,128) -> (B, M4p, 128)."""
    B, P, M4p, K = cols.shape
    flops = B * P * 2 * m_real * k_real * n_real          # real channels only
    bytes_accessed = 4 * (cols.size + w_pad.size + b_pad.size
                          + B * M4p * LANES)
    return pl.pallas_call(
        _conv_pool_relu_kernel,
        out_shape=jax.ShapeDtypeStruct((B, M4p, LANES), jnp.float32),
        grid=(B // bt,),
        in_specs=[
            pl.BlockSpec((bt, P, M4p, K), lambda b: (b, 0, 0, 0)),
            pl.BlockSpec((K, LANES), lambda b: (0, 0)),
            pl.BlockSpec((1, LANES), lambda b: (0, 0)),
        ],
        out_specs=pl.BlockSpec((bt, M4p, LANES), lambda b: (b, 0, 0)),
        compiler_params=pltpu.CompilerParams(
            dimension_semantics=("parallel",),
            vmem_limit_bytes=VMEM_LIMIT),
        cost_estimate=pl.CostEstimate(
            flops=flops, transcendentals=0, bytes_accessed=bytes_accessed),
    )(cols, w_pad, b_pad)


def _fc_fused_kernel(x_ref, w1_ref, b1_ref, w2_ref, b2_ref, o_ref):
    """Fused Linear(400,256) + ReLU + Linear(256,16 padded to 128) per tile."""
    h = jnp.dot(x_ref[...], w1_ref[...], preferred_element_type=jnp.float32)
    h = jnp.maximum(h + b1_ref[...], 0.0)
    y = jnp.dot(h, w2_ref[...], preferred_element_type=jnp.float32)
    o_ref[...] = y + b2_ref[...]


def fc_fused(x, w1, b1, w2_pad, b2_pad, bt):
    """x:(B,400) w1:(400,256) w2_pad:(256,128) -> (B,128)."""
    B, K = x.shape
    N1 = w1.shape[1]
    flops = B * 2 * (K * N1 + N1 * 16)                     # real fc2 width = 16
    bytes_accessed = 4 * (x.size + w1.size + b1.size + w2_pad.size
                          + b2_pad.size + B * LANES)
    return pl.pallas_call(
        _fc_fused_kernel,
        out_shape=jax.ShapeDtypeStruct((B, LANES), jnp.float32),
        grid=(B // bt,),
        in_specs=[
            pl.BlockSpec((bt, K), lambda i: (i, 0)),
            pl.BlockSpec((K, N1), lambda i: (0, 0)),       # weights stay resident
            pl.BlockSpec((1, N1), lambda i: (0, 0)),
            pl.BlockSpec((N1, LANES), lambda i: (0, 0)),
            pl.BlockSpec((1, LANES), lambda i: (0, 0)),
        ],
        out_specs=pl.BlockSpec((bt, LANES), lambda i: (i, 0)),
        compiler_params=pltpu.CompilerParams(
            dimension_semantics=("parallel",),
            vmem_limit_bytes=VMEM_LIMIT),
        cost_estimate=pl.CostEstimate(
            flops=flops, transcendentals=0, bytes_accessed=bytes_accessed),
    )(x, w1, b1, w2_pad, b2_pad)


# ---------------------------------------------------------------------------
# Plain-JAX glue: phase-separated im2col (pure data movement)
# ---------------------------------------------------------------------------
def _pool_phase_cols(act, K, k_pad, m_pad):
    """act:(B,H,W,C) -> (B, 4, m_pad, k_pad) patches.

    Feature order is (kh, kw, ci); phase p = 2*dy + dx selects which of the
    four 2x2 pooling-window positions the conv output row corresponds to.
    m_pad >= (OH//2)*(OW//2) is a multiple of 8 so kernel-side phase slices and
    stores are sublane aligned.
    """
    B, H, W, C = act.shape
    OH, OW = H - K + 1, W - K + 1
    M4 = (OH // 2) * (OW // 2)
    taps = [act[:, kh:kh + OH, kw:kw + OW, :]
            for kh in range(K) for kw in range(K)]
    win = jnp.stack(taps, axis=3)                       # (B, OH, OW, K*K, C)
    win = win.reshape(B, OH, OW, K * K * C)             # f = (kh*K+kw)*C + ci
    win = win.reshape(B, OH // 2, 2, OW // 2, 2, K * K * C)
    win = win.transpose(0, 2, 4, 1, 3, 5)               # (B, dy, dx, i, j, f)
    win = win.reshape(B, 4, M4, K * K * C)
    win = jnp.pad(win, ((0, 0), (0, 0),
                        (0, m_pad - M4), (0, k_pad - K * K * C)))
    return win


# ---------------------------------------------------------------------------
# One-time parameter layout transform (pad N->128, K->mult of 8, fold permutes)
# ---------------------------------------------------------------------------
def _prep_conv_w(w, k_pad):
    """PyTorch OIHW (Co,Ci,K,K) -> (k_pad, 128) matmul weight, rows (kh,kw,ci)."""
    Co, Ci, K, _ = w.shape
    wm = w.transpose(2, 3, 1, 0).reshape(K * K * Ci, Co)
    return jnp.pad(wm, ((0, k_pad - K * K * Ci), (0, LANES - Co)))


def _prep_bias(b):
    return jnp.pad(b, (0, LANES - b.shape[0])).reshape(1, LANES)


def prepare_params(p):
    # Fold the Pallas activation flatten order (h, w, c) into fc1's columns so
    # no activation transpose is needed before the fc stage (PyTorch flattens
    # in (c, h, w) order).
    fw1_r = (p["fw1"].reshape(256, 16, 5, 5)
             .transpose(0, 2, 3, 1)
             .reshape(256, 400))
    return {
        "w1": _prep_conv_w(p["w1"], 32),    # K: 25 -> 32
        "b1": _prep_bias(p["b1"]),
        "w2": _prep_conv_w(p["w2"], 152),   # K: 150 -> 152
        "b2": _prep_bias(p["b2"]),
        "fw1": fw1_r.T,                     # (400, 256)
        "fb1": p["fb1"].reshape(1, 256),
        "fw2": jnp.pad(p["fw2"].T, ((0, 0), (0, LANES - 16))),   # (256, 128)
        "fb2": _prep_bias(p["fb2"]),
    }


# ---------------------------------------------------------------------------
# Full network forward
# ---------------------------------------------------------------------------
def net_forward(x, pp):
    """x: (B, 1, 32, 32) NCHW float32 -> (B, 16) logits. pp = prepare_params()."""
    B = x.shape[0]
    Bp = ((B + 7) // 8) * 8                             # pad batch to mult of 8
    if Bp != B:
        x = jnp.pad(x, ((0, Bp - B), (0, 0), (0, 0), (0, 0)))

    bt1 = _pick_bt(Bp, (16, 8))                         # conv1 batch tile
    bt2 = _pick_bt(Bp, (32, 16, 8))                     # conv2 batch tile
    btf = _pick_bt(Bp, (256, 128, 64, 32, 16, 8))       # fc batch tile

    # conv1 (1->6, 5x5) + maxpool2x2 + relu, one fused Pallas call.
    a = x.reshape(Bp, 32, 32, 1).astype(jnp.float32)    # C=1: NCHW == NHWC
    cols = _pool_phase_cols(a, 5, 32, 200)              # (Bp, 4, 200, 32)
    a = conv_pool_relu(cols, pp["w1"], pp["b1"], bt1,
                       n_real=6, k_real=25, m_real=196)  # (Bp, 200, 128)

    # conv2 (6->16, 5x5) + maxpool2x2 + relu, one fused Pallas call.
    a = a[:, :196, :6].reshape(Bp, 14, 14, 6)
    cols = _pool_phase_cols(a, 5, 152, 32)              # (Bp, 4, 32, 152)
    a = conv_pool_relu(cols, pp["w2"], pp["b2"], bt2,
                       n_real=16, k_real=150, m_real=25)  # (Bp, 32, 128)

    # flatten in (h, w, c) order; the PyTorch (c, h, w) order is baked into fw1.
    flat = a[:, :25, :16].reshape(Bp, 400)

    # fc_unit: Linear(400,256) + ReLU + Linear(256,16), one fused Pallas call.
    logits = fc_fused(flat, pp["fw1"], pp["fb1"], pp["fw2"], pp["fb2"], btf)
    return logits[:B, :16]


# ---------------------------------------------------------------------------
# Pure-JAX reference (for correctness checking only)
# ---------------------------------------------------------------------------
def reference_forward(x, p):
    dn = ("NCHW", "OIHW", "NCHW")
    y = jax.lax.conv_general_dilated(x, p["w1"], (1, 1), "VALID",
                                     dimension_numbers=dn)
    y = y + p["b1"][None, :, None, None]
    y = jax.lax.reduce_window(y, -jnp.inf, jax.lax.max,
                              (1, 1, 2, 2), (1, 1, 2, 2), "VALID")
    y = jnp.maximum(y, 0.0)
    y = jax.lax.conv_general_dilated(y, p["w2"], (1, 1), "VALID",
                                     dimension_numbers=dn)
    y = y + p["b2"][None, :, None, None]
    y = jax.lax.reduce_window(y, -jnp.inf, jax.lax.max,
                              (1, 1, 2, 2), (1, 1, 2, 2), "VALID")
    y = jnp.maximum(y, 0.0)
    y = y.reshape(y.shape[0], -1)
    y = jnp.maximum(y @ p["fw1"].T + p["fb1"], 0.0)
    y = y @ p["fw2"].T + p["fb2"]
    return y


# ---------------------------------------------------------------------------
# Deterministic parameter init (shapes from Net.__init__; synthetic values)
# ---------------------------------------------------------------------------
def init_params(key):
    ks = jax.random.split(key, 8)
    f32 = jnp.float32
    return {
        "w1":  0.10 * jax.random.normal(ks[0], (6, 1, 5, 5),   f32),
        "b1":  0.10 * jax.random.normal(ks[1], (6,),           f32),
        "w2":  0.10 * jax.random.normal(ks[2], (16, 6, 5, 5),  f32),
        "b2":  0.10 * jax.random.normal(ks[3], (16,),          f32),
        "fw1": 0.05 * jax.random.normal(ks[4], (256, 400),     f32),
        "fb1": 0.05 * jax.random.normal(ks[5], (256,),         f32),
        "fw2": 0.05 * jax.random.normal(ks[6], (16, 256),      f32),
        "fb2": 0.05 * jax.random.normal(ks[7], (16,),          f32),
    }


if __name__ == "__main__":
    key = jax.random.PRNGKey(0)
    pkey, xkey = jax.random.split(key)
    params = init_params(pkey)
    prepped = prepare_params(params)        # one-time weight pad/permute

    # LeNet-5 requires 32x32 single-channel input (400 = 16*5*5 after conv/pool).
    x = jax.random.normal(xkey, (2, 1, 32, 32), jnp.float32)

    out = jax.jit(net_forward)(x, prepped)
    out = jax.block_until_ready(out)

    ref = reference_forward(x, params)
    assert out.shape == (2, 16), out.shape
    assert jnp.allclose(out, ref, atol=1e-3, rtol=1e-3), (
        "Pallas output does not match JAX reference")

    print("KERNEL_OK")
</pallas_src>

<mosaic_0001>
module attributes {stable_mosaic.version = 11 : i64} {
  func.func @_conv_pool_relu_kernel(%arg0: i32, %arg1: memref<8x4x200x32xf32, #tpu.memory_space<vmem>>, %arg2: memref<32x128xf32, #tpu.memory_space<vmem>>, %arg3: memref<1x128xf32, #tpu.memory_space<vmem>>, %arg4: memref<8x200x128xf32, #tpu.memory_space<vmem>>) attributes {dimension_semantics = [#tpu.dimension_semantics<parallel>], iteration_bounds = array<i64: 1>, scalar_prefetch = 0 : i64, scratch_operands = 0 : i64, tpu.core_type = #tpu.core_type<tc>, window_params = [{transform_indices = @transform_0, window_bounds = array<i64: 8, 4, 200, 32>}, {pipeline_mode = #tpu.pipeline_mode<synchronous>, transform_indices = @transform_1, window_bounds = array<i64: 32, 128>}, {pipeline_mode = #tpu.pipeline_mode<synchronous>, transform_indices = @transform_2, window_bounds = array<i64: 1, 128>}, {transform_indices = @transform_3, window_bounds = array<i64: 8, 200, 128>}]} {
    %c0 = arith.constant 0 : index
    %c0_0 = arith.constant 0 : index
    %c0_1 = arith.constant 0 : index
    %c0_2 = arith.constant 0 : index
    %0 = vector.load %arg1[%c0, %c0_0, %c0_1, %c0_2] : memref<8x4x200x32xf32, #tpu.memory_space<vmem>>, vector<8x4x200x32xf32>
    %1 = vector.shape_cast %0 : vector<8x4x200x32xf32> to vector<6400x32xf32>
    %c0_3 = arith.constant 0 : index
    %c0_4 = arith.constant 0 : index
    %2 = vector.load %arg2[%c0_3, %c0_4] : memref<32x128xf32, #tpu.memory_space<vmem>>, vector<32x128xf32>
    %cst = arith.constant dense<0.000000e+00> : vector<6400x128xf32>
    %3 = tpu.matmul %1, %2, %cst {dimension_numbers = #tpu.dot_dimension_numbers<[1], [0], [0], [1], [0, 0, 1, 1], [], []>} : vector<6400x32xf32>, vector<32x128xf32>, vector<6400x128xf32> -> vector<6400x128xf32>
    %4 = vector.shape_cast %3 : vector<6400x128xf32> to vector<8x4x200x128xf32>
    %5 = vector.extract_strided_slice %4 {offsets = [0, 0, 0, 0], sizes = [8, 1, 200, 128], strides = [1, 1, 1, 1]} : vector<8x4x200x128xf32> to vector<8x1x200x128xf32>
    %6 = vector.shape_cast %5 : vector<8x1x200x128xf32> to vector<8x200x128xf32>
    %7 = vector.extract_strided_slice %4 {offsets = [0, 1, 0, 0], sizes = [8, 1, 200, 128], strides = [1, 1, 1, 1]} : vector<8x4x200x128xf32> to vector<8x1x200x128xf32>
    %8 = vector.shape_cast %7 : vector<8x1x200x128xf32> to vector<8x200x128xf32>
    %9 = arith.maximumf %6, %8 : vector<8x200x128xf32>
    %10 = vector.extract_strided_slice %4 {offsets = [0, 2, 0, 0], sizes = [8, 1, 200, 128], strides = [1, 1, 1, 1]} : vector<8x4x200x128xf32> to vector<8x1x200x128xf32>
    %11 = vector.shape_cast %10 : vector<8x1x200x128xf32> to vector<8x200x128xf32>
    %12 = vector.extract_strided_slice %4 {offsets = [0, 3, 0, 0], sizes = [8, 1, 200, 128], strides = [1, 1, 1, 1]} : vector<8x4x200x128xf32> to vector<8x1x200x128xf32>
    %13 = vector.shape_cast %12 : vector<8x1x200x128xf32> to vector<8x200x128xf32>
    %14 = arith.maximumf %11, %13 : vector<8x200x128xf32>
    %15 = arith.maximumf %9, %14 : vector<8x200x128xf32>
    %c0_5 = arith.constant 0 : index
    %c0_6 = arith.constant 0 : index
    %16 = vector.load %arg3[%c0_5, %c0_6] : memref<1x128xf32, #tpu.memory_space<vmem>>, vector<1x128xf32>
    %17 = vector.shape_cast %16 : vector<1x128xf32> to vector<1x1x128xf32>
    %18 = vector.broadcast %17 : vector<1x1x128xf32> to vector<8x200x128xf32>
    %19 = arith.addf %15, %18 : vector<8x200x128xf32>
    %cst_7 = arith.constant 0.000000e+00 : f32
    %20 = vector.broadcast %cst_7 : f32 to vector<8x200x128xf32>
    %21 = arith.maximumf %19, %20 : vector<8x200x128xf32>
    %c0_8 = arith.constant 0 : index
    %c0_9 = arith.constant 0 : index
    %c0_10 = arith.constant 0 : index
    %22 = vector.load %arg4[%c0_8, %c0_9, %c0_10] : memref<8x200x128xf32, #tpu.memory_space<vmem>>, vector<8x200x128xf32>
    tpu.vector_store %arg4[%c0_8, %c0_9, %c0_10], %21 {strides = array<i32>} : memref<8x200x128xf32, #tpu.memory_space<vmem>>, vector<8x200x128xf32>,
    return
  }
  func.func @transform_0(%arg0: i32) -> (i32, i32, i32, i32) {
    %c0_i32 = arith.constant 0 : i32
    %c0_i32_0 = arith.constant 0 : i32
    %c0_i32_1 = arith.constant 0 : i32
    %c0_i32_2 = arith.constant 0 : i32
    return %arg0, %c0_i32, %c0_i32_0, %c0_i32_1 : i32, i32, i32, i32
  }
  func.func @transform_1(%arg0: i32) -> (i32, i32) {
    %c0_i32 = arith.constant 0 : i32
    %c0_i32_0 = arith.constant 0 : i32
    %c0_i32_1 = arith.constant 0 : i32
    return %c0_i32, %c0_i32_0 : i32, i32
  }
  func.func @transform_2(%arg0: i32) -> (i32, i32) {
    %c0_i32 = arith.constant 0 : i32
    %c0_i32_0 = arith.constant 0 : i32
    %c0_i32_1 = arith.constant 0 : i32
    return %c0_i32, %c0_i32_0 : i32, i32
  }
  func.func @transform_3(%arg0: i32) -> (i32, i32, i32) {
    %c0_i32 = arith.constant 0 : i32
    %c0_i32_0 = arith.constant 0 : i32
    %c0_i32_1 = arith.constant 0 : i32
    return %arg0, %c0_i32, %c0_i32_0 : i32, i32, i32
  }
}

module attributes {stable_mosaic.version = 11 : i64} {
  func.func @_conv_pool_relu_kernel(%arg0: i32, %arg1: memref<8x4x32x152xf32, #tpu.memory_space<vmem>>, %arg2: memref<152x128xf32, #tpu.memory_space<vmem>>, %arg3: memref<1x128xf32, #tpu.memory_space<vmem>>, %arg4: memref<8x32x128xf32, #tpu.memory_space<vmem>>) attributes {dimension_semantics = [#tpu.dimension_semantics<parallel>], iteration_bounds = array<i64: 1>, scalar_prefetch = 0 : i64, scratch_operands = 0 : i64, tpu.core_type = #tpu.core_type<tc>, window_params = [{transform_indices = @transform_0, window_bounds = array<i64: 8, 4, 32, 152>}, {pipeline_mode = #tpu.pipeline_mode<synchronous>, transform_indices = @transform_1, window_bounds = array<i64: 152, 128>}, {pipeline_mode = #tpu.pipeline_mode<synchronous>, transform_indices = @transform_2, window_bounds = array<i64: 1, 128>}, {transform_indices = @transform_3, window_bounds = array<i64: 8, 32, 128>}]} {
    %c0 = arith.constant 0 : index
    %c0_0 = arith.constant 0 : index
    %c0_1 = arith.constant 0 : index
    %c0_2 = arith.constant 0 : index
    %0 = vector.load %arg1[%c0, %c0_0, %c0_1, %c0_2] : memref<8x4x32x152xf32, #tpu.memory_space<vmem>>, vector<8x4x32x152xf32>
    %1 = vector.shape_cast %0 : vector<8x4x32x152xf32> to vector<1024x152xf32>
    %c0_3 = arith.constant 0 : index
    %c0_4 = arith.constant 0 : index
    %2 = vector.load %arg2[%c0_3, %c0_4] : memref<152x128xf32, #tpu.memory_space<vmem>>, vector<152x128xf32>
    %cst = arith.constant dense<0.000000e+00> : vector<1024x128xf32>
    %3 = tpu.matmul %1, %2, %cst {dimension_numbers = #tpu.dot_dimension_numbers<[1], [0], [0], [1], [0, 0, 1, 1], [], []>} : vector<1024x152xf32>, vector<152x128xf32>, vector<1024x128xf32> -> vector<1024x128xf32>
    %4 = vector.shape_cast %3 : vector<1024x128xf32> to vector<8x4x32x128xf32>
    %5 = vector.extract_strided_slice %4 {offsets = [0, 0, 0, 0], sizes = [8, 1, 32, 128], strides = [1, 1, 1, 1]} : vector<8x4x32x128xf32> to vector<8x1x32x128xf32>
    %6 = vector.shape_cast %5 : vector<8x1x32x128xf32> to vector<8x32x128xf32>
    %7 = vector.extract_strided_slice %4 {offsets = [0, 1, 0, 0], sizes = [8, 1, 32, 128], strides = [1, 1, 1, 1]} : vector<8x4x32x128xf32> to vector<8x1x32x128xf32>
    %8 = vector.shape_cast %7 : vector<8x1x32x128xf32> to vector<8x32x128xf32>
    %9 = arith.maximumf %6, %8 : vector<8x32x128xf32>
    %10 = vector.extract_strided_slice %4 {offsets = [0, 2, 0, 0], sizes = [8, 1, 32, 128], strides = [1, 1, 1, 1]} : vector<8x4x32x128xf32> to vector<8x1x32x128xf32>
    %11 = vector.shape_cast %10 : vector<8x1x32x128xf32> to vector<8x32x128xf32>
    %12 = vector.extract_strided_slice %4 {offsets = [0, 3, 0, 0], sizes = [8, 1, 32, 128], strides = [1, 1, 1, 1]} : vector<8x4x32x128xf32> to vector<8x1x32x128xf32>
    %13 = vector.shape_cast %12 : vector<8x1x32x128xf32> to vector<8x32x128xf32>
    %14 = arith.maximumf %11, %13 : vector<8x32x128xf32>
    %15 = arith.maximumf %9, %14 : vector<8x32x128xf32>
    %c0_5 = arith.constant 0 : index
    %c0_6 = arith.constant 0 : index
    %16 = vector.load %arg3[%c0_5, %c0_6] : memref<1x128xf32, #tpu.memory_space<vmem>>, vector<1x128xf32>
    %17 = vector.shape_cast %16 : vector<1x128xf32> to vector<1x1x128xf32>
    %18 = vector.broadcast %17 : vector<1x1x128xf32> to vector<8x32x128xf32>
    %19 = arith.addf %15, %18 : vector<8x32x128xf32>
    %cst_7 = arith.constant 0.000000e+00 : f32
    %20 = vector.broadcast %cst_7 : f32 to vector<8x32x128xf32>
    %21 = arith.maximumf %19, %20 : vector<8x32x128xf32>
    %c0_8 = arith.constant 0 : index
    %c0_9 = arith.constant 0 : index
    %c0_10 = arith.constant 0 : index
    %22 = vector.load %arg4[%c0_8, %c0_9, %c0_10] : memref<8x32x128xf32, #tpu.memory_space<vmem>>, vector<8x32x128xf32>
    tpu.vector_store %arg4[%c0_8, %c0_9, %c0_10], %21 {strides = array<i32>} : memref<8x32x128xf32, #tpu.memory_space<vmem>>, vector<8x32x128xf32>,
    return
  }
  func.func @transform_0(%arg0: i32) -> (i32, i32, i32, i32) {
    %c0_i32 = arith.constant 0 : i32
    %c0_i32_0 = arith.constant 0 : i32
    %c0_i32_1 = arith.constant 0 : i32
    %c0_i32_2 = arith.constant 0 : i32
    return %arg0, %c0_i32, %c0_i32_0, %c0_i32_1 : i32, i32, i32, i32
  }
  func.func @transform_1(%arg0: i32) -> (i32, i32) {
    %c0_i32 = arith.constant 0 : i32
    %c0_i32_0 = arith.constant 0 : i32
    %c0_i32_1 = arith.constant 0 : i32
    return %c0_i32, %c0_i32_0 : i32, i32
  }
  func.func @transform_2(%arg0: i32) -> (i32, i32) {
    %c0_i32 = arith.constant 0 : i32
    %c0_i32_0 = arith.constant 0 : i32
    %c0_i32_1 = arith.constant 0 : i32
    return %c0_i32, %c0_i32_0 : i32, i32
  }
  func.func @transform_3(%arg0: i32) -> (i32, i32, i32) {
    %c0_i32 = arith.constant 0 : i32
    %c0_i32_0 = arith.constant 0 : i32
    %c0_i32_1 = arith.constant 0 : i32
    return %arg0, %c0_i32, %c0_i32_0 : i32, i32, i32
  }
}

module attributes {stable_mosaic.version = 11 : i64} {
  func.func @_fc_fused_kernel(%arg0: i32, %arg1: memref<8x400xf32, #tpu.memory_space<vmem>>, %arg2: memref<400x256xf32, #tpu.memory_space<vmem>>, %arg3: memref<1x256xf32, #tpu.memory_space<vmem>>, %arg4: memref<256x128xf32, #tpu.memory_space<vmem>>, %arg5: memref<1x128xf32, #tpu.memory_space<vmem>>, %arg6: memref<8x128xf32, #tpu.memory_space<vmem>>) attributes {dimension_semantics = [#tpu.dimension_semantics<parallel>], iteration_bounds = array<i64: 1>, scalar_prefetch = 0 : i64, scratch_operands = 0 : i64, tpu.core_type = #tpu.core_type<tc>, window_params = [{transform_indices = @transform_0, window_bounds = array<i64: 8, 400>}, {pipeline_mode = #tpu.pipeline_mode<synchronous>, transform_indices = @transform_1, window_bounds = array<i64: 400, 256>}, {pipeline_mode = #tpu.pipeline_mode<synchronous>, transform_indices = @transform_2, window_bounds = array<i64: 1, 256>}, {pipeline_mode = #tpu.pipeline_mode<synchronous>, transform_indices = @transform_3, window_bounds = array<i64: 256, 128>}, {pipeline_mode = #tpu.pipeline_mode<synchronous>, transform_indices = @transform_4, window_bounds = array<i64: 1, 128>}, {transform_indices = @transform_5, window_bounds = array<i64: 8, 128>}]} {
    %c0 = arith.constant 0 : index
    %c0_0 = arith.constant 0 : index
    %0 = vector.load %arg1[%c0, %c0_0] : memref<8x400xf32, #tpu.memory_space<vmem>>, vector<8x400xf32>
    %c0_1 = arith.constant 0 : index
    %c0_2 = arith.constant 0 : index
    %1 = vector.load %arg2[%c0_1, %c0_2] : memref<400x256xf32, #tpu.memory_space<vmem>>, vector<400x256xf32>
    %cst = arith.constant dense<0.000000e+00> : vector<8x256xf32>
    %2 = tpu.matmul %0, %1, %cst {dimension_numbers = #tpu.dot_dimension_numbers<[1], [0], [0], [1], [0, 0, 1, 1], [], []>} : vector<8x400xf32>, vector<400x256xf32>, vector<8x256xf32> -> vector<8x256xf32>
    %c0_3 = arith.constant 0 : index
    %c0_4 = arith.constant 0 : index
    %3 = vector.load %arg3[%c0_3, %c0_4] : memref<1x256xf32, #tpu.memory_space<vmem>>, vector<1x256xf32>
    %4 = vector.broadcast %3 : vector<1x256xf32> to vector<8x256xf32>
    %5 = arith.addf %2, %4 : vector<8x256xf32>
    %cst_5 = arith.constant 0.000000e+00 : f32
    %6 = vector.broadcast %cst_5 : f32 to vector<8x256xf32>
    %7 = arith.maximumf %5, %6 : vector<8x256xf32>
    %c0_6 = arith.constant 0 : index
    %c0_7 = arith.constant 0 : index
    %8 = vector.load %arg4[%c0_6, %c0_7] : memref<256x128xf32, #tpu.memory_space<vmem>>, vector<256x128xf32>
    %cst_8 = arith.constant dense<0.000000e+00> : vector<8x128xf32>
    %9 = tpu.matmul %7, %8, %cst_8 {dimension_numbers = #tpu.dot_dimension_numbers<[1], [0], [0], [1], [0, 0, 1, 1], [], []>} : vector<8x256xf32>, vector<256x128xf32>, vector<8x128xf32> -> vector<8x128xf32>
    %c0_9 = arith.constant 0 : index
    %c0_10 = arith.constant 0 : index
    %10 = vector.load %arg5[%c0_9, %c0_10] : memref<1x128xf32, #tpu.memory_space<vmem>>, vector<1x128xf32>
    %11 = vector.broadcast %10 : vector<1x128xf32> to vector<8x128xf32>
    %12 = arith.addf %9, %11 : vector<8x128xf32>
    %c0_11 = arith.constant 0 : index
    %c0_12 = arith.constant 0 : index
    %13 = vector.load %arg6[%c0_11, %c0_12] : memref<8x128xf32, #tpu.memory_space<vmem>>, vector<8x128xf32>
    tpu.vector_store %arg6[%c0_11, %c0_12], %12 {strides = array<i32>} : memref<8x128xf32, #tpu.memory_space<vmem>>, vector<8x128xf32>,
    return
  }
  func.func @transform_0(%arg0: i32) -> (i32, i32) {
    %c0_i32 = arith.constant 0 : i32
    %c0_i32_0 = arith.constant 0 : i32
    return %arg0, %c0_i32 : i32, i32
  }
  func.func @transform_1(%arg0: i32) -> (i32, i32) {
    %c0_i32 = arith.constant 0 : i32
    %c0_i32_0 = arith.constant 0 : i32
    %c0_i32_1 = arith.constant 0 : i32
    return %c0_i32, %c0_i32_0 : i32, i32
  }
  func.func @transform_2(%arg0: i32) -> (i32, i32) {
    %c0_i32 = arith.constant 0 : i32
    %c0_i32_0 = arith.constant 0 : i32
    %c0_i32_1 = arith.constant 0 : i32
    return %c0_i32, %c0_i32_0 : i32, i32
  }
  func.func @transform_3(%arg0: i32) -> (i32, i32) {
    %c0_i32 = arith.constant 0 : i32
    %c0_i32_0 = arith.constant 0 : i32
    %c0_i32_1 = arith.constant 0 : i32
    return %c0_i32, %c0_i32_0 : i32, i32
  }
  func.func @transform_4(%arg0: i32) -> (i32, i32) {
    %c0_i32 = arith.constant 0 : i32
    %c0_i32_0 = arith.constant 0 : i32
    %c0_i32_1 = arith.constant 0 : i32
    return %c0_i32, %c0_i32_0 : i32, i32
  }
  func.func @transform_5(%arg0: i32) -> (i32, i32) {
    %c0_i32 = arith.constant 0 : i32
    %c0_i32_0 = arith.constant 0 : i32
    return %arg0, %c0_i32 : i32, i32
  }
}

</mosaic_0001>

<llo_original>
// kernel: net_forward.3
$region0: #{net_forward.3}
  #allocation0 [shape = 'u32[]', space=smem, size = 0x4, offset = 0x4, fixed_abs, tag = 'smem constant byte address 0x4 - core index']
  #allocation1 [shape = 'u32[72,128]{1,0:T(1,128)}', space=vmem, size = 0x9000, scoped, tag = 'internal scratch']
  %s0 = inlined_call_operand.vmem [shape: f32[8,4,200,32], index: 0, kind: input, shape index: {}]
  %s1 = inlined_call_operand.vmem [shape: f32[32,128], index: 1, kind: input, shape index: {}]
  %s2 = inlined_call_operand.vmem [shape: f32[1,128], index: 2, kind: input, shape index: {}]
  %s3 = inlined_call_operand.vmem [shape: f32[8,200,128], index: 3, kind: output, shape index: {}]
  %s4 = sld [smem:[#allocation0]]
  $region22: #{net_forward.3} parent=0
    _
  %s6 = ssub.s32 1, %s4
  %s7 = scalar_select 0, %s6, %s4
  // Predicated region
  $region2: #{net_forward.3} parent=0 // pred_check
    _
  $region3: #{net_forward.3} parent=0 // pred_check_branch
    %9 = sbr.rel (0) target = $region5
  $region4: #{net_forward.3} parent=0 // pred_region
    _
  $region5: #{net_forward.3} parent=0 // pred_fallthru
    _
  // Predicated region
  $region6: #{net_forward.3} parent=0 // pred_check
    _
  $region7: #{net_forward.3} parent=0 // pred_check_branch
    %11 = sbr.rel (0) target = $region9
  $region8: #{net_forward.3} parent=0 // pred_region
    _
  $region9: #{net_forward.3} parent=0 // pred_fallthru
    _
  // Predicated region
  $region10: #{net_forward.3} parent=0 // pred_check
    _
  $region11: #{net_forward.3} parent=0 // pred_check_branch
    %13 = sbr.rel (0) target = $region13
  $region12: #{net_forward.3} parent=0 // pred_region
    _
  $region13: #{net_forward.3} parent=0 // pred_fallthru
    _
  %v14 = vld [vmem:[%s0] sm:$0xff]
  %v15 = vld [vmem:[%s0 + $0x8] sm:$0xff]
  %v16 = vld [vmem:[%s0 + $0x10] sm:$0xff]
  %v17 = vld [vmem:[%s0 + $0x18] sm:$0xff]
  %v18 = vld [vmem:[%s0 + $0x20] sm:$0xff]
  %v19 = vld [vmem:[%s0 + $0x28] sm:$0xff]
  %v20 = vld [vmem:[%s0 + $0x30] sm:$0xff]
  %v21 = vld [vmem:[%s0 + $0x38] sm:$0xff]
  %v22 = vld [vmem:[%s0 + $0x40] sm:$0xff]
  %v23 = vld [vmem:[%s0 + $0x48] sm:$0xff]
  %v24 = vld [vmem:[%s0 + $0x50] sm:$0xff]
  %v25 = vld [vmem:[%s0 + $0x58] sm:$0xff]
  %v26 = vld [vmem:[%s0 + $0x60] sm:$0xff]
  %v27 = vld [vmem:[%s0 + $0x68] sm:$0xff]
  %v28 = vld [vmem:[%s0 + $0x70] sm:$0xff]
  %v29 = vld [vmem:[%s0 + $0x78] sm:$0xff]
  %v30 = vld [vmem:[%s0 + $0x80] sm:$0xff]
  %v31 = vld [vmem:[%s0 + $0x88] sm:$0xff]
  %v32 = vld [vmem:[%s0 + $0x90] sm:$0xff]
  %v33 = vld [vmem:[%s0 + $0x98] sm:$0xff]
  %v34 = vld [vmem:[%s0 + $0xa0] sm:$0xff]
  %v35 = vld [vmem:[%s0 + $0xa8] sm:$0xff]
  %v36 = vld [vmem:[%s0 + $0xb0] sm:$0xff]
  %v37 = vld [vmem:[%s0 + $0xb8] sm:$0xff]
  %v38 = vld [vmem:[%s0 + $0xc0] sm:$0xff]
  %v39 = vld [vmem:[%s0 + $0xc8] sm:$0xff]
  %v40 = vld [vmem:[%s0 + $0xd0] sm:$0xff]
  %v41 = vld [vmem:[%s0 + $0xd8] sm:$0xff]
  %v42 = vld [vmem:[%s0 + $0xe0] sm:$0xff]
  %v43 = vld [vmem:[%s0 + $0xe8] sm:$0xff]
  %v44 = vld [vmem:[%s0 + $0xf0] sm:$0xff]
  %v45 = vld [vmem:[%s0 + $0xf8] sm:$0xff]
  %v46 = vld [vmem:[%s0 + $0x100] sm:$0xff]
  %v47 = vld [vmem:[%s0 + $0x108] sm:$0xff]
  %v48 = vld [vmem:[%s0 + $0x110] sm:$0xff]
  %v49 = vld [vmem:[%s0 + $0x118] sm:$0xff]
  %v50 = vld [vmem:[%s0 + $0x120] sm:$0xff]
  %v51 = vld [vmem:[%s0 + $0x128] sm:$0xff]
  %v52 = vld [vmem:[%s0 + $0x130] sm:$0xff]
  %v53 = vld [vmem:[%s0 + $0x138] sm:$0xff]
  %v54 = vld [vmem:[%s0 + $0x140] sm:$0xff]
  %v55 = vld [vmem:[%s0 + $0x148] sm:$0xff]
  %v56 = vld [vmem:[%s0 + $0x150] sm:$0xff]
  %v57 = vld [vmem:[%s0 + $0x158] sm:$0xff]
  %v58 = vld [vmem:[%s0 + $0x160] sm:$0xff]
  %v59 = vld [vmem:[%s0 + $0x168] sm:$0xff]
  %v60 = vld [vmem:[%s0 + $0x170] sm:$0xff]
  %v61 = vld [vmem:[%s0 + $0x178] sm:$0xff]
  %v62 = vld [vmem:[%s0 + $0x180] sm:$0xff]
  %v63 = vld [vmem:[%s0 + $0x188] sm:$0xff]
  %v64 = vld [vmem:[%s0 + $0x190] sm:$0xff]
  %v65 = vld [vmem:[%s0 + $0x198] sm:$0xff]
  %v66 = vld [vmem:[%s0 + $0x1a0] sm:$0xff]
  %v67 = vld [vmem:[%s0 + $0x1a8] sm:$0xff]
  %v68 = vld [vmem:[%s0 + $0x1b0] sm:$0xff]
  %v69 = vld [vmem:[%s0 + $0x1b8] sm:$0xff]
  %v70 = vld [vmem:[%s0 + $0x1c0] sm:$0xff]
  %v71 = vld [vmem:[%s0 + $0x1c8] sm:$0xff]
  %v72 = vld [vmem:[%s0 + $0x1d0] sm:$0xff]
  %v73 = vld [vmem:[%s0 + $0x1d8] sm:$0xff]
  %v74 = vld [vmem:[%s0 + $0x1e0] sm:$0xff]
  %v75 = vld [vmem:[%s0 + $0x1e8] sm:$0xff]
  %v76 = vld [vmem:[%s0 + $0x1f0] sm:$0xff]
  %v77 = vld [vmem:[%s0 + $0x1f8] sm:$0xff]
  %v78 = vld [vmem:[%s0 + $0x200] sm:$0xff]
  %v79 = vld [vmem:[%s0 + $0x208] sm:$0xff]
  %v80 = vld [vmem:[%s0 + $0x210] sm:$0xff]
  %v81 = vld [vmem:[%s0 + $0x218] sm:$0xff]
  %v82 = vld [vmem:[%s0 + $0x220] sm:$0xff]
  %v83 = vld [vmem:[%s0 + $0x228] sm:$0xff]
  %v84 = vld [vmem:[%s0 + $0x230] sm:$0xff]
  %v85 = vld [vmem:[%s0 + $0x238] sm:$0xff]
  %v86 = vld [vmem:[%s0 + $0x240] sm:$0xff]
  %v87 = vld [vmem:[%s0 + $0x248] sm:$0xff]
  %v88 = vld [vmem:[%s0 + $0x250] sm:$0xff]
  %v89 = vld [vmem:[%s0 + $0x258] sm:$0xff]
  %v90 = vld [vmem:[%s0 + $0x260] sm:$0xff]
  %v91 = vld [vmem:[%s0 + $0x268] sm:$0xff]
  %v92 = vld [vmem:[%s0 + $0x270] sm:$0xff]
  %v93 = vld [vmem:[%s0 + $0x278] sm:$0xff]
  %v94 = vld [vmem:[%s0 + $0x280] sm:$0xff]
  %v95 = vld [vmem:[%s0 + $0x288] sm:$0xff]
  %v96 = vld [vmem:[%s0 + $0x290] sm:$0xff]
  %v97 = vld [vmem:[%s0 + $0x298] sm:$0xff]
  %v98 = vld [vmem:[%s0 + $0x2a0] sm:$0xff]
  %v99 = vld [vmem:[%s0 + $0x2a8] sm:$0xff]
  %v100 = vld [vmem:[%s0 + $0x2b0] sm:$0xff]
  %v101 = vld [vmem:[%s0 + $0x2b8] sm:$0xff]
  %v102 = vld [vmem:[%s0 + $0x2c0] sm:$0xff]
  %v103 = vld [vmem:[%s0 + $0x2c8] sm:$0xff]
  %v104 = vld [vmem:[%s0 + $0x2d0] sm:$0xff]
  %v105 = vld [vmem:[%s0 + $0x2d8] sm:$0xff]
  %v106 = vld [vmem:[%s0 + $0x2e0] sm:$0xff]
  %v107 = vld [vmem:[%s0 + $0x2e8] sm:$0xff]
  %v108 = vld [vmem:[%s0 + $0x2f0] sm:$0xff]
  %v109 = vld [vmem:[%s0 + $0x2f8] sm:$0xff]
  %v110 = vld [vmem:[%s0 + $0x300] sm:$0xff]
  %v111 = vld [vmem:[%s0 + $0x308] sm:$0xff]
  %v112 = vld [vmem:[%s0 + $0x310] sm:$0xff]
  %v113 = vld [vmem:[%s0 + $0x318] sm:$0xff]
  %v114 = vld [vmem:[%s0 + $0x320] sm:$0xff]
  %v115 = vld [vmem:[%s0 + $0x328] sm:$0xff]
  %v116 = vld [vmem:[%s0 + $0x330] sm:$0xff]
  %v117 = vld [vmem:[%s0 + $0x338] sm:$0xff]
  %v118 = vld [vmem:[%s0 + $0x340] sm:$0xff]
  %v119 = vld [vmem:[%s0 + $0x348] sm:$0xff]
  %v120 = vld [vmem:[%s0 + $0x350] sm:$0xff]
  %v121 = vld [vmem:[%s0 + $0x358] sm:$0xff]
  %v122 = vld [vmem:[%s0 + $0x360] sm:$0xff]
  %v123 = vld [vmem:[%s0 + $0x368] sm:$0xff]
  %v124 = vld [vmem:[%s0 + $0x370] sm:$0xff]
  %v125 = vld [vmem:[%s0 + $0x378] sm:$0xff]
  %v126 = vld [vmem:[%s0 + $0x380] sm:$0xff]
  %v127 = vld [vmem:[%s0 + $0x388] sm:$0xff]
  %v128 = vld [vmem:[%s0 + $0x390] sm:$0xff]
  %v129 = vld [vmem:[%s0 + $0x398] sm:$0xff]
  %v130 = vld [vmem:[%s0 + $0x3a0] sm:$0xff]
  %v131 = vld [vmem:[%s0 + $0x3a8] sm:$0xff]
  %v132 = vld [vmem:[%s0 + $0x3b0] sm:$0xff]
  %v133 = vld [vmem:[%s0 + $0x3b8] sm:$0xff]
  %v134 = vld [vmem:[%s0 + $0x3c0] sm:$0xff]
  %v135 = vld [vmem:[%s0 + $0x3c8] sm:$0xff]
  %v136 = vld [vmem:[%s0 + $0x3d0] sm:$0xff]
  %v137 = vld [vmem:[%s0 + $0x3d8] sm:$0xff]
  %v138 = vld [vmem:[%s0 + $0x3e0] sm:$0xff]
  %v139 = vld [vmem:[%s0 + $0x3e8] sm:$0xff]
  %v140 = vld [vmem:[%s0 + $0x3f0] sm:$0xff]
  %v141 = vld [vmem:[%s0 + $0x3f8] sm:$0xff]
  %v142 = vld [vmem:[%s0 + $0x400] sm:$0xff]
  %v143 = vld [vmem:[%s0 + $0x408] sm:$0xff]
  %v144 = vld [vmem:[%s0 + $0x410] sm:$0xff]
  %v145 = vld [vmem:[%s0 + $0x418] sm:$0xff]
  %v146 = vld [vmem:[%s0 + $0x420] sm:$0xff]
  %v147 = vld [vmem:[%s0 + $0x428] sm:$0xff]
  %v148 = vld [vmem:[%s0 + $0x430] sm:$0xff]
  %v149 = vld [vmem:[%s0 + $0x438] sm:$0xff]
  %v150 = vld [vmem:[%s0 + $0x440] sm:$0xff]
  %v151 = vld [vmem:[%s0 + $0x448] sm:$0xff]
  %v152 = vld [vmem:[%s0 + $0x450] sm:$0xff]
  %v153 = vld [vmem:[%s0 + $0x458] sm:$0xff]
  %v154 = vld [vmem:[%s0 + $0x460] sm:$0xff]
  %v155 = vld [vmem:[%s0 + $0x468] sm:$0xff]
  %v156 = vld [vmem:[%s0 + $0x470] sm:$0xff]
  %v157 = vld [vmem:[%s0 + $0x478] sm:$0xff]
  %v158 = vld [vmem:[%s0 + $0x480] sm:$0xff]
  %v159 = vld [vmem:[%s0 + $0x488] sm:$0xff]
  %v160 = vld [vmem:[%s0 + $0x490] sm:$0xff]
  %v161 = vld [vmem:[%s0 + $0x498] sm:$0xff]
  %v162 = vld [vmem:[%s0 + $0x4a0] sm:$0xff]
  %v163 = vld [vmem:[%s0 + $0x4a8] sm:$0xff]
  %v164 = vld [vmem:[%s0 + $0x4b0] sm:$0xff]
  %v165 = vld [vmem:[%s0 + $0x4b8] sm:$0xff]
  %v166 = vld [vmem:[%s0 + $0x4c0] sm:$0xff]
  %v167 = vld [vmem:[%s0 + $0x4c8] sm:$0xff]
  %v168 = vld [vmem:[%s0 + $0x4d0] sm:$0xff]
  %v169 = vld [vmem:[%s0 + $0x4d8] sm:$0xff]
  %v170 = vld [vmem:[%s0 + $0x4e0] sm:$0xff]
  %v171 = vld [vmem:[%s0 + $0x4e8] sm:$0xff]
  %v172 = vld [vmem:[%s0 + $0x4f0] sm:$0xff]
  %v173 = vld [vmem:[%s0 + $0x4f8] sm:$0xff]
  %v174 = vld [vmem:[%s0 + $0x500] sm:$0xff]
  %v175 = vld [vmem:[%s0 + $0x508] sm:$0xff]
  %v176 = vld [vmem:[%s0 + $0x510] sm:$0xff]
  %v177 = vld [vmem:[%s0 + $0x518] sm:$0xff]
  %v178 = vld [vmem:[%s0 + $0x520] sm:$0xff]
  %v179 = vld [vmem:[%s0 + $0x528] sm:$0xff]
  %v180 = vld [vmem:[%s0 + $0x530] sm:$0xff]
  %v181 = vld [vmem:[%s0 + $0x538] sm:$0xff]
  %v182 = vld [vmem:[%s0 + $0x540] sm:$0xff]
  %v183 = vld [vmem:[%s0 + $0x548] sm:$0xff]
  %v184 = vld [vmem:[%s0 + $0x550] sm:$0xff]
  %v185 = vld [vmem:[%s0 + $0x558] sm:$0xff]
  %v186 = vld [vmem:[%s0 + $0x560] sm:$0xff]
  %v187 = vld [vmem:[%s0 + $0x568] sm:$0xff]
  %v188 = vld [vmem:[%s0 + $0x570] sm:$0xff]
  %v189 = vld [vmem:[%s0 + $0x578] sm:$0xff]
  %v190 = vld [vmem:[%s0 + $0x580] sm:$0xff]
  %v191 = vld [vmem:[%s0 + $0x588] sm:$0xff]
  %v192 = vld [vmem:[%s0 + $0x590] sm:$0xff]
  %v193 = vld [vmem:[%s0 + $0x598] sm:$0xff]
  %v194 = vld [vmem:[%s0 + $0x5a0] sm:$0xff]
  %v195 = vld [vmem:[%s0 + $0x5a8] sm:$0xff]
  %v196 = vld [vmem:[%s0 + $0x5b0] sm:$0xff]
  %v197 = vld [vmem:[%s0 + $0x5b8] sm:$0xff]
  %v198 = vld [vmem:[%s0 + $0x5c0] sm:$0xff]
  %v199 = vld [vmem:[%s0 + $0x5c8] sm:$0xff]
  %v200 = vld [vmem:[%s0 + $0x5d0] sm:$0xff]
  %v201 = vld [vmem:[%s0 + $0x5d8] sm:$0xff]
  %v202 = vld [vmem:[%s0 + $0x5e0] sm:$0xff]
  %v203 = vld [vmem:[%s0 + $0x5e8] sm:$0xff]
  %v204 = vld [vmem:[%s0 + $0x5f0] sm:$0xff]
  %v205 = vld [vmem:[%s0 + $0x5f8] sm:$0xff]
  %v206 = vld [vmem:[%s0 + $0x600] sm:$0xff]
  %v207 = vld [vmem:[%s0 + $0x608] sm:$0xff]
  %v208 = vld [vmem:[%s0 + $0x610] sm:$0xff]
  %v209 = vld [vmem:[%s0 + $0x618] sm:$0xff]
  %v210 = vld [vmem:[%s0 + $0x620] sm:$0xff]
  %v211 = vld [vmem:[%s0 + $0x628] sm:$0xff]
  %v212 = vld [vmem:[%s0 + $0x630] sm:$0xff]
  %v213 = vld [vmem:[%s0 + $0x638] sm:$0xff]
  %v214 = vld [vmem:[%s0 + $0x640] sm:$0xff]
  %v215 = vld [vmem:[%s0 + $0x648] sm:$0xff]
  %v216 = vld [vmem:[%s0 + $0x650] sm:$0xff]
  %v217 = vld [vmem:[%s0 + $0x658] sm:$0xff]
  %v218 = vld [vmem:[%s0 + $0x660] sm:$0xff]
  %v219 = vld [vmem:[%s0 + $0x668] sm:$0xff]
  %v220 = vld [vmem:[%s0 + $0x670] sm:$0xff]
  %v221 = vld [vmem:[%s0 + $0x678] sm:$0xff]
  %v222 = vld [vmem:[%s0 + $0x680] sm:$0xff]
  %v223 = vld [vmem:[%s0 + $0x688] sm:$0xff]
  %v224 = vld [vmem:[%s0 + $0x690] sm:$0xff]
  %v225 = vld [vmem:[%s0 + $0x698] sm:$0xff]
  %v226 = vld [vmem:[%s0 + $0x6a0] sm:$0xff]
  %v227 = vld [vmem:[%s0 + $0x6a8] sm:$0xff]
  %v228 = vld [vmem:[%s0 + $0x6b0] sm:$0xff]
  %v229 = vld [vmem:[%s0 + $0x6b8] sm:$0xff]
  %v230 = vld [vmem:[%s0 + $0x6c0] sm:$0xff]
  %v231 = vld [vmem:[%s0 + $0x6c8] sm:$0xff]
  %v232 = vld [vmem:[%s0 + $0x6d0] sm:$0xff]
  %v233 = vld [vmem:[%s0 + $0x6d8] sm:$0xff]
  %v234 = vld [vmem:[%s0 + $0x6e0] sm:$0xff]
  %v235 = vld [vmem:[%s0 + $0x6e8] sm:$0xff]
  %v236 = vld [vmem:[%s0 + $0x6f0] sm:$0xff]
  %v237 = vld [vmem:[%s0 + $0x6f8] sm:$0xff]
  %v238 = vld [vmem:[%s0 + $0x700] sm:$0xff]
  %v239 = vld [vmem:[%s0 + $0x708] sm:$0xff]
  %v240 = vld [vmem:[%s0 + $0x710] sm:$0xff]
  %v241 = vld [vmem:[%s0 + $0x718] sm:$0xff]
  %v242 = vld [vmem:[%s0 + $0x720] sm:$0xff]
  %v243 = vld [vmem:[%s0 + $0x728] sm:$0xff]
  %v244 = vld [vmem:[%s0 + $0x730] sm:$0xff]
  %v245 = vld [vmem:[%s0 + $0x738] sm:$0xff]
  %v246 = vld [vmem:[%s0 + $0x740] sm:$0xff]
  %v247 = vld [vmem:[%s0 + $0x748] sm:$0xff]
  %v248 = vld [vmem:[%s0 + $0x750] sm:$0xff]
  %v249 = vld [vmem:[%s0 + $0x758] sm:$0xff]
  %v250 = vld [vmem:[%s0 + $0x760] sm:$0xff]
  %v251 = vld [vmem:[%s0 + $0x768] sm:$0xff]
  %v252 = vld [vmem:[%s0 + $0x770] sm:$0xff]
  %v253 = vld [vmem:[%s0 + $0x778] sm:$0xff]
  %v254 = vld [vmem:[%s0 + $0x780] sm:$0xff]
  %v255 = vld [vmem:[%s0 + $0x788] sm:$0xff]
  %v256 = vld [vmem:[%s0 + $0x790] sm:$0xff]
  %v257 = vld [vmem:[%s0 + $0x798] sm:$0xff]
  %v258 = vld [vmem:[%s0 + $0x7a0] sm:$0xff]
  %v259 = vld [vmem:[%s0 + $0x7a8] sm:$0xff]
  %v260 = vld [vmem:[%s0 + $0x7b0] sm:$0xff]
  %v261 = vld [vmem:[%s0 + $0x7b8] sm:$0xff]
  %v262 = vld [vmem:[%s0 + $0x7c0] sm:$0xff]
  %v263 = vld [vmem:[%s0 + $0x7c8] sm:$0xff]
  %v264 = vld [vmem:[%s0 + $0x7d0] sm:$0xff]
  %v265 = vld [vmem:[%s0 + $0x7d8] sm:$0xff]
  %v266 = vld [vmem:[%s0 + $0x7e0] sm:$0xff]
  %v267 = vld [vmem:[%s0 + $0x7e8] sm:$0xff]
  %v268 = vld [vmem:[%s0 + $0x7f0] sm:$0xff]
  %v269 = vld [vmem:[%s0 + $0x7f8] sm:$0xff]
  %v270 = vld [vmem:[%s0 + $0x800] sm:$0xff]
  %v271 = vld [vmem:[%s0 + $0x808] sm:$0xff]
  %v272 = vld [vmem:[%s0 + $0x810] sm:$0xff]
  %v273 = vld [vmem:[%s0 + $0x818] sm:$0xff]
  %v274 = vld [vmem:[%s0 + $0x820] sm:$0xff]
  %v275 = vld [vmem:[%s0 + $0x828] sm:$0xff]
  %v276 = vld [vmem:[%s0 + $0x830] sm:$0xff]
  %v277 = vld [vmem:[%s0 + $0x838] sm:$0xff]
  %v278 = vld [vmem:[%s0 + $0x840] sm:$0xff]
  %v279 = vld [vmem:[%s0 + $0x848] sm:$0xff]
  %v280 = vld [vmem:[%s0 + $0x850] sm:$0xff]
  %v281 = vld [vmem:[%s0 + $0x858] sm:$0xff]
  %v282 = vld [vmem:[%s0 + $0x860] sm:$0xff]
  %v283 = vld [vmem:[%s0 + $0x868] sm:$0xff]
  %v284 = vld [vmem:[%s0 + $0x870] sm:$0xff]
  %v285 = vld [vmem:[%s0 + $0x878] sm:$0xff]
  %v286 = vld [vmem:[%s0 + $0x880] sm:$0xff]
  %v287 = vld [vmem:[%s0 + $0x888] sm:$0xff]
  %v288 = vld [vmem:[%s0 + $0x890] sm:$0xff]
  %v289 = vld [vmem:[%s0 + $0x898] sm:$0xff]
  %v290 = vld [vmem:[%s0 + $0x8a0] sm:$0xff]
  %v291 = vld [vmem:[%s0 + $0x8a8] sm:$0xff]
  %v292 = vld [vmem:[%s0 + $0x8b0] sm:$0xff]
  %v293 = vld [vmem:[%s0 + $0x8b8] sm:$0xff]
  %v294 = vld [vmem:[%s0 + $0x8c0] sm:$0xff]
  %v295 = vld [vmem:[%s0 + $0x8c8] sm:$0xff]
  %v296 = vld [vmem:[%s0 + $0x8d0] sm:$0xff]
  %v297 = vld [vmem:[%s0 + $0x8d8] sm:$0xff]
  %v298 = vld [vmem:[%s0 + $0x8e0] sm:$0xff]
  %v299 = vld [vmem:[%s0 + $0x8e8] sm:$0xff]
  %v300 = vld [vmem:[%s0 + $0x8f0] sm:$0xff]
  %v301 = vld [vmem:[%s0 + $0x8f8] sm:$0xff]
  %v302 = vld [vmem:[%s0 + $0x900] sm:$0xff]
  %v303 = vld [vmem:[%s0 + $0x908] sm:$0xff]
  %v304 = vld [vmem:[%s0 + $0x910] sm:$0xff]
  %v305 = vld [vmem:[%s0 + $0x918] sm:$0xff]
  %v306 = vld [vmem:[%s0 + $0x920] sm:$0xff]
  %v307 = vld [vmem:[%s0 + $0x928] sm:$0xff]
  %v308 = vld [vmem:[%s0 + $0x930] sm:$0xff]
  %v309 = vld [vmem:[%s0 + $0x938] sm:$0xff]
  %v310 = vld [vmem:[%s0 + $0x940] sm:$0xff]
  %v311 = vld [vmem:[%s0 + $0x948] sm:$0xff]
  %v312 = vld [vmem:[%s0 + $0x950] sm:$0xff]
  %v313 = vld [vmem:[%s0 + $0x958] sm:$0xff]
  %v314 = vld [vmem:[%s0 + $0x960] sm:$0xff]
  %v315 = vld [vmem:[%s0 + $0x968] sm:$0xff]
  %v316 = vld [vmem:[%s0 + $0x970] sm:$0xff]
  %v317 = vld [vmem:[%s0 + $0x978] sm:$0xff]
  %v318 = vld [vmem:[%s0 + $0x980] sm:$0xff]
  %v319 = vld [vmem:[%s0 + $0x988] sm:$0xff]
  %v320 = vld [vmem:[%s0 + $0x990] sm:$0xff]
  %v321 = vld [vmem:[%s0 + $0x998] sm:$0xff]
  %v322 = vld [vmem:[%s0 + $0x9a0] sm:$0xff]
  %v323 = vld [vmem:[%s0 + $0x9a8] sm:$0xff]
  %v324 = vld [vmem:[%s0 + $0x9b0] sm:$0xff]
  %v325 = vld [vmem:[%s0 + $0x9b8] sm:$0xff]
  %v326 = vld [vmem:[%s0 + $0x9c0] sm:$0xff]
  %v327 = vld [vmem:[%s0 + $0x9c8] sm:$0xff]
  %v328 = vld [vmem:[%s0 + $0x9d0] sm:$0xff]
  %v329 = vld [vmem:[%s0 + $0x9d8] sm:$0xff]
  %v330 = vld [vmem:[%s0 + $0x9e0] sm:$0xff]
  %v331 = vld [vmem:[%s0 + $0x9e8] sm:$0xff]
  %v332 = vld [vmem:[%s0 + $0x9f0] sm:$0xff]
  %v333 = vld [vmem:[%s0 + $0x9f8] sm:$0xff]
  %v334 = vld [vmem:[%s0 + $0xa00] sm:$0xff]
  %v335 = vld [vmem:[%s0 + $0xa08] sm:$0xff]
  %v336 = vld [vmem:[%s0 + $0xa10] sm:$0xff]
  %v337 = vld [vmem:[%s0 + $0xa18] sm:$0xff]
  %v338 = vld [vmem:[%s0 + $0xa20] sm:$0xff]
  %v339 = vld [vmem:[%s0 + $0xa28] sm:$0xff]
  %v340 = vld [vmem:[%s0 + $0xa30] sm:$0xff]
  %v341 = vld [vmem:[%s0 + $0xa38] sm:$0xff]
  %v342 = vld [vmem:[%s0 + $0xa40] sm:$0xff]
  %v343 = vld [vmem:[%s0 + $0xa48] sm:$0xff]
  %v344 = vld [vmem:[%s0 + $0xa50] sm:$0xff]
  %v345 = vld [vmem:[%s0 + $0xa58] sm:$0xff]
  %v346 = vld [vmem:[%s0 + $0xa60] sm:$0xff]
  %v347 = vld [vmem:[%s0 + $0xa68] sm:$0xff]
  %v348 = vld [vmem:[%s0 + $0xa70] sm:$0xff]
  %v349 = vld [vmem:[%s0 + $0xa78] sm:$0xff]
  %v350 = vld [vmem:[%s0 + $0xa80] sm:$0xff]
  %v351 = vld [vmem:[%s0 + $0xa88] sm:$0xff]
  %v352 = vld [vmem:[%s0 + $0xa90] sm:$0xff]
  %v353 = vld [vmem:[%s0 + $0xa98] sm:$0xff]
  %v354 = vld [vmem:[%s0 + $0xaa0] sm:$0xff]
  %v355 = vld [vmem:[%s0 + $0xaa8] sm:$0xff]
  %v356 = vld [vmem:[%s0 + $0xab0] sm:$0xff]
  %v357 = vld [vmem:[%s0 + $0xab8] sm:$0xff]
  %v358 = vld [vmem:[%s0 + $0xac0] sm:$0xff]
  %v359 = vld [vmem:[%s0 + $0xac8] sm:$0xff]
  %v360 = vld [vmem:[%s0 + $0xad0] sm:$0xff]
  %v361 = vld [vmem:[%s0 + $0xad8] sm:$0xff]
  %v362 = vld [vmem:[%s0 + $0xae0] sm:$0xff]
  %v363 = vld [vmem:[%s0 + $0xae8] sm:$0xff]
  %v364 = vld [vmem:[%s0 + $0xaf0] sm:$0xff]
  %v365 = vld [vmem:[%s0 + $0xaf8] sm:$0xff]
  %v366 = vld [vmem:[%s0 + $0xb00] sm:$0xff]
  %v367 = vld [vmem:[%s0 + $0xb08] sm:$0xff]
  %v368 = vld [vmem:[%s0 + $0xb10] sm:$0xff]
  %v369 = vld [vmem:[%s0 + $0xb18] sm:$0xff]
  %v370 = vld [vmem:[%s0 + $0xb20] sm:$0xff]
  %v371 = vld [vmem:[%s0 + $0xb28] sm:$0xff]
  %v372 = vld [vmem:[%s0 + $0xb30] sm:$0xff]
  %v373 = vld [vmem:[%s0 + $0xb38] sm:$0xff]
  %v374 = vld [vmem:[%s0 + $0xb40] sm:$0xff]
  %v375 = vld [vmem:[%s0 + $0xb48] sm:$0xff]
  %v376 = vld [vmem:[%s0 + $0xb50] sm:$0xff]
  %v377 = vld [vmem:[%s0 + $0xb58] sm:$0xff]
  %v378 = vld [vmem:[%s0 + $0xb60] sm:$0xff]
  %v379 = vld [vmem:[%s0 + $0xb68] sm:$0xff]
  %v380 = vld [vmem:[%s0 + $0xb70] sm:$0xff]
  %v381 = vld [vmem:[%s0 + $0xb78] sm:$0xff]
  %v382 = vld [vmem:[%s0 + $0xb80] sm:$0xff]
  %v383 = vld [vmem:[%s0 + $0xb88] sm:$0xff]
  %v384 = vld [vmem:[%s0 + $0xb90] sm:$0xff]
  %v385 = vld [vmem:[%s0 + $0xb98] sm:$0xff]
  %v386 = vld [vmem:[%s0 + $0xba0] sm:$0xff]
  %v387 = vld [vmem:[%s0 + $0xba8] sm:$0xff]
  %v388 = vld [vmem:[%s0 + $0xbb0] sm:$0xff]
  %v389 = vld [vmem:[%s0 + $0xbb8] sm:$0xff]
  %v390 = vld [vmem:[%s0 + $0xbc0] sm:$0xff]
  %v391 = vld [vmem:[%s0 + $0xbc8] sm:$0xff]
  %v392 = vld [vmem:[%s0 + $0xbd0] sm:$0xff]
  %v393 = vld [vmem:[%s0 + $0xbd8] sm:$0xff]
  %v394 = vld [vmem:[%s0 + $0xbe0] sm:$0xff]
  %v395 = vld [vmem:[%s0 + $0xbe8] sm:$0xff]
  %v396 = vld [vmem:[%s0 + $0xbf0] sm:$0xff]
  %v397 = vld [vmem:[%s0 + $0xbf8] sm:$0xff]
  %v398 = vld [vmem:[%s0 + $0xc00] sm:$0xff]
  %v399 = vld [vmem:[%s0 + $0xc08] sm:$0xff]
  %v400 = vld [vmem:[%s0 + $0xc10] sm:$0xff]
  %v401 = vld [vmem:[%s0 + $0xc18] sm:$0xff]
  %v402 = vld [vmem:[%s0 + $0xc20] sm:$0xff]
  %v403 = vld [vmem:[%s0 + $0xc28] sm:$0xff]
  %v404 = vld [vmem:[%s0 + $0xc30] sm:$0xff]
  %v405 = vld [vmem:[%s0 + $0xc38] sm:$0xff]
  %v406 = vld [vmem:[%s0 + $0xc40] sm:$0xff]
  %v407 = vld [vmem:[%s0 + $0xc48] sm:$0xff]
  %v408 = vld [vmem:[%s0 + $0xc50] sm:$0xff]
  %v409 = vld [vmem:[%s0 + $0xc58] sm:$0xff]
  %v410 = vld [vmem:[%s0 + $0xc60] sm:$0xff]
  %v411 = vld [vmem:[%s0 + $0xc68] sm:$0xff]
  %v412 = vld [vmem:[%s0 + $0xc70] sm:$0xff]
  %v413 = vld [vmem:[%s0 + $0xc78] sm:$0xff]
  %v414 = vld [vmem:[%s0 + $0xc80] sm:$0xff]
  %v415 = vld [vmem:[%s0 + $0xc88] sm:$0xff]
  %v416 = vld [vmem:[%s0 + $0xc90] sm:$0xff]
  %v417 = vld [vmem:[%s0 + $0xc98] sm:$0xff]
  %v418 = vld [vmem:[%s0 + $0xca0] sm:$0xff]
  %v419 = vld [vmem:[%s0 + $0xca8] sm:$0xff]
  %v420 = vld [vmem:[%s0 + $0xcb0] sm:$0xff]
  %v421 = vld [vmem:[%s0 + $0xcb8] sm:$0xff]
  %v422 = vld [vmem:[%s0 + $0xcc0] sm:$0xff]
  %v423 = vld [vmem:[%s0 + $0xcc8] sm:$0xff]
  %v424 = vld [vmem:[%s0 + $0xcd0] sm:$0xff]
  %v425 = vld [vmem:[%s0 + $0xcd8] sm:$0xff]
  %v426 = vld [vmem:[%s0 + $0xce0] sm:$0xff]
  %v427 = vld [vmem:[%s0 + $0xce8] sm:$0xff]
  %v428 = vld [vmem:[%s0 + $0xcf0] sm:$0xff]
  %v429 = vld [vmem:[%s0 + $0xcf8] sm:$0xff]
  %v430 = vld [vmem:[%s0 + $0xd00] sm:$0xff]
  %v431 = vld [vmem:[%s0 + $0xd08] sm:$0xff]
  %v432 = vld [vmem:[%s0 + $0xd10] sm:$0xff]
  %v433 = vld [vmem:[%s0 + $0xd18] sm:$0xff]
  %v434 = vld [vmem:[%s0 + $0xd20] sm:$0xff]
  %v435 = vld [vmem:[%s0 + $0xd28] sm:$0xff]
  %v436 = vld [vmem:[%s0 + $0xd30] sm:$0xff]
  %v437 = vld [vmem:[%s0 + $0xd38] sm:$0xff]
  %v438 = vld [vmem:[%s0 + $0xd40] sm:$0xff]
  %v439 = vld [vmem:[%s0 + $0xd48] sm:$0xff]
  %v440 = vld [vmem:[%s0 + $0xd50] sm:$0xff]
  %v441 = vld [vmem:[%s0 + $0xd58] sm:$0xff]
  %v442 = vld [vmem:[%s0 + $0xd60] sm:$0xff]
  %v443 = vld [vmem:[%s0 + $0xd68] sm:$0xff]
  %v444 = vld [vmem:[%s0 + $0xd70] sm:$0xff]
  %v445 = vld [vmem:[%s0 + $0xd78] sm:$0xff]
  %v446 = vld [vmem:[%s0 + $0xd80] sm:$0xff]
  %v447 = vld [vmem:[%s0 + $0xd88] sm:$0xff]
  %v448 = vld [vmem:[%s0 + $0xd90] sm:$0xff]
  %v449 = vld [vmem:[%s0 + $0xd98] sm:$0xff]
  %v450 = vld [vmem:[%s0 + $0xda0] sm:$0xff]
  %v451 = vld [vmem:[%s0 + $0xda8] sm:$0xff]
  %v452 = vld [vmem:[%s0 + $0xdb0] sm:$0xff]
  %v453 = vld [vmem:[%s0 + $0xdb8] sm:$0xff]
  %v454 = vld [vmem:[%s0 + $0xdc0] sm:$0xff]
  %v455 = vld [vmem:[%s0 + $0xdc8] sm:$0xff]
  %v456 = vld [vmem:[%s0 + $0xdd0] sm:$0xff]
  %v457 = vld [vmem:[%s0 + $0xdd8] sm:$0xff]
  %v458 = vld [vmem:[%s0 + $0xde0] sm:$0xff]
  %v459 = vld [vmem:[%s0 + $0xde8] sm:$0xff]
  %v460 = vld [vmem:[%s0 + $0xdf0] sm:$0xff]
  %v461 = vld [vmem:[%s0 + $0xdf8] sm:$0xff]
  %v462 = vld [vmem:[%s0 + $0xe00] sm:$0xff]
  %v463 = vld [vmem:[%s0 + $0xe08] sm:$0xff]
  %v464 = vld [vmem:[%s0 + $0xe10] sm:$0xff]
  %v465 = vld [vmem:[%s0 + $0xe18] sm:$0xff]
  %v466 = vld [vmem:[%s0 + $0xe20] sm:$0xff]
  %v467 = vld [vmem:[%s0 + $0xe28] sm:$0xff]
  %v468 = vld [vmem:[%s0 + $0xe30] sm:$0xff]
  %v469 = vld [vmem:[%s0 + $0xe38] sm:$0xff]
  %v470 = vld [vmem:[%s0 + $0xe40] sm:$0xff]
  %v471 = vld [vmem:[%s0 + $0xe48] sm:$0xff]
  %v472 = vld [vmem:[%s0 + $0xe50] sm:$0xff]
  %v473 = vld [vmem:[%s0 + $0xe58] sm:$0xff]
  %v474 = vld [vmem:[%s0 + $0xe60] sm:$0xff]
  %v475 = vld [vmem:[%s0 + $0xe68] sm:$0xff]
  %v476 = vld [vmem:[%s0 + $0xe70] sm:$0xff]
  %v477 = vld [vmem:[%s0 + $0xe78] sm:$0xff]
  %v478 = vld [vmem:[%s0 + $0xe80] sm:$0xff]
  %v479 = vld [vmem:[%s0 + $0xe88] sm:$0xff]
  %v480 = vld [vmem:[%s0 + $0xe90] sm:$0xff]
  %v481 = vld [vmem:[%s0 + $0xe98] sm:$0xff]
  %v482 = vld [vmem:[%s0 + $0xea0] sm:$0xff]
  %v483 = vld [vmem:[%s0 + $0xea8] sm:$0xff]
  %v484 = vld [vmem:[%s0 + $0xeb0] sm:$0xff]
  %v485 = vld [vmem:[%s0 + $0xeb8] sm:$0xff]
  %v486 = vld [vmem:[%s0 + $0xec0] sm:$0xff]
  %v487 = vld [vmem:[%s0 + $0xec8] sm:$0xff]
  %v488 = vld [vmem:[%s0 + $0xed0] sm:$0xff]
  %v489 = vld [vmem:[%s0 + $0xed8] sm:$0xff]
  %v490 = vld [vmem:[%s0 + $0xee0] sm:$0xff]
  %v491 = vld [vmem:[%s0 + $0xee8] sm:$0xff]
  %v492 = vld [vmem:[%s0 + $0xef0] sm:$0xff]
  %v493 = vld [vmem:[%s0 + $0xef8] sm:$0xff]
  %v494 = vld [vmem:[%s0 + $0xf00] sm:$0xff]
  %v495 = vld [vmem:[%s0 + $0xf08] sm:$0xff]
  %v496 = vld [vmem:[%s0 + $0xf10] sm:$0xff]
  %v497 = vld [vmem:[%s0 + $0xf18] sm:$0xff]
  %v498 = vld [vmem:[%s0 + $0xf20] sm:$0xff]
  %v499 = vld [vmem:[%s0 + $0xf28] sm:$0xff]
  %v500 = vld [vmem:[%s0 + $0xf30] sm:$0xff]
  %v501 = vld [vmem:[%s0 + $0xf38] sm:$0xff]
  %v502 = vld [vmem:[%s0 + $0xf40] sm:$0xff]
  %v503 = vld [vmem:[%s0 + $0xf48] sm:$0xff]
  %v504 = vld [vmem:[%s0 + $0xf50] sm:$0xff]
  %v505 = vld [vmem:[%s0 + $0xf58] sm:$0xff]
  %v506 = vld [vmem:[%s0 + $0xf60] sm:$0xff]
  %v507 = vld [vmem:[%s0 + $0xf68] sm:$0xff]
  %v508 = vld [vmem:[%s0 + $0xf70] sm:$0xff]
  %v509 = vld [vmem:[%s0 + $0xf78] sm:$0xff]
  %v510 = vld [vmem:[%s0 + $0xf80] sm:$0xff]
  %v511 = vld [vmem:[%s0 + $0xf88] sm:$0xff]
  %v512 = vld [vmem:[%s0 + $0xf90] sm:$0xff]
  %v513 = vld [vmem:[%s0 + $0xf98] sm:$0xff]
  %v514 = vld [vmem:[%s0 + $0xfa0] sm:$0xff]
  %v515 = vld [vmem:[%s0 + $0xfa8] sm:$0xff]
  %v516 = vld [vmem:[%s0 + $0xfb0] sm:$0xff]
  %v517 = vld [vmem:[%s0 + $0xfb8] sm:$0xff]
  %v518 = vld [vmem:[%s0 + $0xfc0] sm:$0xff]
  %v519 = vld [vmem:[%s0 + $0xfc8] sm:$0xff]
  %v520 = vld [vmem:[%s0 + $0xfd0] sm:$0xff]
  %v521 = vld [vmem:[%s0 + $0xfd8] sm:$0xff]
  %v522 = vld [vmem:[%s0 + $0xfe0] sm:$0xff]
  %v523 = vld [vmem:[%s0 + $0xfe8] sm:$0xff]
  %v524 = vld [vmem:[%s0 + $0xff0] sm:$0xff]
  %v525 = vld [vmem:[%s0 + $0xff8] sm:$0xff]
  %v526 = vld [vmem:[%s0 + $0x1000] sm:$0xff]
  %v527 = vld [vmem:[%s0 + $0x1008] sm:$0xff]
  %v528 = vld [vmem:[%s0 + $0x1010] sm:$0xff]
  %v529 = vld [vmem:[%s0 + $0x1018] sm:$0xff]
  %v530 = vld [vmem:[%s0 + $0x1020] sm:$0xff]
  %v531 = vld [vmem:[%s0 + $0x1028] sm:$0xff]
  %v532 = vld [vmem:[%s0 + $0x1030] sm:$0xff]
  %v533 = vld [vmem:[%s0 + $0x1038] sm:$0xff]
  %v534 = vld [vmem:[%s0 + $0x1040] sm:$0xff]
  %v535 = vld [vmem:[%s0 + $0x1048] sm:$0xff]
  %v536 = vld [vmem:[%s0 + $0x1050] sm:$0xff]
  %v537 = vld [vmem:[%s0 + $0x1058] sm:$0xff]
  %v538 = vld [vmem:[%s0 + $0x1060] sm:$0xff]
  %v539 = vld [vmem:[%s0 + $0x1068] sm:$0xff]
  %v540 = vld [vmem:[%s0 + $0x1070] sm:$0xff]
  %v541 = vld [vmem:[%s0 + $0x1078] sm:$0xff]
  %v542 = vld [vmem:[%s0 + $0x1080] sm:$0xff]
  %v543 = vld [vmem:[%s0 + $0x1088] sm:$0xff]
  %v544 = vld [vmem:[%s0 + $0x1090] sm:$0xff]
  %v545 = vld [vmem:[%s0 + $0x1098] sm:$0xff]
  %v546 = vld [vmem:[%s0 + $0x10a0] sm:$0xff]
  %v547 = vld [vmem:[%s0 + $0x10a8] sm:$0xff]
  %v548 = vld [vmem:[%s0 + $0x10b0] sm:$0xff]
  %v549 = vld [vmem:[%s0 + $0x10b8] sm:$0xff]
  %v550 = vld [vmem:[%s0 + $0x10c0] sm:$0xff]
  %v551 = vld [vmem:[%s0 + $0x10c8] sm:$0xff]
  %v552 = vld [vmem:[%s0 + $0x10d0] sm:$0xff]
  %v553 = vld [vmem:[%s0 + $0x10d8] sm:$0xff]
  %v554 = vld [vmem:[%s0 + $0x10e0] sm:$0xff]
  %v555 = vld [vmem:[%s0 + $0x10e8] sm:$0xff]
  %v556 = vld [vmem:[%s0 + $0x10f0] sm:$0xff]
  %v557 = vld [vmem:[%s0 + $0x10f8] sm:$0xff]
  %v558 = vld [vmem:[%s0 + $0x1100] sm:$0xff]
  %v559 = vld [vmem:[%s0 + $0x1108] sm:$0xff]
  %v560 = vld [vmem:[%s0 + $0x1110] sm:$0xff]
  %v561 = vld [vmem:[%s0 + $0x1118] sm:$0xff]
  %v562 = vld [vmem:[%s0 + $0x1120] sm:$0xff]
  %v563 = vld [vmem:[%s0 + $0x1128] sm:$0xff]
  %v564 = vld [vmem:[%s0 + $0x1130] sm:$0xff]
  %v565 = vld [vmem:[%s0 + $0x1138] sm:$0xff]
  %v566 = vld [vmem:[%s0 + $0x1140] sm:$0xff]
  %v567 = vld [vmem:[%s0 + $0x1148] sm:$0xff]
  %v568 = vld [vmem:[%s0 + $0x1150] sm:$0xff]
  %v569 = vld [vmem:[%s0 + $0x1158] sm:$0xff]
  %v570 = vld [vmem:[%s0 + $0x1160] sm:$0xff]
  %v571 = vld [vmem:[%s0 + $0x1168] sm:$0xff]
  %v572 = vld [vmem:[%s0 + $0x1170] sm:$0xff]
  %v573 = vld [vmem:[%s0 + $0x1178] sm:$0xff]
  %v574 = vld [vmem:[%s0 + $0x1180] sm:$0xff]
  %v575 = vld [vmem:[%s0 + $0x1188] sm:$0xff]
  %v576 = vld [vmem:[%s0 + $0x1190] sm:$0xff]
  %v577 = vld [vmem:[%s0 + $0x1198] sm:$0xff]
  %v578 = vld [vmem:[%s0 + $0x11a0] sm:$0xff]
  %v579 = vld [vmem:[%s0 + $0x11a8] sm:$0xff]
  %v580 = vld [vmem:[%s0 + $0x11b0] sm:$0xff]
  %v581 = vld [vmem:[%s0 + $0x11b8] sm:$0xff]
  %v582 = vld [vmem:[%s0 + $0x11c0] sm:$0xff]
  %v583 = vld [vmem:[%s0 + $0x11c8] sm:$0xff]
  %v584 = vld [vmem:[%s0 + $0x11d0] sm:$0xff]
  %v585 = vld [vmem:[%s0 + $0x11d8] sm:$0xff]
  %v586 = vld [vmem:[%s0 + $0x11e0] sm:$0xff]
  %v587 = vld [vmem:[%s0 + $0x11e8] sm:$0xff]
  %v588 = vld [vmem:[%s0 + $0x11f0] sm:$0xff]
  %v589 = vld [vmem:[%s0 + $0x11f8] sm:$0xff]
  %v590 = vld [vmem:[%s0 + $0x1200] sm:$0xff]
  %v591 = vld [vmem:[%s0 + $0x1208] sm:$0xff]
  %v592 = vld [vmem:[%s0 + $0x1210] sm:$0xff]
  %v593 = vld [vmem:[%s0 + $0x1218] sm:$0xff]
  %v594 = vld [vmem:[%s0 + $0x1220] sm:$0xff]
  %v595 = vld [vmem:[%s0 + $0x1228] sm:$0xff]
  %v596 = vld [vmem:[%s0 + $0x1230] sm:$0xff]
  %v597 = vld [vmem:[%s0 + $0x1238] sm:$0xff]
  %v598 = vld [vmem:[%s0 + $0x1240] sm:$0xff]
  %v599 = vld [vmem:[%s0 + $0x1248] sm:$0xff]
  %v600 = vld [vmem:[%s0 + $0x1250] sm:$0xff]
  %v601 = vld [vmem:[%s0 + $0x1258] sm:$0xff]
  %v602 = vld [vmem:[%s0 + $0x1260] sm:$0xff]
  %v603 = vld [vmem:[%s0 + $0x1268] sm:$0xff]
  %v604 = vld [vmem:[%s0 + $0x1270] sm:$0xff]
  %v605 = vld [vmem:[%s0 + $0x1278] sm:$0xff]
  %v606 = vld [vmem:[%s0 + $0x1280] sm:$0xff]
  %v607 = vld [vmem:[%s0 + $0x1288] sm:$0xff]
  %v608 = vld [vmem:[%s0 + $0x1290] sm:$0xff]
  %v609 = vld [vmem:[%s0 + $0x1298] sm:$0xff]
  %v610 = vld [vmem:[%s0 + $0x12a0] sm:$0xff]
  %v611 = vld [vmem:[%s0 + $0x12a8] sm:$0xff]
  %v612 = vld [vmem:[%s0 + $0x12b0] sm:$0xff]
  %v613 = vld [vmem:[%s0 + $0x12b8] sm:$0xff]
  %v614 = vld [vmem:[%s0 + $0x12c0] sm:$0xff]
  %v615 = vld [vmem:[%s0 + $0x12c8] sm:$0xff]
  %v616 = vld [vmem:[%s0 + $0x12d0] sm:$0xff]
  %v617 = vld [vmem:[%s0 + $0x12d8] sm:$0xff]
  %v618 = vld [vmem:[%s0 + $0x12e0] sm:$0xff]
  %v619 = vld [vmem:[%s0 + $0x12e8] sm:$0xff]
  %v620 = vld [vmem:[%s0 + $0x12f0] sm:$0xff]
  %v621 = vld [vmem:[%s0 + $0x12f8] sm:$0xff]
  %v622 = vld [vmem:[%s0 + $0x1300] sm:$0xff]
  %v623 = vld [vmem:[%s0 + $0x1308] sm:$0xff]
  %v624 = vld [vmem:[%s0 + $0x1310] sm:$0xff]
  %v625 = vld [vmem:[%s0 + $0x1318] sm:$0xff]
  %v626 = vld [vmem:[%s0 + $0x1320] sm:$0xff]
  %v627 = vld [vmem:[%s0 + $0x1328] sm:$0xff]
  %v628 = vld [vmem:[%s0 + $0x1330] sm:$0xff]
  %v629 = vld [vmem:[%s0 + $0x1338] sm:$0xff]
  %v630 = vld [vmem:[%s0 + $0x1340] sm:$0xff]
  %v631 = vld [vmem:[%s0 + $0x1348] sm:$0xff]
  %v632 = vld [vmem:[%s0 + $0x1350] sm:$0xff]
  %v633 = vld [vmem:[%s0 + $0x1358] sm:$0xff]
  %v634 = vld [vmem:[%s0 + $0x1360] sm:$0xff]
  %v635 = vld [vmem:[%s0 + $0x1368] sm:$0xff]
  %v636 = vld [vmem:[%s0 + $0x1370] sm:$0xff]
  %v637 = vld [vmem:[%s0 + $0x1378] sm:$0xff]
  %v638 = vld [vmem:[%s0 + $0x1380] sm:$0xff]
  %v639 = vld [vmem:[%s0 + $0x1388] sm:$0xff]
  %v640 = vld [vmem:[%s0 + $0x1390] sm:$0xff]
  %v641 = vld [vmem:[%s0 + $0x1398] sm:$0xff]
  %v642 = vld [vmem:[%s0 + $0x13a0] sm:$0xff]
  %v643 = vld [vmem:[%s0 + $0x13a8] sm:$0xff]
  %v644 = vld [vmem:[%s0 + $0x13b0] sm:$0xff]
  %v645 = vld [vmem:[%s0 + $0x13b8] sm:$0xff]
  %v646 = vld [vmem:[%s0 + $0x13c0] sm:$0xff]
  %v647 = vld [vmem:[%s0 + $0x13c8] sm:$0xff]
  %v648 = vld [vmem:[%s0 + $0x13d0] sm:$0xff]
  %v649 = vld [vmem:[%s0 + $0x13d8] sm:$0xff]
  %v650 = vld [vmem:[%s0 + $0x13e0] sm:$0xff]
  %v651 = vld [vmem:[%s0 + $0x13e8] sm:$0xff]
  %v652 = vld [vmem:[%s0 + $0x13f0] sm:$0xff]
  %v653 = vld [vmem:[%s0 + $0x13f8] sm:$0xff]
  %v654 = vld [vmem:[%s0 + $0x1400] sm:$0xff]
  %v655 = vld [vmem:[%s0 + $0x1408] sm:$0xff]
  %v656 = vld [vmem:[%s0 + $0x1410] sm:$0xff]
  %v657 = vld [vmem:[%s0 + $0x1418] sm:$0xff]
  %v658 = vld [vmem:[%s0 + $0x1420] sm:$0xff]
  %v659 = vld [vmem:[%s0 + $0x1428] sm:$0xff]
  %v660 = vld [vmem:[%s0 + $0x1430] sm:$0xff]
  %v661 = vld [vmem:[%s0 + $0x1438] sm:$0xff]
  %v662 = vld [vmem:[%s0 + $0x1440] sm:$0xff]
  %v663 = vld [vmem:[%s0 + $0x1448] sm:$0xff]
  %v664 = vld [vmem:[%s0 + $0x1450] sm:$0xff]
  %v665 = vld [vmem:[%s0 + $0x1458] sm:$0xff]
  %v666 = vld [vmem:[%s0 + $0x1460] sm:$0xff]
  %v667 = vld [vmem:[%s0 + $0x1468] sm:$0xff]
  %v668 = vld [vmem:[%s0 + $0x1470] sm:$0xff]
  %v669 = vld [vmem:[%s0 + $0x1478] sm:$0xff]
  %v670 = vld [vmem:[%s0 + $0x1480] sm:$0xff]
  %v671 = vld [vmem:[%s0 + $0x1488] sm:$0xff]
  %v672 = vld [vmem:[%s0 + $0x1490] sm:$0xff]
  %v673 = vld [vmem:[%s0 + $0x1498] sm:$0xff]
  %v674 = vld [vmem:[%s0 + $0x14a0] sm:$0xff]
  %v675 = vld [vmem:[%s0 + $0x14a8] sm:$0xff]
  %v676 = vld [vmem:[%s0 + $0x14b0] sm:$0xff]
  %v677 = vld [vmem:[%s0 + $0x14b8] sm:$0xff]
  %v678 = vld [vmem:[%s0 + $0x14c0] sm:$0xff]
  %v679 = vld [vmem:[%s0 + $0x14c8] sm:$0xff]
  %v680 = vld [vmem:[%s0 + $0x14d0] sm:$0xff]
  %v681 = vld [vmem:[%s0 + $0x14d8] sm:$0xff]
  %v682 = vld [vmem:[%s0 + $0x14e0] sm:$0xff]
  %v683 = vld [vmem:[%s0 + $0x14e8] sm:$0xff]
  %v684 = vld [vmem:[%s0 + $0x14f0] sm:$0xff]
  %v685 = vld [vmem:[%s0 + $0x14f8] sm:$0xff]
  %v686 = vld [vmem:[%s0 + $0x1500] sm:$0xff]
  %v687 = vld [vmem:[%s0 + $0x1508] sm:$0xff]
  %v688 = vld [vmem:[%s0 + $0x1510] sm:$0xff]
  %v689 = vld [vmem:[%s0 + $0x1518] sm:$0xff]
  %v690 = vld [vmem:[%s0 + $0x1520] sm:$0xff]
  %v691 = vld [vmem:[%s0 + $0x1528] sm:$0xff]
  %v692 = vld [vmem:[%s0 + $0x1530] sm:$0xff]
  %v693 = vld [vmem:[%s0 + $0x1538] sm:$0xff]
  %v694 = vld [vmem:[%s0 + $0x1540] sm:$0xff]
  %v695 = vld [vmem:[%s0 + $0x1548] sm:$0xff]
  %v696 = vld [vmem:[%s0 + $0x1550] sm:$0xff]
  %v697 = vld [vmem:[%s0 + $0x1558] sm:$0xff]
  %v698 = vld [vmem:[%s0 + $0x1560] sm:$0xff]
  %v699 = vld [vmem:[%s0 + $0x1568] sm:$0xff]
  %v700 = vld [vmem:[%s0 + $0x1570] sm:$0xff]
  %v701 = vld [vmem:[%s0 + $0x1578] sm:$0xff]
  %v702 = vld [vmem:[%s0 + $0x1580] sm:$0xff]
  %v703 = vld [vmem:[%s0 + $0x1588] sm:$0xff]
  %v704 = vld [vmem:[%s0 + $0x1590] sm:$0xff]
  %v705 = vld [vmem:[%s0 + $0x1598] sm:$0xff]
  %v706 = vld [vmem:[%s0 + $0x15a0] sm:$0xff]
  %v707 = vld [vmem:[%s0 + $0x15a8] sm:$0xff]
  %v708 = vld [vmem:[%s0 + $0x15b0] sm:$0xff]
  %v709 = vld [vmem:[%s0 + $0x15b8] sm:$0xff]
  %v710 = vld [vmem:[%s0 + $0x15c0] sm:$0xff]
  %v711 = vld [vmem:[%s0 + $0x15c8] sm:$0xff]
  %v712 = vld [vmem:[%s0 + $0x15d0] sm:$0xff]
  %v713 = vld [vmem:[%s0 + $0x15d8] sm:$0xff]
  %v714 = vld [vmem:[%s0 + $0x15e0] sm:$0xff]
  %v715 = vld [vmem:[%s0 + $0x15e8] sm:$0xff]
  %v716 = vld [vmem:[%s0 + $0x15f0] sm:$0xff]
  %v717 = vld [vmem:[%s0 + $0x15f8] sm:$0xff]
  %v718 = vld [vmem:[%s0 + $0x1600] sm:$0xff]
  %v719 = vld [vmem:[%s0 + $0x1608] sm:$0xff]
  %v720 = vld [vmem:[%s0 + $0x1610] sm:$0xff]
  %v721 = vld [vmem:[%s0 + $0x1618] sm:$0xff]
  %v722 = vld [vmem:[%s0 + $0x1620] sm:$0xff]
  %v723 = vld [vmem:[%s0 + $0x1628] sm:$0xff]
  %v724 = vld [vmem:[%s0 + $0x1630] sm:$0xff]
  %v725 = vld [vmem:[%s0 + $0x1638] sm:$0xff]
  %v726 = vld [vmem:[%s0 + $0x1640] sm:$0xff]
  %v727 = vld [vmem:[%s0 + $0x1648] sm:$0xff]
  %v728 = vld [vmem:[%s0 + $0x1650] sm:$0xff]
  %v729 = vld [vmem:[%s0 + $0x1658] sm:$0xff]
  %v730 = vld [vmem:[%s0 + $0x1660] sm:$0xff]
  %v731 = vld [vmem:[%s0 + $0x1668] sm:$0xff]
  %v732 = vld [vmem:[%s0 + $0x1670] sm:$0xff]
  %v733 = vld [vmem:[%s0 + $0x1678] sm:$0xff]
  %v734 = vld [vmem:[%s0 + $0x1680] sm:$0xff]
  %v735 = vld [vmem:[%s0 + $0x1688] sm:$0xff]
  %v736 = vld [vmem:[%s0 + $0x1690] sm:$0xff]
  %v737 = vld [vmem:[%s0 + $0x1698] sm:$0xff]
  %v738 = vld [vmem:[%s0 + $0x16a0] sm:$0xff]
  %v739 = vld [vmem:[%s0 + $0x16a8] sm:$0xff]
  %v740 = vld [vmem:[%s0 + $0x16b0] sm:$0xff]
  %v741 = vld [vmem:[%s0 + $0x16b8] sm:$0xff]
  %v742 = vld [vmem:[%s0 + $0x16c0] sm:$0xff]
  %v743 = vld [vmem:[%s0 + $0x16c8] sm:$0xff]
  %v744 = vld [vmem:[%s0 + $0x16d0] sm:$0xff]
  %v745 = vld [vmem:[%s0 + $0x16d8] sm:$0xff]
  %v746 = vld [vmem:[%s0 + $0x16e0] sm:$0xff]
  %v747 = vld [vmem:[%s0 + $0x16e8] sm:$0xff]
  %v748 = vld [vmem:[%s0 + $0x16f0] sm:$0xff]
  %v749 = vld [vmem:[%s0 + $0x16f8] sm:$0xff]
  %v750 = vld [vmem:[%s0 + $0x1700] sm:$0xff]
  %v751 = vld [vmem:[%s0 + $0x1708] sm:$0xff]
  %v752 = vld [vmem:[%s0 + $0x1710] sm:$0xff]
  %v753 = vld [vmem:[%s0 + $0x1718] sm:$0xff]
  %v754 = vld [vmem:[%s0 + $0x1720] sm:$0xff]
  %v755 = vld [vmem:[%s0 + $0x1728] sm:$0xff]
  %v756 = vld [vmem:[%s0 + $0x1730] sm:$0xff]
  %v757 = vld [vmem:[%s0 + $0x1738] sm:$0xff]
  %v758 = vld [vmem:[%s0 + $0x1740] sm:$0xff]
  %v759 = vld [vmem:[%s0 + $0x1748] sm:$0xff]
  %v760 = vld [vmem:[%s0 + $0x1750] sm:$0xff]
  %v761 = vld [vmem:[%s0 + $0x1758] sm:$0xff]
  %v762 = vld [vmem:[%s0 + $0x1760] sm:$0xff]
  %v763 = vld [vmem:[%s0 + $0x1768] sm:$0xff]
  %v764 = vld [vmem:[%s0 + $0x1770] sm:$0xff]
  %v765 = vld [vmem:[%s0 + $0x1778] sm:$0xff]
  %v766 = vld [vmem:[%s0 + $0x1780] sm:$0xff]
  %v767 = vld [vmem:[%s0 + $0x1788] sm:$0xff]
  %v768 = vld [vmem:[%s0 + $0x1790] sm:$0xff]
  %v769 = vld [vmem:[%s0 + $0x1798] sm:$0xff]
  %v770 = vld [vmem:[%s0 + $0x17a0] sm:$0xff]
  %v771 = vld [vmem:[%s0 + $0x17a8] sm:$0xff]
  %v772 = vld [vmem:[%s0 + $0x17b0] sm:$0xff]
  %v773 = vld [vmem:[%s0 + $0x17b8] sm:$0xff]
  %v774 = vld [vmem:[%s0 + $0x17c0] sm:$0xff]
  %v775 = vld [vmem:[%s0 + $0x17c8] sm:$0xff]
  %v776 = vld [vmem:[%s0 + $0x17d0] sm:$0xff]
  %v777 = vld [vmem:[%s0 + $0x17d8] sm:$0xff]
  %v778 = vld [vmem:[%s0 + $0x17e0] sm:$0xff]
  %v779 = vld [vmem:[%s0 + $0x17e8] sm:$0xff]
  %v780 = vld [vmem:[%s0 + $0x17f0] sm:$0xff]
  %v781 = vld [vmem:[%s0 + $0x17f8] sm:$0xff]
  %v782 = vld [vmem:[%s0 + $0x1800] sm:$0xff]
  %v783 = vld [vmem:[%s0 + $0x1808] sm:$0xff]
  %v784 = vld [vmem:[%s0 + $0x1810] sm:$0xff]
  %v785 = vld [vmem:[%s0 + $0x1818] sm:$0xff]
  %v786 = vld [vmem:[%s0 + $0x1820] sm:$0xff]
  %v787 = vld [vmem:[%s0 + $0x1828] sm:$0xff]
  %v788 = vld [vmem:[%s0 + $0x1830] sm:$0xff]
  %v789 = vld [vmem:[%s0 + $0x1838] sm:$0xff]
  %v790 = vld [vmem:[%s0 + $0x1840] sm:$0xff]
  %v791 = vld [vmem:[%s0 + $0x1848] sm:$0xff]
  %v792 = vld [vmem:[%s0 + $0x1850] sm:$0xff]
  %v793 = vld [vmem:[%s0 + $0x1858] sm:$0xff]
  %v794 = vld [vmem:[%s0 + $0x1860] sm:$0xff]
  %v795 = vld [vmem:[%s0 + $0x1868] sm:$0xff]
  %v796 = vld [vmem:[%s0 + $0x1870] sm:$0xff]
  %v797 = vld [vmem:[%s0 + $0x1878] sm:$0xff]
  %v798 = vld [vmem:[%s0 + $0x1880] sm:$0xff]
  %v799 = vld [vmem:[%s0 + $0x1888] sm:$0xff]
  %v800 = vld [vmem:[%s0 + $0x1890] sm:$0xff]
  %v801 = vld [vmem:[%s0 + $0x1898] sm:$0xff]
  %v802 = vld [vmem:[%s0 + $0x18a0] sm:$0xff]
  %v803 = vld [vmem:[%s0 + $0x18a8] sm:$0xff]
  %v804 = vld [vmem:[%s0 + $0x18b0] sm:$0xff]
  %v805 = vld [vmem:[%s0 + $0x18b8] sm:$0xff]
  %v806 = vld [vmem:[%s0 + $0x18c0] sm:$0xff]
  %v807 = vld [vmem:[%s0 + $0x18c8] sm:$0xff]
  %v808 = vld [vmem:[%s0 + $0x18d0] sm:$0xff]
  %v809 = vld [vmem:[%s0 + $0x18d8] sm:$0xff]
  %v810 = vld [vmem:[%s0 + $0x18e0] sm:$0xff]
  %v811 = vld [vmem:[%s0 + $0x18e8] sm:$0xff]
  %v812 = vld [vmem:[%s0 + $0x18f0] sm:$0xff]
  %v813 = vld [vmem:[%s0 + $0x18f8] sm:$0xff]
  %v814 = vld [vmem:[%s1] sm:$0xff]
  %v815 = vld [vmem:[%s1 + $0x8] sm:$0xff]
  %v816 = vld [vmem:[%s1 + $0x10] sm:$0xff]
  %v817 = vld [vmem:[%s1 + $0x18] sm:$0xff]
  %vm818 = vcmask 261120
  %v820 = vsel %vm818, %v14, 0
  %v823 = vsel %vm818, %v15, 0
  %v826 = vsel %vm818, %v16, 0
  %v829 = vsel %vm818, %v17, 0
  %v832 = vsel %vm818, %v18, 0
  %v835 = vsel %vm818, %v19, 0
  %v838 = vsel %vm818, %v20, 0
  %v841 = vsel %vm818, %v21, 0
  %v844 = vsel %vm818, %v22, 0
  %v847 = vsel %vm818, %v23, 0
  %v850 = vsel %vm818, %v24, 0
  %v853 = vsel %vm818, %v25, 0
  %v856 = vsel %vm818, %v26, 0
  %v859 = vsel %vm818, %v27, 0
  %v862 = vsel %vm818, %v28, 0
  %v865 = vsel %vm818, %v29, 0
  %v868 = vsel %vm818, %v30, 0
  %v871 = vsel %vm818, %v31, 0
  %v874 = vsel %vm818, %v32, 0
  %v877 = vsel %vm818, %v33, 0
  %v880 = vsel %vm818, %v34, 0
  %v883 = vsel %vm818, %v35, 0
  %v886 = vsel %vm818, %v36, 0
  %v889 = vsel %vm818, %v37, 0
  %v892 = vsel %vm818, %v38, 0
  %v895 = vsel %vm818, %v39, 0
  %v898 = vsel %vm818, %v40, 0
  %v901 = vsel %vm818, %v41, 0
  %v904 = vsel %vm818, %v42, 0
  %v907 = vsel %vm818, %v43, 0
  %v910 = vsel %vm818, %v44, 0
  %v913 = vsel %vm818, %v45, 0
  %v916 = vsel %vm818, %v46, 0
  %v919 = vsel %vm818, %v47, 0
  %v922 = vsel %vm818, %v48, 0
  %v925 = vsel %vm818, %v49, 0
  %v928 = vsel %vm818, %v50, 0
  %v931 = vsel %vm818, %v51, 0
  %v934 = vsel %vm818, %v52, 0
  %v937 = vsel %vm818, %v53, 0
  %v940 = vsel %vm818, %v54, 0
  %v943 = vsel %vm818, %v55, 0
  %v946 = vsel %vm818, %v56, 0
  %v949 = vsel %vm818, %v57, 0
  %v952 = vsel %vm818, %v58, 0
  %v955 = vsel %vm818, %v59, 0
  %v958 = vsel %vm818, %v60, 0
  %v961 = vsel %vm818, %v61, 0
  %v964 = vsel %vm818, %v62, 0
  %v967 = vsel %vm818, %v63, 0
  %v970 = vsel %vm818, %v64, 0
  %v973 = vsel %vm818, %v65, 0
  %v976 = vsel %vm818, %v66, 0
  %v979 = vsel %vm818, %v67, 0
  %v982 = vsel %vm818, %v68, 0
  %v985 = vsel %vm818, %v69, 0
  %v988 = vsel %vm818, %v70, 0
  %v991 = vsel %vm818, %v71, 0
  %v994 = vsel %vm818, %v72, 0
  %v997 = vsel %vm818, %v73, 0
  %v1000 = vsel %vm818, %v74, 0
  %v1003 = vsel %vm818, %v75, 0
  %v1006 = vsel %vm818, %v76, 0
  %v1009 = vsel %vm818, %v77, 0
  %v1012 = vsel %vm818, %v78, 0
  %v1015 = vsel %vm818, %v79, 0
  %v1018 = vsel %vm818, %v80, 0
  %v1021 = vsel %vm818, %v81, 0
  %v1024 = vsel %vm818, %v82, 0
  %v1027 = vsel %vm818, %v83, 0
  %v1030 = vsel %vm818, %v84, 0
  %v1033 = vsel %vm818, %v85, 0
  %v1036 = vsel %vm818, %v86, 0
  %v1039 = vsel %vm818, %v87, 0
  %v1042 = vsel %vm818, %v88, 0
  %v1045 = vsel %vm818, %v89, 0
  %v1048 = vsel %vm818, %v90, 0
  %v1051 = vsel %vm818, %v91, 0
  %v1054 = vsel %vm818, %v92, 0
  %v1057 = vsel %vm818, %v93, 0
  %v1060 = vsel %vm818, %v94, 0
  %v1063 = vsel %vm818, %v95, 0
  %v1066 = vsel %vm818, %v96, 0
  %v1069 = vsel %vm818, %v97, 0
  %v1072 = vsel %vm818, %v98, 0
  %v1075 = vsel %vm818, %v99, 0
  %v1078 = vsel %vm818, %v100, 0
  %v1081 = vsel %vm818, %v101, 0
  %v1084 = vsel %vm818, %v102, 0
  %v1087 = vsel %vm818, %v103, 0
  %v1090 = vsel %vm818, %v104, 0
  %v1093 = vsel %vm818, %v105, 0
  %v1096 = vsel %vm818, %v106, 0
  %v1099 = vsel %vm818, %v107, 0
  %v1102 = vsel %vm818, %v108, 0
  %v1105 = vsel %vm818, %v109, 0
  %v1108 = vsel %vm818, %v110, 0
  %v1111 = vsel %vm818, %v111, 0
  %v1114 = vsel %vm818, %v112, 0
  %v1117 = vsel %vm818, %v113, 0
  %v1120 = vsel %vm818, %v114, 0
  %v1123 = vsel %vm818, %v115, 0
  %v1126 = vsel %vm818, %v116, 0
  %v1129 = vsel %vm818, %v117, 0
  %v1132 = vsel %vm818, %v118, 0
  %v1135 = vsel %vm818, %v119, 0
  %v1138 = vsel %vm818, %v120, 0
  %v1141 = vsel %vm818, %v121, 0
  %v1144 = vsel %vm818, %v122, 0
  %v1147 = vsel %vm818, %v123, 0
  %v1150 = vsel %vm818, %v124, 0
  %v1153 = vsel %vm818, %v125, 0
  %v1156 = vsel %vm818, %v126, 0
  %v1159 = vsel %vm818, %v127, 0
  %v1162 = vsel %vm818, %v128, 0
  %v1165 = vsel %vm818, %v129, 0
  %v1168 = vsel %vm818, %v130, 0
  %v1171 = vsel %vm818, %v131, 0
  %v1174 = vsel %vm818, %v132, 0
  %v1177 = vsel %vm818, %v133, 0
  %v1180 = vsel %vm818, %v134, 0
  %v1183 = vsel %vm818, %v135, 0
  %v1186 = vsel %vm818, %v136, 0
  %v1189 = vsel %vm818, %v137, 0
  %v1192 = vsel %vm818, %v138, 0
  %v1195 = vsel %vm818, %v139, 0
  %v1198 = vsel %vm818, %v140, 0
  %v1201 = vsel %vm818, %v141, 0
  %v1204 = vsel %vm818, %v142, 0
  %v1207 = vsel %vm818, %v143, 0
  %v1210 = vsel %vm818, %v144, 0
  %v1213 = vsel %vm818, %v145, 0
  %v1216 = vsel %vm818, %v146, 0
  %v1219 = vsel %vm818, %v147, 0
  %v1222 = vsel %vm818, %v148, 0
  %v1225 = vsel %vm818, %v149, 0
  %v1228 = vsel %vm818, %v150, 0
  %v1231 = vsel %vm818, %v151, 0
  %v1234 = vsel %vm818, %v152, 0
  %v1237 = vsel %vm818, %v153, 0
  %v1240 = vsel %vm818, %v154, 0
  %v1243 = vsel %vm818, %v155, 0
  %v1246 = vsel %vm818, %v156, 0
  %v1249 = vsel %vm818, %v157, 0
  %v1252 = vsel %vm818, %v158, 0
  %v1255 = vsel %vm818, %v159, 0
  %v1258 = vsel %vm818, %v160, 0
  %v1261 = vsel %vm818, %v161, 0
  %v1264 = vsel %vm818, %v162, 0
  %v1267 = vsel %vm818, %v163, 0
  %v1270 = vsel %vm818, %v164, 0
  %v1273 = vsel %vm818, %v165, 0
  %v1276 = vsel %vm818, %v166, 0
  %v1279 = vsel %vm818, %v167, 0
  %v1282 = vsel %vm818, %v168, 0
  %v1285 = vsel %vm818, %v169, 0
  %v1288 = vsel %vm818, %v170, 0
  %v1291 = vsel %vm818, %v171, 0
  %v1294 = vsel %vm818, %v172, 0
  %v1297 = vsel %vm818, %v173, 0
  %v1300 = vsel %vm818, %v174, 0
  %v1303 = vsel %vm818, %v175, 0
  %v1306 = vsel %vm818, %v176, 0
  %v1309 = vsel %vm818, %v177, 0
  %v1312 = vsel %vm818, %v178, 0
  %v1315 = vsel %vm818, %v179, 0
  %v1318 = vsel %vm818, %v180, 0
  %v1321 = vsel %vm818, %v181, 0
  %v1324 = vsel %vm818, %v182, 0
  %v1327 = vsel %vm818, %v183, 0
  %v1330 = vsel %vm818, %v184, 0
  %v1333 = vsel %vm818, %v185, 0
  %v1336 = vsel %vm818, %v186, 0
  %v1339 = vsel %vm818, %v187, 0
  %v1342 = vsel %vm818, %v188, 0
  %v1345 = vsel %vm818, %v189, 0
  %v1348 = vsel %vm818, %v190, 0
  %v1351 = vsel %vm818, %v191, 0
  %v1354 = vsel %vm818, %v192, 0
  %v1357 = vsel %vm818, %v193, 0
  %v1360 = vsel %vm818, %v194, 0
  %v1363 = vsel %vm818, %v195, 0
  %v1366 = vsel %vm818, %v196, 0
  %v1369 = vsel %vm818, %v197, 0
  %v1372 = vsel %vm818, %v198, 0
  %v1375 = vsel %vm818, %v199, 0
  %v1378 = vsel %vm818, %v200, 0
  %v1381 = vsel %vm818, %v201, 0
  %v1384 = vsel %vm818, %v202, 0
  %v1387 = vsel %vm818, %v203, 0
  %v1390 = vsel %vm818, %v204, 0
  %v1393 = vsel %vm818, %v205, 0
  %v1396 = vsel %vm818, %v206, 0
  %v1399 = vsel %vm818, %v207, 0
  %v1402 = vsel %vm818, %v208, 0
  %v1405 = vsel %vm818, %v209, 0
  %v1408 = vsel %vm818, %v210, 0
  %v1411 = vsel %vm818, %v211, 0
  %v1414 = vsel %vm818, %v212, 0
  %v1417 = vsel %vm818, %v213, 0
  %v1420 = vsel %vm818, %v214, 0
  %v1423 = vsel %vm818, %v215, 0
  %v1426 = vsel %vm818, %v216, 0
  %v1429 = vsel %vm818, %v217, 0
  %v1432 = vsel %vm818, %v218, 0
  %v1435 = vsel %vm818, %v219, 0
  %v1438 = vsel %vm818, %v220, 0
  %v1441 = vsel %vm818, %v221, 0
  %v1444 = vsel %vm818, %v222, 0
  %v1447 = vsel %vm818, %v223, 0
  %v1450 = vsel %vm818, %v224, 0
  %v1453 = vsel %vm818, %v225, 0
  %v1456 = vsel %vm818, %v226, 0
  %v1459 = vsel %vm818, %v227, 0
  %v1462 = vsel %vm818, %v228, 0
  %v1465 = vsel %vm818, %v229, 0
  %v1468 = vsel %vm818, %v230, 0
  %v1471 = vsel %vm818, %v231, 0
  %v1474 = vsel %vm818, %v232, 0
  %v1477 = vsel %vm818, %v233, 0
  %v1480 = vsel %vm818, %v234, 0
  %v1483 = vsel %vm818, %v235, 0
  %v1486 = vsel %vm818, %v236, 0
  %v1489 = vsel %vm818, %v237, 0
  %v1492 = vsel %vm818, %v238, 0
  %v1495 = vsel %vm818, %v239, 0
  %v1498 = vsel %vm818, %v240, 0
  %v1501 = vsel %vm818, %v241, 0
  %v1504 = vsel %vm818, %v242, 0
  %v1507 = vsel %vm818, %v243, 0
  %v1510 = vsel %vm818, %v244, 0
  %v1513 = vsel %vm818, %v245, 0
  %v1516 = vsel %vm818, %v246, 0
  %v1519 = vsel %vm818, %v247, 0
  %v1522 = vsel %vm818, %v248, 0
  %v1525 = vsel %vm818, %v249, 0
  %v1528 = vsel %vm818, %v250, 0
  %v1531 = vsel %vm818, %v251, 0
  %v1534 = vsel %vm818, %v252, 0
  %v1537 = vsel %vm818, %v253, 0
  %v1540 = vsel %vm818, %v254, 0
  %v1543 = vsel %vm818, %v255, 0
  %v1546 = vsel %vm818, %v256, 0
  %v1549 = vsel %vm818, %v257, 0
  %v1552 = vsel %vm818, %v258, 0
  %v1555 = vsel %vm818, %v259, 0
  %v1558 = vsel %vm818, %v260, 0
  %v1561 = vsel %vm818, %v261, 0
  %v1564 = vsel %vm818, %v262, 0
  %v1567 = vsel %vm818, %v263, 0
  %v1570 = vsel %vm818, %v264, 0
  %v1573 = vsel %vm818, %v265, 0
  %v1576 = vsel %vm818, %v266, 0
  %v1579 = vsel %vm818, %v267, 0
  %v1582 = vsel %vm818, %v268, 0
  %v1585 = vsel %vm818, %v269, 0
  %v1588 = vsel %vm818, %v270, 0
  %v1591 = vsel %vm818, %v271, 0
  %v1594 = vsel %vm818, %v272, 0
  %v1597 = vsel %vm818, %v273, 0
  %v1600 = vsel %vm818, %v274, 0
  %v1603 = vsel %vm818, %v275, 0
  %v1606 = vsel %vm818, %v276, 0
  %v1609 = vsel %vm818, %v277, 0
  %v1612 = vsel %vm818, %v278, 0
  %v1615 = vsel %vm818, %v279, 0
  %v1618 = vsel %vm818, %v280, 0
  %v1621 = vsel %vm818, %v281, 0
  %v1624 = vsel %vm818, %v282, 0
  %v1627 = vsel %vm818, %v283, 0
  %v1630 = vsel %vm818, %v284, 0
  %v1633 = vsel %vm818, %v285, 0
  %v1636 = vsel %vm818, %v286, 0
  %v1639 = vsel %vm818, %v287, 0
  %v1642 = vsel %vm818, %v288, 0
  %v1645 = vsel %vm818, %v289, 0
  %v1648 = vsel %vm818, %v290, 0
  %v1651 = vsel %vm818, %v291, 0
  %v1654 = vsel %vm818, %v292, 0
  %v1657 = vsel %vm818, %v293, 0
  %v1660 = vsel %vm818, %v294, 0
  %v1663 = vsel %vm818, %v295, 0
  %v1666 = vsel %vm818, %v296, 0
  %v1669 = vsel %vm818, %v297, 0
  %v1672 = vsel %vm818, %v298, 0
  %v1675 = vsel %vm818, %v299, 0
  %v1678 = vsel %vm818, %v300, 0
  %v1681 = vsel %vm818, %v301, 0
  %v1684 = vsel %vm818, %v302, 0
  %v1687 = vsel %vm818, %v303, 0
  %v1690 = vsel %vm818, %v304, 0
  %v1693 = vsel %vm818, %v305, 0
  %v1696 = vsel %vm818, %v306, 0
  %v1699 = vsel %vm818, %v307, 0
  %v1702 = vsel %vm818, %v308, 0
  %v1705 = vsel %vm818, %v309, 0
  %v1708 = vsel %vm818, %v310, 0
  %v1711 = vsel %vm818, %v311, 0
  %v1714 = vsel %vm818, %v312, 0
  %v1717 = vsel %vm818, %v313, 0
  %v1720 = vsel %vm818, %v314, 0
  %v1723 = vsel %vm818, %v315, 0
  %v1726 = vsel %vm818, %v316, 0
  %v1729 = vsel %vm818, %v317, 0
  %v1732 = vsel %vm818, %v318, 0
  %v1735 = vsel %vm818, %v319, 0
  %v1738 = vsel %vm818, %v320, 0
  %v1741 = vsel %vm818, %v321, 0
  %v1744 = vsel %vm818, %v322, 0
  %v1747 = vsel %vm818, %v323, 0
  %v1750 = vsel %vm818, %v324, 0
  %v1753 = vsel %vm818, %v325, 0
  %v1756 = vsel %vm818, %v326, 0
  %v1759 = vsel %vm818, %v327, 0
  %v1762 = vsel %vm818, %v328, 0
  %v1765 = vsel %vm818, %v329, 0
  %v1768 = vsel %vm818, %v330, 0
  %v1771 = vsel %vm818, %v331, 0
  %v1774 = vsel %vm818, %v332, 0
  %v1777 = vsel %vm818, %v333, 0
  %v1780 = vsel %vm818, %v334, 0
  %v1783 = vsel %vm818, %v335, 0
  %v1786 = vsel %vm818, %v336, 0
  %v1789 = vsel %vm818, %v337, 0
  %v1792 = vsel %vm818, %v338, 0
  %v1795 = vsel %vm818, %v339, 0
  %v1798 = vsel %vm818, %v340, 0
  %v1801 = vsel %vm818, %v341, 0
  %v1804 = vsel %vm818, %v342, 0
  %v1807 = vsel %vm818, %v343, 0
  %v1810 = vsel %vm818, %v344, 0
  %v1813 = vsel %vm818, %v345, 0
  %v1816 = vsel %vm818, %v346, 0
  %v1819 = vsel %vm818, %v347, 0
  %v1822 = vsel %vm818, %v348, 0
  %v1825 = vsel %vm818, %v349, 0
  %v1828 = vsel %vm818, %v350, 0
  %v1831 = vsel %vm818, %v351, 0
  %v1834 = vsel %vm818, %v352, 0
  %v1837 = vsel %vm818, %v353, 0
  %v1840 = vsel %vm818, %v354, 0
  %v1843 = vsel %vm818, %v355, 0
  %v1846 = vsel %vm818, %v356, 0
  %v1849 = vsel %vm818, %v357, 0
  %v1852 = vsel %vm818, %v358, 0
  %v1855 = vsel %vm818, %v359, 0
  %v1858 = vsel %vm818, %v360, 0
  %v1861 = vsel %vm818, %v361, 0
  %v1864 = vsel %vm818, %v362, 0
  %v1867 = vsel %vm818, %v363, 0
  %v1870 = vsel %vm818, %v364, 0
  %v1873 = vsel %vm818, %v365, 0
  %v1876 = vsel %vm818, %v366, 0
  %v1879 = vsel %vm818, %v367, 0
  %v1882 = vsel %vm818, %v368, 0
  %v1885 = vsel %vm818, %v369, 0
  %v1888 = vsel %vm818, %v370, 0
  %v1891 = vsel %vm818, %v371, 0
  %v1894 = vsel %vm818, %v372, 0
  %v1897 = vsel %vm818, %v373, 0
  %v1900 = vsel %vm818, %v374, 0
  %v1903 = vsel %vm818, %v375, 0
  %v1906 = vsel %vm818, %v376, 0
  %v1909 = vsel %vm818, %v377, 0
  %v1912 = vsel %vm818, %v378, 0
  %v1915 = vsel %vm818, %v379, 0
  %v1918 = vsel %vm818, %v380, 0
  %v1921 = vsel %vm818, %v381, 0
  %v1924 = vsel %vm818, %v382, 0
  %v1927 = vsel %vm818, %v383, 0
  %v1930 = vsel %vm818, %v384, 0
  %v1933 = vsel %vm818, %v385, 0
  %v1936 = vsel %vm818, %v386, 0
  %v1939 = vsel %vm818, %v387, 0
  %v1942 = vsel %vm818, %v388, 0
  %v1945 = vsel %vm818, %v389, 0
  %v1948 = vsel %vm818, %v390, 0
  %v1951 = vsel %vm818, %v391, 0
  %v1954 = vsel %vm818, %v392, 0
  %v1957 = vsel %vm818, %v393, 0
  %v1960 = vsel %vm818, %v394, 0
  %v1963 = vsel %vm818, %v395, 0
  %v1966 = vsel %vm818, %v396, 0
  %v1969 = vsel %vm818, %v397, 0
  %v1972 = vsel %vm818, %v398, 0
  %v1975 = vsel %vm818, %v399, 0
  %v1978 = vsel %vm818, %v400, 0
  %v1981 = vsel %vm818, %v401, 0
  %v1984 = vsel %vm818, %v402, 0
  %v1987 = vsel %vm818, %v403, 0
  %v1990 = vsel %vm818, %v404, 0
  %v1993 = vsel %vm818, %v405, 0
  %v1996 = vsel %vm818, %v406, 0
  %v1999 = vsel %vm818, %v407, 0
  %v2002 = vsel %vm818, %v408, 0
  %v2005 = vsel %vm818, %v409, 0
  %v2008 = vsel %vm818, %v410, 0
  %v2011 = vsel %vm818, %v411, 0
  %v2014 = vsel %vm818, %v412, 0
  %v2017 = vsel %vm818, %v413, 0
  %v2020 = vsel %vm818, %v414, 0
  %v2023 = vsel %vm818, %v415, 0
  %v2026 = vsel %vm818, %v416, 0
  %v2029 = vsel %vm818, %v417, 0
  %v2032 = vsel %vm818, %v418, 0
  %v2035 = vsel %vm818, %v419, 0
  %v2038 = vsel %vm818, %v420, 0
  %v2041 = vsel %vm818, %v421, 0
  %v2044 = vsel %vm818, %v422, 0
  %v2047 = vsel %vm818, %v423, 0
  %v2050 = vsel %vm818, %v424, 0
  %v2053 = vsel %vm818, %v425, 0
  %v2056 = vsel %vm818, %v426, 0
  %v2059 = vsel %vm818, %v427, 0
  %v2062 = vsel %vm818, %v428, 0
  %v2065 = vsel %vm818, %v429, 0
  %v2068 = vsel %vm818, %v430, 0
  %v2071 = vsel %vm818, %v431, 0
  %v2074 = vsel %vm818, %v432, 0
  %v2077 = vsel %vm818, %v433, 0
  %v2080 = vsel %vm818, %v434, 0
  %v2083 = vsel %vm818, %v435, 0
  %v2086 = vsel %vm818, %v436, 0
  %v2089 = vsel %vm818, %v437, 0
  %v2092 = vsel %vm818, %v438, 0
  %v2095 = vsel %vm818, %v439, 0
  %v2098 = vsel %vm818, %v440, 0
  %v2101 = vsel %vm818, %v441, 0
  %v2104 = vsel %vm818, %v442, 0
  %v2107 = vsel %vm818, %v443, 0
  %v2110 = vsel %vm818, %v444, 0
  %v2113 = vsel %vm818, %v445, 0
  %v2116 = vsel %vm818, %v446, 0
  %v2119 = vsel %vm818, %v447, 0
  %v2122 = vsel %vm818, %v448, 0
  %v2125 = vsel %vm818, %v449, 0
  %v2128 = vsel %vm818, %v450, 0
  %v2131 = vsel %vm818, %v451, 0
  %v2134 = vsel %vm818, %v452, 0
  %v2137 = vsel %vm818, %v453, 0
  %v2140 = vsel %vm818, %v454, 0
  %v2143 = vsel %vm818, %v455, 0
  %v2146 = vsel %vm818, %v456, 0
  %v2149 = vsel %vm818, %v457, 0
  %v2152 = vsel %vm818, %v458, 0
  %v2155 = vsel %vm818, %v459, 0
  %v2158 = vsel %vm818, %v460, 0
  %v2161 = vsel %vm818, %v461, 0
  %v2164 = vsel %vm818, %v462, 0
  %v2167 = vsel %vm818, %v463, 0
  %v2170 = vsel %vm818, %v464, 0
  %v2173 = vsel %vm818, %v465, 0
  %v2176 = vsel %vm818, %v466, 0
  %v2179 = vsel %vm818, %v467, 0
  %v2182 = vsel %vm818, %v468, 0
  %v2185 = vsel %vm818, %v469, 0
  %v2188 = vsel %vm818, %v470, 0
  %v2191 = vsel %vm818, %v471, 0
  %v2194 = vsel %vm818, %v472, 0
  %v2197 = vsel %vm818, %v473, 0
  %v2200 = vsel %vm818, %v474, 0
  %v2203 = vsel %vm818, %v475, 0
  %v2206 = vsel %vm818, %v476, 0
  %v2209 = vsel %vm818, %v477, 0
  %v2212 = vsel %vm818, %v478, 0
  %v2215 = vsel %vm818, %v479, 0
  %v2218 = vsel %vm818, %v480, 0
  %v2221 = vsel %vm818, %v481, 0
  %v2224 = vsel %vm818, %v482, 0
  %v2227 = vsel %vm818, %v483, 0
  %v2230 = vsel %vm818, %v484, 0
  %v2233 = vsel %vm818, %v485, 0
  %v2236 = vsel %vm818, %v486, 0
  %v2239 = vsel %vm818, %v487, 0
  %v2242 = vsel %vm818, %v488, 0
  %v2245 = vsel %vm818, %v489, 0
  %v2248 = vsel %vm818, %v490, 0
  %v2251 = vsel %vm818, %v491, 0
  %v2254 = vsel %vm818, %v492, 0
  %v2257 = vsel %vm818, %v493, 0
  %v2260 = vsel %vm818, %v494, 0
  %v2263 = vsel %vm818, %v495, 0
  %v2266 = vsel %vm818, %v496, 0
  %v2269 = vsel %vm818, %v497, 0
  %v2272 = vsel %vm818, %v498, 0
  %v2275 = vsel %vm818, %v499, 0
  %v2278 = vsel %vm818, %v500, 0
  %v2281 = vsel %vm818, %v501, 0
  %v2284 = vsel %vm818, %v502, 0
  %v2287 = vsel %vm818, %v503, 0
  %v2290 = vsel %vm818, %v504, 0
  %v2293 = vsel %vm818, %v505, 0
  %v2296 = vsel %vm818, %v506, 0
  %v2299 = vsel %vm818, %v507, 0
  %v2302 = vsel %vm818, %v508, 0
  %v2305 = vsel %vm818, %v509, 0
  %v2308 = vsel %vm818, %v510, 0
  %v2311 = vsel %vm818, %v511, 0
  %v2314 = vsel %vm818, %v512, 0
  %v2317 = vsel %vm818, %v513, 0
  %v2320 = vsel %vm818, %v514, 0
  %v2323 = vsel %vm818, %v515, 0
  %v2326 = vsel %vm818, %v516, 0
  %v2329 = vsel %vm818, %v517, 0
  %v2332 = vsel %vm818, %v518, 0
  %v2335 = vsel %vm818, %v519, 0
  %v2338 = vsel %vm818, %v520, 0
  %v2341 = vsel %vm818, %v521, 0
  %v2344 = vsel %vm818, %v522, 0
  %v2347 = vsel %vm818, %v523, 0
  %v2350 = vsel %vm818, %v524, 0
  %v2353 = vsel %vm818, %v525, 0
  %v2356 = vsel %vm818, %v526, 0
  %v2359 = vsel %vm818, %v527, 0
  %v2362 = vsel %vm818, %v528, 0
  %v2365 = vsel %vm818, %v529, 0
  %v2368 = vsel %vm818, %v530, 0
  %v2371 = vsel %vm818, %v531, 0
  %v2374 = vsel %vm818, %v532, 0
  %v2377 = vsel %vm818, %v533, 0
  %v2380 = vsel %vm818, %v534, 0
  %v2383 = vsel %vm818, %v535, 0
  %v2386 = vsel %vm818, %v536, 0
  %v2389 = vsel %vm818, %v537, 0
  %v2392 = vsel %vm818, %v538, 0
  %v2395 = vsel %vm818, %v539, 0
  %v2398 = vsel %vm818, %v540, 0
  %v2401 = vsel %vm818, %v541, 0
  %v2404 = vsel %vm818, %v542, 0
  %v2407 = vsel %vm818, %v543, 0
  %v2410 = vsel %vm818, %v544, 0
  %v2413 = vsel %vm818, %v545, 0
  %v2416 = vsel %vm818, %v546, 0
  %v2419 = vsel %vm818, %v547, 0
  %v2422 = vsel %vm818, %v548, 0
  %v2425 = vsel %vm818, %v549, 0
  %v2428 = vsel %vm818, %v550, 0
  %v2431 = vsel %vm818, %v551, 0
  %v2434 = vsel %vm818, %v552, 0
  %v2437 = vsel %vm818, %v553, 0
  %v2440 = vsel %vm818, %v554, 0
  %v2443 = vsel %vm818, %v555, 0
  %v2446 = vsel %vm818, %v556, 0
  %v2449 = vsel %vm818, %v557, 0
  %v2452 = vsel %vm818, %v558, 0
  %v2455 = vsel %vm818, %v559, 0
  %v2458 = vsel %vm818, %v560, 0
  %v2461 = vsel %vm818, %v561, 0
  %v2464 = vsel %vm818, %v562, 0
  %v2467 = vsel %vm818, %v563, 0
  %v2470 = vsel %vm818, %v564, 0
  %v2473 = vsel %vm818, %v565, 0
  %v2476 = vsel %vm818, %v566, 0
  %v2479 = vsel %vm818, %v567, 0
  %v2482 = vsel %vm818, %v568, 0
  %v2485 = vsel %vm818, %v569, 0
  %v2488 = vsel %vm818, %v570, 0
  %v2491 = vsel %vm818, %v571, 0
  %v2494 = vsel %vm818, %v572, 0
  %v2497 = vsel %vm818, %v573, 0
  %v2500 = vsel %vm818, %v574, 0
  %v2503 = vsel %vm818, %v575, 0
  %v2506 = vsel %vm818, %v576, 0
  %v2509 = vsel %vm818, %v577, 0
  %v2512 = vsel %vm818, %v578, 0
  %v2515 = vsel %vm818, %v579, 0
  %v2518 = vsel %vm818, %v580, 0
  %v2521 = vsel %vm818, %v581, 0
  %v2524 = vsel %vm818, %v582, 0
  %v2527 = vsel %vm818, %v583, 0
  %v2530 = vsel %vm818, %v584, 0
  %v2533 = vsel %vm818, %v585, 0
  %v2536 = vsel %vm818, %v586, 0
  %v2539 = vsel %vm818, %v587, 0
  %v2542 = vsel %vm818, %v588, 0
  %v2545 = vsel %vm818, %v589, 0
  %v2548 = vsel %vm818, %v590, 0
  %v2551 = vsel %vm818, %v591, 0
  %v2554 = vsel %vm818, %v592, 0
  %v2557 = vsel %vm818, %v593, 0
  %v2560 = vsel %vm818, %v594, 0
  %v2563 = vsel %vm818, %v595, 0
  %v2566 = vsel %vm818, %v596, 0
  %v2569 = vsel %vm818, %v597, 0
  %v2572 = vsel %vm818, %v598, 0
  %v2575 = vsel %vm818, %v599, 0
  %v2578 = vsel %vm818, %v600, 0
  %v2581 = vsel %vm818, %v601, 0
  %v2584 = vsel %vm818, %v602, 0
  %v2587 = vsel %vm818, %v603, 0
  %v2590 = vsel %vm818, %v604, 0
  %v2593 = vsel %vm818, %v605, 0
  %v2596 = vsel %vm818, %v606, 0
  %v2599 = vsel %vm818, %v607, 0
  %v2602 = vsel %vm818, %v608, 0
  %v2605 = vsel %vm818, %v609, 0
  %v2608 = vsel %vm818, %v610, 0
  %v2611 = vsel %vm818, %v611, 0
  %v2614 = vsel %vm818, %v612, 0
  %v2617 = vsel %vm818, %v613, 0
  %v2620 = vsel %vm818, %v614, 0
  %v2623 = vsel %vm818, %v615, 0
  %v2626 = vsel %vm818, %v616, 0
  %v2629 = vsel %vm818, %v617, 0
  %v2632 = vsel %vm818, %v618, 0
  %v2635 = vsel %vm818, %v619, 0
  %v2638 = vsel %vm818, %v620, 0
  %v2641 = vsel %vm818, %v621, 0
  %v2644 = vsel %vm818, %v622, 0
  %v2647 = vsel %vm818, %v623, 0
  %v2650 = vsel %vm818, %v624, 0
  %v2653 = vsel %vm818, %v625, 0
  %v2656 = vsel %vm818, %v626, 0
  %v2659 = vsel %vm818, %v627, 0
  %v2662 = vsel %vm818, %v628, 0
  %v2665 = vsel %vm818, %v629, 0
  %v2668 = vsel %vm818, %v630, 0
  %v2671 = vsel %vm818, %v631, 0
  %v2674 = vsel %vm818, %v632, 0
  %v2677 = vsel %vm818, %v633, 0
  %v2680 = vsel %vm818, %v634, 0
  %v2683 = vsel %vm818, %v635, 0
  %v2686 = vsel %vm818, %v636, 0
  %v2689 = vsel %vm818, %v637, 0
  %v2692 = vsel %vm818, %v638, 0
  %v2695 = vsel %vm818, %v639, 0
  %v2698 = vsel %vm818, %v640, 0
  %v2701 = vsel %vm818, %v641, 0
  %v2704 = vsel %vm818, %v642, 0
  %v2707 = vsel %vm818, %v643, 0
  %v2710 = vsel %vm818, %v644, 0
  %v2713 = vsel %vm818, %v645, 0
  %v2716 = vsel %vm818, %v646, 0
  %v2719 = vsel %vm818, %v647, 0
  %v2722 = vsel %vm818, %v648, 0
  %v2725 = vsel %vm818, %v649, 0
  %v2728 = vsel %vm818, %v650, 0
  %v2731 = vsel %vm818, %v651, 0
  %v2734 = vsel %vm818, %v652, 0
  %v2737 = vsel %vm818, %v653, 0
  %v2740 = vsel %vm818, %v654, 0
  %v2743 = vsel %vm818, %v655, 0
  %v2746 = vsel %vm818, %v656, 0
  %v2749 = vsel %vm818, %v657, 0
  %v2752 = vsel %vm818, %v658, 0
  %v2755 = vsel %vm818, %v659, 0
  %v2758 = vsel %vm818, %v660, 0
  %v2761 = vsel %vm818, %v661, 0
  %v2764 = vsel %vm818, %v662, 0
  %v2767 = vsel %vm818, %v663, 0
  %v2770 = vsel %vm818, %v664, 0
  %v2773 = vsel %vm818, %v665, 0
  %v2776 = vsel %vm818, %v666, 0
  %v2779 = vsel %vm818, %v667, 0
  %v2782 = vsel %vm818, %v668, 0
  %v2785 = vsel %vm818, %v669, 0
  %v2788 = vsel %vm818, %v670, 0
  %v2791 = vsel %vm818, %v671, 0
  %v2794 = vsel %vm818, %v672, 0
  %v2797 = vsel %vm818, %v673, 0
  %v2800 = vsel %vm818, %v674, 0
  %v2803 = vsel %vm818, %v675, 0
  %v2806 = vsel %vm818, %v676, 0
  %v2809 = vsel %vm818, %v677, 0
  %v2812 = vsel %vm818, %v678, 0
  %v2815 = vsel %vm818, %v679, 0
  %v2818 = vsel %vm818, %v680, 0
  %v2821 = vsel %vm818, %v681, 0
  %v2824 = vsel %vm818, %v682, 0
  %v2827 = vsel %vm818, %v683, 0
  %v2830 = vsel %vm818, %v684, 0
  %v2833 = vsel %vm818, %v685, 0
  %v2836 = vsel %vm818, %v686, 0
  %v2839 = vsel %vm818, %v687, 0
  %v2842 = vsel %vm818, %v688, 0
  %v2845 = vsel %vm818, %v689, 0
  %v2848 = vsel %vm818, %v690, 0
  %v2851 = vsel %vm818, %v691, 0
  %v2854 = vsel %vm818, %v692, 0
  %v2857 = vsel %vm818, %v693, 0
  %v2860 = vsel %vm818, %v694, 0
  %v2863 = vsel %vm818, %v695, 0
  %v2866 = vsel %vm818, %v696, 0
  %v2869 = vsel %vm818, %v697, 0
  %v2872 = vsel %vm818, %v698, 0
  %v2875 = vsel %vm818, %v699, 0
  %v2878 = vsel %vm818, %v700, 0
  %v2881 = vsel %vm818, %v701, 0
  %v2884 = vsel %vm818, %v702, 0
  %v2887 = vsel %vm818, %v703, 0
  %v2890 = vsel %vm818, %v704, 0
  %v2893 = vsel %vm818, %v705, 0
  %v2896 = vsel %vm818, %v706, 0
  %v2899 = vsel %vm818, %v707, 0
  %v2902 = vsel %vm818, %v708, 0
  %v2905 = vsel %vm818, %v709, 0
  %v2908 = vsel %vm818, %v710, 0
  %v2911 = vsel %vm818, %v711, 0
  %v2914 = vsel %vm818, %v712, 0
  %v2917 = vsel %vm818, %v713, 0
  %v2920 = vsel %vm818, %v714, 0
  %v2923 = vsel %vm818, %v715, 0
  %v2926 = vsel %vm818, %v716, 0
  %v2929 = vsel %vm818, %v717, 0
  %v2932 = vsel %vm818, %v718, 0
  %v2935 = vsel %vm818, %v719, 0
  %v2938 = vsel %vm818, %v720, 0
  %v2941 = vsel %vm818, %v721, 0
  %v2944 = vsel %vm818, %v722, 0
  %v2947 = vsel %vm818, %v723, 0
  %v2950 = vsel %vm818, %v724, 0
  %v2953 = vsel %vm818, %v725, 0
  %v2956 = vsel %vm818, %v726, 0
  %v2959 = vsel %vm818, %v727, 0
  %v2962 = vsel %vm818, %v728, 0
  %v2965 = vsel %vm818, %v729, 0
  %v2968 = vsel %vm818, %v730, 0
  %v2971 = vsel %vm818, %v731, 0
  %v2974 = vsel %vm818, %v732, 0
  %v2977 = vsel %vm818, %v733, 0
  %v2980 = vsel %vm818, %v734, 0
  %v2983 = vsel %vm818, %v735, 0
  %v2986 = vsel %vm818, %v736, 0
  %v2989 = vsel %vm818, %v737, 0
  %v2992 = vsel %vm818, %v738, 0
  %v2995 = vsel %vm818, %v739, 0
  %v2998 = vsel %vm818, %v740, 0
  %v3001 = vsel %vm818, %v741, 0
  %v3004 = vsel %vm818, %v742, 0
  %v3007 = vsel %vm818, %v743, 0
  %v3010 = vsel %vm818, %v744, 0
  %v3013 = vsel %vm818, %v745, 0
  %v3016 = vsel %vm818, %v746, 0
  %v3019 = vsel %vm818, %v747, 0
  %v3022 = vsel %vm818, %v748, 0
  %v3025 = vsel %vm818, %v749, 0
  %v3028 = vsel %vm818, %v750, 0
  %v3031 = vsel %vm818, %v751, 0
  %v3034 = vsel %vm818, %v752, 0
  %v3037 = vsel %vm818, %v753, 0
  %v3040 = vsel %vm818, %v754, 0
  %v3043 = vsel %vm818, %v755, 0
  %v3046 = vsel %vm818, %v756, 0
  %v3049 = vsel %vm818, %v757, 0
  %v3052 = vsel %vm818, %v758, 0
  %v3055 = vsel %vm818, %v759, 0
  %v3058 = vsel %vm818, %v760, 0
  %v3061 = vsel %vm818, %v761, 0
  %v3064 = vsel %vm818, %v762, 0
  %v3067 = vsel %vm818, %v763, 0
  %v3070 = vsel %vm818, %v764, 0
  %v3073 = vsel %vm818, %v765, 0
  %v3076 = vsel %vm818, %v766, 0
  %v3079 = vsel %vm818, %v767, 0
  %v3082 = vsel %vm818, %v768, 0
  %v3085 = vsel %vm818, %v769, 0
  %v3088 = vsel %vm818, %v770, 0
  %v3091 = vsel %vm818, %v771, 0
  %v3094 = vsel %vm818, %v772, 0
  %v3097 = vsel %vm818, %v773, 0
  %v3100 = vsel %vm818, %v774, 0
  %v3103 = vsel %vm818, %v775, 0
  %v3106 = vsel %vm818, %v776, 0
  %v3109 = vsel %vm818, %v777, 0
  %v3112 = vsel %vm818, %v778, 0
  %v3115 = vsel %vm818, %v779, 0
  %v3118 = vsel %vm818, %v780, 0
  %v3121 = vsel %vm818, %v781, 0
  %v3124 = vsel %vm818, %v782, 0
  %v3127 = vsel %vm818, %v783, 0
  %v3130 = vsel %vm818, %v784, 0
  %v3133 = vsel %vm818, %v785, 0
  %v3136 = vsel %vm818, %v786, 0
  %v3139 = vsel %vm818, %v787, 0
  %v3142 = vsel %vm818, %v788, 0
  %v3145 = vsel %vm818, %v789, 0
  %v3148 = vsel %vm818, %v790, 0
  %v3151 = vsel %vm818, %v791, 0
  %v3154 = vsel %vm818, %v792, 0
  %v3157 = vsel %vm818, %v793, 0
  %v3160 = vsel %vm818, %v794, 0
  %v3163 = vsel %vm818, %v795, 0
  %v3166 = vsel %vm818, %v796, 0
  %v3169 = vsel %vm818, %v797, 0
  %v3172 = vsel %vm818, %v798, 0
  %v3175 = vsel %vm818, %v799, 0
  %v3178 = vsel %vm818, %v800, 0
  %v3181 = vsel %vm818, %v801, 0
  %v3184 = vsel %vm818, %v802, 0
  %v3187 = vsel %vm818, %v803, 0
  %v3190 = vsel %vm818, %v804, 0
  %v3193 = vsel %vm818, %v805, 0
  %v3196 = vsel %vm818, %v806, 0
  %v3199 = vsel %vm818, %v807, 0
  %v3202 = vsel %vm818, %v808, 0
  %v3205 = vsel %vm818, %v809, 0
  %v3208 = vsel %vm818, %v810, 0
  %v3211 = vsel %vm818, %v811, 0
  %v3214 = vsel %vm818, %v812, 0
  %v3217 = vsel %vm818, %v813, 0
  %3219 = vmatpush.msra.mxu0 0.0
  %3220 = vmatpush.msra.mxu0 0.0
  %3221 = vmatpush.msra.mxu0 0.0
  %3222 = vmatpush.msra.mxu0 0.0
  %3223 = vmatpush.msra.mxu0 0.0
  %3224 = vmatpush.msra.mxu0 0.0
  %3225 = vmatpush.msra.mxu0 0.0
  %3226 = vmatpush.msra.mxu0 0.0
  %3227 = vmatpush.msra.mxu0 0.0
  %3228 = vmatpush.msra.mxu0 0.0
  %3229 = vmatpush.msra.mxu0 0.0
  %3230 = vmatpush.msra.mxu0 0.0
  %3231 = vmatpush.msra.mxu0 %v817
  %3232 = vmatpush.msra.mxu0 %v816
  %3233 = vmatpush.msra.mxu0 %v815
  %3234 = vmatpush.msra.mxu0 %v814
  %3235 = vmatmul.f32.gmra.mxu0 %v820
  %v3236 = vpop.f32.mrf.mxu0
  %v3237 = vadd.f32 0.0, %v3236
  %3238 = vmatmul.f32.gmra.mxu0 %v823
  %v3239 = vpop.f32.mrf.mxu0
  %v3240 = vadd.f32 0.0, %v3239
  %3241 = vmatmul.f32.gmra.mxu0 %v826
  %v3242 = vpop.f32.mrf.mxu0
  %v3243 = vadd.f32 0.0, %v3242
  %3244 = vmatmul.f32.gmra.mxu0 %v829
  %v3245 = vpop.f32.mrf.mxu0
  %v3246 = vadd.f32 0.0, %v3245
  %3247 = vmatmul.f32.gmra.mxu0 %v832
  %v3248 = vpop.f32.mrf.mxu0
  %v3249 = vadd.f32 0.0, %v3248
  %3250 = vmatmul.f32.gmra.mxu0 %v835
  %v3251 = vpop.f32.mrf.mxu0
  %v3252 = vadd.f32 0.0, %v3251
  %3253 = vmatmul.f32.gmra.mxu0 %v838
  %v3254 = vpop.f32.mrf.mxu0
  %v3255 = vadd.f32 0.0, %v3254
  %3256 = vmatmul.f32.gmra.mxu0 %v841
  %v3257 = vpop.f32.mrf.mxu0
  %v3258 = vadd.f32 0.0, %v3257
  %3259 = vmatmul.f32.gmra.mxu0 %v844
  %v3260 = vpop.f32.mrf.mxu0
  %v3261 = vadd.f32 0.0, %v3260
  %3262 = vmatmul.f32.gmra.mxu0 %v847
  %v3263 = vpop.f32.mrf.mxu0
  %v3264 = vadd.f32 0.0, %v3263
  %3265 = vmatmul.f32.gmra.mxu0 %v850
  %v3266 = vpop.f32.mrf.mxu0
  %v3267 = vadd.f32 0.0, %v3266
  %3268 = vmatmul.f32.gmra.mxu0 %v853
  %v3269 = vpop.f32.mrf.mxu0
  %v3270 = vadd.f32 0.0, %v3269
  %3271 = vmatmul.f32.gmra.mxu0 %v856
  %v3272 = vpop.f32.mrf.mxu0
  %v3273 = vadd.f32 0.0, %v3272
  %3274 = vmatmul.f32.gmra.mxu0 %v859
  %v3275 = vpop.f32.mrf.mxu0
  %v3276 = vadd.f32 0.0, %v3275
  %3277 = vmatmul.f32.gmra.mxu0 %v862
  %v3278 = vpop.f32.mrf.mxu0
  %v3279 = vadd.f32 0.0, %v3278
  %3280 = vmatmul.f32.gmra.mxu0 %v865
  %v3281 = vpop.f32.mrf.mxu0
  %v3282 = vadd.f32 0.0, %v3281
  %3283 = vmatmul.f32.gmra.mxu0 %v868
  %v3284 = vpop.f32.mrf.mxu0
  %v3285 = vadd.f32 0.0, %v3284
  %3286 = vmatmul.f32.gmra.mxu0 %v871
  %v3287 = vpop.f32.mrf.mxu0
  %v3288 = vadd.f32 0.0, %v3287
  %3289 = vmatmul.f32.gmra.mxu0 %v874
  %v3290 = vpop.f32.mrf.mxu0
  %v3291 = vadd.f32 0.0, %v3290
  %3292 = vmatmul.f32.gmra.mxu0 %v877
  %v3293 = vpop.f32.mrf.mxu0
  %v3294 = vadd.f32 0.0, %v3293
  %3295 = vmatmul.f32.gmra.mxu0 %v880
  %v3296 = vpop.f32.mrf.mxu0
  %v3297 = vadd.f32 0.0, %v3296
  %3298 = vmatmul.f32.gmra.mxu0 %v883
  %v3299 = vpop.f32.mrf.mxu0
  %v3300 = vadd.f32 0.0, %v3299
  %3301 = vmatmul.f32.gmra.mxu0 %v886
  %v3302 = vpop.f32.mrf.mxu0
  %v3303 = vadd.f32 0.0, %v3302
  %3304 = vmatmul.f32.gmra.mxu0 %v889
  %v3305 = vpop.f32.mrf.mxu0
  %v3306 = vadd.f32 0.0, %v3305
  %3307 = vmatmul.f32.gmra.mxu0 %v892
  %v3308 = vpop.f32.mrf.mxu0
  %v3309 = vadd.f32 0.0, %v3308
  %3310 = vmatmul.f32.gmra.mxu0 %v895
  %v3311 = vpop.f32.mrf.mxu0
  %v3312 = vadd.f32 0.0, %v3311
  %3313 = vmatmul.f32.gmra.mxu0 %v898
  %v3314 = vpop.f32.mrf.mxu0
  %v3315 = vadd.f32 0.0, %v3314
  %3316 = vmatmul.f32.gmra.mxu0 %v901
  %v3317 = vpop.f32.mrf.mxu0
  %v3318 = vadd.f32 0.0, %v3317
  %3319 = vmatmul.f32.gmra.mxu0 %v904
  %v3320 = vpop.f32.mrf.mxu0
  %v3321 = vadd.f32 0.0, %v3320
  %3322 = vmatmul.f32.gmra.mxu0 %v907
  %v3323 = vpop.f32.mrf.mxu0
  %v3324 = vadd.f32 0.0, %v3323
  %3325 = vmatmul.f32.gmra.mxu0 %v910
  %v3326 = vpop.f32.mrf.mxu0
  %v3327 = vadd.f32 0.0, %v3326
  %3328 = vmatmul.f32.gmra.mxu0 %v913
  %v3329 = vpop.f32.mrf.mxu0
  %v3330 = vadd.f32 0.0, %v3329
  %3331 = vmatmul.f32.gmra.mxu0 %v916
  %v3332 = vpop.f32.mrf.mxu0
  %v3333 = vadd.f32 0.0, %v3332
  %3334 = vmatmul.f32.gmra.mxu0 %v919
  %v3335 = vpop.f32.mrf.mxu0
  %v3336 = vadd.f32 0.0, %v3335
  %3337 = vmatmul.f32.gmra.mxu0 %v922
  %v3338 = vpop.f32.mrf.mxu0
  %v3339 = vadd.f32 0.0, %v3338
  %3340 = vmatmul.f32.gmra.mxu0 %v925
  %v3341 = vpop.f32.mrf.mxu0
  %v3342 = vadd.f32 0.0, %v3341
  %3343 = vmatmul.f32.gmra.mxu0 %v928
  %v3344 = vpop.f32.mrf.mxu0
  %v3345 = vadd.f32 0.0, %v3344
  %3346 = vmatmul.f32.gmra.mxu0 %v931
  %v3347 = vpop.f32.mrf.mxu0
  %v3348 = vadd.f32 0.0, %v3347
  %3349 = vmatmul.f32.gmra.mxu0 %v934
  %v3350 = vpop.f32.mrf.mxu0
  %v3351 = vadd.f32 0.0, %v3350
  %3352 = vmatmul.f32.gmra.mxu0 %v937
  %v3353 = vpop.f32.mrf.mxu0
  %v3354 = vadd.f32 0.0, %v3353
  %3355 = vmatmul.f32.gmra.mxu0 %v940
  %v3356 = vpop.f32.mrf.mxu0
  %v3357 = vadd.f32 0.0, %v3356
  %3358 = vmatmul.f32.gmra.mxu0 %v943
  %v3359 = vpop.f32.mrf.mxu0
  %v3360 = vadd.f32 0.0, %v3359
  %3361 = vmatmul.f32.gmra.mxu0 %v946
  %v3362 = vpop.f32.mrf.mxu0
  %v3363 = vadd.f32 0.0, %v3362
  %3364 = vmatmul.f32.gmra.mxu0 %v949
  %v3365 = vpop.f32.mrf.mxu0
  %v3366 = vadd.f32 0.0, %v3365
  %3367 = vmatmul.f32.gmra.mxu0 %v952
  %v3368 = vpop.f32.mrf.mxu0
  %v3369 = vadd.f32 0.0, %v3368
  %3370 = vmatmul.f32.gmra.mxu0 %v955
  %v3371 = vpop.f32.mrf.mxu0
  %v3372 = vadd.f32 0.0, %v3371
  %3373 = vmatmul.f32.gmra.mxu0 %v958
  %v3374 = vpop.f32.mrf.mxu0
  %v3375 = vadd.f32 0.0, %v3374
  %3376 = vmatmul.f32.gmra.mxu0 %v961
  %v3377 = vpop.f32.mrf.mxu0
  %v3378 = vadd.f32 0.0, %v3377
  %3379 = vmatmul.f32.gmra.mxu0 %v964
  %v3380 = vpop.f32.mrf.mxu0
  %v3381 = vadd.f32 0.0, %v3380
  %3382 = vmatmul.f32.gmra.mxu0 %v967
  %v3383 = vpop.f32.mrf.mxu0
  %v3384 = vadd.f32 0.0, %v3383
  %3385 = vmatmul.f32.gmra.mxu0 %v970
  %v3386 = vpop.f32.mrf.mxu0
  %v3387 = vadd.f32 0.0, %v3386
  %3388 = vmatmul.f32.gmra.mxu0 %v973
  %v3389 = vpop.f32.mrf.mxu0
  %v3390 = vadd.f32 0.0, %v3389
  %3391 = vmatmul.f32.gmra.mxu0 %v976
  %v3392 = vpop.f32.mrf.mxu0
  %v3393 = vadd.f32 0.0, %v3392
  %3394 = vmatmul.f32.gmra.mxu0 %v979
  %v3395 = vpop.f32.mrf.mxu0
  %v3396 = vadd.f32 0.0, %v3395
  %3397 = vmatmul.f32.gmra.mxu0 %v982
  %v3398 = vpop.f32.mrf.mxu0
  %v3399 = vadd.f32 0.0, %v3398
  %3400 = vmatmul.f32.gmra.mxu0 %v985
  %v3401 = vpop.f32.mrf.mxu0
  %v3402 = vadd.f32 0.0, %v3401
  %3403 = vmatmul.f32.gmra.mxu0 %v988
  %v3404 = vpop.f32.mrf.mxu0
  %v3405 = vadd.f32 0.0, %v3404
  %3406 = vmatmul.f32.gmra.mxu0 %v991
  %v3407 = vpop.f32.mrf.mxu0
  %v3408 = vadd.f32 0.0, %v3407
  %3409 = vmatmul.f32.gmra.mxu0 %v994
  %v3410 = vpop.f32.mrf.mxu0
  %v3411 = vadd.f32 0.0, %v3410
  %3412 = vmatmul.f32.gmra.mxu0 %v997
  %v3413 = vpop.f32.mrf.mxu0
  %v3414 = vadd.f32 0.0, %v3413
  %3415 = vmatmul.f32.gmra.mxu0 %v1000
  %v3416 = vpop.f32.mrf.mxu0
  %v3417 = vadd.f32 0.0, %v3416
  %3418 = vmatmul.f32.gmra.mxu0 %v1003
  %v3419 = vpop.f32.mrf.mxu0
  %v3420 = vadd.f32 0.0, %v3419
  %3421 = vmatmul.f32.gmra.mxu0 %v1006
  %v3422 = vpop.f32.mrf.mxu0
  %v3423 = vadd.f32 0.0, %v3422
  %3424 = vmatmul.f32.gmra.mxu0 %v1009
  %v3425 = vpop.f32.mrf.mxu0
  %v3426 = vadd.f32 0.0, %v3425
  %3427 = vmatmul.f32.gmra.mxu0 %v1012
  %v3428 = vpop.f32.mrf.mxu0
  %v3429 = vadd.f32 0.0, %v3428
  %3430 = vmatmul.f32.gmra.mxu0 %v1015
  %v3431 = vpop.f32.mrf.mxu0
  %v3432 = vadd.f32 0.0, %v3431
  %3433 = vmatmul.f32.gmra.mxu0 %v1018
  %v3434 = vpop.f32.mrf.mxu0
  %v3435 = vadd.f32 0.0, %v3434
  %3436 = vmatmul.f32.gmra.mxu0 %v1021
  %v3437 = vpop.f32.mrf.mxu0
  %v3438 = vadd.f32 0.0, %v3437
  %3439 = vmatmul.f32.gmra.mxu0 %v1024
  %v3440 = vpop.f32.mrf.mxu0
  %v3441 = vadd.f32 0.0, %v3440
  %3442 = vmatmul.f32.gmra.mxu0 %v1027
  %v3443 = vpop.f32.mrf.mxu0
  %v3444 = vadd.f32 0.0, %v3443
  %3445 = vmatmul.f32.gmra.mxu0 %v1030
  %v3446 = vpop.f32.mrf.mxu0
  %v3447 = vadd.f32 0.0, %v3446
  %3448 = vmatmul.f32.gmra.mxu0 %v1033
  %v3449 = vpop.f32.mrf.mxu0
  %v3450 = vadd.f32 0.0, %v3449
  %3451 = vmatmul.f32.gmra.mxu0 %v1036
  %v3452 = vpop.f32.mrf.mxu0
  %v3453 = vadd.f32 0.0, %v3452
  %3454 = vmatmul.f32.gmra.mxu0 %v1039
  %v3455 = vpop.f32.mrf.mxu0
  %v3456 = vadd.f32 0.0, %v3455
  %3457 = vmatmul.f32.gmra.mxu0 %v1042
  %v3458 = vpop.f32.mrf.mxu0
  %v3459 = vadd.f32 0.0, %v3458
  %3460 = vmatmul.f32.gmra.mxu0 %v1045
  %v3461 = vpop.f32.mrf.mxu0
  %v3462 = vadd.f32 0.0, %v3461
  %3463 = vmatmul.f32.gmra.mxu0 %v1048
  %v3464 = vpop.f32.mrf.mxu0
  %v3465 = vadd.f32 0.0, %v3464
  %3466 = vmatmul.f32.gmra.mxu0 %v1051
  %v3467 = vpop.f32.mrf.mxu0
  %v3468 = vadd.f32 0.0, %v3467
  %3469 = vmatmul.f32.gmra.mxu0 %v1054
  %v3470 = vpop.f32.mrf.mxu0
  %v3471 = vadd.f32 0.0, %v3470
  %3472 = vmatmul.f32.gmra.mxu0 %v1057
  %v3473 = vpop.f32.mrf.mxu0
  %v3474 = vadd.f32 0.0, %v3473
  %3475 = vmatmul.f32.gmra.mxu0 %v1060
  %v3476 = vpop.f32.mrf.mxu0
  %v3477 = vadd.f32 0.0, %v3476
  %3478 = vmatmul.f32.gmra.mxu0 %v1063
  %v3479 = vpop.f32.mrf.mxu0
  %v3480 = vadd.f32 0.0, %v3479
  %3481 = vmatmul.f32.gmra.mxu0 %v1066
  %v3482 = vpop.f32.mrf.mxu0
  %v3483 = vadd.f32 0.0, %v3482
  %3484 = vmatmul.f32.gmra.mxu0 %v1069
  %v3485 = vpop.f32.mrf.mxu0
  %v3486 = vadd.f32 0.0, %v3485
  %3487 = vmatmul.f32.gmra.mxu0 %v1072
  %v3488 = vpop.f32.mrf.mxu0
  %v3489 = vadd.f32 0.0, %v3488
  %3490 = vmatmul.f32.gmra.mxu0 %v1075
  %v3491 = vpop.f32.mrf.mxu0
  %v3492 = vadd.f32 0.0, %v3491
  %3493 = vmatmul.f32.gmra.mxu0 %v1078
  %v3494 = vpop.f32.mrf.mxu0
  %v3495 = vadd.f32 0.0, %v3494
  %3496 = vmatmul.f32.gmra.mxu0 %v1081
  %v3497 = vpop.f32.mrf.mxu0
  %v3498 = vadd.f32 0.0, %v3497
  %3499 = vmatmul.f32.gmra.mxu0 %v1084
  %v3500 = vpop.f32.mrf.mxu0
  %v3501 = vadd.f32 0.0, %v3500
  %3502 = vmatmul.f32.gmra.mxu0 %v1087
  %v3503 = vpop.f32.mrf.mxu0
  %v3504 = vadd.f32 0.0, %v3503
  %3505 = vmatmul.f32.gmra.mxu0 %v1090
  %v3506 = vpop.f32.mrf.mxu0
  %v3507 = vadd.f32 0.0, %v3506
  %3508 = vmatmul.f32.gmra.mxu0 %v1093
  %v3509 = vpop.f32.mrf.mxu0
  %v3510 = vadd.f32 0.0, %v3509
  %3511 = vmatmul.f32.gmra.mxu0 %v1096
  %v3512 = vpop.f32.mrf.mxu0
  %v3513 = vadd.f32 0.0, %v3512
  %3514 = vmatmul.f32.gmra.mxu0 %v1099
  %v3515 = vpop.f32.mrf.mxu0
  %v3516 = vadd.f32 0.0, %v3515
  %3517 = vmatmul.f32.gmra.mxu0 %v1102
  %v3518 = vpop.f32.mrf.mxu0
  %v3519 = vadd.f32 0.0, %v3518
  %3520 = vmatmul.f32.gmra.mxu0 %v1105
  %v3521 = vpop.f32.mrf.mxu0
  %v3522 = vadd.f32 0.0, %v3521
  %3523 = vmatmul.f32.gmra.mxu0 %v1108
  %v3524 = vpop.f32.mrf.mxu0
  %v3525 = vadd.f32 0.0, %v3524
  %3526 = vmatmul.f32.gmra.mxu0 %v1111
  %v3527 = vpop.f32.mrf.mxu0
  %v3528 = vadd.f32 0.0, %v3527
  %3529 = vmatmul.f32.gmra.mxu0 %v1114
  %v3530 = vpop.f32.mrf.mxu0
  %v3531 = vadd.f32 0.0, %v3530
  %3532 = vmatmul.f32.gmra.mxu0 %v1117
  %v3533 = vpop.f32.mrf.mxu0
  %v3534 = vadd.f32 0.0, %v3533
  %3535 = vmatmul.f32.gmra.mxu0 %v1120
  %v3536 = vpop.f32.mrf.mxu0
  %v3537 = vadd.f32 0.0, %v3536
  %3538 = vmatmul.f32.gmra.mxu0 %v1123
  %v3539 = vpop.f32.mrf.mxu0
  %v3540 = vadd.f32 0.0, %v3539
  %3541 = vmatmul.f32.gmra.mxu0 %v1126
  %v3542 = vpop.f32.mrf.mxu0
  %v3543 = vadd.f32 0.0, %v3542
  %3544 = vmatmul.f32.gmra.mxu0 %v1129
  %v3545 = vpop.f32.mrf.mxu0
  %v3546 = vadd.f32 0.0, %v3545
  %3547 = vmatmul.f32.gmra.mxu0 %v1132
  %v3548 = vpop.f32.mrf.mxu0
  %v3549 = vadd.f32 0.0, %v3548
  %3550 = vmatmul.f32.gmra.mxu0 %v1135
  %v3551 = vpop.f32.mrf.mxu0
  %v3552 = vadd.f32 0.0, %v3551
  %3553 = vmatmul.f32.gmra.mxu0 %v1138
  %v3554 = vpop.f32.mrf.mxu0
  %v3555 = vadd.f32 0.0, %v3554
  %3556 = vmatmul.f32.gmra.mxu0 %v1141
  %v3557 = vpop.f32.mrf.mxu0
  %v3558 = vadd.f32 0.0, %v3557
  %3559 = vmatmul.f32.gmra.mxu0 %v1144
  %v3560 = vpop.f32.mrf.mxu0
  %v3561 = vadd.f32 0.0, %v3560
  %3562 = vmatmul.f32.gmra.mxu0 %v1147
  %v3563 = vpop.f32.mrf.mxu0
  %v3564 = vadd.f32 0.0, %v3563
  %3565 = vmatmul.f32.gmra.mxu0 %v1150
  %v3566 = vpop.f32.mrf.mxu0
  %v3567 = vadd.f32 0.0, %v3566
  %3568 = vmatmul.f32.gmra.mxu0 %v1153
  %v3569 = vpop.f32.mrf.mxu0
  %v3570 = vadd.f32 0.0, %v3569
  %3571 = vmatmul.f32.gmra.mxu0 %v1156
  %v3572 = vpop.f32.mrf.mxu0
  %v3573 = vadd.f32 0.0, %v3572
  %3574 = vmatmul.f32.gmra.mxu0 %v1159
  %v3575 = vpop.f32.mrf.mxu0
  %v3576 = vadd.f32 0.0, %v3575
  %3577 = vmatmul.f32.gmra.mxu0 %v1162
  %v3578 = vpop.f32.mrf.mxu0
  %v3579 = vadd.f32 0.0, %v3578
  %3580 = vmatmul.f32.gmra.mxu0 %v1165
  %v3581 = vpop.f32.mrf.mxu0
  %v3582 = vadd.f32 0.0, %v3581
  %3583 = vmatmul.f32.gmra.mxu0 %v1168
  %v3584 = vpop.f32.mrf.mxu0
  %v3585 = vadd.f32 0.0, %v3584
  %3586 = vmatmul.f32.gmra.mxu0 %v1171
  %v3587 = vpop.f32.mrf.mxu0
  %v3588 = vadd.f32 0.0, %v3587
  %3589 = vmatmul.f32.gmra.mxu0 %v1174
  %v3590 = vpop.f32.mrf.mxu0
  %v3591 = vadd.f32 0.0, %v3590
  %3592 = vmatmul.f32.gmra.mxu0 %v1177
  %v3593 = vpop.f32.mrf.mxu0
  %v3594 = vadd.f32 0.0, %v3593
  %3595 = vmatmul.f32.gmra.mxu0 %v1180
  %v3596 = vpop.f32.mrf.mxu0
  %v3597 = vadd.f32 0.0, %v3596
  %3598 = vmatmul.f32.gmra.mxu0 %v1183
  %v3599 = vpop.f32.mrf.mxu0
  %v3600 = vadd.f32 0.0, %v3599
  %3601 = vmatmul.f32.gmra.mxu0 %v1186
  %v3602 = vpop.f32.mrf.mxu0
  %v3603 = vadd.f32 0.0, %v3602
  %3604 = vmatmul.f32.gmra.mxu0 %v1189
  %v3605 = vpop.f32.mrf.mxu0
  %v3606 = vadd.f32 0.0, %v3605
  %3607 = vmatmul.f32.gmra.mxu0 %v1192
  %v3608 = vpop.f32.mrf.mxu0
  %v3609 = vadd.f32 0.0, %v3608
  %3610 = vmatmul.f32.gmra.mxu0 %v1195
  %v3611 = vpop.f32.mrf.mxu0
  %v3612 = vadd.f32 0.0, %v3611
  %3613 = vmatmul.f32.gmra.mxu0 %v1198
  %v3614 = vpop.f32.mrf.mxu0
  %v3615 = vadd.f32 0.0, %v3614
  %3616 = vmatmul.f32.gmra.mxu0 %v1201
  %v3617 = vpop.f32.mrf.mxu0
  %v3618 = vadd.f32 0.0, %v3617
  %3619 = vmatmul.f32.gmra.mxu0 %v1204
  %v3620 = vpop.f32.mrf.mxu0
  %v3621 = vadd.f32 0.0, %v3620
  %3622 = vmatmul.f32.gmra.mxu0 %v1207
  %v3623 = vpop.f32.mrf.mxu0
  %v3624 = vadd.f32 0.0, %v3623
  %3625 = vmatmul.f32.gmra.mxu0 %v1210
  %v3626 = vpop.f32.mrf.mxu0
  %v3627 = vadd.f32 0.0, %v3626
  %3628 = vmatmul.f32.gmra.mxu0 %v1213
  %v3629 = vpop.f32.mrf.mxu0
  %v3630 = vadd.f32 0.0, %v3629
  %3631 = vmatmul.f32.gmra.mxu0 %v1216
  %v3632 = vpop.f32.mrf.mxu0
  %v3633 = vadd.f32 0.0, %v3632
  %3634 = vmatmul.f32.gmra.mxu0 %v1219
  %v3635 = vpop.f32.mrf.mxu0
  %v3636 = vadd.f32 0.0, %v3635
  %3637 = vmatmul.f32.gmra.mxu0 %v1222
  %v3638 = vpop.f32.mrf.mxu0
  %v3639 = vadd.f32 0.0, %v3638
  %3640 = vmatmul.f32.gmra.mxu0 %v1225
  %v3641 = vpop.f32.mrf.mxu0
  %v3642 = vadd.f32 0.0, %v3641
  %3643 = vmatmul.f32.gmra.mxu0 %v1228
  %v3644 = vpop.f32.mrf.mxu0
  %v3645 = vadd.f32 0.0, %v3644
  %3646 = vmatmul.f32.gmra.mxu0 %v1231
  %v3647 = vpop.f32.mrf.mxu0
  %v3648 = vadd.f32 0.0, %v3647
  %3649 = vmatmul.f32.gmra.mxu0 %v1234
  %v3650 = vpop.f32.mrf.mxu0
  %v3651 = vadd.f32 0.0, %v3650
  %3652 = vmatmul.f32.gmra.mxu0 %v1237
  %v3653 = vpop.f32.mrf.mxu0
  %v3654 = vadd.f32 0.0, %v3653
  %3655 = vmatmul.f32.gmra.mxu0 %v1240
  %v3656 = vpop.f32.mrf.mxu0
  %v3657 = vadd.f32 0.0, %v3656
  %3658 = vmatmul.f32.gmra.mxu0 %v1243
  %v3659 = vpop.f32.mrf.mxu0
  %v3660 = vadd.f32 0.0, %v3659
  %3661 = vmatmul.f32.gmra.mxu0 %v1246
  %v3662 = vpop.f32.mrf.mxu0
  %v3663 = vadd.f32 0.0, %v3662
  %3664 = vmatmul.f32.gmra.mxu0 %v1249
  %v3665 = vpop.f32.mrf.mxu0
  %v3666 = vadd.f32 0.0, %v3665
  %3667 = vmatmul.f32.gmra.mxu0 %v1252
  %v3668 = vpop.f32.mrf.mxu0
  %v3669 = vadd.f32 0.0, %v3668
  %3670 = vmatmul.f32.gmra.mxu0 %v1255
  %v3671 = vpop.f32.mrf.mxu0
  %v3672 = vadd.f32 0.0, %v3671
  %3673 = vmatmul.f32.gmra.mxu0 %v1258
  %v3674 = vpop.f32.mrf.mxu0
  %v3675 = vadd.f32 0.0, %v3674
  %3676 = vmatmul.f32.gmra.mxu0 %v1261
  %v3677 = vpop.f32.mrf.mxu0
  %v3678 = vadd.f32 0.0, %v3677
  %3679 = vmatmul.f32.gmra.mxu0 %v1264
  %v3680 = vpop.f32.mrf.mxu0
  %v3681 = vadd.f32 0.0, %v3680
  %3682 = vmatmul.f32.gmra.mxu0 %v1267
  %v3683 = vpop.f32.mrf.mxu0
  %v3684 = vadd.f32 0.0, %v3683
  %3685 = vmatmul.f32.gmra.mxu0 %v1270
  %v3686 = vpop.f32.mrf.mxu0
  %v3687 = vadd.f32 0.0, %v3686
  %3688 = vmatmul.f32.gmra.mxu0 %v1273
  %v3689 = vpop.f32.mrf.mxu0
  %v3690 = vadd.f32 0.0, %v3689
  %3691 = vmatmul.f32.gmra.mxu0 %v1276
  %v3692 = vpop.f32.mrf.mxu0
  %v3693 = vadd.f32 0.0, %v3692
  %3694 = vmatmul.f32.gmra.mxu0 %v1279
  %v3695 = vpop.f32.mrf.mxu0
  %v3696 = vadd.f32 0.0, %v3695
  %3697 = vmatmul.f32.gmra.mxu0 %v1282
  %v3698 = vpop.f32.mrf.mxu0
  %v3699 = vadd.f32 0.0, %v3698
  %3700 = vmatmul.f32.gmra.mxu0 %v1285
  %v3701 = vpop.f32.mrf.mxu0
  %v3702 = vadd.f32 0.0, %v3701
  %3703 = vmatmul.f32.gmra.mxu0 %v1288
  %v3704 = vpop.f32.mrf.mxu0
  %v3705 = vadd.f32 0.0, %v3704
  %3706 = vmatmul.f32.gmra.mxu0 %v1291
  %v3707 = vpop.f32.mrf.mxu0
  %v3708 = vadd.f32 0.0, %v3707
  %3709 = vmatmul.f32.gmra.mxu0 %v1294
  %v3710 = vpop.f32.mrf.mxu0
  %v3711 = vadd.f32 0.0, %v3710
  %3712 = vmatmul.f32.gmra.mxu0 %v1297
  %v3713 = vpop.f32.mrf.mxu0
  %v3714 = vadd.f32 0.0, %v3713
  %3715 = vmatmul.f32.gmra.mxu0 %v1300
  %v3716 = vpop.f32.mrf.mxu0
  %v3717 = vadd.f32 0.0, %v3716
  %3718 = vmatmul.f32.gmra.mxu0 %v1303
  %v3719 = vpop.f32.mrf.mxu0
  %v3720 = vadd.f32 0.0, %v3719
  %3721 = vmatmul.f32.gmra.mxu0 %v1306
  %v3722 = vpop.f32.mrf.mxu0
  %v3723 = vadd.f32 0.0, %v3722
  %3724 = vmatmul.f32.gmra.mxu0 %v1309
  %v3725 = vpop.f32.mrf.mxu0
  %v3726 = vadd.f32 0.0, %v3725
  %3727 = vmatmul.f32.gmra.mxu0 %v1312
  %v3728 = vpop.f32.mrf.mxu0
  %v3729 = vadd.f32 0.0, %v3728
  %3730 = vmatmul.f32.gmra.mxu0 %v1315
  %v3731 = vpop.f32.mrf.mxu0
  %v3732 = vadd.f32 0.0, %v3731
  %3733 = vmatmul.f32.gmra.mxu0 %v1318
  %v3734 = vpop.f32.mrf.mxu0
  %v3735 = vadd.f32 0.0, %v3734
  %3736 = vmatmul.f32.gmra.mxu0 %v1321
  %v3737 = vpop.f32.mrf.mxu0
  %v3738 = vadd.f32 0.0, %v3737
  %3739 = vmatmul.f32.gmra.mxu0 %v1324
  %v3740 = vpop.f32.mrf.mxu0
  %v3741 = vadd.f32 0.0, %v3740
  %3742 = vmatmul.f32.gmra.mxu0 %v1327
  %v3743 = vpop.f32.mrf.mxu0
  %v3744 = vadd.f32 0.0, %v3743
  %3745 = vmatmul.f32.gmra.mxu0 %v1330
  %v3746 = vpop.f32.mrf.mxu0
  %v3747 = vadd.f32 0.0, %v3746
  %3748 = vmatmul.f32.gmra.mxu0 %v1333
  %v3749 = vpop.f32.mrf.mxu0
  %v3750 = vadd.f32 0.0, %v3749
  %3751 = vmatmul.f32.gmra.mxu0 %v1336
  %v3752 = vpop.f32.mrf.mxu0
  %v3753 = vadd.f32 0.0, %v3752
  %3754 = vmatmul.f32.gmra.mxu0 %v1339
  %v3755 = vpop.f32.mrf.mxu0
  %v3756 = vadd.f32 0.0, %v3755
  %3757 = vmatmul.f32.gmra.mxu0 %v1342
  %v3758 = vpop.f32.mrf.mxu0
  %v3759 = vadd.f32 0.0, %v3758
  %3760 = vmatmul.f32.gmra.mxu0 %v1345
  %v3761 = vpop.f32.mrf.mxu0
  %v3762 = vadd.f32 0.0, %v3761
  %3763 = vmatmul.f32.gmra.mxu0 %v1348
  %v3764 = vpop.f32.mrf.mxu0
  %v3765 = vadd.f32 0.0, %v3764
  %3766 = vmatmul.f32.gmra.mxu0 %v1351
  %v3767 = vpop.f32.mrf.mxu0
  %v3768 = vadd.f32 0.0, %v3767
  %3769 = vmatmul.f32.gmra.mxu0 %v1354
  %v3770 = vpop.f32.mrf.mxu0
  %v3771 = vadd.f32 0.0, %v3770
  %3772 = vmatmul.f32.gmra.mxu0 %v1357
  %v3773 = vpop.f32.mrf.mxu0
  %v3774 = vadd.f32 0.0, %v3773
  %3775 = vmatmul.f32.gmra.mxu0 %v1360
  %v3776 = vpop.f32.mrf.mxu0
  %v3777 = vadd.f32 0.0, %v3776
  %3778 = vmatmul.f32.gmra.mxu0 %v1363
  %v3779 = vpop.f32.mrf.mxu0
  %v3780 = vadd.f32 0.0, %v3779
  %3781 = vmatmul.f32.gmra.mxu0 %v1366
  %v3782 = vpop.f32.mrf.mxu0
  %v3783 = vadd.f32 0.0, %v3782
  %3784 = vmatmul.f32.gmra.mxu0 %v1369
  %v3785 = vpop.f32.mrf.mxu0
  %v3786 = vadd.f32 0.0, %v3785
  %3787 = vmatmul.f32.gmra.mxu0 %v1372
  %v3788 = vpop.f32.mrf.mxu0
  %v3789 = vadd.f32 0.0, %v3788
  %3790 = vmatmul.f32.gmra.mxu0 %v1375
  %v3791 = vpop.f32.mrf.mxu0
  %v3792 = vadd.f32 0.0, %v3791
  %3793 = vmatmul.f32.gmra.mxu0 %v1378
  %v3794 = vpop.f32.mrf.mxu0
  %v3795 = vadd.f32 0.0, %v3794
  %3796 = vmatmul.f32.gmra.mxu0 %v1381
  %v3797 = vpop.f32.mrf.mxu0
  %v3798 = vadd.f32 0.0, %v3797
  %3799 = vmatmul.f32.gmra.mxu0 %v1384
  %v3800 = vpop.f32.mrf.mxu0
  %v3801 = vadd.f32 0.0, %v3800
  %3802 = vmatmul.f32.gmra.mxu0 %v1387
  %v3803 = vpop.f32.mrf.mxu0
  %v3804 = vadd.f32 0.0, %v3803
  %3805 = vmatmul.f32.gmra.mxu0 %v1390
  %v3806 = vpop.f32.mrf.mxu0
  %v3807 = vadd.f32 0.0, %v3806
  %3808 = vmatmul.f32.gmra.mxu0 %v1393
  %v3809 = vpop.f32.mrf.mxu0
  %v3810 = vadd.f32 0.0, %v3809
  %3811 = vmatmul.f32.gmra.mxu0 %v1396
  %v3812 = vpop.f32.mrf.mxu0
  %v3813 = vadd.f32 0.0, %v3812
  %3814 = vmatmul.f32.gmra.mxu0 %v1399
  %v3815 = vpop.f32.mrf.mxu0
  %v3816 = vadd.f32 0.0, %v3815
  %3817 = vmatmul.f32.gmra.mxu0 %v1402
  %v3818 = vpop.f32.mrf.mxu0
  %v3819 = vadd.f32 0.0, %v3818
  %3820 = vmatmul.f32.gmra.mxu0 %v1405
  %v3821 = vpop.f32.mrf.mxu0
  %v3822 = vadd.f32 0.0, %v3821
  %3823 = vmatmul.f32.gmra.mxu0 %v1408
  %v3824 = vpop.f32.mrf.mxu0
  %v3825 = vadd.f32 0.0, %v3824
  %3826 = vmatmul.f32.gmra.mxu0 %v1411
  %v3827 = vpop.f32.mrf.mxu0
  %v3828 = vadd.f32 0.0, %v3827
  %3829 = vmatmul.f32.gmra.mxu0 %v1414
  %v3830 = vpop.f32.mrf.mxu0
  %v3831 = vadd.f32 0.0, %v3830
  %3832 = vmatmul.f32.gmra.mxu0 %v1417
  %v3833 = vpop.f32.mrf.mxu0
  %v3834 = vadd.f32 0.0, %v3833
  %3835 = vmatmul.f32.gmra.mxu0 %v1420
  %v3836 = vpop.f32.mrf.mxu0
  %v3837 = vadd.f32 0.0, %v3836
  %3838 = vmatmul.f32.gmra.mxu0 %v1423
  %v3839 = vpop.f32.mrf.mxu0
  %v3840 = vadd.f32 0.0, %v3839
  %3841 = vmatmul.f32.gmra.mxu0 %v1426
  %v3842 = vpop.f32.mrf.mxu0
  %v3843 = vadd.f32 0.0, %v3842
  %3844 = vmatmul.f32.gmra.mxu0 %v1429
  %v3845 = vpop.f32.mrf.mxu0
  %v3846 = vadd.f32 0.0, %v3845
  %3847 = vmatmul.f32.gmra.mxu0 %v1432
  %v3848 = vpop.f32.mrf.mxu0
  %v3849 = vadd.f32 0.0, %v3848
  %3850 = vmatmul.f32.gmra.mxu0 %v1435
  %v3851 = vpop.f32.mrf.mxu0
  %v3852 = vadd.f32 0.0, %v3851
  %3853 = vmatmul.f32.gmra.mxu0 %v1438
  %v3854 = vpop.f32.mrf.mxu0
  %v3855 = vadd.f32 0.0, %v3854
  %3856 = vmatmul.f32.gmra.mxu0 %v1441
  %v3857 = vpop.f32.mrf.mxu0
  %v3858 = vadd.f32 0.0, %v3857
  %3859 = vmatmul.f32.gmra.mxu0 %v1444
  %v3860 = vpop.f32.mrf.mxu0
  %v3861 = vadd.f32 0.0, %v3860
  %3862 = vmatmul.f32.gmra.mxu0 %v1447
  %v3863 = vpop.f32.mrf.mxu0
  %v3864 = vadd.f32 0.0, %v3863
  %3865 = vmatmul.f32.gmra.mxu0 %v1450
  %v3866 = vpop.f32.mrf.mxu0
  %v3867 = vadd.f32 0.0, %v3866
  %3868 = vmatmul.f32.gmra.mxu0 %v1453
  %v3869 = vpop.f32.mrf.mxu0
  %v3870 = vadd.f32 0.0, %v3869
  %3871 = vmatmul.f32.gmra.mxu0 %v1456
  %v3872 = vpop.f32.mrf.mxu0
  %v3873 = vadd.f32 0.0, %v3872
  %3874 = vmatmul.f32.gmra.mxu0 %v1459
  %v3875 = vpop.f32.mrf.mxu0
  %v3876 = vadd.f32 0.0, %v3875
  %3877 = vmatmul.f32.gmra.mxu0 %v1462
  %v3878 = vpop.f32.mrf.mxu0
  %v3879 = vadd.f32 0.0, %v3878
  %3880 = vmatmul.f32.gmra.mxu0 %v1465
  %v3881 = vpop.f32.mrf.mxu0
  %v3882 = vadd.f32 0.0, %v3881
  %3883 = vmatmul.f32.gmra.mxu0 %v1468
  %v3884 = vpop.f32.mrf.mxu0
  %v3885 = vadd.f32 0.0, %v3884
  %3886 = vmatmul.f32.gmra.mxu0 %v1471
  %v3887 = vpop.f32.mrf.mxu0
  %v3888 = vadd.f32 0.0, %v3887
  %3889 = vmatmul.f32.gmra.mxu0 %v1474
  %v3890 = vpop.f32.mrf.mxu0
  %v3891 = vadd.f32 0.0, %v3890
  %3892 = vmatmul.f32.gmra.mxu0 %v1477
  %v3893 = vpop.f32.mrf.mxu0
  %v3894 = vadd.f32 0.0, %v3893
  %3895 = vmatmul.f32.gmra.mxu0 %v1480
  %v3896 = vpop.f32.mrf.mxu0
  %v3897 = vadd.f32 0.0, %v3896
  %3898 = vmatmul.f32.gmra.mxu0 %v1483
  %v3899 = vpop.f32.mrf.mxu0
  %v3900 = vadd.f32 0.0, %v3899
  %3901 = vmatmul.f32.gmra.mxu0 %v1486
  %v3902 = vpop.f32.mrf.mxu0
  %v3903 = vadd.f32 0.0, %v3902
  %3904 = vmatmul.f32.gmra.mxu0 %v1489
  %v3905 = vpop.f32.mrf.mxu0
  %v3906 = vadd.f32 0.0, %v3905
  %3907 = vmatmul.f32.gmra.mxu0 %v1492
  %v3908 = vpop.f32.mrf.mxu0
  %v3909 = vadd.f32 0.0, %v3908
  %3910 = vmatmul.f32.gmra.mxu0 %v1495
  %v3911 = vpop.f32.mrf.mxu0
  %v3912 = vadd.f32 0.0, %v3911
  %3913 = vmatmul.f32.gmra.mxu0 %v1498
  %v3914 = vpop.f32.mrf.mxu0
  %v3915 = vadd.f32 0.0, %v3914
  %3916 = vmatmul.f32.gmra.mxu0 %v1501
  %v3917 = vpop.f32.mrf.mxu0
  %v3918 = vadd.f32 0.0, %v3917
  %3919 = vmatmul.f32.gmra.mxu0 %v1504
  %v3920 = vpop.f32.mrf.mxu0
  %v3921 = vadd.f32 0.0, %v3920
  %3922 = vmatmul.f32.gmra.mxu0 %v1507
  %v3923 = vpop.f32.mrf.mxu0
  %v3924 = vadd.f32 0.0, %v3923
  %3925 = vmatmul.f32.gmra.mxu0 %v1510
  %v3926 = vpop.f32.mrf.mxu0
  %v3927 = vadd.f32 0.0, %v3926
  %3928 = vmatmul.f32.gmra.mxu0 %v1513
  %v3929 = vpop.f32.mrf.mxu0
  %v3930 = vadd.f32 0.0, %v3929
  %3931 = vmatmul.f32.gmra.mxu0 %v1516
  %v3932 = vpop.f32.mrf.mxu0
  %v3933 = vadd.f32 0.0, %v3932
  %3934 = vmatmul.f32.gmra.mxu0 %v1519
  %v3935 = vpop.f32.mrf.mxu0
  %v3936 = vadd.f32 0.0, %v3935
  %3937 = vmatmul.f32.gmra.mxu0 %v1522
  %v3938 = vpop.f32.mrf.mxu0
  %v3939 = vadd.f32 0.0, %v3938
  %3940 = vmatmul.f32.gmra.mxu0 %v1525
  %v3941 = vpop.f32.mrf.mxu0
  %v3942 = vadd.f32 0.0, %v3941
  %3943 = vmatmul.f32.gmra.mxu0 %v1528
  %v3944 = vpop.f32.mrf.mxu0
  %v3945 = vadd.f32 0.0, %v3944
  %3946 = vmatmul.f32.gmra.mxu0 %v1531
  %v3947 = vpop.f32.mrf.mxu0
  %v3948 = vadd.f32 0.0, %v3947
  %3949 = vmatmul.f32.gmra.mxu0 %v1534
  %v3950 = vpop.f32.mrf.mxu0
  %v3951 = vadd.f32 0.0, %v3950
  %3952 = vmatmul.f32.gmra.mxu0 %v1537
  %v3953 = vpop.f32.mrf.mxu0
  %v3954 = vadd.f32 0.0, %v3953
  %3955 = vmatmul.f32.gmra.mxu0 %v1540
  %v3956 = vpop.f32.mrf.mxu0
  %v3957 = vadd.f32 0.0, %v3956
  %3958 = vmatmul.f32.gmra.mxu0 %v1543
  %v3959 = vpop.f32.mrf.mxu0
  %v3960 = vadd.f32 0.0, %v3959
  %3961 = vmatmul.f32.gmra.mxu0 %v1546
  %v3962 = vpop.f32.mrf.mxu0
  %v3963 = vadd.f32 0.0, %v3962
  %3964 = vmatmul.f32.gmra.mxu0 %v1549
  %v3965 = vpop.f32.mrf.mxu0
  %v3966 = vadd.f32 0.0, %v3965
  %3967 = vmatmul.f32.gmra.mxu0 %v1552
  %v3968 = vpop.f32.mrf.mxu0
  %v3969 = vadd.f32 0.0, %v3968
  %3970 = vmatmul.f32.gmra.mxu0 %v1555
  %v3971 = vpop.f32.mrf.mxu0
  %v3972 = vadd.f32 0.0, %v3971
  %3973 = vmatmul.f32.gmra.mxu0 %v1558
  %v3974 = vpop.f32.mrf.mxu0
  %v3975 = vadd.f32 0.0, %v3974
  %3976 = vmatmul.f32.gmra.mxu0 %v1561
  %v3977 = vpop.f32.mrf.mxu0
  %v3978 = vadd.f32 0.0, %v3977
  %3979 = vmatmul.f32.gmra.mxu0 %v1564
  %v3980 = vpop.f32.mrf.mxu0
  %v3981 = vadd.f32 0.0, %v3980
  %3982 = vmatmul.f32.gmra.mxu0 %v1567
  %v3983 = vpop.f32.mrf.mxu0
  %v3984 = vadd.f32 0.0, %v3983
  %3985 = vmatmul.f32.gmra.mxu0 %v1570
  %v3986 = vpop.f32.mrf.mxu0
  %v3987 = vadd.f32 0.0, %v3986
  %3988 = vmatmul.f32.gmra.mxu0 %v1573
  %v3989 = vpop.f32.mrf.mxu0
  %v3990 = vadd.f32 0.0, %v3989
  %3991 = vmatmul.f32.gmra.mxu0 %v1576
  %v3992 = vpop.f32.mrf.mxu0
  %v3993 = vadd.f32 0.0, %v3992
  %3994 = vmatmul.f32.gmra.mxu0 %v1579
  %v3995 = vpop.f32.mrf.mxu0
  %v3996 = vadd.f32 0.0, %v3995
  %3997 = vmatmul.f32.gmra.mxu0 %v1582
  %v3998 = vpop.f32.mrf.mxu0
  %v3999 = vadd.f32 0.0, %v3998
  %4000 = vmatmul.f32.gmra.mxu0 %v1585
  %v4001 = vpop.f32.mrf.mxu0
  %v4002 = vadd.f32 0.0, %v4001
  %4003 = vmatmul.f32.gmra.mxu0 %v1588
  %v4004 = vpop.f32.mrf.mxu0
  %v4005 = vadd.f32 0.0, %v4004
  %4006 = vmatmul.f32.gmra.mxu0 %v1591
  %v4007 = vpop.f32.mrf.mxu0
  %v4008 = vadd.f32 0.0, %v4007
  %4009 = vmatmul.f32.gmra.mxu0 %v1594
  %v4010 = vpop.f32.mrf.mxu0
  %v4011 = vadd.f32 0.0, %v4010
  %4012 = vmatmul.f32.gmra.mxu0 %v1597
  %v4013 = vpop.f32.mrf.mxu0
  %v4014 = vadd.f32 0.0, %v4013
  %4015 = vmatmul.f32.gmra.mxu0 %v1600
  %v4016 = vpop.f32.mrf.mxu0
  %v4017 = vadd.f32 0.0, %v4016
  %4018 = vmatmul.f32.gmra.mxu0 %v1603
  %v4019 = vpop.f32.mrf.mxu0
  %v4020 = vadd.f32 0.0, %v4019
  %4021 = vmatmul.f32.gmra.mxu0 %v1606
  %v4022 = vpop.f32.mrf.mxu0
  %v4023 = vadd.f32 0.0, %v4022
  %4024 = vmatmul.f32.gmra.mxu0 %v1609
  %v4025 = vpop.f32.mrf.mxu0
  %v4026 = vadd.f32 0.0, %v4025
  %4027 = vmatmul.f32.gmra.mxu0 %v1612
  %v4028 = vpop.f32.mrf.mxu0
  %v4029 = vadd.f32 0.0, %v4028
  %4030 = vmatmul.f32.gmra.mxu0 %v1615
  %v4031 = vpop.f32.mrf.mxu0
  %v4032 = vadd.f32 0.0, %v4031
  %4033 = vmatmul.f32.gmra.mxu0 %v1618
  %v4034 = vpop.f32.mrf.mxu0
  %v4035 = vadd.f32 0.0, %v4034
  %4036 = vmatmul.f32.gmra.mxu0 %v1621
  %v4037 = vpop.f32.mrf.mxu0
  %v4038 = vadd.f32 0.0, %v4037
  %4039 = vmatmul.f32.gmra.mxu0 %v1624
  %v4040 = vpop.f32.mrf.mxu0
  %v4041 = vadd.f32 0.0, %v4040
  %4042 = vmatmul.f32.gmra.mxu0 %v1627
  %v4043 = vpop.f32.mrf.mxu0
  %v4044 = vadd.f32 0.0, %v4043
  %4045 = vmatmul.f32.gmra.mxu0 %v1630
  %v4046 = vpop.f32.mrf.mxu0
  %v4047 = vadd.f32 0.0, %v4046
  %4048 = vmatmul.f32.gmra.mxu0 %v1633
  %v4049 = vpop.f32.mrf.mxu0
  %v4050 = vadd.f32 0.0, %v4049
  %4051 = vmatmul.f32.gmra.mxu0 %v1636
  %v4052 = vpop.f32.mrf.mxu0
  %v4053 = vadd.f32 0.0, %v4052
  %4054 = vmatmul.f32.gmra.mxu0 %v1639
  %v4055 = vpop.f32.mrf.mxu0
  %v4056 = vadd.f32 0.0, %v4055
  %4057 = vmatmul.f32.gmra.mxu0 %v1642
  %v4058 = vpop.f32.mrf.mxu0
  %v4059 = vadd.f32 0.0, %v4058
  %4060 = vmatmul.f32.gmra.mxu0 %v1645
  %v4061 = vpop.f32.mrf.mxu0
  %v4062 = vadd.f32 0.0, %v4061
  %4063 = vmatmul.f32.gmra.mxu0 %v1648
  %v4064 = vpop.f32.mrf.mxu0
  %v4065 = vadd.f32 0.0, %v4064
  %4066 = vmatmul.f32.gmra.mxu0 %v1651
  %v4067 = vpop.f32.mrf.mxu0
  %v4068 = vadd.f32 0.0, %v4067
  %4069 = vmatmul.f32.gmra.mxu0 %v1654
  %v4070 = vpop.f32.mrf.mxu0
  %v4071 = vadd.f32 0.0, %v4070
  %4072 = vmatmul.f32.gmra.mxu0 %v1657
  %v4073 = vpop.f32.mrf.mxu0
  %v4074 = vadd.f32 0.0, %v4073
  %4075 = vmatmul.f32.gmra.mxu0 %v1660
  %v4076 = vpop.f32.mrf.mxu0
  %v4077 = vadd.f32 0.0, %v4076
  %4078 = vmatmul.f32.gmra.mxu0 %v1663
  %v4079 = vpop.f32.mrf.mxu0
  %v4080 = vadd.f32 0.0, %v4079
  %4081 = vmatmul.f32.gmra.mxu0 %v1666
  %v4082 = vpop.f32.mrf.mxu0
  %v4083 = vadd.f32 0.0, %v4082
  %4084 = vmatmul.f32.gmra.mxu0 %v1669
  %v4085 = vpop.f32.mrf.mxu0
  %v4086 = vadd.f32 0.0, %v4085
  %4087 = vmatmul.f32.gmra.mxu0 %v1672
  %v4088 = vpop.f32.mrf.mxu0
  %v4089 = vadd.f32 0.0, %v4088
  %4090 = vmatmul.f32.gmra.mxu0 %v1675
  %v4091 = vpop.f32.mrf.mxu0
  %v4092 = vadd.f32 0.0, %v4091
  %4093 = vmatmul.f32.gmra.mxu0 %v1678
  %v4094 = vpop.f32.mrf.mxu0
  %v4095 = vadd.f32 0.0, %v4094
  %4096 = vmatmul.f32.gmra.mxu0 %v1681
  %v4097 = vpop.f32.mrf.mxu0
  %v4098 = vadd.f32 0.0, %v4097
  %4099 = vmatmul.f32.gmra.mxu0 %v1684
  %v4100 = vpop.f32.mrf.mxu0
  %v4101 = vadd.f32 0.0, %v4100
  %4102 = vmatmul.f32.gmra.mxu0 %v1687
  %v4103 = vpop.f32.mrf.mxu0
  %v4104 = vadd.f32 0.0, %v4103
  %4105 = vmatmul.f32.gmra.mxu0 %v1690
  %v4106 = vpop.f32.mrf.mxu0
  %v4107 = vadd.f32 0.0, %v4106
  %4108 = vmatmul.f32.gmra.mxu0 %v1693
  %v4109 = vpop.f32.mrf.mxu0
  %v4110 = vadd.f32 0.0, %v4109
  %4111 = vmatmul.f32.gmra.mxu0 %v1696
  %v4112 = vpop.f32.mrf.mxu0
  %v4113 = vadd.f32 0.0, %v4112
  %4114 = vmatmul.f32.gmra.mxu0 %v1699
  %v4115 = vpop.f32.mrf.mxu0
  %v4116 = vadd.f32 0.0, %v4115
  %4117 = vmatmul.f32.gmra.mxu0 %v1702
  %v4118 = vpop.f32.mrf.mxu0
  %v4119 = vadd.f32 0.0, %v4118
  %4120 = vmatmul.f32.gmra.mxu0 %v1705
  %v4121 = vpop.f32.mrf.mxu0
  %v4122 = vadd.f32 0.0, %v4121
  %4123 = vmatmul.f32.gmra.mxu0 %v1708
  %v4124 = vpop.f32.mrf.mxu0
  %v4125 = vadd.f32 0.0, %v4124
  %4126 = vmatmul.f32.gmra.mxu0 %v1711
  %v4127 = vpop.f32.mrf.mxu0
  %v4128 = vadd.f32 0.0, %v4127
  %4129 = vmatmul.f32.gmra.mxu0 %v1714
  %v4130 = vpop.f32.mrf.mxu0
  %v4131 = vadd.f32 0.0, %v4130
  %4132 = vmatmul.f32.gmra.mxu0 %v1717
  %v4133 = vpop.f32.mrf.mxu0
  %v4134 = vadd.f32 0.0, %v4133
  %4135 = vmatmul.f32.gmra.mxu0 %v1720
  %v4136 = vpop.f32.mrf.mxu0
  %v4137 = vadd.f32 0.0, %v4136
  %4138 = vmatmul.f32.gmra.mxu0 %v1723
  %v4139 = vpop.f32.mrf.mxu0
  %v4140 = vadd.f32 0.0, %v4139
  %4141 = vmatmul.f32.gmra.mxu0 %v1726
  %v4142 = vpop.f32.mrf.mxu0
  %v4143 = vadd.f32 0.0, %v4142
  %4144 = vmatmul.f32.gmra.mxu0 %v1729
  %v4145 = vpop.f32.mrf.mxu0
  %v4146 = vadd.f32 0.0, %v4145
  %4147 = vmatmul.f32.gmra.mxu0 %v1732
  %v4148 = vpop.f32.mrf.mxu0
  %v4149 = vadd.f32 0.0, %v4148
  %4150 = vmatmul.f32.gmra.mxu0 %v1735
  %v4151 = vpop.f32.mrf.mxu0
  %v4152 = vadd.f32 0.0, %v4151
  %4153 = vmatmul.f32.gmra.mxu0 %v1738
  %v4154 = vpop.f32.mrf.mxu0
  %v4155 = vadd.f32 0.0, %v4154
  %4156 = vmatmul.f32.gmra.mxu0 %v1741
  %v4157 = vpop.f32.mrf.mxu0
  %v4158 = vadd.f32 0.0, %v4157
  %4159 = vmatmul.f32.gmra.mxu0 %v1744
  %v4160 = vpop.f32.mrf.mxu0
  %v4161 = vadd.f32 0.0, %v4160
  %4162 = vmatmul.f32.gmra.mxu0 %v1747
  %v4163 = vpop.f32.mrf.mxu0
  %v4164 = vadd.f32 0.0, %v4163
  %4165 = vmatmul.f32.gmra.mxu0 %v1750
  %v4166 = vpop.f32.mrf.mxu0
  %v4167 = vadd.f32 0.0, %v4166
  %4168 = vmatmul.f32.gmra.mxu0 %v1753
  %v4169 = vpop.f32.mrf.mxu0
  %v4170 = vadd.f32 0.0, %v4169
  %4171 = vmatmul.f32.gmra.mxu0 %v1756
  %v4172 = vpop.f32.mrf.mxu0
  %v4173 = vadd.f32 0.0, %v4172
  %4174 = vmatmul.f32.gmra.mxu0 %v1759
  %v4175 = vpop.f32.mrf.mxu0
  %v4176 = vadd.f32 0.0, %v4175
  %4177 = vmatmul.f32.gmra.mxu0 %v1762
  %v4178 = vpop.f32.mrf.mxu0
  %v4179 = vadd.f32 0.0, %v4178
  %4180 = vmatmul.f32.gmra.mxu0 %v1765
  %v4181 = vpop.f32.mrf.mxu0
  %v4182 = vadd.f32 0.0, %v4181
  %4183 = vmatmul.f32.gmra.mxu0 %v1768
  %v4184 = vpop.f32.mrf.mxu0
  %v4185 = vadd.f32 0.0, %v4184
  %4186 = vmatmul.f32.gmra.mxu0 %v1771
  %v4187 = vpop.f32.mrf.mxu0
  %v4188 = vadd.f32 0.0, %v4187
  %4189 = vmatmul.f32.gmra.mxu0 %v1774
  %v4190 = vpop.f32.mrf.mxu0
  %v4191 = vadd.f32 0.0, %v4190
  %4192 = vmatmul.f32.gmra.mxu0 %v1777
  %v4193 = vpop.f32.mrf.mxu0
  %v4194 = vadd.f32 0.0, %v4193
  %4195 = vmatmul.f32.gmra.mxu0 %v1780
  %v4196 = vpop.f32.mrf.mxu0
  %v4197 = vadd.f32 0.0, %v4196
  %4198 = vmatmul.f32.gmra.mxu0 %v1783
  %v4199 = vpop.f32.mrf.mxu0
  %v4200 = vadd.f32 0.0, %v4199
  %4201 = vmatmul.f32.gmra.mxu0 %v1786
  %v4202 = vpop.f32.mrf.mxu0
  %v4203 = vadd.f32 0.0, %v4202
  %4204 = vmatmul.f32.gmra.mxu0 %v1789
  %v4205 = vpop.f32.mrf.mxu0
  %v4206 = vadd.f32 0.0, %v4205
  %4207 = vmatmul.f32.gmra.mxu0 %v1792
  %v4208 = vpop.f32.mrf.mxu0
  %v4209 = vadd.f32 0.0, %v4208
  %4210 = vmatmul.f32.gmra.mxu0 %v1795
  %v4211 = vpop.f32.mrf.mxu0
  %v4212 = vadd.f32 0.0, %v4211
  %4213 = vmatmul.f32.gmra.mxu0 %v1798
  %v4214 = vpop.f32.mrf.mxu0
  %v4215 = vadd.f32 0.0, %v4214
  %4216 = vmatmul.f32.gmra.mxu0 %v1801
  %v4217 = vpop.f32.mrf.mxu0
  %v4218 = vadd.f32 0.0, %v4217
  %4219 = vmatmul.f32.gmra.mxu0 %v1804
  %v4220 = vpop.f32.mrf.mxu0
  %v4221 = vadd.f32 0.0, %v4220
  %4222 = vmatmul.f32.gmra.mxu0 %v1807
  %v4223 = vpop.f32.mrf.mxu0
  %v4224 = vadd.f32 0.0, %v4223
  %4225 = vmatmul.f32.gmra.mxu0 %v1810
  %v4226 = vpop.f32.mrf.mxu0
  %v4227 = vadd.f32 0.0, %v4226
  %4228 = vmatmul.f32.gmra.mxu0 %v1813
  %v4229 = vpop.f32.mrf.mxu0
  %v4230 = vadd.f32 0.0, %v4229
  %4231 = vmatmul.f32.gmra.mxu0 %v1816
  %v4232 = vpop.f32.mrf.mxu0
  %v4233 = vadd.f32 0.0, %v4232
  %4234 = vmatmul.f32.gmra.mxu0 %v1819
  %v4235 = vpop.f32.mrf.mxu0
  %v4236 = vadd.f32 0.0, %v4235
  %4237 = vmatmul.f32.gmra.mxu0 %v1822
  %v4238 = vpop.f32.mrf.mxu0
  %v4239 = vadd.f32 0.0, %v4238
  %4240 = vmatmul.f32.gmra.mxu0 %v1825
  %v4241 = vpop.f32.mrf.mxu0
  %v4242 = vadd.f32 0.0, %v4241
  %4243 = vmatmul.f32.gmra.mxu0 %v1828
  %v4244 = vpop.f32.mrf.mxu0
  %v4245 = vadd.f32 0.0, %v4244
  %4246 = vmatmul.f32.gmra.mxu0 %v1831
  %v4247 = vpop.f32.mrf.mxu0
  %v4248 = vadd.f32 0.0, %v4247
  %4249 = vmatmul.f32.gmra.mxu0 %v1834
  %v4250 = vpop.f32.mrf.mxu0
  %v4251 = vadd.f32 0.0, %v4250
  %4252 = vmatmul.f32.gmra.mxu0 %v1837
  %v4253 = vpop.f32.mrf.mxu0
  %v4254 = vadd.f32 0.0, %v4253
  %4255 = vmatmul.f32.gmra.mxu0 %v1840
  %v4256 = vpop.f32.mrf.mxu0
  %v4257 = vadd.f32 0.0, %v4256
  %4258 = vmatmul.f32.gmra.mxu0 %v1843
  %v4259 = vpop.f32.mrf.mxu0
  %v4260 = vadd.f32 0.0, %v4259
  %4261 = vmatmul.f32.gmra.mxu0 %v1846
  %v4262 = vpop.f32.mrf.mxu0
  %v4263 = vadd.f32 0.0, %v4262
  %4264 = vmatmul.f32.gmra.mxu0 %v1849
  %v4265 = vpop.f32.mrf.mxu0
  %v4266 = vadd.f32 0.0, %v4265
  %4267 = vmatmul.f32.gmra.mxu0 %v1852
  %v4268 = vpop.f32.mrf.mxu0
  %v4269 = vadd.f32 0.0, %v4268
  %4270 = vmatmul.f32.gmra.mxu0 %v1855
  %v4271 = vpop.f32.mrf.mxu0
  %v4272 = vadd.f32 0.0, %v4271
  %4273 = vmatmul.f32.gmra.mxu0 %v1858
  %v4274 = vpop.f32.mrf.mxu0
  %v4275 = vadd.f32 0.0, %v4274
  %4276 = vmatmul.f32.gmra.mxu0 %v1861
  %v4277 = vpop.f32.mrf.mxu0
  %v4278 = vadd.f32 0.0, %v4277
  %4279 = vmatmul.f32.gmra.mxu0 %v1864
  %v4280 = vpop.f32.mrf.mxu0
  %v4281 = vadd.f32 0.0, %v4280
  %4282 = vmatmul.f32.gmra.mxu0 %v1867
  %v4283 = vpop.f32.mrf.mxu0
  %v4284 = vadd.f32 0.0, %v4283
  %4285 = vmatmul.f32.gmra.mxu0 %v1870
  %v4286 = vpop.f32.mrf.mxu0
  %v4287 = vadd.f32 0.0, %v4286
  %4288 = vmatmul.f32.gmra.mxu0 %v1873
  %v4289 = vpop.f32.mrf.mxu0
  %v4290 = vadd.f32 0.0, %v4289
  %4291 = vmatmul.f32.gmra.mxu0 %v1876
  %v4292 = vpop.f32.mrf.mxu0
  %v4293 = vadd.f32 0.0, %v4292
  %4294 = vmatmul.f32.gmra.mxu0 %v1879
  %v4295 = vpop.f32.mrf.mxu0
  %v4296 = vadd.f32 0.0, %v4295
  %4297 = vmatmul.f32.gmra.mxu0 %v1882
  %v4298 = vpop.f32.mrf.mxu0
  %v4299 = vadd.f32 0.0, %v4298
  %4300 = vmatmul.f32.gmra.mxu0 %v1885
  %v4301 = vpop.f32.mrf.mxu0
  %v4302 = vadd.f32 0.0, %v4301
  %4303 = vmatmul.f32.gmra.mxu0 %v1888
  %v4304 = vpop.f32.mrf.mxu0
  %v4305 = vadd.f32 0.0, %v4304
  %4306 = vmatmul.f32.gmra.mxu0 %v1891
  %v4307 = vpop.f32.mrf.mxu0
  %v4308 = vadd.f32 0.0, %v4307
  %4309 = vmatmul.f32.gmra.mxu0 %v1894
  %v4310 = vpop.f32.mrf.mxu0
  %v4311 = vadd.f32 0.0, %v4310
  %4312 = vmatmul.f32.gmra.mxu0 %v1897
  %v4313 = vpop.f32.mrf.mxu0
  %v4314 = vadd.f32 0.0, %v4313
  %4315 = vmatmul.f32.gmra.mxu0 %v1900
  %v4316 = vpop.f32.mrf.mxu0
  %v4317 = vadd.f32 0.0, %v4316
  %4318 = vmatmul.f32.gmra.mxu0 %v1903
  %v4319 = vpop.f32.mrf.mxu0
  %v4320 = vadd.f32 0.0, %v4319
  %4321 = vmatmul.f32.gmra.mxu0 %v1906
  %v4322 = vpop.f32.mrf.mxu0
  %v4323 = vadd.f32 0.0, %v4322
  %4324 = vmatmul.f32.gmra.mxu0 %v1909
  %v4325 = vpop.f32.mrf.mxu0
  %v4326 = vadd.f32 0.0, %v4325
  %4327 = vmatmul.f32.gmra.mxu0 %v1912
  %v4328 = vpop.f32.mrf.mxu0
  %v4329 = vadd.f32 0.0, %v4328
  %4330 = vmatmul.f32.gmra.mxu0 %v1915
  %v4331 = vpop.f32.mrf.mxu0
  %v4332 = vadd.f32 0.0, %v4331
  %4333 = vmatmul.f32.gmra.mxu0 %v1918
  %v4334 = vpop.f32.mrf.mxu0
  %v4335 = vadd.f32 0.0, %v4334
  %4336 = vmatmul.f32.gmra.mxu0 %v1921
  %v4337 = vpop.f32.mrf.mxu0
  %v4338 = vadd.f32 0.0, %v4337
  %4339 = vmatmul.f32.gmra.mxu0 %v1924
  %v4340 = vpop.f32.mrf.mxu0
  %v4341 = vadd.f32 0.0, %v4340
  %4342 = vmatmul.f32.gmra.mxu0 %v1927
  %v4343 = vpop.f32.mrf.mxu0
  %v4344 = vadd.f32 0.0, %v4343
  %4345 = vmatmul.f32.gmra.mxu0 %v1930
  %v4346 = vpop.f32.mrf.mxu0
  %v4347 = vadd.f32 0.0, %v4346
  %4348 = vmatmul.f32.gmra.mxu0 %v1933
  %v4349 = vpop.f32.mrf.mxu0
  %v4350 = vadd.f32 0.0, %v4349
  %4351 = vmatmul.f32.gmra.mxu0 %v1936
  %v4352 = vpop.f32.mrf.mxu0
  %v4353 = vadd.f32 0.0, %v4352
  %4354 = vmatmul.f32.gmra.mxu0 %v1939
  %v4355 = vpop.f32.mrf.mxu0
  %v4356 = vadd.f32 0.0, %v4355
  %4357 = vmatmul.f32.gmra.mxu0 %v1942
  %v4358 = vpop.f32.mrf.mxu0
  %v4359 = vadd.f32 0.0, %v4358
  %4360 = vmatmul.f32.gmra.mxu0 %v1945
  %v4361 = vpop.f32.mrf.mxu0
  %v4362 = vadd.f32 0.0, %v4361
  %4363 = vmatmul.f32.gmra.mxu0 %v1948
  %v4364 = vpop.f32.mrf.mxu0
  %v4365 = vadd.f32 0.0, %v4364
  %4366 = vmatmul.f32.gmra.mxu0 %v1951
  %v4367 = vpop.f32.mrf.mxu0
  %v4368 = vadd.f32 0.0, %v4367
  %4369 = vmatmul.f32.gmra.mxu0 %v1954
  %v4370 = vpop.f32.mrf.mxu0
  %v4371 = vadd.f32 0.0, %v4370
  %4372 = vmatmul.f32.gmra.mxu0 %v1957
  %v4373 = vpop.f32.mrf.mxu0
  %v4374 = vadd.f32 0.0, %v4373
  %4375 = vmatmul.f32.gmra.mxu0 %v1960
  %v4376 = vpop.f32.mrf.mxu0
  %v4377 = vadd.f32 0.0, %v4376
  %4378 = vmatmul.f32.gmra.mxu0 %v1963
  %v4379 = vpop.f32.mrf.mxu0
  %v4380 = vadd.f32 0.0, %v4379
  %4381 = vmatmul.f32.gmra.mxu0 %v1966
  %v4382 = vpop.f32.mrf.mxu0
  %v4383 = vadd.f32 0.0, %v4382
  %4384 = vmatmul.f32.gmra.mxu0 %v1969
  %v4385 = vpop.f32.mrf.mxu0
  %v4386 = vadd.f32 0.0, %v4385
  %4387 = vmatmul.f32.gmra.mxu0 %v1972
  %v4388 = vpop.f32.mrf.mxu0
  %v4389 = vadd.f32 0.0, %v4388
  %4390 = vmatmul.f32.gmra.mxu0 %v1975
  %v4391 = vpop.f32.mrf.mxu0
  %v4392 = vadd.f32 0.0, %v4391
  %4393 = vmatmul.f32.gmra.mxu0 %v1978
  %v4394 = vpop.f32.mrf.mxu0
  %v4395 = vadd.f32 0.0, %v4394
  %4396 = vmatmul.f32.gmra.mxu0 %v1981
  %v4397 = vpop.f32.mrf.mxu0
  %v4398 = vadd.f32 0.0, %v4397
  %4399 = vmatmul.f32.gmra.mxu0 %v1984
  %v4400 = vpop.f32.mrf.mxu0
  %v4401 = vadd.f32 0.0, %v4400
  %4402 = vmatmul.f32.gmra.mxu0 %v1987
  %v4403 = vpop.f32.mrf.mxu0
  %v4404 = vadd.f32 0.0, %v4403
  %4405 = vmatmul.f32.gmra.mxu0 %v1990
  %v4406 = vpop.f32.mrf.mxu0
  %v4407 = vadd.f32 0.0, %v4406
  %4408 = vmatmul.f32.gmra.mxu0 %v1993
  %v4409 = vpop.f32.mrf.mxu0
  %v4410 = vadd.f32 0.0, %v4409
  %4411 = vmatmul.f32.gmra.mxu0 %v1996
  %v4412 = vpop.f32.mrf.mxu0
  %v4413 = vadd.f32 0.0, %v4412
  %4414 = vmatmul.f32.gmra.mxu0 %v1999
  %v4415 = vpop.f32.mrf.mxu0
  %v4416 = vadd.f32 0.0, %v4415
  %4417 = vmatmul.f32.gmra.mxu0 %v2002
  %v4418 = vpop.f32.mrf.mxu0
  %v4419 = vadd.f32 0.0, %v4418
  %4420 = vmatmul.f32.gmra.mxu0 %v2005
  %v4421 = vpop.f32.mrf.mxu0
  %v4422 = vadd.f32 0.0, %v4421
  %4423 = vmatmul.f32.gmra.mxu0 %v2008
  %v4424 = vpop.f32.mrf.mxu0
  %v4425 = vadd.f32 0.0, %v4424
  %4426 = vmatmul.f32.gmra.mxu0 %v2011
  %v4427 = vpop.f32.mrf.mxu0
  %v4428 = vadd.f32 0.0, %v4427
  %4429 = vmatmul.f32.gmra.mxu0 %v2014
  %v4430 = vpop.f32.mrf.mxu0
  %v4431 = vadd.f32 0.0, %v4430
  %4432 = vmatmul.f32.gmra.mxu0 %v2017
  %v4433 = vpop.f32.mrf.mxu0
  %v4434 = vadd.f32 0.0, %v4433
  %4435 = vmatmul.f32.gmra.mxu0 %v2020
  %v4436 = vpop.f32.mrf.mxu0
  %v4437 = vadd.f32 0.0, %v4436
  %4438 = vmatmul.f32.gmra.mxu0 %v2023
  %v4439 = vpop.f32.mrf.mxu0
  %v4440 = vadd.f32 0.0, %v4439
  %4441 = vmatmul.f32.gmra.mxu0 %v2026
  %v4442 = vpop.f32.mrf.mxu0
  %v4443 = vadd.f32 0.0, %v4442
  %4444 = vmatmul.f32.gmra.mxu0 %v2029
  %v4445 = vpop.f32.mrf.mxu0
  %v4446 = vadd.f32 0.0, %v4445
  %4447 = vmatmul.f32.gmra.mxu0 %v2032
  %v4448 = vpop.f32.mrf.mxu0
  %v4449 = vadd.f32 0.0, %v4448
  %4450 = vmatmul.f32.gmra.mxu0 %v2035
  %v4451 = vpop.f32.mrf.mxu0
  %v4452 = vadd.f32 0.0, %v4451
  %4453 = vmatmul.f32.gmra.mxu0 %v2038
  %v4454 = vpop.f32.mrf.mxu0
  %v4455 = vadd.f32 0.0, %v4454
  %4456 = vmatmul.f32.gmra.mxu0 %v2041
  %v4457 = vpop.f32.mrf.mxu0
  %v4458 = vadd.f32 0.0, %v4457
  %4459 = vmatmul.f32.gmra.mxu0 %v2044
  %v4460 = vpop.f32.mrf.mxu0
  %v4461 = vadd.f32 0.0, %v4460
  %4462 = vmatmul.f32.gmra.mxu0 %v2047
  %v4463 = vpop.f32.mrf.mxu0
  %v4464 = vadd.f32 0.0, %v4463
  %4465 = vmatmul.f32.gmra.mxu0 %v2050
  %v4466 = vpop.f32.mrf.mxu0
  %v4467 = vadd.f32 0.0, %v4466
  %4468 = vmatmul.f32.gmra.mxu0 %v2053
  %v4469 = vpop.f32.mrf.mxu0
  %v4470 = vadd.f32 0.0, %v4469
  %4471 = vmatmul.f32.gmra.mxu0 %v2056
  %v4472 = vpop.f32.mrf.mxu0
  %v4473 = vadd.f32 0.0, %v4472
  %4474 = vmatmul.f32.gmra.mxu0 %v2059
  %v4475 = vpop.f32.mrf.mxu0
  %v4476 = vadd.f32 0.0, %v4475
  %4477 = vmatmul.f32.gmra.mxu0 %v2062
  %v4478 = vpop.f32.mrf.mxu0
  %v4479 = vadd.f32 0.0, %v4478
  %4480 = vmatmul.f32.gmra.mxu0 %v2065
  %v4481 = vpop.f32.mrf.mxu0
  %v4482 = vadd.f32 0.0, %v4481
  %4483 = vmatmul.f32.gmra.mxu0 %v2068
  %v4484 = vpop.f32.mrf.mxu0
  %v4485 = vadd.f32 0.0, %v4484
  %4486 = vmatmul.f32.gmra.mxu0 %v2071
  %v4487 = vpop.f32.mrf.mxu0
  %v4488 = vadd.f32 0.0, %v4487
  %4489 = vmatmul.f32.gmra.mxu0 %v2074
  %v4490 = vpop.f32.mrf.mxu0
  %v4491 = vadd.f32 0.0, %v4490
  %4492 = vmatmul.f32.gmra.mxu0 %v2077
  %v4493 = vpop.f32.mrf.mxu0
  %v4494 = vadd.f32 0.0, %v4493
  %4495 = vmatmul.f32.gmra.mxu0 %v2080
  %v4496 = vpop.f32.mrf.mxu0
  %v4497 = vadd.f32 0.0, %v4496
  %4498 = vmatmul.f32.gmra.mxu0 %v2083
  %v4499 = vpop.f32.mrf.mxu0
  %v4500 = vadd.f32 0.0, %v4499
  %4501 = vmatmul.f32.gmra.mxu0 %v2086
  %v4502 = vpop.f32.mrf.mxu0
  %v4503 = vadd.f32 0.0, %v4502
  %4504 = vmatmul.f32.gmra.mxu0 %v2089
  %v4505 = vpop.f32.mrf.mxu0
  %v4506 = vadd.f32 0.0, %v4505
  %4507 = vmatmul.f32.gmra.mxu0 %v2092
  %v4508 = vpop.f32.mrf.mxu0
  %v4509 = vadd.f32 0.0, %v4508
  %4510 = vmatmul.f32.gmra.mxu0 %v2095
  %v4511 = vpop.f32.mrf.mxu0
  %v4512 = vadd.f32 0.0, %v4511
  %4513 = vmatmul.f32.gmra.mxu0 %v2098
  %v4514 = vpop.f32.mrf.mxu0
  %v4515 = vadd.f32 0.0, %v4514
  %4516 = vmatmul.f32.gmra.mxu0 %v2101
  %v4517 = vpop.f32.mrf.mxu0
  %v4518 = vadd.f32 0.0, %v4517
  %4519 = vmatmul.f32.gmra.mxu0 %v2104
  %v4520 = vpop.f32.mrf.mxu0
  %v4521 = vadd.f32 0.0, %v4520
  %4522 = vmatmul.f32.gmra.mxu0 %v2107
  %v4523 = vpop.f32.mrf.mxu0
  %v4524 = vadd.f32 0.0, %v4523
  %4525 = vmatmul.f32.gmra.mxu0 %v2110
  %v4526 = vpop.f32.mrf.mxu0
  %v4527 = vadd.f32 0.0, %v4526
  %4528 = vmatmul.f32.gmra.mxu0 %v2113
  %v4529 = vpop.f32.mrf.mxu0
  %v4530 = vadd.f32 0.0, %v4529
  %4531 = vmatmul.f32.gmra.mxu0 %v2116
  %v4532 = vpop.f32.mrf.mxu0
  %v4533 = vadd.f32 0.0, %v4532
  %4534 = vmatmul.f32.gmra.mxu0 %v2119
  %v4535 = vpop.f32.mrf.mxu0
  %v4536 = vadd.f32 0.0, %v4535
  %4537 = vmatmul.f32.gmra.mxu0 %v2122
  %v4538 = vpop.f32.mrf.mxu0
  %v4539 = vadd.f32 0.0, %v4538
  %4540 = vmatmul.f32.gmra.mxu0 %v2125
  %v4541 = vpop.f32.mrf.mxu0
  %v4542 = vadd.f32 0.0, %v4541
  %4543 = vmatmul.f32.gmra.mxu0 %v2128
  %v4544 = vpop.f32.mrf.mxu0
  %v4545 = vadd.f32 0.0, %v4544
  %4546 = vmatmul.f32.gmra.mxu0 %v2131
  %v4547 = vpop.f32.mrf.mxu0
  %v4548 = vadd.f32 0.0, %v4547
  %4549 = vmatmul.f32.gmra.mxu0 %v2134
  %v4550 = vpop.f32.mrf.mxu0
  %v4551 = vadd.f32 0.0, %v4550
  %4552 = vmatmul.f32.gmra.mxu0 %v2137
  %v4553 = vpop.f32.mrf.mxu0
  %v4554 = vadd.f32 0.0, %v4553
  %4555 = vmatmul.f32.gmra.mxu0 %v2140
  %v4556 = vpop.f32.mrf.mxu0
  %v4557 = vadd.f32 0.0, %v4556
  %4558 = vmatmul.f32.gmra.mxu0 %v2143
  %v4559 = vpop.f32.mrf.mxu0
  %v4560 = vadd.f32 0.0, %v4559
  %4561 = vmatmul.f32.gmra.mxu0 %v2146
  %v4562 = vpop.f32.mrf.mxu0
  %v4563 = vadd.f32 0.0, %v4562
  %4564 = vmatmul.f32.gmra.mxu0 %v2149
  %v4565 = vpop.f32.mrf.mxu0
  %v4566 = vadd.f32 0.0, %v4565
  %4567 = vmatmul.f32.gmra.mxu0 %v2152
  %v4568 = vpop.f32.mrf.mxu0
  %v4569 = vadd.f32 0.0, %v4568
  %4570 = vmatmul.f32.gmra.mxu0 %v2155
  %v4571 = vpop.f32.mrf.mxu0
  %v4572 = vadd.f32 0.0, %v4571
  %4573 = vmatmul.f32.gmra.mxu0 %v2158
  %v4574 = vpop.f32.mrf.mxu0
  %v4575 = vadd.f32 0.0, %v4574
  %4576 = vmatmul.f32.gmra.mxu0 %v2161
  %v4577 = vpop.f32.mrf.mxu0
  %v4578 = vadd.f32 0.0, %v4577
  %4579 = vmatmul.f32.gmra.mxu0 %v2164
  %v4580 = vpop.f32.mrf.mxu0
  %v4581 = vadd.f32 0.0, %v4580
  %4582 = vmatmul.f32.gmra.mxu0 %v2167
  %v4583 = vpop.f32.mrf.mxu0
  %v4584 = vadd.f32 0.0, %v4583
  %4585 = vmatmul.f32.gmra.mxu0 %v2170
  %v4586 = vpop.f32.mrf.mxu0
  %v4587 = vadd.f32 0.0, %v4586
  %4588 = vmatmul.f32.gmra.mxu0 %v2173
  %v4589 = vpop.f32.mrf.mxu0
  %v4590 = vadd.f32 0.0, %v4589
  %4591 = vmatmul.f32.gmra.mxu0 %v2176
  %v4592 = vpop.f32.mrf.mxu0
  %v4593 = vadd.f32 0.0, %v4592
  %4594 = vmatmul.f32.gmra.mxu0 %v2179
  %v4595 = vpop.f32.mrf.mxu0
  %v4596 = vadd.f32 0.0, %v4595
  %4597 = vmatmul.f32.gmra.mxu0 %v2182
  %v4598 = vpop.f32.mrf.mxu0
  %v4599 = vadd.f32 0.0, %v4598
  %4600 = vmatmul.f32.gmra.mxu0 %v2185
  %v4601 = vpop.f32.mrf.mxu0
  %v4602 = vadd.f32 0.0, %v4601
  %4603 = vmatmul.f32.gmra.mxu0 %v2188
  %v4604 = vpop.f32.mrf.mxu0
  %v4605 = vadd.f32 0.0, %v4604
  %4606 = vmatmul.f32.gmra.mxu0 %v2191
  %v4607 = vpop.f32.mrf.mxu0
  %v4608 = vadd.f32 0.0, %v4607
  %4609 = vmatmul.f32.gmra.mxu0 %v2194
  %v4610 = vpop.f32.mrf.mxu0
  %v4611 = vadd.f32 0.0, %v4610
  %4612 = vmatmul.f32.gmra.mxu0 %v2197
  %v4613 = vpop.f32.mrf.mxu0
  %v4614 = vadd.f32 0.0, %v4613
  %4615 = vmatmul.f32.gmra.mxu0 %v2200
  %v4616 = vpop.f32.mrf.mxu0
  %v4617 = vadd.f32 0.0, %v4616
  %4618 = vmatmul.f32.gmra.mxu0 %v2203
  %v4619 = vpop.f32.mrf.mxu0
  %v4620 = vadd.f32 0.0, %v4619
  %4621 = vmatmul.f32.gmra.mxu0 %v2206
  %v4622 = vpop.f32.mrf.mxu0
  %v4623 = vadd.f32 0.0, %v4622
  %4624 = vmatmul.f32.gmra.mxu0 %v2209
  %v4625 = vpop.f32.mrf.mxu0
  %v4626 = vadd.f32 0.0, %v4625
  %4627 = vmatmul.f32.gmra.mxu0 %v2212
  %v4628 = vpop.f32.mrf.mxu0
  %v4629 = vadd.f32 0.0, %v4628
  %4630 = vmatmul.f32.gmra.mxu0 %v2215
  %v4631 = vpop.f32.mrf.mxu0
  %v4632 = vadd.f32 0.0, %v4631
  %4633 = vmatmul.f32.gmra.mxu0 %v2218
  %v4634 = vpop.f32.mrf.mxu0
  %v4635 = vadd.f32 0.0, %v4634
  %4636 = vmatmul.f32.gmra.mxu0 %v2221
  %v4637 = vpop.f32.mrf.mxu0
  %v4638 = vadd.f32 0.0, %v4637
  %4639 = vmatmul.f32.gmra.mxu0 %v2224
  %v4640 = vpop.f32.mrf.mxu0
  %v4641 = vadd.f32 0.0, %v4640
  %4642 = vmatmul.f32.gmra.mxu0 %v2227
  %v4643 = vpop.f32.mrf.mxu0
  %v4644 = vadd.f32 0.0, %v4643
  %4645 = vmatmul.f32.gmra.mxu0 %v2230
  %v4646 = vpop.f32.mrf.mxu0
  %v4647 = vadd.f32 0.0, %v4646
  %4648 = vmatmul.f32.gmra.mxu0 %v2233
  %v4649 = vpop.f32.mrf.mxu0
  %v4650 = vadd.f32 0.0, %v4649
  %4651 = vmatmul.f32.gmra.mxu0 %v2236
  %v4652 = vpop.f32.mrf.mxu0
  %v4653 = vadd.f32 0.0, %v4652
  %4654 = vmatmul.f32.gmra.mxu0 %v2239
  %v4655 = vpop.f32.mrf.mxu0
  %v4656 = vadd.f32 0.0, %v4655
  %4657 = vmatmul.f32.gmra.mxu0 %v2242
  %v4658 = vpop.f32.mrf.mxu0
  %v4659 = vadd.f32 0.0, %v4658
  %4660 = vmatmul.f32.gmra.mxu0 %v2245
  %v4661 = vpop.f32.mrf.mxu0
  %v4662 = vadd.f32 0.0, %v4661
  %4663 = vmatmul.f32.gmra.mxu0 %v2248
  %v4664 = vpop.f32.mrf.mxu0
  %v4665 = vadd.f32 0.0, %v4664
  %4666 = vmatmul.f32.gmra.mxu0 %v2251
  %v4667 = vpop.f32.mrf.mxu0
  %v4668 = vadd.f32 0.0, %v4667
  %4669 = vmatmul.f32.gmra.mxu0 %v2254
  %v4670 = vpop.f32.mrf.mxu0
  %v4671 = vadd.f32 0.0, %v4670
  %4672 = vmatmul.f32.gmra.mxu0 %v2257
  %v4673 = vpop.f32.mrf.mxu0
  %v4674 = vadd.f32 0.0, %v4673
  %4675 = vmatmul.f32.gmra.mxu0 %v2260
  %v4676 = vpop.f32.mrf.mxu0
  %v4677 = vadd.f32 0.0, %v4676
  %4678 = vmatmul.f32.gmra.mxu0 %v2263
  %v4679 = vpop.f32.mrf.mxu0
  %v4680 = vadd.f32 0.0, %v4679
  %4681 = vmatmul.f32.gmra.mxu0 %v2266
  %v4682 = vpop.f32.mrf.mxu0
  %v4683 = vadd.f32 0.0, %v4682
  %4684 = vmatmul.f32.gmra.mxu0 %v2269
  %v4685 = vpop.f32.mrf.mxu0
  %v4686 = vadd.f32 0.0, %v4685
  %4687 = vmatmul.f32.gmra.mxu0 %v2272
  %v4688 = vpop.f32.mrf.mxu0
  %v4689 = vadd.f32 0.0, %v4688
  %4690 = vmatmul.f32.gmra.mxu0 %v2275
  %v4691 = vpop.f32.mrf.mxu0
  %v4692 = vadd.f32 0.0, %v4691
  %4693 = vmatmul.f32.gmra.mxu0 %v2278
  %v4694 = vpop.f32.mrf.mxu0
  %v4695 = vadd.f32 0.0, %v4694
  %4696 = vmatmul.f32.gmra.mxu0 %v2281
  %v4697 = vpop.f32.mrf.mxu0
  %v4698 = vadd.f32 0.0, %v4697
  %4699 = vmatmul.f32.gmra.mxu0 %v2284
  %v4700 = vpop.f32.mrf.mxu0
  %v4701 = vadd.f32 0.0, %v4700
  %4702 = vmatmul.f32.gmra.mxu0 %v2287
  %v4703 = vpop.f32.mrf.mxu0
  %v4704 = vadd.f32 0.0, %v4703
  %4705 = vmatmul.f32.gmra.mxu0 %v2290
  %v4706 = vpop.f32.mrf.mxu0
  %v4707 = vadd.f32 0.0, %v4706
  %4708 = vmatmul.f32.gmra.mxu0 %v2293
  %v4709 = vpop.f32.mrf.mxu0
  %v4710 = vadd.f32 0.0, %v4709
  %4711 = vmatmul.f32.gmra.mxu0 %v2296
  %v4712 = vpop.f32.mrf.mxu0
  %v4713 = vadd.f32 0.0, %v4712
  %4714 = vmatmul.f32.gmra.mxu0 %v2299
  %v4715 = vpop.f32.mrf.mxu0
  %v4716 = vadd.f32 0.0, %v4715
  %4717 = vmatmul.f32.gmra.mxu0 %v2302
  %v4718 = vpop.f32.mrf.mxu0
  %v4719 = vadd.f32 0.0, %v4718
  %4720 = vmatmul.f32.gmra.mxu0 %v2305
  %v4721 = vpop.f32.mrf.mxu0
  %v4722 = vadd.f32 0.0, %v4721
  %4723 = vmatmul.f32.gmra.mxu0 %v2308
  %v4724 = vpop.f32.mrf.mxu0
  %v4725 = vadd.f32 0.0, %v4724
  %4726 = vmatmul.f32.gmra.mxu0 %v2311
  %v4727 = vpop.f32.mrf.mxu0
  %v4728 = vadd.f32 0.0, %v4727
  %4729 = vmatmul.f32.gmra.mxu0 %v2314
  %v4730 = vpop.f32.mrf.mxu0
  %v4731 = vadd.f32 0.0, %v4730
  %4732 = vmatmul.f32.gmra.mxu0 %v2317
  %v4733 = vpop.f32.mrf.mxu0
  %v4734 = vadd.f32 0.0, %v4733
  %4735 = vmatmul.f32.gmra.mxu0 %v2320
  %v4736 = vpop.f32.mrf.mxu0
  %v4737 = vadd.f32 0.0, %v4736
  %4738 = vmatmul.f32.gmra.mxu0 %v2323
  %v4739 = vpop.f32.mrf.mxu0
  %v4740 = vadd.f32 0.0, %v4739
  %4741 = vmatmul.f32.gmra.mxu0 %v2326
  %v4742 = vpop.f32.mrf.mxu0
  %v4743 = vadd.f32 0.0, %v4742
  %4744 = vmatmul.f32.gmra.mxu0 %v2329
  %v4745 = vpop.f32.mrf.mxu0
  %v4746 = vadd.f32 0.0, %v4745
  %4747 = vmatmul.f32.gmra.mxu0 %v2332
  %v4748 = vpop.f32.mrf.mxu0
  %v4749 = vadd.f32 0.0, %v4748
  %4750 = vmatmul.f32.gmra.mxu0 %v2335
  %v4751 = vpop.f32.mrf.mxu0
  %v4752 = vadd.f32 0.0, %v4751
  %4753 = vmatmul.f32.gmra.mxu0 %v2338
  %v4754 = vpop.f32.mrf.mxu0
  %v4755 = vadd.f32 0.0, %v4754
  %4756 = vmatmul.f32.gmra.mxu0 %v2341
  %v4757 = vpop.f32.mrf.mxu0
  %v4758 = vadd.f32 0.0, %v4757
  %4759 = vmatmul.f32.gmra.mxu0 %v2344
  %v4760 = vpop.f32.mrf.mxu0
  %v4761 = vadd.f32 0.0, %v4760
  %4762 = vmatmul.f32.gmra.mxu0 %v2347
  %v4763 = vpop.f32.mrf.mxu0
  %v4764 = vadd.f32 0.0, %v4763
  %4765 = vmatmul.f32.gmra.mxu0 %v2350
  %v4766 = vpop.f32.mrf.mxu0
  %v4767 = vadd.f32 0.0, %v4766
  %4768 = vmatmul.f32.gmra.mxu0 %v2353
  %v4769 = vpop.f32.mrf.mxu0
  %v4770 = vadd.f32 0.0, %v4769
  %4771 = vmatmul.f32.gmra.mxu0 %v2356
  %v4772 = vpop.f32.mrf.mxu0
  %v4773 = vadd.f32 0.0, %v4772
  %4774 = vmatmul.f32.gmra.mxu0 %v2359
  %v4775 = vpop.f32.mrf.mxu0
  %v4776 = vadd.f32 0.0, %v4775
  %4777 = vmatmul.f32.gmra.mxu0 %v2362
  %v4778 = vpop.f32.mrf.mxu0
  %v4779 = vadd.f32 0.0, %v4778
  %4780 = vmatmul.f32.gmra.mxu0 %v2365
  %v4781 = vpop.f32.mrf.mxu0
  %v4782 = vadd.f32 0.0, %v4781
  %4783 = vmatmul.f32.gmra.mxu0 %v2368
  %v4784 = vpop.f32.mrf.mxu0
  %v4785 = vadd.f32 0.0, %v4784
  %4786 = vmatmul.f32.gmra.mxu0 %v2371
  %v4787 = vpop.f32.mrf.mxu0
  %v4788 = vadd.f32 0.0, %v4787
  %4789 = vmatmul.f32.gmra.mxu0 %v2374
  %v4790 = vpop.f32.mrf.mxu0
  %v4791 = vadd.f32 0.0, %v4790
  %4792 = vmatmul.f32.gmra.mxu0 %v2377
  %v4793 = vpop.f32.mrf.mxu0
  %v4794 = vadd.f32 0.0, %v4793
  %4795 = vmatmul.f32.gmra.mxu0 %v2380
  %v4796 = vpop.f32.mrf.mxu0
  %v4797 = vadd.f32 0.0, %v4796
  %4798 = vmatmul.f32.gmra.mxu0 %v2383
  %v4799 = vpop.f32.mrf.mxu0
  %v4800 = vadd.f32 0.0, %v4799
  %4801 = vmatmul.f32.gmra.mxu0 %v2386
  %v4802 = vpop.f32.mrf.mxu0
  %v4803 = vadd.f32 0.0, %v4802
  %4804 = vmatmul.f32.gmra.mxu0 %v2389
  %v4805 = vpop.f32.mrf.mxu0
  %v4806 = vadd.f32 0.0, %v4805
  %4807 = vmatmul.f32.gmra.mxu0 %v2392
  %v4808 = vpop.f32.mrf.mxu0
  %v4809 = vadd.f32 0.0, %v4808
  %4810 = vmatmul.f32.gmra.mxu0 %v2395
  %v4811 = vpop.f32.mrf.mxu0
  %v4812 = vadd.f32 0.0, %v4811
  %4813 = vmatmul.f32.gmra.mxu0 %v2398
  %v4814 = vpop.f32.mrf.mxu0
  %v4815 = vadd.f32 0.0, %v4814
  %4816 = vmatmul.f32.gmra.mxu0 %v2401
  %v4817 = vpop.f32.mrf.mxu0
  %v4818 = vadd.f32 0.0, %v4817
  %4819 = vmatmul.f32.gmra.mxu0 %v2404
  %v4820 = vpop.f32.mrf.mxu0
  %v4821 = vadd.f32 0.0, %v4820
  %4822 = vmatmul.f32.gmra.mxu0 %v2407
  %v4823 = vpop.f32.mrf.mxu0
  %v4824 = vadd.f32 0.0, %v4823
  %4825 = vmatmul.f32.gmra.mxu0 %v2410
  %v4826 = vpop.f32.mrf.mxu0
  %v4827 = vadd.f32 0.0, %v4826
  %4828 = vmatmul.f32.gmra.mxu0 %v2413
  %v4829 = vpop.f32.mrf.mxu0
  %v4830 = vadd.f32 0.0, %v4829
  %4831 = vmatmul.f32.gmra.mxu0 %v2416
  %v4832 = vpop.f32.mrf.mxu0
  %v4833 = vadd.f32 0.0, %v4832
  %4834 = vmatmul.f32.gmra.mxu0 %v2419
  %v4835 = vpop.f32.mrf.mxu0
  %v4836 = vadd.f32 0.0, %v4835
  %4837 = vmatmul.f32.gmra.mxu0 %v2422
  %v4838 = vpop.f32.mrf.mxu0
  %v4839 = vadd.f32 0.0, %v4838
  %4840 = vmatmul.f32.gmra.mxu0 %v2425
  %v4841 = vpop.f32.mrf.mxu0
  %v4842 = vadd.f32 0.0, %v4841
  %4843 = vmatmul.f32.gmra.mxu0 %v2428
  %v4844 = vpop.f32.mrf.mxu0
  %v4845 = vadd.f32 0.0, %v4844
  %4846 = vmatmul.f32.gmra.mxu0 %v2431
  %v4847 = vpop.f32.mrf.mxu0
  %v4848 = vadd.f32 0.0, %v4847
  %4849 = vmatmul.f32.gmra.mxu0 %v2434
  %v4850 = vpop.f32.mrf.mxu0
  %v4851 = vadd.f32 0.0, %v4850
  %4852 = vmatmul.f32.gmra.mxu0 %v2437
  %v4853 = vpop.f32.mrf.mxu0
  %v4854 = vadd.f32 0.0, %v4853
  %4855 = vmatmul.f32.gmra.mxu0 %v2440
  %v4856 = vpop.f32.mrf.mxu0
  %v4857 = vadd.f32 0.0, %v4856
  %4858 = vmatmul.f32.gmra.mxu0 %v2443
  %v4859 = vpop.f32.mrf.mxu0
  %v4860 = vadd.f32 0.0, %v4859
  %4861 = vmatmul.f32.gmra.mxu0 %v2446
  %v4862 = vpop.f32.mrf.mxu0
  %v4863 = vadd.f32 0.0, %v4862
  %4864 = vmatmul.f32.gmra.mxu0 %v2449
  %v4865 = vpop.f32.mrf.mxu0
  %v4866 = vadd.f32 0.0, %v4865
  %4867 = vmatmul.f32.gmra.mxu0 %v2452
  %v4868 = vpop.f32.mrf.mxu0
  %v4869 = vadd.f32 0.0, %v4868
  %4870 = vmatmul.f32.gmra.mxu0 %v2455
  %v4871 = vpop.f32.mrf.mxu0
  %v4872 = vadd.f32 0.0, %v4871
  %4873 = vmatmul.f32.gmra.mxu0 %v2458
  %v4874 = vpop.f32.mrf.mxu0
  %v4875 = vadd.f32 0.0, %v4874
  %4876 = vmatmul.f32.gmra.mxu0 %v2461
  %v4877 = vpop.f32.mrf.mxu0
  %v4878 = vadd.f32 0.0, %v4877
  %4879 = vmatmul.f32.gmra.mxu0 %v2464
  %v4880 = vpop.f32.mrf.mxu0
  %v4881 = vadd.f32 0.0, %v4880
  %4882 = vmatmul.f32.gmra.mxu0 %v2467
  %v4883 = vpop.f32.mrf.mxu0
  %v4884 = vadd.f32 0.0, %v4883
  %4885 = vmatmul.f32.gmra.mxu0 %v2470
  %v4886 = vpop.f32.mrf.mxu0
  %v4887 = vadd.f32 0.0, %v4886
  %4888 = vmatmul.f32.gmra.mxu0 %v2473
  %v4889 = vpop.f32.mrf.mxu0
  %v4890 = vadd.f32 0.0, %v4889
  %4891 = vmatmul.f32.gmra.mxu0 %v2476
  %v4892 = vpop.f32.mrf.mxu0
  %v4893 = vadd.f32 0.0, %v4892
  %4894 = vmatmul.f32.gmra.mxu0 %v2479
  %v4895 = vpop.f32.mrf.mxu0
  %v4896 = vadd.f32 0.0, %v4895
  %4897 = vmatmul.f32.gmra.mxu0 %v2482
  %v4898 = vpop.f32.mrf.mxu0
  %v4899 = vadd.f32 0.0, %v4898
  %4900 = vmatmul.f32.gmra.mxu0 %v2485
  %v4901 = vpop.f32.mrf.mxu0
  %v4902 = vadd.f32 0.0, %v4901
  %4903 = vmatmul.f32.gmra.mxu0 %v2488
  %v4904 = vpop.f32.mrf.mxu0
  %v4905 = vadd.f32 0.0, %v4904
  %4906 = vmatmul.f32.gmra.mxu0 %v2491
  %v4907 = vpop.f32.mrf.mxu0
  %v4908 = vadd.f32 0.0, %v4907
  %4909 = vmatmul.f32.gmra.mxu0 %v2494
  %v4910 = vpop.f32.mrf.mxu0
  %v4911 = vadd.f32 0.0, %v4910
  %4912 = vmatmul.f32.gmra.mxu0 %v2497
  %v4913 = vpop.f32.mrf.mxu0
  %v4914 = vadd.f32 0.0, %v4913
  %4915 = vmatmul.f32.gmra.mxu0 %v2500
  %v4916 = vpop.f32.mrf.mxu0
  %v4917 = vadd.f32 0.0, %v4916
  %4918 = vmatmul.f32.gmra.mxu0 %v2503
  %v4919 = vpop.f32.mrf.mxu0
  %v4920 = vadd.f32 0.0, %v4919
  %4921 = vmatmul.f32.gmra.mxu0 %v2506
  %v4922 = vpop.f32.mrf.mxu0
  %v4923 = vadd.f32 0.0, %v4922
  %4924 = vmatmul.f32.gmra.mxu0 %v2509
  %v4925 = vpop.f32.mrf.mxu0
  %v4926 = vadd.f32 0.0, %v4925
  %4927 = vmatmul.f32.gmra.mxu0 %v2512
  %v4928 = vpop.f32.mrf.mxu0
  %v4929 = vadd.f32 0.0, %v4928
  %4930 = vmatmul.f32.gmra.mxu0 %v2515
  %v4931 = vpop.f32.mrf.mxu0
  %v4932 = vadd.f32 0.0, %v4931
  %4933 = vmatmul.f32.gmra.mxu0 %v2518
  %v4934 = vpop.f32.mrf.mxu0
  %v4935 = vadd.f32 0.0, %v4934
  %4936 = vmatmul.f32.gmra.mxu0 %v2521
  %v4937 = vpop.f32.mrf.mxu0
  %v4938 = vadd.f32 0.0, %v4937
  %4939 = vmatmul.f32.gmra.mxu0 %v2524
  %v4940 = vpop.f32.mrf.mxu0
  %v4941 = vadd.f32 0.0, %v4940
  %4942 = vmatmul.f32.gmra.mxu0 %v2527
  %v4943 = vpop.f32.mrf.mxu0
  %v4944 = vadd.f32 0.0, %v4943
  %4945 = vmatmul.f32.gmra.mxu0 %v2530
  %v4946 = vpop.f32.mrf.mxu0
  %v4947 = vadd.f32 0.0, %v4946
  %4948 = vmatmul.f32.gmra.mxu0 %v2533
  %v4949 = vpop.f32.mrf.mxu0
  %v4950 = vadd.f32 0.0, %v4949
  %4951 = vmatmul.f32.gmra.mxu0 %v2536
  %v4952 = vpop.f32.mrf.mxu0
  %v4953 = vadd.f32 0.0, %v4952
  %4954 = vmatmul.f32.gmra.mxu0 %v2539
  %v4955 = vpop.f32.mrf.mxu0
  %v4956 = vadd.f32 0.0, %v4955
  %4957 = vmatmul.f32.gmra.mxu0 %v2542
  %v4958 = vpop.f32.mrf.mxu0
  %v4959 = vadd.f32 0.0, %v4958
  %4960 = vmatmul.f32.gmra.mxu0 %v2545
  %v4961 = vpop.f32.mrf.mxu0
  %v4962 = vadd.f32 0.0, %v4961
  %4963 = vmatmul.f32.gmra.mxu0 %v2548
  %v4964 = vpop.f32.mrf.mxu0
  %v4965 = vadd.f32 0.0, %v4964
  %4966 = vmatmul.f32.gmra.mxu0 %v2551
  %v4967 = vpop.f32.mrf.mxu0
  %v4968 = vadd.f32 0.0, %v4967
  %4969 = vmatmul.f32.gmra.mxu0 %v2554
  %v4970 = vpop.f32.mrf.mxu0
  %v4971 = vadd.f32 0.0, %v4970
  %4972 = vmatmul.f32.gmra.mxu0 %v2557
  %v4973 = vpop.f32.mrf.mxu0
  %v4974 = vadd.f32 0.0, %v4973
  %4975 = vmatmul.f32.gmra.mxu0 %v2560
  %v4976 = vpop.f32.mrf.mxu0
  %v4977 = vadd.f32 0.0, %v4976
  %4978 = vmatmul.f32.gmra.mxu0 %v2563
  %v4979 = vpop.f32.mrf.mxu0
  %v4980 = vadd.f32 0.0, %v4979
  %4981 = vmatmul.f32.gmra.mxu0 %v2566
  %v4982 = vpop.f32.mrf.mxu0
  %v4983 = vadd.f32 0.0, %v4982
  %4984 = vmatmul.f32.gmra.mxu0 %v2569
  %v4985 = vpop.f32.mrf.mxu0
  %v4986 = vadd.f32 0.0, %v4985
  %4987 = vmatmul.f32.gmra.mxu0 %v2572
  %v4988 = vpop.f32.mrf.mxu0
  %v4989 = vadd.f32 0.0, %v4988
  %4990 = vmatmul.f32.gmra.mxu0 %v2575
  %v4991 = vpop.f32.mrf.mxu0
  %v4992 = vadd.f32 0.0, %v4991
  %4993 = vmatmul.f32.gmra.mxu0 %v2578
  %v4994 = vpop.f32.mrf.mxu0
  %v4995 = vadd.f32 0.0, %v4994
  %4996 = vmatmul.f32.gmra.mxu0 %v2581
  %v4997 = vpop.f32.mrf.mxu0
  %v4998 = vadd.f32 0.0, %v4997
  %4999 = vmatmul.f32.gmra.mxu0 %v2584
  %v5000 = vpop.f32.mrf.mxu0
  %v5001 = vadd.f32 0.0, %v5000
  %5002 = vmatmul.f32.gmra.mxu0 %v2587
  %v5003 = vpop.f32.mrf.mxu0
  %v5004 = vadd.f32 0.0, %v5003
  %5005 = vmatmul.f32.gmra.mxu0 %v2590
  %v5006 = vpop.f32.mrf.mxu0
  %v5007 = vadd.f32 0.0, %v5006
  %5008 = vmatmul.f32.gmra.mxu0 %v2593
  %v5009 = vpop.f32.mrf.mxu0
  %v5010 = vadd.f32 0.0, %v5009
  %5011 = vmatmul.f32.gmra.mxu0 %v2596
  %v5012 = vpop.f32.mrf.mxu0
  %v5013 = vadd.f32 0.0, %v5012
  %5014 = vmatmul.f32.gmra.mxu0 %v2599
  %v5015 = vpop.f32.mrf.mxu0
  %v5016 = vadd.f32 0.0, %v5015
  %5017 = vmatmul.f32.gmra.mxu0 %v2602
  %v5018 = vpop.f32.mrf.mxu0
  %v5019 = vadd.f32 0.0, %v5018
  %5020 = vmatmul.f32.gmra.mxu0 %v2605
  %v5021 = vpop.f32.mrf.mxu0
  %v5022 = vadd.f32 0.0, %v5021
  %5023 = vmatmul.f32.gmra.mxu0 %v2608
  %v5024 = vpop.f32.mrf.mxu0
  %v5025 = vadd.f32 0.0, %v5024
  %5026 = vmatmul.f32.gmra.mxu0 %v2611
  %v5027 = vpop.f32.mrf.mxu0
  %v5028 = vadd.f32 0.0, %v5027
  %5029 = vmatmul.f32.gmra.mxu0 %v2614
  %v5030 = vpop.f32.mrf.mxu0
  %v5031 = vadd.f32 0.0, %v5030
  %5032 = vmatmul.f32.gmra.mxu0 %v2617
  %v5033 = vpop.f32.mrf.mxu0
  %v5034 = vadd.f32 0.0, %v5033
  %5035 = vmatmul.f32.gmra.mxu0 %v2620
  %v5036 = vpop.f32.mrf.mxu0
  %v5037 = vadd.f32 0.0, %v5036
  %5038 = vmatmul.f32.gmra.mxu0 %v2623
  %v5039 = vpop.f32.mrf.mxu0
  %v5040 = vadd.f32 0.0, %v5039
  %5041 = vmatmul.f32.gmra.mxu0 %v2626
  %v5042 = vpop.f32.mrf.mxu0
  %v5043 = vadd.f32 0.0, %v5042
  %5044 = vmatmul.f32.gmra.mxu0 %v2629
  %v5045 = vpop.f32.mrf.mxu0
  %v5046 = vadd.f32 0.0, %v5045
  %5047 = vmatmul.f32.gmra.mxu0 %v2632
  %v5048 = vpop.f32.mrf.mxu0
  %v5049 = vadd.f32 0.0, %v5048
  %5050 = vmatmul.f32.gmra.mxu0 %v2635
  %v5051 = vpop.f32.mrf.mxu0
  %v5052 = vadd.f32 0.0, %v5051
  %5053 = vmatmul.f32.gmra.mxu0 %v2638
  %v5054 = vpop.f32.mrf.mxu0
  %v5055 = vadd.f32 0.0, %v5054
  %5056 = vmatmul.f32.gmra.mxu0 %v2641
  %v5057 = vpop.f32.mrf.mxu0
  %v5058 = vadd.f32 0.0, %v5057
  %5059 = vmatmul.f32.gmra.mxu0 %v2644
  %v5060 = vpop.f32.mrf.mxu0
  %v5061 = vadd.f32 0.0, %v5060
  %5062 = vmatmul.f32.gmra.mxu0 %v2647
  %v5063 = vpop.f32.mrf.mxu0
  %v5064 = vadd.f32 0.0, %v5063
  %5065 = vmatmul.f32.gmra.mxu0 %v2650
  %v5066 = vpop.f32.mrf.mxu0
  %v5067 = vadd.f32 0.0, %v5066
  %5068 = vmatmul.f32.gmra.mxu0 %v2653
  %v5069 = vpop.f32.mrf.mxu0
  %v5070 = vadd.f32 0.0, %v5069
  %5071 = vmatmul.f32.gmra.mxu0 %v2656
  %v5072 = vpop.f32.mrf.mxu0
  %v5073 = vadd.f32 0.0, %v5072
  %5074 = vmatmul.f32.gmra.mxu0 %v2659
  %v5075 = vpop.f32.mrf.mxu0
  %v5076 = vadd.f32 0.0, %v5075
  %5077 = vmatmul.f32.gmra.mxu0 %v2662
  %v5078 = vpop.f32.mrf.mxu0
  %v5079 = vadd.f32 0.0, %v5078
  %5080 = vmatmul.f32.gmra.mxu0 %v2665
  %v5081 = vpop.f32.mrf.mxu0
  %v5082 = vadd.f32 0.0, %v5081
  %5083 = vmatmul.f32.gmra.mxu0 %v2668
  %v5084 = vpop.f32.mrf.mxu0
  %v5085 = vadd.f32 0.0, %v5084
  %5086 = vmatmul.f32.gmra.mxu0 %v2671
  %v5087 = vpop.f32.mrf.mxu0
  %v5088 = vadd.f32 0.0, %v5087
  %5089 = vmatmul.f32.gmra.mxu0 %v2674
  %v5090 = vpop.f32.mrf.mxu0
  %v5091 = vadd.f32 0.0, %v5090
  %5092 = vmatmul.f32.gmra.mxu0 %v2677
  %v5093 = vpop.f32.mrf.mxu0
  %v5094 = vadd.f32 0.0, %v5093
  %5095 = vmatmul.f32.gmra.mxu0 %v2680
  %v5096 = vpop.f32.mrf.mxu0
  %v5097 = vadd.f32 0.0, %v5096
  %5098 = vmatmul.f32.gmra.mxu0 %v2683
  %v5099 = vpop.f32.mrf.mxu0
  %v5100 = vadd.f32 0.0, %v5099
  %5101 = vmatmul.f32.gmra.mxu0 %v2686
  %v5102 = vpop.f32.mrf.mxu0
  %v5103 = vadd.f32 0.0, %v5102
  %5104 = vmatmul.f32.gmra.mxu0 %v2689
  %v5105 = vpop.f32.mrf.mxu0
  %v5106 = vadd.f32 0.0, %v5105
  %5107 = vmatmul.f32.gmra.mxu0 %v2692
  %v5108 = vpop.f32.mrf.mxu0
  %v5109 = vadd.f32 0.0, %v5108
  %5110 = vmatmul.f32.gmra.mxu0 %v2695
  %v5111 = vpop.f32.mrf.mxu0
  %v5112 = vadd.f32 0.0, %v5111
  %5113 = vmatmul.f32.gmra.mxu0 %v2698
  %v5114 = vpop.f32.mrf.mxu0
  %v5115 = vadd.f32 0.0, %v5114
  %5116 = vmatmul.f32.gmra.mxu0 %v2701
  %v5117 = vpop.f32.mrf.mxu0
  %v5118 = vadd.f32 0.0, %v5117
  %5119 = vmatmul.f32.gmra.mxu0 %v2704
  %v5120 = vpop.f32.mrf.mxu0
  %v5121 = vadd.f32 0.0, %v5120
  %5122 = vmatmul.f32.gmra.mxu0 %v2707
  %v5123 = vpop.f32.mrf.mxu0
  %v5124 = vadd.f32 0.0, %v5123
  %5125 = vmatmul.f32.gmra.mxu0 %v2710
  %v5126 = vpop.f32.mrf.mxu0
  %v5127 = vadd.f32 0.0, %v5126
  %5128 = vmatmul.f32.gmra.mxu0 %v2713
  %v5129 = vpop.f32.mrf.mxu0
  %v5130 = vadd.f32 0.0, %v5129
  %5131 = vmatmul.f32.gmra.mxu0 %v2716
  %v5132 = vpop.f32.mrf.mxu0
  %v5133 = vadd.f32 0.0, %v5132
  %5134 = vmatmul.f32.gmra.mxu0 %v2719
  %v5135 = vpop.f32.mrf.mxu0
  %v5136 = vadd.f32 0.0, %v5135
  %5137 = vmatmul.f32.gmra.mxu0 %v2722
  %v5138 = vpop.f32.mrf.mxu0
  %v5139 = vadd.f32 0.0, %v5138
  %5140 = vmatmul.f32.gmra.mxu0 %v2725
  %v5141 = vpop.f32.mrf.mxu0
  %v5142 = vadd.f32 0.0, %v5141
  %5143 = vmatmul.f32.gmra.mxu0 %v2728
  %v5144 = vpop.f32.mrf.mxu0
  %v5145 = vadd.f32 0.0, %v5144
  %5146 = vmatmul.f32.gmra.mxu0 %v2731
  %v5147 = vpop.f32.mrf.mxu0
  %v5148 = vadd.f32 0.0, %v5147
  %5149 = vmatmul.f32.gmra.mxu0 %v2734
  %v5150 = vpop.f32.mrf.mxu0
  %v5151 = vadd.f32 0.0, %v5150
  %5152 = vmatmul.f32.gmra.mxu0 %v2737
  %v5153 = vpop.f32.mrf.mxu0
  %v5154 = vadd.f32 0.0, %v5153
  %5155 = vmatmul.f32.gmra.mxu0 %v2740
  %v5156 = vpop.f32.mrf.mxu0
  %v5157 = vadd.f32 0.0, %v5156
  %5158 = vmatmul.f32.gmra.mxu0 %v2743
  %v5159 = vpop.f32.mrf.mxu0
  %v5160 = vadd.f32 0.0, %v5159
  %5161 = vmatmul.f32.gmra.mxu0 %v2746
  %v5162 = vpop.f32.mrf.mxu0
  %v5163 = vadd.f32 0.0, %v5162
  %5164 = vmatmul.f32.gmra.mxu0 %v2749
  %v5165 = vpop.f32.mrf.mxu0
  %v5166 = vadd.f32 0.0, %v5165
  %5167 = vmatmul.f32.gmra.mxu0 %v2752
  %v5168 = vpop.f32.mrf.mxu0
  %v5169 = vadd.f32 0.0, %v5168
  %5170 = vmatmul.f32.gmra.mxu0 %v2755
  %v5171 = vpop.f32.mrf.mxu0
  %v5172 = vadd.f32 0.0, %v5171
  %5173 = vmatmul.f32.gmra.mxu0 %v2758
  %v5174 = vpop.f32.mrf.mxu0
  %v5175 = vadd.f32 0.0, %v5174
  %5176 = vmatmul.f32.gmra.mxu0 %v2761
  %v5177 = vpop.f32.mrf.mxu0
  %v5178 = vadd.f32 0.0, %v5177
  %5179 = vmatmul.f32.gmra.mxu0 %v2764
  %v5180 = vpop.f32.mrf.mxu0
  %v5181 = vadd.f32 0.0, %v5180
  %5182 = vmatmul.f32.gmra.mxu0 %v2767
  %v5183 = vpop.f32.mrf.mxu0
  %v5184 = vadd.f32 0.0, %v5183
  %5185 = vmatmul.f32.gmra.mxu0 %v2770
  %v5186 = vpop.f32.mrf.mxu0
  %v5187 = vadd.f32 0.0, %v5186
  %5188 = vmatmul.f32.gmra.mxu0 %v2773
  %v5189 = vpop.f32.mrf.mxu0
  %v5190 = vadd.f32 0.0, %v5189
  %5191 = vmatmul.f32.gmra.mxu0 %v2776
  %v5192 = vpop.f32.mrf.mxu0
  %v5193 = vadd.f32 0.0, %v5192
  %5194 = vmatmul.f32.gmra.mxu0 %v2779
  %v5195 = vpop.f32.mrf.mxu0
  %v5196 = vadd.f32 0.0, %v5195
  %5197 = vmatmul.f32.gmra.mxu0 %v2782
  %v5198 = vpop.f32.mrf.mxu0
  %v5199 = vadd.f32 0.0, %v5198
  %5200 = vmatmul.f32.gmra.mxu0 %v2785
  %v5201 = vpop.f32.mrf.mxu0
  %v5202 = vadd.f32 0.0, %v5201
  %5203 = vmatmul.f32.gmra.mxu0 %v2788
  %v5204 = vpop.f32.mrf.mxu0
  %v5205 = vadd.f32 0.0, %v5204
  %5206 = vmatmul.f32.gmra.mxu0 %v2791
  %v5207 = vpop.f32.mrf.mxu0
  %v5208 = vadd.f32 0.0, %v5207
  %5209 = vmatmul.f32.gmra.mxu0 %v2794
  %v5210 = vpop.f32.mrf.mxu0
  %v5211 = vadd.f32 0.0, %v5210
  %5212 = vmatmul.f32.gmra.mxu0 %v2797
  %v5213 = vpop.f32.mrf.mxu0
  %v5214 = vadd.f32 0.0, %v5213
  %5215 = vmatmul.f32.gmra.mxu0 %v2800
  %v5216 = vpop.f32.mrf.mxu0
  %v5217 = vadd.f32 0.0, %v5216
  %5218 = vmatmul.f32.gmra.mxu0 %v2803
  %v5219 = vpop.f32.mrf.mxu0
  %v5220 = vadd.f32 0.0, %v5219
  %5221 = vmatmul.f32.gmra.mxu0 %v2806
  %v5222 = vpop.f32.mrf.mxu0
  %v5223 = vadd.f32 0.0, %v5222
  %5224 = vmatmul.f32.gmra.mxu0 %v2809
  %v5225 = vpop.f32.mrf.mxu0
  %v5226 = vadd.f32 0.0, %v5225
  %5227 = vmatmul.f32.gmra.mxu0 %v2812
  %v5228 = vpop.f32.mrf.mxu0
  %v5229 = vadd.f32 0.0, %v5228
  %5230 = vmatmul.f32.gmra.mxu0 %v2815
  %v5231 = vpop.f32.mrf.mxu0
  %v5232 = vadd.f32 0.0, %v5231
  %5233 = vmatmul.f32.gmra.mxu0 %v2818
  %v5234 = vpop.f32.mrf.mxu0
  %v5235 = vadd.f32 0.0, %v5234
  %5236 = vmatmul.f32.gmra.mxu0 %v2821
  %v5237 = vpop.f32.mrf.mxu0
  %v5238 = vadd.f32 0.0, %v5237
  %5239 = vmatmul.f32.gmra.mxu0 %v2824
  %v5240 = vpop.f32.mrf.mxu0
  %v5241 = vadd.f32 0.0, %v5240
  %5242 = vmatmul.f32.gmra.mxu0 %v2827
  %v5243 = vpop.f32.mrf.mxu0
  %v5244 = vadd.f32 0.0, %v5243
  %5245 = vmatmul.f32.gmra.mxu0 %v2830
  %v5246 = vpop.f32.mrf.mxu0
  %v5247 = vadd.f32 0.0, %v5246
  %5248 = vmatmul.f32.gmra.mxu0 %v2833
  %v5249 = vpop.f32.mrf.mxu0
  %v5250 = vadd.f32 0.0, %v5249
  %5251 = vmatmul.f32.gmra.mxu0 %v2836
  %v5252 = vpop.f32.mrf.mxu0
  %v5253 = vadd.f32 0.0, %v5252
  %5254 = vmatmul.f32.gmra.mxu0 %v2839
  %v5255 = vpop.f32.mrf.mxu0
  %v5256 = vadd.f32 0.0, %v5255
  %5257 = vmatmul.f32.gmra.mxu0 %v2842
  %v5258 = vpop.f32.mrf.mxu0
  %v5259 = vadd.f32 0.0, %v5258
  %5260 = vmatmul.f32.gmra.mxu0 %v2845
  %v5261 = vpop.f32.mrf.mxu0
  %v5262 = vadd.f32 0.0, %v5261
  %5263 = vmatmul.f32.gmra.mxu0 %v2848
  %v5264 = vpop.f32.mrf.mxu0
  %v5265 = vadd.f32 0.0, %v5264
  %5266 = vmatmul.f32.gmra.mxu0 %v2851
  %v5267 = vpop.f32.mrf.mxu0
  %v5268 = vadd.f32 0.0, %v5267
  %5269 = vmatmul.f32.gmra.mxu0 %v2854
  %v5270 = vpop.f32.mrf.mxu0
  %v5271 = vadd.f32 0.0, %v5270
  %5272 = vmatmul.f32.gmra.mxu0 %v2857
  %v5273 = vpop.f32.mrf.mxu0
  %v5274 = vadd.f32 0.0, %v5273
  %5275 = vmatmul.f32.gmra.mxu0 %v2860
  %v5276 = vpop.f32.mrf.mxu0
  %v5277 = vadd.f32 0.0, %v5276
  %5278 = vmatmul.f32.gmra.mxu0 %v2863
  %v5279 = vpop.f32.mrf.mxu0
  %v5280 = vadd.f32 0.0, %v5279
  %5281 = vmatmul.f32.gmra.mxu0 %v2866
  %v5282 = vpop.f32.mrf.mxu0
  %v5283 = vadd.f32 0.0, %v5282
  %5284 = vmatmul.f32.gmra.mxu0 %v2869
  %v5285 = vpop.f32.mrf.mxu0
  %v5286 = vadd.f32 0.0, %v5285
  %5287 = vmatmul.f32.gmra.mxu0 %v2872
  %v5288 = vpop.f32.mrf.mxu0
  %v5289 = vadd.f32 0.0, %v5288
  %5290 = vmatmul.f32.gmra.mxu0 %v2875
  %v5291 = vpop.f32.mrf.mxu0
  %v5292 = vadd.f32 0.0, %v5291
  %5293 = vmatmul.f32.gmra.mxu0 %v2878
  %v5294 = vpop.f32.mrf.mxu0
  %v5295 = vadd.f32 0.0, %v5294
  %5296 = vmatmul.f32.gmra.mxu0 %v2881
  %v5297 = vpop.f32.mrf.mxu0
  %v5298 = vadd.f32 0.0, %v5297
  %5299 = vmatmul.f32.gmra.mxu0 %v2884
  %v5300 = vpop.f32.mrf.mxu0
  %v5301 = vadd.f32 0.0, %v5300
  %5302 = vmatmul.f32.gmra.mxu0 %v2887
  %v5303 = vpop.f32.mrf.mxu0
  %v5304 = vadd.f32 0.0, %v5303
  %5305 = vmatmul.f32.gmra.mxu0 %v2890
  %v5306 = vpop.f32.mrf.mxu0
  %v5307 = vadd.f32 0.0, %v5306
  %5308 = vmatmul.f32.gmra.mxu0 %v2893
  %v5309 = vpop.f32.mrf.mxu0
  %v5310 = vadd.f32 0.0, %v5309
  %5311 = vmatmul.f32.gmra.mxu0 %v2896
  %v5312 = vpop.f32.mrf.mxu0
  %v5313 = vadd.f32 0.0, %v5312
  %5314 = vmatmul.f32.gmra.mxu0 %v2899
  %v5315 = vpop.f32.mrf.mxu0
  %v5316 = vadd.f32 0.0, %v5315
  %5317 = vmatmul.f32.gmra.mxu0 %v2902
  %v5318 = vpop.f32.mrf.mxu0
  %v5319 = vadd.f32 0.0, %v5318
  %5320 = vmatmul.f32.gmra.mxu0 %v2905
  %v5321 = vpop.f32.mrf.mxu0
  %v5322 = vadd.f32 0.0, %v5321
  %5323 = vmatmul.f32.gmra.mxu0 %v2908
  %v5324 = vpop.f32.mrf.mxu0
  %v5325 = vadd.f32 0.0, %v5324
  %5326 = vmatmul.f32.gmra.mxu0 %v2911
  %v5327 = vpop.f32.mrf.mxu0
  %v5328 = vadd.f32 0.0, %v5327
  %5329 = vmatmul.f32.gmra.mxu0 %v2914
  %v5330 = vpop.f32.mrf.mxu0
  %v5331 = vadd.f32 0.0, %v5330
  %5332 = vmatmul.f32.gmra.mxu0 %v2917
  %v5333 = vpop.f32.mrf.mxu0
  %v5334 = vadd.f32 0.0, %v5333
  %5335 = vmatmul.f32.gmra.mxu0 %v2920
  %v5336 = vpop.f32.mrf.mxu0
  %v5337 = vadd.f32 0.0, %v5336
  %5338 = vmatmul.f32.gmra.mxu0 %v2923
  %v5339 = vpop.f32.mrf.mxu0
  %v5340 = vadd.f32 0.0, %v5339
  %5341 = vmatmul.f32.gmra.mxu0 %v2926
  %v5342 = vpop.f32.mrf.mxu0
  %v5343 = vadd.f32 0.0, %v5342
  %5344 = vmatmul.f32.gmra.mxu0 %v2929
  %v5345 = vpop.f32.mrf.mxu0
  %v5346 = vadd.f32 0.0, %v5345
  %5347 = vmatmul.f32.gmra.mxu0 %v2932
  %v5348 = vpop.f32.mrf.mxu0
  %v5349 = vadd.f32 0.0, %v5348
  %5350 = vmatmul.f32.gmra.mxu0 %v2935
  %v5351 = vpop.f32.mrf.mxu0
  %v5352 = vadd.f32 0.0, %v5351
  %5353 = vmatmul.f32.gmra.mxu0 %v2938
  %v5354 = vpop.f32.mrf.mxu0
  %v5355 = vadd.f32 0.0, %v5354
  %5356 = vmatmul.f32.gmra.mxu0 %v2941
  %v5357 = vpop.f32.mrf.mxu0
  %v5358 = vadd.f32 0.0, %v5357
  %5359 = vmatmul.f32.gmra.mxu0 %v2944
  %v5360 = vpop.f32.mrf.mxu0
  %v5361 = vadd.f32 0.0, %v5360
  %5362 = vmatmul.f32.gmra.mxu0 %v2947
  %v5363 = vpop.f32.mrf.mxu0
  %v5364 = vadd.f32 0.0, %v5363
  %5365 = vmatmul.f32.gmra.mxu0 %v2950
  %v5366 = vpop.f32.mrf.mxu0
  %v5367 = vadd.f32 0.0, %v5366
  %5368 = vmatmul.f32.gmra.mxu0 %v2953
  %v5369 = vpop.f32.mrf.mxu0
  %v5370 = vadd.f32 0.0, %v5369
  %5371 = vmatmul.f32.gmra.mxu0 %v2956
  %v5372 = vpop.f32.mrf.mxu0
  %v5373 = vadd.f32 0.0, %v5372
  %5374 = vmatmul.f32.gmra.mxu0 %v2959
  %v5375 = vpop.f32.mrf.mxu0
  %v5376 = vadd.f32 0.0, %v5375
  %5377 = vmatmul.f32.gmra.mxu0 %v2962
  %v5378 = vpop.f32.mrf.mxu0
  %v5379 = vadd.f32 0.0, %v5378
  %5380 = vmatmul.f32.gmra.mxu0 %v2965
  %v5381 = vpop.f32.mrf.mxu0
  %v5382 = vadd.f32 0.0, %v5381
  %5383 = vmatmul.f32.gmra.mxu0 %v2968
  %v5384 = vpop.f32.mrf.mxu0
  %v5385 = vadd.f32 0.0, %v5384
  %5386 = vmatmul.f32.gmra.mxu0 %v2971
  %v5387 = vpop.f32.mrf.mxu0
  %v5388 = vadd.f32 0.0, %v5387
  %5389 = vmatmul.f32.gmra.mxu0 %v2974
  %v5390 = vpop.f32.mrf.mxu0
  %v5391 = vadd.f32 0.0, %v5390
  %5392 = vmatmul.f32.gmra.mxu0 %v2977
  %v5393 = vpop.f32.mrf.mxu0
  %v5394 = vadd.f32 0.0, %v5393
  %5395 = vmatmul.f32.gmra.mxu0 %v2980
  %v5396 = vpop.f32.mrf.mxu0
  %v5397 = vadd.f32 0.0, %v5396
  %5398 = vmatmul.f32.gmra.mxu0 %v2983
  %v5399 = vpop.f32.mrf.mxu0
  %v5400 = vadd.f32 0.0, %v5399
  %5401 = vmatmul.f32.gmra.mxu0 %v2986
  %v5402 = vpop.f32.mrf.mxu0
  %v5403 = vadd.f32 0.0, %v5402
  %5404 = vmatmul.f32.gmra.mxu0 %v2989
  %v5405 = vpop.f32.mrf.mxu0
  %v5406 = vadd.f32 0.0, %v5405
  %5407 = vmatmul.f32.gmra.mxu0 %v2992
  %v5408 = vpop.f32.mrf.mxu0
  %v5409 = vadd.f32 0.0, %v5408
  %5410 = vmatmul.f32.gmra.mxu0 %v2995
  %v5411 = vpop.f32.mrf.mxu0
  %v5412 = vadd.f32 0.0, %v5411
  %5413 = vmatmul.f32.gmra.mxu0 %v2998
  %v5414 = vpop.f32.mrf.mxu0
  %v5415 = vadd.f32 0.0, %v5414
  %5416 = vmatmul.f32.gmra.mxu0 %v3001
  %v5417 = vpop.f32.mrf.mxu0
  %v5418 = vadd.f32 0.0, %v5417
  %5419 = vmatmul.f32.gmra.mxu0 %v3004
  %v5420 = vpop.f32.mrf.mxu0
  %v5421 = vadd.f32 0.0, %v5420
  %5422 = vmatmul.f32.gmra.mxu0 %v3007
  %v5423 = vpop.f32.mrf.mxu0
  %v5424 = vadd.f32 0.0, %v5423
  %5425 = vmatmul.f32.gmra.mxu0 %v3010
  %v5426 = vpop.f32.mrf.mxu0
  %v5427 = vadd.f32 0.0, %v5426
  %5428 = vmatmul.f32.gmra.mxu0 %v3013
  %v5429 = vpop.f32.mrf.mxu0
  %v5430 = vadd.f32 0.0, %v5429
  %5431 = vmatmul.f32.gmra.mxu0 %v3016
  %v5432 = vpop.f32.mrf.mxu0
  %v5433 = vadd.f32 0.0, %v5432
  %5434 = vmatmul.f32.gmra.mxu0 %v3019
  %v5435 = vpop.f32.mrf.mxu0
  %v5436 = vadd.f32 0.0, %v5435
  %5437 = vmatmul.f32.gmra.mxu0 %v3022
  %v5438 = vpop.f32.mrf.mxu0
  %v5439 = vadd.f32 0.0, %v5438
  %5440 = vmatmul.f32.gmra.mxu0 %v3025
  %v5441 = vpop.f32.mrf.mxu0
  %v5442 = vadd.f32 0.0, %v5441
  %5443 = vmatmul.f32.gmra.mxu0 %v3028
  %v5444 = vpop.f32.mrf.mxu0
  %v5445 = vadd.f32 0.0, %v5444
  %5446 = vmatmul.f32.gmra.mxu0 %v3031
  %v5447 = vpop.f32.mrf.mxu0
  %v5448 = vadd.f32 0.0, %v5447
  %5449 = vmatmul.f32.gmra.mxu0 %v3034
  %v5450 = vpop.f32.mrf.mxu0
  %v5451 = vadd.f32 0.0, %v5450
  %5452 = vmatmul.f32.gmra.mxu0 %v3037
  %v5453 = vpop.f32.mrf.mxu0
  %v5454 = vadd.f32 0.0, %v5453
  %5455 = vmatmul.f32.gmra.mxu0 %v3040
  %v5456 = vpop.f32.mrf.mxu0
  %v5457 = vadd.f32 0.0, %v5456
  %5458 = vmatmul.f32.gmra.mxu0 %v3043
  %v5459 = vpop.f32.mrf.mxu0
  %v5460 = vadd.f32 0.0, %v5459
  %5461 = vmatmul.f32.gmra.mxu0 %v3046
  %v5462 = vpop.f32.mrf.mxu0
  %v5463 = vadd.f32 0.0, %v5462
  %5464 = vmatmul.f32.gmra.mxu0 %v3049
  %v5465 = vpop.f32.mrf.mxu0
  %v5466 = vadd.f32 0.0, %v5465
  %5467 = vmatmul.f32.gmra.mxu0 %v3052
  %v5468 = vpop.f32.mrf.mxu0
  %v5469 = vadd.f32 0.0, %v5468
  %5470 = vmatmul.f32.gmra.mxu0 %v3055
  %v5471 = vpop.f32.mrf.mxu0
  %v5472 = vadd.f32 0.0, %v5471
  %5473 = vmatmul.f32.gmra.mxu0 %v3058
  %v5474 = vpop.f32.mrf.mxu0
  %v5475 = vadd.f32 0.0, %v5474
  %5476 = vmatmul.f32.gmra.mxu0 %v3061
  %v5477 = vpop.f32.mrf.mxu0
  %v5478 = vadd.f32 0.0, %v5477
  %5479 = vmatmul.f32.gmra.mxu0 %v3064
  %v5480 = vpop.f32.mrf.mxu0
  %v5481 = vadd.f32 0.0, %v5480
  %5482 = vmatmul.f32.gmra.mxu0 %v3067
  %v5483 = vpop.f32.mrf.mxu0
  %v5484 = vadd.f32 0.0, %v5483
  %5485 = vmatmul.f32.gmra.mxu0 %v3070
  %v5486 = vpop.f32.mrf.mxu0
  %v5487 = vadd.f32 0.0, %v5486
  %5488 = vmatmul.f32.gmra.mxu0 %v3073
  %v5489 = vpop.f32.mrf.mxu0
  %v5490 = vadd.f32 0.0, %v5489
  %5491 = vmatmul.f32.gmra.mxu0 %v3076
  %v5492 = vpop.f32.mrf.mxu0
  %v5493 = vadd.f32 0.0, %v5492
  %5494 = vmatmul.f32.gmra.mxu0 %v3079
  %v5495 = vpop.f32.mrf.mxu0
  %v5496 = vadd.f32 0.0, %v5495
  %5497 = vmatmul.f32.gmra.mxu0 %v3082
  %v5498 = vpop.f32.mrf.mxu0
  %v5499 = vadd.f32 0.0, %v5498
  %5500 = vmatmul.f32.gmra.mxu0 %v3085
  %v5501 = vpop.f32.mrf.mxu0
  %v5502 = vadd.f32 0.0, %v5501
  %5503 = vmatmul.f32.gmra.mxu0 %v3088
  %v5504 = vpop.f32.mrf.mxu0
  %v5505 = vadd.f32 0.0, %v5504
  %5506 = vmatmul.f32.gmra.mxu0 %v3091
  %v5507 = vpop.f32.mrf.mxu0
  %v5508 = vadd.f32 0.0, %v5507
  %5509 = vmatmul.f32.gmra.mxu0 %v3094
  %v5510 = vpop.f32.mrf.mxu0
  %v5511 = vadd.f32 0.0, %v5510
  %5512 = vmatmul.f32.gmra.mxu0 %v3097
  %v5513 = vpop.f32.mrf.mxu0
  %v5514 = vadd.f32 0.0, %v5513
  %5515 = vmatmul.f32.gmra.mxu0 %v3100
  %v5516 = vpop.f32.mrf.mxu0
  %v5517 = vadd.f32 0.0, %v5516
  %5518 = vmatmul.f32.gmra.mxu0 %v3103
  %v5519 = vpop.f32.mrf.mxu0
  %v5520 = vadd.f32 0.0, %v5519
  %5521 = vmatmul.f32.gmra.mxu0 %v3106
  %v5522 = vpop.f32.mrf.mxu0
  %v5523 = vadd.f32 0.0, %v5522
  %5524 = vmatmul.f32.gmra.mxu0 %v3109
  %v5525 = vpop.f32.mrf.mxu0
  %v5526 = vadd.f32 0.0, %v5525
  %5527 = vmatmul.f32.gmra.mxu0 %v3112
  %v5528 = vpop.f32.mrf.mxu0
  %v5529 = vadd.f32 0.0, %v5528
  %5530 = vmatmul.f32.gmra.mxu0 %v3115
  %v5531 = vpop.f32.mrf.mxu0
  %v5532 = vadd.f32 0.0, %v5531
  %5533 = vmatmul.f32.gmra.mxu0 %v3118
  %v5534 = vpop.f32.mrf.mxu0
  %v5535 = vadd.f32 0.0, %v5534
  %5536 = vmatmul.f32.gmra.mxu0 %v3121
  %v5537 = vpop.f32.mrf.mxu0
  %v5538 = vadd.f32 0.0, %v5537
  %5539 = vmatmul.f32.gmra.mxu0 %v3124
  %v5540 = vpop.f32.mrf.mxu0
  %v5541 = vadd.f32 0.0, %v5540
  %5542 = vmatmul.f32.gmra.mxu0 %v3127
  %v5543 = vpop.f32.mrf.mxu0
  %v5544 = vadd.f32 0.0, %v5543
  %5545 = vmatmul.f32.gmra.mxu0 %v3130
  %v5546 = vpop.f32.mrf.mxu0
  %v5547 = vadd.f32 0.0, %v5546
  %5548 = vmatmul.f32.gmra.mxu0 %v3133
  %v5549 = vpop.f32.mrf.mxu0
  %v5550 = vadd.f32 0.0, %v5549
  %5551 = vmatmul.f32.gmra.mxu0 %v3136
  %v5552 = vpop.f32.mrf.mxu0
  %v5553 = vadd.f32 0.0, %v5552
  %5554 = vmatmul.f32.gmra.mxu0 %v3139
  %v5555 = vpop.f32.mrf.mxu0
  %v5556 = vadd.f32 0.0, %v5555
  %5557 = vmatmul.f32.gmra.mxu0 %v3142
  %v5558 = vpop.f32.mrf.mxu0
  %v5559 = vadd.f32 0.0, %v5558
  %5560 = vmatmul.f32.gmra.mxu0 %v3145
  %v5561 = vpop.f32.mrf.mxu0
  %v5562 = vadd.f32 0.0, %v5561
  %5563 = vmatmul.f32.gmra.mxu0 %v3148
  %v5564 = vpop.f32.mrf.mxu0
  %v5565 = vadd.f32 0.0, %v5564
  %5566 = vmatmul.f32.gmra.mxu0 %v3151
  %v5567 = vpop.f32.mrf.mxu0
  %v5568 = vadd.f32 0.0, %v5567
  %5569 = vmatmul.f32.gmra.mxu0 %v3154
  %v5570 = vpop.f32.mrf.mxu0
  %v5571 = vadd.f32 0.0, %v5570
  %5572 = vmatmul.f32.gmra.mxu0 %v3157
  %v5573 = vpop.f32.mrf.mxu0
  %v5574 = vadd.f32 0.0, %v5573
  %5575 = vmatmul.f32.gmra.mxu0 %v3160
  %v5576 = vpop.f32.mrf.mxu0
  %v5577 = vadd.f32 0.0, %v5576
  %5578 = vmatmul.f32.gmra.mxu0 %v3163
  %v5579 = vpop.f32.mrf.mxu0
  %v5580 = vadd.f32 0.0, %v5579
  %5581 = vmatmul.f32.gmra.mxu0 %v3166
  %v5582 = vpop.f32.mrf.mxu0
  %v5583 = vadd.f32 0.0, %v5582
  %5584 = vmatmul.f32.gmra.mxu0 %v3169
  %v5585 = vpop.f32.mrf.mxu0
  %v5586 = vadd.f32 0.0, %v5585
  %5587 = vmatmul.f32.gmra.mxu0 %v3172
  %v5588 = vpop.f32.mrf.mxu0
  %v5589 = vadd.f32 0.0, %v5588
  %5590 = vmatmul.f32.gmra.mxu0 %v3175
  %v5591 = vpop.f32.mrf.mxu0
  %v5592 = vadd.f32 0.0, %v5591
  %5593 = vmatmul.f32.gmra.mxu0 %v3178
  %v5594 = vpop.f32.mrf.mxu0
  %v5595 = vadd.f32 0.0, %v5594
  %5596 = vmatmul.f32.gmra.mxu0 %v3181
  %v5597 = vpop.f32.mrf.mxu0
  %v5598 = vadd.f32 0.0, %v5597
  %5599 = vmatmul.f32.gmra.mxu0 %v3184
  %v5600 = vpop.f32.mrf.mxu0
  %v5601 = vadd.f32 0.0, %v5600
  %5602 = vmatmul.f32.gmra.mxu0 %v3187
  %v5603 = vpop.f32.mrf.mxu0
  %v5604 = vadd.f32 0.0, %v5603
  %5605 = vmatmul.f32.gmra.mxu0 %v3190
  %v5606 = vpop.f32.mrf.mxu0
  %v5607 = vadd.f32 0.0, %v5606
  %5608 = vmatmul.f32.gmra.mxu0 %v3193
  %v5609 = vpop.f32.mrf.mxu0
  %v5610 = vadd.f32 0.0, %v5609
  %5611 = vmatmul.f32.gmra.mxu0 %v3196
  %v5612 = vpop.f32.mrf.mxu0
  %v5613 = vadd.f32 0.0, %v5612
  %5614 = vmatmul.f32.gmra.mxu0 %v3199
  %v5615 = vpop.f32.mrf.mxu0
  %v5616 = vadd.f32 0.0, %v5615
  %5617 = vmatmul.f32.gmra.mxu0 %v3202
  %v5618 = vpop.f32.mrf.mxu0
  %v5619 = vadd.f32 0.0, %v5618
  %5620 = vmatmul.f32.gmra.mxu0 %v3205
  %v5621 = vpop.f32.mrf.mxu0
  %v5622 = vadd.f32 0.0, %v5621
  %5623 = vmatmul.f32.gmra.mxu0 %v3208
  %v5624 = vpop.f32.mrf.mxu0
  %v5625 = vadd.f32 0.0, %v5624
  %5626 = vmatmul.f32.gmra.mxu0 %v3211
  %v5627 = vpop.f32.mrf.mxu0
  %v5628 = vadd.f32 0.0, %v5627
  %5629 = vmatmul.f32.gmra.mxu0 %v3214
  %v5630 = vpop.f32.mrf.mxu0
  %v5631 = vadd.f32 0.0, %v5630
  %5632 = vmatmul.f32.gmra.mxu0 %v3217
  %v5633 = vpop.f32.mrf.mxu0
  %v5634 = vadd.f32 0.0, %v5633
  %5635 = vdwg.mxu0
  %v5636 = vmax.f32 %v3237, %v3312
  %v5637 = vmax.f32 %v3240, %v3315
  %v5638 = vmax.f32 %v3243, %v3318
  %v5639 = vmax.f32 %v3246, %v3321
  %v5640 = vmax.f32 %v3249, %v3324
  %v5641 = vmax.f32 %v3252, %v3327
  %v5642 = vmax.f32 %v3255, %v3330
  %v5643 = vmax.f32 %v3258, %v3333
  %v5644 = vmax.f32 %v3261, %v3336
  %v5645 = vmax.f32 %v3264, %v3339
  %v5646 = vmax.f32 %v3267, %v3342
  %v5647 = vmax.f32 %v3270, %v3345
  %v5648 = vmax.f32 %v3273, %v3348
  %v5649 = vmax.f32 %v3276, %v3351
  %v5650 = vmax.f32 %v3279, %v3354
  %v5651 = vmax.f32 %v3282, %v3357
  %v5652 = vmax.f32 %v3285, %v3360
  %v5653 = vmax.f32 %v3288, %v3363
  %v5654 = vmax.f32 %v3291, %v3366
  %v5655 = vmax.f32 %v3294, %v3369
  %v5656 = vmax.f32 %v3297, %v3372
  %v5657 = vmax.f32 %v3300, %v3375
  %v5658 = vmax.f32 %v3303, %v3378
  %v5659 = vmax.f32 %v3306, %v3381
  %v5660 = vmax.f32 %v3309, %v3384
  %v5661 = vmax.f32 %v3537, %v3612
  %v5662 = vmax.f32 %v3540, %v3615
  %v5663 = vmax.f32 %v3543, %v3618
  %v5664 = vmax.f32 %v3546, %v3621
  %v5665 = vmax.f32 %v3549, %v3624
  %v5666 = vmax.f32 %v3552, %v3627
  %v5667 = vmax.f32 %v3555, %v3630
  %v5668 = vmax.f32 %v3558, %v3633
  %v5669 = vmax.f32 %v3561, %v3636
  %v5670 = vmax.f32 %v3564, %v3639
  %v5671 = vmax.f32 %v3567, %v3642
  %v5672 = vmax.f32 %v3570, %v3645
  %v5673 = vmax.f32 %v3573, %v3648
  %v5674 = vmax.f32 %v3576, %v3651
  %v5675 = vmax.f32 %v3579, %v3654
  %v5676 = vmax.f32 %v3582, %v3657
  %v5677 = vmax.f32 %v3585, %v3660
  %v5678 = vmax.f32 %v3588, %v3663
  %v5679 = vmax.f32 %v3591, %v3666
  %v5680 = vmax.f32 %v3594, %v3669
  %v5681 = vmax.f32 %v3597, %v3672
  %v5682 = vmax.f32 %v3600, %v3675
  %v5683 = vmax.f32 %v3603, %v3678
  %v5684 = vmax.f32 %v3606, %v3681
  %v5685 = vmax.f32 %v3609, %v3684
  %v5686 = vmax.f32 %v3837, %v3912
  %v5687 = vmax.f32 %v3840, %v3915
  %v5688 = vmax.f32 %v3843, %v3918
  %v5689 = vmax.f32 %v3846, %v3921
  %v5690 = vmax.f32 %v3849, %v3924
  %v5691 = vmax.f32 %v3852, %v3927
  %v5692 = vmax.f32 %v3855, %v3930
  %v5693 = vmax.f32 %v3858, %v3933
  %v5694 = vmax.f32 %v3861, %v3936
  %v5695 = vmax.f32 %v3864, %v3939
  %v5696 = vmax.f32 %v3867, %v3942
  %v5697 = vmax.f32 %v3870, %v3945
  %v5698 = vmax.f32 %v3873, %v3948
  %v5699 = vmax.f32 %v3876, %v3951
  %v5700 = vmax.f32 %v3879, %v3954
  %v5701 = vmax.f32 %v3882, %v3957
  %v5702 = vmax.f32 %v3885, %v3960
  %v5703 = vmax.f32 %v3888, %v3963
  %v5704 = vmax.f32 %v3891, %v3966
  %v5705 = vmax.f32 %v3894, %v3969
  %v5706 = vmax.f32 %v3897, %v3972
  %v5707 = vmax.f32 %v3900, %v3975
  %v5708 = vmax.f32 %v3903, %v3978
  %v5709 = vmax.f32 %v3906, %v3981
  %v5710 = vmax.f32 %v3909, %v3984
  %v5711 = vmax.f32 %v4137, %v4212
  %v5712 = vmax.f32 %v4140, %v4215
  %v5713 = vmax.f32 %v4143, %v4218
  %v5714 = vmax.f32 %v4146, %v4221
  %v5715 = vmax.f32 %v4149, %v4224
  %v5716 = vmax.f32 %v4152, %v4227
  %v5717 = vmax.f32 %v4155, %v4230
  %v5718 = vmax.f32 %v4158, %v4233
  %v5719 = vmax.f32 %v4161, %v4236
  %v5720 = vmax.f32 %v4164, %v4239
  %v5721 = vmax.f32 %v4167, %v4242
  %v5722 = vmax.f32 %v4170, %v4245
  %v5723 = vmax.f32 %v4173, %v4248
  %v5724 = vmax.f32 %v4176, %v4251
  %v5725 = vmax.f32 %v4179, %v4254
  %v5726 = vmax.f32 %v4182, %v4257
  %v5727 = vmax.f32 %v4185, %v4260
  %v5728 = vmax.f32 %v4188, %v4263
  %v5729 = vmax.f32 %v4191, %v4266
  %v5730 = vmax.f32 %v4194, %v4269
  %v5731 = vmax.f32 %v4197, %v4272
  %v5732 = vmax.f32 %v4200, %v4275
  %v5733 = vmax.f32 %v4203, %v4278
  %v5734 = vmax.f32 %v4206, %v4281
  %v5735 = vmax.f32 %v4209, %v4284
  %v5736 = vmax.f32 %v4437, %v4512
  %v5737 = vmax.f32 %v4440, %v4515
  %v5738 = vmax.f32 %v4443, %v4518
  %v5739 = vmax.f32 %v4446, %v4521
  %v5740 = vmax.f32 %v4449, %v4524
  %v5741 = vmax.f32 %v4452, %v4527
  %v5742 = vmax.f32 %v4455, %v4530
  %v5743 = vmax.f32 %v4458, %v4533
  %v5744 = vmax.f32 %v4461, %v4536
  %v5745 = vmax.f32 %v4464, %v4539
  %v5746 = vmax.f32 %v4467, %v4542
  %v5747 = vmax.f32 %v4470, %v4545
  %v5748 = vmax.f32 %v4473, %v4548
  %v5749 = vmax.f32 %v4476, %v4551
  %v5750 = vmax.f32 %v4479, %v4554
  %v5751 = vmax.f32 %v4482, %v4557
  %v5752 = vmax.f32 %v4485, %v4560
  %v5753 = vmax.f32 %v4488, %v4563
  %v5754 = vmax.f32 %v4491, %v4566
  %v5755 = vmax.f32 %v4494, %v4569
  %v5756 = vmax.f32 %v4497, %v4572
  %v5757 = vmax.f32 %v4500, %v4575
  %v5758 = vmax.f32 %v4503, %v4578
  %v5759 = vmax.f32 %v4506, %v4581
  %v5760 = vmax.f32 %v4509, %v4584
  %v5761 = vmax.f32 %v4737, %v4812
  %v5762 = vmax.f32 %v4740, %v4815
  %v5763 = vmax.f32 %v4743, %v4818
  %v5764 = vmax.f32 %v4746, %v4821
  %v5765 = vmax.f32 %v4749, %v4824
  %v5766 = vmax.f32 %v4752, %v4827
  %v5767 = vmax.f32 %v4755, %v4830
  %v5768 = vmax.f32 %v4758, %v4833
  %v5769 = vmax.f32 %v4761, %v4836
  %v5770 = vmax.f32 %v4764, %v4839
  %v5771 = vmax.f32 %v4767, %v4842
  %v5772 = vmax.f32 %v4770, %v4845
  %v5773 = vmax.f32 %v4773, %v4848
  %v5774 = vmax.f32 %v4776, %v4851
  %v5775 = vmax.f32 %v4779, %v4854
  %v5776 = vmax.f32 %v4782, %v4857
  %v5777 = vmax.f32 %v4785, %v4860
  %v5778 = vmax.f32 %v4788, %v4863
  %v5779 = vmax.f32 %v4791, %v4866
  %v5780 = vmax.f32 %v4794, %v4869
  %v5781 = vmax.f32 %v4797, %v4872
  %v5782 = vmax.f32 %v4800, %v4875
  %v5783 = vmax.f32 %v4803, %v4878
  %v5784 = vmax.f32 %v4806, %v4881
  %v5785 = vmax.f32 %v4809, %v4884
  %v5786 = vmax.f32 %v5037, %v5112
  %v5787 = vmax.f32 %v5040, %v5115
  %v5788 = vmax.f32 %v5043, %v5118
  %v5789 = vmax.f32 %v5046, %v5121
  %v5790 = vmax.f32 %v5049, %v5124
  %v5791 = vmax.f32 %v5052, %v5127
  %v5792 = vmax.f32 %v5055, %v5130
  %v5793 = vmax.f32 %v5058, %v5133
  %v5794 = vmax.f32 %v5061, %v5136
  %v5795 = vmax.f32 %v5064, %v5139
  %v5796 = vmax.f32 %v5067, %v5142
  %v5797 = vmax.f32 %v5070, %v5145
  %v5798 = vmax.f32 %v5073, %v5148
  %v5799 = vmax.f32 %v5076, %v5151
  %v5800 = vmax.f32 %v5079, %v5154
  %v5801 = vmax.f32 %v5082, %v5157
  %v5802 = vmax.f32 %v5085, %v5160
  %v5803 = vmax.f32 %v5088, %v5163
  %v5804 = vmax.f32 %v5091, %v5166
  %v5805 = vmax.f32 %v5094, %v5169
  %v5806 = vmax.f32 %v5097, %v5172
  %v5807 = vmax.f32 %v5100, %v5175
  %v5808 = vmax.f32 %v5103, %v5178
  %v5809 = vmax.f32 %v5106, %v5181
  %v5810 = vmax.f32 %v5109, %v5184
  %v5811 = vmax.f32 %v5337, %v5412
  %v5812 = vmax.f32 %v5340, %v5415
  %v5813 = vmax.f32 %v5343, %v5418
  %v5814 = vmax.f32 %v5346, %v5421
  %v5815 = vmax.f32 %v5349, %v5424
  %v5816 = vmax.f32 %v5352, %v5427
  %v5817 = vmax.f32 %v5355, %v5430
  %v5818 = vmax.f32 %v5358, %v5433
  %v5819 = vmax.f32 %v5361, %v5436
  %v5820 = vmax.f32 %v5364, %v5439
  %v5821 = vmax.f32 %v5367, %v5442
  %v5822 = vmax.f32 %v5370, %v5445
  %v5823 = vmax.f32 %v5373, %v5448
  %v5824 = vmax.f32 %v5376, %v5451
  %v5825 = vmax.f32 %v5379, %v5454
  %v5826 = vmax.f32 %v5382, %v5457
  %v5827 = vmax.f32 %v5385, %v5460
  %v5828 = vmax.f32 %v5388, %v5463
  %v5829 = vmax.f32 %v5391, %v5466
  %v5830 = vmax.f32 %v5394, %v5469
  %v5831 = vmax.f32 %v5397, %v5472
  %v5832 = vmax.f32 %v5400, %v5475
  %v5833 = vmax.f32 %v5403, %v5478
  %v5834 = vmax.f32 %v5406, %v5481
  %v5835 = vmax.f32 %v5409, %v5484
  %v5836 = vmax.f32 %v3387, %v3462
  %v5837 = vmax.f32 %v3390, %v3465
  %v5838 = vmax.f32 %v3393, %v3468
  %v5839 = vmax.f32 %v3396, %v3471
  %v5840 = vmax.f32 %v3399, %v3474
  %v5841 = vmax.f32 %v3402, %v3477
  %v5842 = vmax.f32 %v3405, %v3480
  %v5843 = vmax.f32 %v3408, %v3483
  %v5844 = vmax.f32 %v3411, %v3486
  %v5845 = vmax.f32 %v3414, %v3489
  %v5846 = vmax.f32 %v3417, %v3492
  %v5847 = vmax.f32 %v3420, %v3495
  %v5848 = vmax.f32 %v3423, %v3498
  %v5849 = vmax.f32 %v3426, %v3501
  %v5850 = vmax.f32 %v3429, %v3504
  %v5851 = vmax.f32 %v3432, %v3507
  %v5852 = vmax.f32 %v3435, %v3510
  %v5853 = vmax.f32 %v3438, %v3513
  %v5854 = vmax.f32 %v3441, %v3516
  %v5855 = vmax.f32 %v3444, %v3519
  %v5856 = vmax.f32 %v3447, %v3522
  %v5857 = vmax.f32 %v3450, %v3525
  %v5858 = vmax.f32 %v3453, %v3528
  %v5859 = vmax.f32 %v3456, %v3531
  %v5860 = vmax.f32 %v3459, %v3534
  %v5861 = vmax.f32 %v3687, %v3762
  %v5862 = vmax.f32 %v3690, %v3765
  %v5863 = vmax.f32 %v3693, %v3768
  %v5864 = vmax.f32 %v3696, %v3771
  %v5865 = vmax.f32 %v3699, %v3774
  %v5866 = vmax.f32 %v3702, %v3777
  %v5867 = vmax.f32 %v3705, %v3780
  %v5868 = vmax.f32 %v3708, %v3783
  %v5869 = vmax.f32 %v3711, %v3786
  %v5870 = vmax.f32 %v3714, %v3789
  %v5871 = vmax.f32 %v3717, %v3792
  %v5872 = vmax.f32 %v3720, %v3795
  %v5873 = vmax.f32 %v3723, %v3798
  %v5874 = vmax.f32 %v3726, %v3801
  %v5875 = vmax.f32 %v3729, %v3804
  %v5876 = vmax.f32 %v3732, %v3807
  %v5877 = vmax.f32 %v3735, %v3810
  %v5878 = vmax.f32 %v3738, %v3813
  %v5879 = vmax.f32 %v3741, %v3816
  %v5880 = vmax.f32 %v3744, %v3819
  %v5881 = vmax.f32 %v3747, %v3822
  %v5882 = vmax.f32 %v3750, %v3825
  %v5883 = vmax.f32 %v3753, %v3828
  %v5884 = vmax.f32 %v3756, %v3831
  %v5885 = vmax.f32 %v3759, %v3834
  %v5886 = vmax.f32 %v3987, %v4062
  %v5887 = vmax.f32 %v3990, %v4065
  %v5888 = vmax.f32 %v3993, %v4068
  %v5889 = vmax.f32 %v3996, %v4071
  %v5890 = vmax.f32 %v3999, %v4074
  %v5891 = vmax.f32 %v4002, %v4077
  %v5892 = vmax.f32 %v4005, %v4080
  %v5893 = vmax.f32 %v4008, %v4083
  %v5894 = vmax.f32 %v4011, %v4086
  %v5895 = vmax.f32 %v4014, %v4089
  %v5896 = vmax.f32 %v4017, %v4092
  %v5897 = vmax.f32 %v4020, %v4095
  %v5898 = vmax.f32 %v4023, %v4098
  %v5899 = vmax.f32 %v4026, %v4101
  %v5900 = vmax.f32 %v4029, %v4104
  %v5901 = vmax.f32 %v4032, %v4107
  %v5902 = vmax.f32 %v4035, %v4110
  %v5903 = vmax.f32 %v4038, %v4113
  %v5904 = vmax.f32 %v4041, %v4116
  %v5905 = vmax.f32 %v4044, %v4119
  %v5906 = vmax.f32 %v4047, %v4122
  %v5907 = vmax.f32 %v4050, %v4125
  %v5908 = vmax.f32 %v4053, %v4128
  %v5909 = vmax.f32 %v4056, %v4131
  %v5910 = vmax.f32 %v4059, %v4134
  %v5911 = vmax.f32 %v4287, %v4362
  %v5912 = vmax.f32 %v4290, %v4365
  %v5913 = vmax.f32 %v4293, %v4368
  %v5914 = vmax.f32 %v4296, %v4371
  %v5915 = vmax.f32 %v4299, %v4374
  %v5916 = vmax.f32 %v4302, %v4377
  %v5917 = vmax.f32 %v4305, %v4380
  %v5918 = vmax.f32 %v4308, %v4383
  %v5919 = vmax.f32 %v4311, %v4386
  %v5920 = vmax.f32 %v4314, %v4389
  %v5921 = vmax.f32 %v4317, %v4392
  %v5922 = vmax.f32 %v4320, %v4395
  %v5923 = vmax.f32 %v4323, %v4398
  %v5924 = vmax.f32 %v4326, %v4401
  %v5925 = vmax.f32 %v4329, %v4404
  %v5926 = vmax.f32 %v4332, %v4407
  %v5927 = vmax.f32 %v4335, %v4410
  %v5928 = vmax.f32 %v4338, %v4413
  %v5929 = vmax.f32 %v4341, %v4416
  %v5930 = vmax.f32 %v4344, %v4419
  %v5931 = vmax.f32 %v4347, %v4422
  %v5932 = vmax.f32 %v4350, %v4425
  %v5933 = vmax.f32 %v4353, %v4428
  %v5934 = vmax.f32 %v4356, %v4431
  %v5935 = vmax.f32 %v4359, %v4434
  %v5936 = vmax.f32 %v4587, %v4662
  %v5937 = vmax.f32 %v4590, %v4665
  %v5938 = vmax.f32 %v4593, %v4668
  %v5939 = vmax.f32 %v4596, %v4671
  %v5940 = vmax.f32 %v4599, %v4674
  %v5941 = vmax.f32 %v4602, %v4677
  %v5942 = vmax.f32 %v4605, %v4680
  %v5943 = vmax.f32 %v4608, %v4683
  %v5944 = vmax.f32 %v4611, %v4686
  %v5945 = vmax.f32 %v4614, %v4689
  %v5946 = vmax.f32 %v4617, %v4692
  %v5947 = vmax.f32 %v4620, %v4695
  %v5948 = vmax.f32 %v4623, %v4698
  %v5949 = vmax.f32 %v4626, %v4701
  %v5950 = vmax.f32 %v4629, %v4704
  %v5951 = vmax.f32 %v4632, %v4707
  %v5952 = vmax.f32 %v4635, %v4710
  %v5953 = vmax.f32 %v4638, %v4713
  %v5954 = vmax.f32 %v4641, %v4716
  %v5955 = vmax.f32 %v4644, %v4719
  %v5956 = vmax.f32 %v4647, %v4722
  %v5957 = vmax.f32 %v4650, %v4725
  %v5958 = vmax.f32 %v4653, %v4728
  %v5959 = vmax.f32 %v4656, %v4731
  %v5960 = vmax.f32 %v4659, %v4734
  %v5961 = vmax.f32 %v4887, %v4962
  %v5962 = vmax.f32 %v4890, %v4965
  %v5963 = vmax.f32 %v4893, %v4968
  %v5964 = vmax.f32 %v4896, %v4971
  %v5965 = vmax.f32 %v4899, %v4974
  %v5966 = vmax.f32 %v4902, %v4977
  %v5967 = vmax.f32 %v4905, %v4980
  %v5968 = vmax.f32 %v4908, %v4983
  %v5969 = vmax.f32 %v4911, %v4986
  %v5970 = vmax.f32 %v4914, %v4989
  %v5971 = vmax.f32 %v4917, %v4992
  %v5972 = vmax.f32 %v4920, %v4995
  %v5973 = vmax.f32 %v4923, %v4998
  %v5974 = vmax.f32 %v4926, %v5001
  %v5975 = vmax.f32 %v4929, %v5004
  %v5976 = vmax.f32 %v4932, %v5007
  %v5977 = vmax.f32 %v4935, %v5010
  %v5978 = vmax.f32 %v4938, %v5013
  %v5979 = vmax.f32 %v4941, %v5016
  %v5980 = vmax.f32 %v4944, %v5019
  %v5981 = vmax.f32 %v4947, %v5022
  %v5982 = vmax.f32 %v4950, %v5025
  %v5983 = vmax.f32 %v4953, %v5028
  %v5984 = vmax.f32 %v4956, %v5031
  %v5985 = vmax.f32 %v4959, %v5034
  %v5986 = vmax.f32 %v5187, %v5262
  %v5987 = vmax.f32 %v5190, %v5265
  %v5988 = vmax.f32 %v5193, %v5268
  %v5989 = vmax.f32 %v5196, %v5271
  %v5990 = vmax.f32 %v5199, %v5274
  %v5991 = vmax.f32 %v5202, %v5277
  %v5992 = vmax.f32 %v5205, %v5280
  %v5993 = vmax.f32 %v5208, %v5283
  %v5994 = vmax.f32 %v5211, %v5286
  %v5995 = vmax.f32 %v5214, %v5289
  %v5996 = vmax.f32 %v5217, %v5292
  %v5997 = vmax.f32 %v5220, %v5295
  %v5998 = vmax.f32 %v5223, %v5298
  %v5999 = vmax.f32 %v5226, %v5301
  %v6000 = vmax.f32 %v5229, %v5304
  %v6001 = vmax.f32 %v5232, %v5307
  %v6002 = vmax.f32 %v5235, %v5310
  %v6003 = vmax.f32 %v5238, %v5313
  %v6004 = vmax.f32 %v5241, %v5316
  %v6005 = vmax.f32 %v5244, %v5319
  %v6006 = vmax.f32 %v5247, %v5322
  %v6007 = vmax.f32 %v5250, %v5325
  %v6008 = vmax.f32 %v5253, %v5328
  %v6009 = vmax.f32 %v5256, %v5331
  %v6010 = vmax.f32 %v5259, %v5334
  %v6011 = vmax.f32 %v5487, %v5562
  %v6012 = vmax.f32 %v5490, %v5565
  %v6013 = vmax.f32 %v5493, %v5568
  %v6014 = vmax.f32 %v5496, %v5571
  %v6015 = vmax.f32 %v5499, %v5574
  %v6016 = vmax.f32 %v5502, %v5577
  %v6017 = vmax.f32 %v5505, %v5580
  %v6018 = vmax.f32 %v5508, %v5583
  %v6019 = vmax.f32 %v5511, %v5586
  %v6020 = vmax.f32 %v5514, %v5589
  %v6021 = vmax.f32 %v5517, %v5592
  %v6022 = vmax.f32 %v5520, %v5595
  %v6023 = vmax.f32 %v5523, %v5598
  %v6024 = vmax.f32 %v5526, %v5601
  %v6025 = vmax.f32 %v5529, %v5604
  %v6026 = vmax.f32 %v5532, %v5607
  %v6027 = vmax.f32 %v5535, %v5610
  %v6028 = vmax.f32 %v5538, %v5613
  %v6029 = vmax.f32 %v5541, %v5616
  %v6030 = vmax.f32 %v5544, %v5619
  %v6031 = vmax.f32 %v5547, %v5622
  %v6032 = vmax.f32 %v5550, %v5625
  %v6033 = vmax.f32 %v5553, %v5628
  %v6034 = vmax.f32 %v5556, %v5631
  %v6035 = vmax.f32 %v5559, %v5634
  %v6036 = vmax.f32 %v5636, %v5836
  %v6037 = vmax.f32 %v5637, %v5837
  %v6038 = vmax.f32 %v5638, %v5838
  %v6039 = vmax.f32 %v5639, %v5839
  %v6040 = vmax.f32 %v5640, %v5840
  %v6041 = vmax.f32 %v5641, %v5841
  %v6042 = vmax.f32 %v5642, %v5842
  %v6043 = vmax.f32 %v5643, %v5843
  %v6044 = vmax.f32 %v5644, %v5844
  %v6045 = vmax.f32 %v5645, %v5845
  %v6046 = vmax.f32 %v5646, %v5846
  %v6047 = vmax.f32 %v5647, %v5847
  %v6048 = vmax.f32 %v5648, %v5848
  %v6049 = vmax.f32 %v5649, %v5849
  %v6050 = vmax.f32 %v5650, %v5850
  %v6051 = vmax.f32 %v5651, %v5851
  %v6052 = vmax.f32 %v5652, %v5852
  %v6053 = vmax.f32 %v5653, %v5853
  %v6054 = vmax.f32 %v5654, %v5854
  %v6055 = vmax.f32 %v5655, %v5855
  %v6056 = vmax.f32 %v5656, %v5856
  %v6057 = vmax.f32 %v5657, %v5857
  %v6058 = vmax.f32 %v5658, %v5858
  %v6059 = vmax.f32 %v5659, %v5859
  %v6060 = vmax.f32 %v5660, %v5860
  %v6061 = vmax.f32 %v5661, %v5861
  %v6062 = vmax.f32 %v5662, %v5862
  %v6063 = vmax.f32 %v5663, %v5863
  %v6064 = vmax.f32 %v5664, %v5864
  %v6065 = vmax.f32 %v5665, %v5865
  %v6066 = vmax.f32 %v5666, %v5866
  %v6067 = vmax.f32 %v5667, %v5867
  %v6068 = vmax.f32 %v5668, %v5868
  %v6069 = vmax.f32 %v5669, %v5869
  %v6070 = vmax.f32 %v5670, %v5870
  %v6071 = vmax.f32 %v5671, %v5871
  %v6072 = vmax.f32 %v5672, %v5872
  %v6073 = vmax.f32 %v5673, %v5873
  %v6074 = vmax.f32 %v5674, %v5874
  %v6075 = vmax.f32 %v5675, %v5875
  %v6076 = vmax.f32 %v5676, %v5876
  %v6077 = vmax.f32 %v5677, %v5877
  %v6078 = vmax.f32 %v5678, %v5878
  %v6079 = vmax.f32 %v5679, %v5879
  %v6080 = vmax.f32 %v5680, %v5880
  %v6081 = vmax.f32 %v5681, %v5881
  %v6082 = vmax.f32 %v5682, %v5882
  %v6083 = vmax.f32 %v5683, %v5883
  %v6084 = vmax.f32 %v5684, %v5884
  %v6085 = vmax.f32 %v5685, %v5885
  %v6086 = vmax.f32 %v5686, %v5886
  %v6087 = vmax.f32 %v5687, %v5887
  %v6088 = vmax.f32 %v5688, %v5888
  %v6089 = vmax.f32 %v5689, %v5889
  %v6090 = vmax.f32 %v5690, %v5890
  %v6091 = vmax.f32 %v5691, %v5891
  %v6092 = vmax.f32 %v5692, %v5892
  %v6093 = vmax.f32 %v5693, %v5893
  %v6094 = vmax.f32 %v5694, %v5894
  %v6095 = vmax.f32 %v5695, %v5895
  %v6096 = vmax.f32 %v5696, %v5896
  %v6097 = vmax.f32 %v5697, %v5897
  %v6098 = vmax.f32 %v5698, %v5898
  %v6099 = vmax.f32 %v5699, %v5899
  %v6100 = vmax.f32 %v5700, %v5900
  %v6101 = vmax.f32 %v5701, %v5901
  %v6102 = vmax.f32 %v5702, %v5902
  %v6103 = vmax.f32 %v5703, %v5903
  %v6104 = vmax.f32 %v5704, %v5904
  %v6105 = vmax.f32 %v5705, %v5905
  %v6106 = vmax.f32 %v5706, %v5906
  %v6107 = vmax.f32 %v5707, %v5907
  %v6108 = vmax.f32 %v5708, %v5908
  %v6109 = vmax.f32 %v5709, %v5909
  %v6110 = vmax.f32 %v5710, %v5910
  %v6111 = vmax.f32 %v5711, %v5911
  %v6112 = vmax.f32 %v5712, %v5912
  %v6113 = vmax.f32 %v5713, %v5913
  %v6114 = vmax.f32 %v5714, %v5914
  %v6115 = vmax.f32 %v5715, %v5915
  %v6116 = vmax.f32 %v5716, %v5916
  %v6117 = vmax.f32 %v5717, %v5917
  %v6118 = vmax.f32 %v5718, %v5918
  %v6119 = vmax.f32 %v5719, %v5919
  %v6120 = vmax.f32 %v5720, %v5920
  %v6121 = vmax.f32 %v5721, %v5921
  %v6122 = vmax.f32 %v5722, %v5922
  %v6123 = vmax.f32 %v5723, %v5923
  %v6124 = vmax.f32 %v5724, %v5924
  %v6125 = vmax.f32 %v5725, %v5925
  %v6126 = vmax.f32 %v5726, %v5926
  %v6127 = vmax.f32 %v5727, %v5927
  %v6128 = vmax.f32 %v5728, %v5928
  %v6129 = vmax.f32 %v5729, %v5929
  %v6130 = vmax.f32 %v5730, %v5930
  %v6131 = vmax.f32 %v5731, %v5931
  %v6132 = vmax.f32 %v5732, %v5932
  %v6133 = vmax.f32 %v5733, %v5933
  %v6134 = vmax.f32 %v5734, %v5934
  %v6135 = vmax.f32 %v5735, %v5935
  %v6136 = vmax.f32 %v5736, %v5936
  %v6137 = vmax.f32 %v5737, %v5937
  %v6138 = vmax.f32 %v5738, %v5938
  %v6139 = vmax.f32 %v5739, %v5939
  %v6140 = vmax.f32 %v5740, %v5940
  %v6141 = vmax.f32 %v5741, %v5941
  %v6142 = vmax.f32 %v5742, %v5942
  %v6143 = vmax.f32 %v5743, %v5943
  %v6144 = vmax.f32 %v5744, %v5944
  %v6145 = vmax.f32 %v5745, %v5945
  %v6146 = vmax.f32 %v5746, %v5946
  %v6147 = vmax.f32 %v5747, %v5947
  %v6148 = vmax.f32 %v5748, %v5948
  %v6149 = vmax.f32 %v5749, %v5949
  %v6150 = vmax.f32 %v5750, %v5950
  %v6151 = vmax.f32 %v5751, %v5951
  %v6152 = vmax.f32 %v5752, %v5952
  %v6153 = vmax.f32 %v5753, %v5953
  %v6154 = vmax.f32 %v5754, %v5954
  %v6155 = vmax.f32 %v5755, %v5955
  %v6156 = vmax.f32 %v5756, %v5956
  %v6157 = vmax.f32 %v5757, %v5957
  %v6158 = vmax.f32 %v5758, %v5958
  %v6159 = vmax.f32 %v5759, %v5959
  %v6160 = vmax.f32 %v5760, %v5960
  %v6161 = vmax.f32 %v5761, %v5961
  %v6162 = vmax.f32 %v5762, %v5962
  %v6163 = vmax.f32 %v5763, %v5963
  %v6164 = vmax.f32 %v5764, %v5964
  %v6165 = vmax.f32 %v5765, %v5965
  %v6166 = vmax.f32 %v5766, %v5966
  %v6167 = vmax.f32 %v5767, %v5967
  %v6168 = vmax.f32 %v5768, %v5968
  %v6169 = vmax.f32 %v5769, %v5969
  %v6170 = vmax.f32 %v5770, %v5970
  %v6171 = vmax.f32 %v5771, %v5971
  %v6172 = vmax.f32 %v5772, %v5972
  %v6173 = vmax.f32 %v5773, %v5973
  %v6174 = vmax.f32 %v5774, %v5974
  %v6175 = vmax.f32 %v5775, %v5975
  %v6176 = vmax.f32 %v5776, %v5976
  %v6177 = vmax.f32 %v5777, %v5977
  %v6178 = vmax.f32 %v5778, %v5978
  %v6179 = vmax.f32 %v5779, %v5979
  %v6180 = vmax.f32 %v5780, %v5980
  %v6181 = vmax.f32 %v5781, %v5981
  %v6182 = vmax.f32 %v5782, %v5982
  %v6183 = vmax.f32 %v5783, %v5983
  %v6184 = vmax.f32 %v5784, %v5984
  %v6185 = vmax.f32 %v5785, %v5985
  %v6186 = vmax.f32 %v5786, %v5986
  %v6187 = vmax.f32 %v5787, %v5987
  %v6188 = vmax.f32 %v5788, %v5988
  %v6189 = vmax.f32 %v5789, %v5989
  %v6190 = vmax.f32 %v5790, %v5990
  %v6191 = vmax.f32 %v5791, %v5991
  %v6192 = vmax.f32 %v5792, %v5992
  %v6193 = vmax.f32 %v5793, %v5993
  %v6194 = vmax.f32 %v5794, %v5994
  %v6195 = vmax.f32 %v5795, %v5995
  %v6196 = vmax.f32 %v5796, %v5996
  %v6197 = vmax.f32 %v5797, %v5997
  %v6198 = vmax.f32 %v5798, %v5998
  %v6199 = vmax.f32 %v5799, %v5999
  %v6200 = vmax.f32 %v5800, %v6000
  %v6201 = vmax.f32 %v5801, %v6001
  %v6202 = vmax.f32 %v5802, %v6002
  %v6203 = vmax.f32 %v5803, %v6003
  %v6204 = vmax.f32 %v5804, %v6004
  %v6205 = vmax.f32 %v5805, %v6005
  %v6206 = vmax.f32 %v5806, %v6006
  %v6207 = vmax.f32 %v5807, %v6007
  %v6208 = vmax.f32 %v5808, %v6008
  %v6209 = vmax.f32 %v5809, %v6009
  %v6210 = vmax.f32 %v5810, %v6010
  %v6211 = vmax.f32 %v5811, %v6011
  %v6212 = vmax.f32 %v5812, %v6012
  %v6213 = vmax.f32 %v5813, %v6013
  %v6214 = vmax.f32 %v5814, %v6014
  %v6215 = vmax.f32 %v5815, %v6015
  %v6216 = vmax.f32 %v5816, %v6016
  %v6217 = vmax.f32 %v5817, %v6017
  %v6218 = vmax.f32 %v5818, %v6018
  %v6219 = vmax.f32 %v5819, %v6019
  %v6220 = vmax.f32 %v5820, %v6020
  %v6221 = vmax.f32 %v5821, %v6021
  %v6222 = vmax.f32 %v5822, %v6022
  %v6223 = vmax.f32 %v5823, %v6023
  %v6224 = vmax.f32 %v5824, %v6024
  %v6225 = vmax.f32 %v5825, %v6025
  %v6226 = vmax.f32 %v5826, %v6026
  %v6227 = vmax.f32 %v5827, %v6027
  %v6228 = vmax.f32 %v5828, %v6028
  %v6229 = vmax.f32 %v5829, %v6029
  %v6230 = vmax.f32 %v5830, %v6030
  %v6231 = vmax.f32 %v5831, %v6031
  %v6232 = vmax.f32 %v5832, %v6032
  %v6233 = vmax.f32 %v5833, %v6033
  %v6234 = vmax.f32 %v5834, %v6034
  %v6235 = vmax.f32 %v5835, %v6035
  %v6236 = vld [vmem:[%s2] sm:$0x1]
  %v6238 = vperm.slane %v6236, 0
  %v6240 = vadd.f32 %v6036, %v6238
  %v6241 = vadd.f32 %v6037, %v6238
  %v6242 = vadd.f32 %v6038, %v6238
  %v6243 = vadd.f32 %v6039, %v6238
  %v6244 = vadd.f32 %v6040, %v6238
  %v6245 = vadd.f32 %v6041, %v6238
  %v6246 = vadd.f32 %v6042, %v6238
  %v6247 = vadd.f32 %v6043, %v6238
  %v6248 = vadd.f32 %v6044, %v6238
  %v6249 = vadd.f32 %v6045, %v6238
  %v6250 = vadd.f32 %v6046, %v6238
  %v6251 = vadd.f32 %v6047, %v6238
  %v6252 = vadd.f32 %v6048, %v6238
  %v6253 = vadd.f32 %v6049, %v6238
  %v6254 = vadd.f32 %v6050, %v6238
  %v6255 = vadd.f32 %v6051, %v6238
  %v6256 = vadd.f32 %v6052, %v6238
  %v6257 = vadd.f32 %v6053, %v6238
  %v6258 = vadd.f32 %v6054, %v6238
  %v6259 = vadd.f32 %v6055, %v6238
  %v6260 = vadd.f32 %v6056, %v6238
  %v6261 = vadd.f32 %v6057, %v6238
  %v6262 = vadd.f32 %v6058, %v6238
  %v6263 = vadd.f32 %v6059, %v6238
  %v6264 = vadd.f32 %v6060, %v6238
  %v6265 = vadd.f32 %v6061, %v6238
  %v6266 = vadd.f32 %v6062, %v6238
  %v6267 = vadd.f32 %v6063, %v6238
  %v6268 = vadd.f32 %v6064, %v6238
  %v6269 = vadd.f32 %v6065, %v6238
  %v6270 = vadd.f32 %v6066, %v6238
  %v6271 = vadd.f32 %v6067, %v6238
  %v6272 = vadd.f32 %v6068, %v6238
  %v6273 = vadd.f32 %v6069, %v6238
  %v6274 = vadd.f32 %v6070, %v6238
  %v6275 = vadd.f32 %v6071, %v6238
  %v6276 = vadd.f32 %v6072, %v6238
  %v6277 = vadd.f32 %v6073, %v6238
  %v6278 = vadd.f32 %v6074, %v6238
  %v6279 = vadd.f32 %v6075, %v6238
  %v6280 = vadd.f32 %v6076, %v6238
  %v6281 = vadd.f32 %v6077, %v6238
  %v6282 = vadd.f32 %v6078, %v6238
  %v6283 = vadd.f32 %v6079, %v6238
  %v6284 = vadd.f32 %v6080, %v6238
  %v6285 = vadd.f32 %v6081, %v6238
  %v6286 = vadd.f32 %v6082, %v6238
  %v6287 = vadd.f32 %v6083, %v6238
  %v6288 = vadd.f32 %v6084, %v6238
  %v6289 = vadd.f32 %v6085, %v6238
  %v6290 = vadd.f32 %v6086, %v6238
  %v6291 = vadd.f32 %v6087, %v6238
  %v6292 = vadd.f32 %v6088, %v6238
  %v6293 = vadd.f32 %v6089, %v6238
  %v6294 = vadd.f32 %v6090, %v6238
  %v6295 = vadd.f32 %v6091, %v6238
  %v6296 = vadd.f32 %v6092, %v6238
  %v6297 = vadd.f32 %v6093, %v6238
  %v6298 = vadd.f32 %v6094, %v6238
  %v6299 = vadd.f32 %v6095, %v6238
  %v6300 = vadd.f32 %v6096, %v6238
  %v6301 = vadd.f32 %v6097, %v6238
  %v6302 = vadd.f32 %v6098, %v6238
  %v6303 = vadd.f32 %v6099, %v6238
  %v6304 = vadd.f32 %v6100, %v6238
  %v6305 = vadd.f32 %v6101, %v6238
  %v6306 = vadd.f32 %v6102, %v6238
  %v6307 = vadd.f32 %v6103, %v6238
  %v6308 = vadd.f32 %v6104, %v6238
  %v6309 = vadd.f32 %v6105, %v6238
  %v6310 = vadd.f32 %v6106, %v6238
  %v6311 = vadd.f32 %v6107, %v6238
  %v6312 = vadd.f32 %v6108, %v6238
  %v6313 = vadd.f32 %v6109, %v6238
  %v6314 = vadd.f32 %v6110, %v6238
  %v6315 = vadd.f32 %v6111, %v6238
  %v6316 = vadd.f32 %v6112, %v6238
  %v6317 = vadd.f32 %v6113, %v6238
  %v6318 = vadd.f32 %v6114, %v6238
  %v6319 = vadd.f32 %v6115, %v6238
  %v6320 = vadd.f32 %v6116, %v6238
  %v6321 = vadd.f32 %v6117, %v6238
  %v6322 = vadd.f32 %v6118, %v6238
  %v6323 = vadd.f32 %v6119, %v6238
  %v6324 = vadd.f32 %v6120, %v6238
  %v6325 = vadd.f32 %v6121, %v6238
  %v6326 = vadd.f32 %v6122, %v6238
  %v6327 = vadd.f32 %v6123, %v6238
  %v6328 = vadd.f32 %v6124, %v6238
  %v6329 = vadd.f32 %v6125, %v6238
  %v6330 = vadd.f32 %v6126, %v6238
  %v6331 = vadd.f32 %v6127, %v6238
  %v6332 = vadd.f32 %v6128, %v6238
  %v6333 = vadd.f32 %v6129, %v6238
  %v6334 = vadd.f32 %v6130, %v6238
  %v6335 = vadd.f32 %v6131, %v6238
  %v6336 = vadd.f32 %v6132, %v6238
  %v6337 = vadd.f32 %v6133, %v6238
  %v6338 = vadd.f32 %v6134, %v6238
  %v6339 = vadd.f32 %v6135, %v6238
  %v6340 = vadd.f32 %v6136, %v6238
  %v6341 = vadd.f32 %v6137, %v6238
  %v6342 = vadd.f32 %v6138, %v6238
  %v6343 = vadd.f32 %v6139, %v6238
  %v6344 = vadd.f32 %v6140, %v6238
  %v6345 = vadd.f32 %v6141, %v6238
  %v6346 = vadd.f32 %v6142, %v6238
  %v6347 = vadd.f32 %v6143, %v6238
  %v6348 = vadd.f32 %v6144, %v6238
  %v6349 = vadd.f32 %v6145, %v6238
  %v6350 = vadd.f32 %v6146, %v6238
  %v6351 = vadd.f32 %v6147, %v6238
  %v6352 = vadd.f32 %v6148, %v6238
  %v6353 = vadd.f32 %v6149, %v6238
  %v6354 = vadd.f32 %v6150, %v6238
  %v6355 = vadd.f32 %v6151, %v6238
  %v6356 = vadd.f32 %v6152, %v6238
  %v6357 = vadd.f32 %v6153, %v6238
  %v6358 = vadd.f32 %v6154, %v6238
  %v6359 = vadd.f32 %v6155, %v6238
  %v6360 = vadd.f32 %v6156, %v6238
  %v6361 = vadd.f32 %v6157, %v6238
  %v6362 = vadd.f32 %v6158, %v6238
  %v6363 = vadd.f32 %v6159, %v6238
  %v6364 = vadd.f32 %v6160, %v6238
  %v6365 = vadd.f32 %v6161, %v6238
  %v6366 = vadd.f32 %v6162, %v6238
  %v6367 = vadd.f32 %v6163, %v6238
  %v6368 = vadd.f32 %v6164, %v6238
  %v6369 = vadd.f32 %v6165, %v6238
  %v6370 = vadd.f32 %v6166, %v6238
  %v6371 = vadd.f32 %v6167, %v6238
  %v6372 = vadd.f32 %v6168, %v6238
  %v6373 = vadd.f32 %v6169, %v6238
  %v6374 = vadd.f32 %v6170, %v6238
  %v6375 = vadd.f32 %v6171, %v6238
  %v6376 = vadd.f32 %v6172, %v6238
  %v6377 = vadd.f32 %v6173, %v6238
  %v6378 = vadd.f32 %v6174, %v6238
  %v6379 = vadd.f32 %v6175, %v6238
  %v6380 = vadd.f32 %v6176, %v6238
  %v6381 = vadd.f32 %v6177, %v6238
  %v6382 = vadd.f32 %v6178, %v6238
  %v6383 = vadd.f32 %v6179, %v6238
  %v6384 = vadd.f32 %v6180, %v6238
  %v6385 = vadd.f32 %v6181, %v6238
  %v6386 = vadd.f32 %v6182, %v6238
  %v6387 = vadd.f32 %v6183, %v6238
  %v6388 = vadd.f32 %v6184, %v6238
  %v6389 = vadd.f32 %v6185, %v6238
  %v6390 = vadd.f32 %v6186, %v6238
  %v6391 = vadd.f32 %v6187, %v6238
  %v6392 = vadd.f32 %v6188, %v6238
  %v6393 = vadd.f32 %v6189, %v6238
  %v6394 = vadd.f32 %v6190, %v6238
  %v6395 = vadd.f32 %v6191, %v6238
  %v6396 = vadd.f32 %v6192, %v6238
  %v6397 = vadd.f32 %v6193, %v6238
  %v6398 = vadd.f32 %v6194, %v6238
  %v6399 = vadd.f32 %v6195, %v6238
  %v6400 = vadd.f32 %v6196, %v6238
  %v6401 = vadd.f32 %v6197, %v6238
  %v6402 = vadd.f32 %v6198, %v6238
  %v6403 = vadd.f32 %v6199, %v6238
  %v6404 = vadd.f32 %v6200, %v6238
  %v6405 = vadd.f32 %v6201, %v6238
  %v6406 = vadd.f32 %v6202, %v6238
  %v6407 = vadd.f32 %v6203, %v6238
  %v6408 = vadd.f32 %v6204, %v6238
  %v6409 = vadd.f32 %v6205, %v6238
  %v6410 = vadd.f32 %v6206, %v6238
  %v6411 = vadd.f32 %v6207, %v6238
  %v6412 = vadd.f32 %v6208, %v6238
  %v6413 = vadd.f32 %v6209, %v6238
  %v6414 = vadd.f32 %v6210, %v6238
  %v6415 = vadd.f32 %v6211, %v6238
  %v6416 = vadd.f32 %v6212, %v6238
  %v6417 = vadd.f32 %v6213, %v6238
  %v6418 = vadd.f32 %v6214, %v6238
  %v6419 = vadd.f32 %v6215, %v6238
  %v6420 = vadd.f32 %v6216, %v6238
  %v6421 = vadd.f32 %v6217, %v6238
  %v6422 = vadd.f32 %v6218, %v6238
  %v6423 = vadd.f32 %v6219, %v6238
  %v6424 = vadd.f32 %v6220, %v6238
  %v6425 = vadd.f32 %v6221, %v6238
  %v6426 = vadd.f32 %v6222, %v6238
  %v6427 = vadd.f32 %v6223, %v6238
  %v6428 = vadd.f32 %v6224, %v6238
  %v6429 = vadd.f32 %v6225, %v6238
  %v6430 = vadd.f32 %v6226, %v6238
  %v6431 = vadd.f32 %v6227, %v6238
  %v6432 = vadd.f32 %v6228, %v6238
  %v6433 = vadd.f32 %v6229, %v6238
  %v6434 = vadd.f32 %v6230, %v6238
  %v6435 = vadd.f32 %v6231, %v6238
  %v6436 = vadd.f32 %v6232, %v6238
  %v6437 = vadd.f32 %v6233, %v6238
  %v6438 = vadd.f32 %v6234, %v6238
  %v6439 = vadd.f32 %v6235, %v6238
  %v6440 = vmax.f32 %v6240, 0.0
  %v6441 = vmax.f32 %v6241, 0.0
  %v6442 = vmax.f32 %v6242, 0.0
  %v6443 = vmax.f32 %v6243, 0.0
  %v6444 = vmax.f32 %v6244, 0.0
  %v6445 = vmax.f32 %v6245, 0.0
  %v6446 = vmax.f32 %v6246, 0.0
  %v6447 = vmax.f32 %v6247, 0.0
  %v6448 = vmax.f32 %v6248, 0.0
  %v6449 = vmax.f32 %v6249, 0.0
  %v6450 = vmax.f32 %v6250, 0.0
  %v6451 = vmax.f32 %v6251, 0.0
  %v6452 = vmax.f32 %v6252, 0.0
  %v6453 = vmax.f32 %v6253, 0.0
  %v6454 = vmax.f32 %v6254, 0.0
  %v6455 = vmax.f32 %v6255, 0.0
  %v6456 = vmax.f32 %v6256, 0.0
  %v6457 = vmax.f32 %v6257, 0.0
  %v6458 = vmax.f32 %v6258, 0.0
  %v6459 = vmax.f32 %v6259, 0.0
  %v6460 = vmax.f32 %v6260, 0.0
  %v6461 = vmax.f32 %v6261, 0.0
  %v6462 = vmax.f32 %v6262, 0.0
  %v6463 = vmax.f32 %v6263, 0.0
  %v6464 = vmax.f32 %v6264, 0.0
  %v6465 = vmax.f32 %v6265, 0.0
  %v6466 = vmax.f32 %v6266, 0.0
  %v6467 = vmax.f32 %v6267, 0.0
  %v6468 = vmax.f32 %v6268, 0.0
  %v6469 = vmax.f32 %v6269, 0.0
  %v6470 = vmax.f32 %v6270, 0.0
  %v6471 = vmax.f32 %v6271, 0.0
  %v6472 = vmax.f32 %v6272, 0.0
  %v6473 = vmax.f32 %v6273, 0.0
  %v6474 = vmax.f32 %v6274, 0.0
  %v6475 = vmax.f32 %v6275, 0.0
  %v6476 = vmax.f32 %v6276, 0.0
  %v6477 = vmax.f32 %v6277, 0.0
  %v6478 = vmax.f32 %v6278, 0.0
  %v6479 = vmax.f32 %v6279, 0.0
  %v6480 = vmax.f32 %v6280, 0.0
  %v6481 = vmax.f32 %v6281, 0.0
  %v6482 = vmax.f32 %v6282, 0.0
  %v6483 = vmax.f32 %v6283, 0.0
  %v6484 = vmax.f32 %v6284, 0.0
  %v6485 = vmax.f32 %v6285, 0.0
  %v6486 = vmax.f32 %v6286, 0.0
  %v6487 = vmax.f32 %v6287, 0.0
  %v6488 = vmax.f32 %v6288, 0.0
  %v6489 = vmax.f32 %v6289, 0.0
  %v6490 = vmax.f32 %v6290, 0.0
  %v6491 = vmax.f32 %v6291, 0.0
  %v6492 = vmax.f32 %v6292, 0.0
  %v6493 = vmax.f32 %v6293, 0.0
  %v6494 = vmax.f32 %v6294, 0.0
  %v6495 = vmax.f32 %v6295, 0.0
  %v6496 = vmax.f32 %v6296, 0.0
  %v6497 = vmax.f32 %v6297, 0.0
  %v6498 = vmax.f32 %v6298, 0.0
  %v6499 = vmax.f32 %v6299, 0.0
  %v6500 = vmax.f32 %v6300, 0.0
  %v6501 = vmax.f32 %v6301, 0.0
  %v6502 = vmax.f32 %v6302, 0.0
  %v6503 = vmax.f32 %v6303, 0.0
  %v6504 = vmax.f32 %v6304, 0.0
  %v6505 = vmax.f32 %v6305, 0.0
  %v6506 = vmax.f32 %v6306, 0.0
  %v6507 = vmax.f32 %v6307, 0.0
  %v6508 = vmax.f32 %v6308, 0.0
  %v6509 = vmax.f32 %v6309, 0.0
  %v6510 = vmax.f32 %v6310, 0.0
  %v6511 = vmax.f32 %v6311, 0.0
  %v6512 = vmax.f32 %v6312, 0.0
  %v6513 = vmax.f32 %v6313, 0.0
  %v6514 = vmax.f32 %v6314, 0.0
  %v6515 = vmax.f32 %v6315, 0.0
  %v6516 = vmax.f32 %v6316, 0.0
  %v6517 = vmax.f32 %v6317, 0.0
  %v6518 = vmax.f32 %v6318, 0.0
  %v6519 = vmax.f32 %v6319, 0.0
  %v6520 = vmax.f32 %v6320, 0.0
  %v6521 = vmax.f32 %v6321, 0.0
  %v6522 = vmax.f32 %v6322, 0.0
  %v6523 = vmax.f32 %v6323, 0.0
  %v6524 = vmax.f32 %v6324, 0.0
  %v6525 = vmax.f32 %v6325, 0.0
  %v6526 = vmax.f32 %v6326, 0.0
  %v6527 = vmax.f32 %v6327, 0.0
  %v6528 = vmax.f32 %v6328, 0.0
  %v6529 = vmax.f32 %v6329, 0.0
  %v6530 = vmax.f32 %v6330, 0.0
  %v6531 = vmax.f32 %v6331, 0.0
  %v6532 = vmax.f32 %v6332, 0.0
  %v6533 = vmax.f32 %v6333, 0.0
  %v6534 = vmax.f32 %v6334, 0.0
  %v6535 = vmax.f32 %v6335, 0.0
  %v6536 = vmax.f32 %v6336, 0.0
  %v6537 = vmax.f32 %v6337, 0.0
  %v6538 = vmax.f32 %v6338, 0.0
  %v6539 = vmax.f32 %v6339, 0.0
  %v6540 = vmax.f32 %v6340, 0.0
  %v6541 = vmax.f32 %v6341, 0.0
  %v6542 = vmax.f32 %v6342, 0.0
  %v6543 = vmax.f32 %v6343, 0.0
  %v6544 = vmax.f32 %v6344, 0.0
  %v6545 = vmax.f32 %v6345, 0.0
  %v6546 = vmax.f32 %v6346, 0.0
  %v6547 = vmax.f32 %v6347, 0.0
  %v6548 = vmax.f32 %v6348, 0.0
  %v6549 = vmax.f32 %v6349, 0.0
  %v6550 = vmax.f32 %v6350, 0.0
  %v6551 = vmax.f32 %v6351, 0.0
  %v6552 = vmax.f32 %v6352, 0.0
  %v6553 = vmax.f32 %v6353, 0.0
  %v6554 = vmax.f32 %v6354, 0.0
  %v6555 = vmax.f32 %v6355, 0.0
  %v6556 = vmax.f32 %v6356, 0.0
  %v6557 = vmax.f32 %v6357, 0.0
  %v6558 = vmax.f32 %v6358, 0.0
  %v6559 = vmax.f32 %v6359, 0.0
  %v6560 = vmax.f32 %v6360, 0.0
  %v6561 = vmax.f32 %v6361, 0.0
  %v6562 = vmax.f32 %v6362, 0.0
  %v6563 = vmax.f32 %v6363, 0.0
  %v6564 = vmax.f32 %v6364, 0.0
  %v6565 = vmax.f32 %v6365, 0.0
  %v6566 = vmax.f32 %v6366, 0.0
  %v6567 = vmax.f32 %v6367, 0.0
  %v6568 = vmax.f32 %v6368, 0.0
  %v6569 = vmax.f32 %v6369, 0.0
  %v6570 = vmax.f32 %v6370, 0.0
  %v6571 = vmax.f32 %v6371, 0.0
  %v6572 = vmax.f32 %v6372, 0.0
  %v6573 = vmax.f32 %v6373, 0.0
  %v6574 = vmax.f32 %v6374, 0.0
  %v6575 = vmax.f32 %v6375, 0.0
  %v6576 = vmax.f32 %v6376, 0.0
  %v6577 = vmax.f32 %v6377, 0.0
  %v6578 = vmax.f32 %v6378, 0.0
  %v6579 = vmax.f32 %v6379, 0.0
  %v6580 = vmax.f32 %v6380, 0.0
  %v6581 = vmax.f32 %v6381, 0.0
  %v6582 = vmax.f32 %v6382, 0.0
  %v6583 = vmax.f32 %v6383, 0.0
  %v6584 = vmax.f32 %v6384, 0.0
  %v6585 = vmax.f32 %v6385, 0.0
  %v6586 = vmax.f32 %v6386, 0.0
  %v6587 = vmax.f32 %v6387, 0.0
  %v6588 = vmax.f32 %v6388, 0.0
  %v6589 = vmax.f32 %v6389, 0.0
  %v6590 = vmax.f32 %v6390, 0.0
  %v6591 = vmax.f32 %v6391, 0.0
  %v6592 = vmax.f32 %v6392, 0.0
  %v6593 = vmax.f32 %v6393, 0.0
  %v6594 = vmax.f32 %v6394, 0.0
  %v6595 = vmax.f32 %v6395, 0.0
  %v6596 = vmax.f32 %v6396, 0.0
  %v6597 = vmax.f32 %v6397, 0.0
  %v6598 = vmax.f32 %v6398, 0.0
  %v6599 = vmax.f32 %v6399, 0.0
  %v6600 = vmax.f32 %v6400, 0.0
  %v6601 = vmax.f32 %v6401, 0.0
  %v6602 = vmax.f32 %v6402, 0.0
  %v6603 = vmax.f32 %v6403, 0.0
  %v6604 = vmax.f32 %v6404, 0.0
  %v6605 = vmax.f32 %v6405, 0.0
  %v6606 = vmax.f32 %v6406, 0.0
  %v6607 = vmax.f32 %v6407, 0.0
  %v6608 = vmax.f32 %v6408, 0.0
  %v6609 = vmax.f32 %v6409, 0.0
  %v6610 = vmax.f32 %v6410, 0.0
  %v6611 = vmax.f32 %v6411, 0.0
  %v6612 = vmax.f32 %v6412, 0.0
  %v6613 = vmax.f32 %v6413, 0.0
  %v6614 = vmax.f32 %v6414, 0.0
  %v6615 = vmax.f32 %v6415, 0.0
  %v6616 = vmax.f32 %v6416, 0.0
  %v6617 = vmax.f32 %v6417, 0.0
  %v6618 = vmax.f32 %v6418, 0.0
  %v6619 = vmax.f32 %v6419, 0.0
  %v6620 = vmax.f32 %v6420, 0.0
  %v6621 = vmax.f32 %v6421, 0.0
  %v6622 = vmax.f32 %v6422, 0.0
  %v6623 = vmax.f32 %v6423, 0.0
  %v6624 = vmax.f32 %v6424, 0.0
  %v6625 = vmax.f32 %v6425, 0.0
  %v6626 = vmax.f32 %v6426, 0.0
  %v6627 = vmax.f32 %v6427, 0.0
  %v6628 = vmax.f32 %v6428, 0.0
  %v6629 = vmax.f32 %v6429, 0.0
  %v6630 = vmax.f32 %v6430, 0.0
  %v6631 = vmax.f32 %v6431, 0.0
  %v6632 = vmax.f32 %v6432, 0.0
  %v6633 = vmax.f32 %v6433, 0.0
  %v6634 = vmax.f32 %v6434, 0.0
  %v6635 = vmax.f32 %v6435, 0.0
  %v6636 = vmax.f32 %v6436, 0.0
  %v6637 = vmax.f32 %v6437, 0.0
  %v6638 = vmax.f32 %v6438, 0.0
  %v6639 = vmax.f32 %v6439, 0.0
  %6640 = vst [vmem:[%s3] sm:$0xff] %v6440
  %6641 = vst [vmem:[%s3 + $0x8] sm:$0xff] %v6441
  %6642 = vst [vmem:[%s3 + $0x10] sm:$0xff] %v6442
  %6643 = vst [vmem:[%s3 + $0x18] sm:$0xff] %v6443
  %6644 = vst [vmem:[%s3 + $0x20] sm:$0xff] %v6444
  %6645 = vst [vmem:[%s3 + $0x28] sm:$0xff] %v6445
  %6646 = vst [vmem:[%s3 + $0x30] sm:$0xff] %v6446
  %6647 = vst [vmem:[%s3 + $0x38] sm:$0xff] %v6447
  %6648 = vst [vmem:[%s3 + $0x40] sm:$0xff] %v6448
  %6649 = vst [vmem:[%s3 + $0x48] sm:$0xff] %v6449
  %6650 = vst [vmem:[%s3 + $0x50] sm:$0xff] %v6450
  %6651 = vst [vmem:[%s3 + $0x58] sm:$0xff] %v6451
  %6652 = vst [vmem:[%s3 + $0x60] sm:$0xff] %v6452
  %6653 = vst [vmem:[%s3 + $0x68] sm:$0xff] %v6453
  %6654 = vst [vmem:[%s3 + $0x70] sm:$0xff] %v6454
  %6655 = vst [vmem:[%s3 + $0x78] sm:$0xff] %v6455
  %6656 = vst [vmem:[%s3 + $0x80] sm:$0xff] %v6456
  %6657 = vst [vmem:[%s3 + $0x88] sm:$0xff] %v6457
  %6658 = vst [vmem:[%s3 + $0x90] sm:$0xff] %v6458
  %6659 = vst [vmem:[%s3 + $0x98] sm:$0xff] %v6459
  %6660 = vst [vmem:[%s3 + $0xa0] sm:$0xff] %v6460
  %6661 = vst [vmem:[%s3 + $0xa8] sm:$0xff] %v6461
  %6662 = vst [vmem:[%s3 + $0xb0] sm:$0xff] %v6462
  %6663 = vst [vmem:[%s3 + $0xb8] sm:$0xff] %v6463
  %6664 = vst [vmem:[%s3 + $0xc0] sm:$0xff] %v6464
  %6665 = vst [vmem:[%s3 + $0xc8] sm:$0xff] %v6465
  %6666 = vst [vmem:[%s3 + $0xd0] sm:$0xff] %v6466
  %6667 = vst [vmem:[%s3 + $0xd8] sm:$0xff] %v6467
  %6668 = vst [vmem:[%s3 + $0xe0] sm:$0xff] %v6468
  %6669 = vst [vmem:[%s3 + $0xe8] sm:$0xff] %v6469
  %6670 = vst [vmem:[%s3 + $0xf0] sm:$0xff] %v6470
  %6671 = vst [vmem:[%s3 + $0xf8] sm:$0xff] %v6471
  %6672 = vst [vmem:[%s3 + $0x100] sm:$0xff] %v6472
  %6673 = vst [vmem:[%s3 + $0x108] sm:$0xff] %v6473
  %6674 = vst [vmem:[%s3 + $0x110] sm:$0xff] %v6474
  %6675 = vst [vmem:[%s3 + $0x118] sm:$0xff] %v6475
  %6676 = vst [vmem:[%s3 + $0x120] sm:$0xff] %v6476
  %6677 = vst [vmem:[%s3 + $0x128] sm:$0xff] %v6477
  %6678 = vst [vmem:[%s3 + $0x130] sm:$0xff] %v6478
  %6679 = vst [vmem:[%s3 + $0x138] sm:$0xff] %v6479
  %6680 = vst [vmem:[%s3 + $0x140] sm:$0xff] %v6480
  %6681 = vst [vmem:[%s3 + $0x148] sm:$0xff] %v6481
  %6682 = vst [vmem:[%s3 + $0x150] sm:$0xff] %v6482
  %6683 = vst [vmem:[%s3 + $0x158] sm:$0xff] %v6483
  %6684 = vst [vmem:[%s3 + $0x160] sm:$0xff] %v6484
  %6685 = vst [vmem:[%s3 + $0x168] sm:$0xff] %v6485
  %6686 = vst [vmem:[%s3 + $0x170] sm:$0xff] %v6486
  %6687 = vst [vmem:[%s3 + $0x178] sm:$0xff] %v6487
  %6688 = vst [vmem:[%s3 + $0x180] sm:$0xff] %v6488
  %6689 = vst [vmem:[%s3 + $0x188] sm:$0xff] %v6489
  %6690 = vst [vmem:[%s3 + $0x190] sm:$0xff] %v6490
  %6691 = vst [vmem:[%s3 + $0x198] sm:$0xff] %v6491
  %6692 = vst [vmem:[%s3 + $0x1a0] sm:$0xff] %v6492
  %6693 = vst [vmem:[%s3 + $0x1a8] sm:$0xff] %v6493
  %6694 = vst [vmem:[%s3 + $0x1b0] sm:$0xff] %v6494
  %6695 = vst [vmem:[%s3 + $0x1b8] sm:$0xff] %v6495
  %6696 = vst [vmem:[%s3 + $0x1c0] sm:$0xff] %v6496
  %6697 = vst [vmem:[%s3 + $0x1c8] sm:$0xff] %v6497
  %6698 = vst [vmem:[%s3 + $0x1d0] sm:$0xff] %v6498
  %6699 = vst [vmem:[%s3 + $0x1d8] sm:$0xff] %v6499
  %6700 = vst [vmem:[%s3 + $0x1e0] sm:$0xff] %v6500
  %6701 = vst [vmem:[%s3 + $0x1e8] sm:$0xff] %v6501
  %6702 = vst [vmem:[%s3 + $0x1f0] sm:$0xff] %v6502
  %6703 = vst [vmem:[%s3 + $0x1f8] sm:$0xff] %v6503
  %6704 = vst [vmem:[%s3 + $0x200] sm:$0xff] %v6504
  %6705 = vst [vmem:[%s3 + $0x208] sm:$0xff] %v6505
  %6706 = vst [vmem:[%s3 + $0x210] sm:$0xff] %v6506
  %6707 = vst [vmem:[%s3 + $0x218] sm:$0xff] %v6507
  %6708 = vst [vmem:[%s3 + $0x220] sm:$0xff] %v6508
  %6709 = vst [vmem:[%s3 + $0x228] sm:$0xff] %v6509
  %6710 = vst [vmem:[%s3 + $0x230] sm:$0xff] %v6510
  %6711 = vst [vmem:[%s3 + $0x238] sm:$0xff] %v6511
  %6712 = vst [vmem:[%s3 + $0x240] sm:$0xff] %v6512
  %6713 = vst [vmem:[%s3 + $0x248] sm:$0xff] %v6513
  %6714 = vst [vmem:[%s3 + $0x250] sm:$0xff] %v6514
  %6715 = vst [vmem:[%s3 + $0x258] sm:$0xff] %v6515
  %6716 = vst [vmem:[%s3 + $0x260] sm:$0xff] %v6516
  %6717 = vst [vmem:[%s3 + $0x268] sm:$0xff] %v6517
  %6718 = vst [vmem:[%s3 + $0x270] sm:$0xff] %v6518
  %6719 = vst [vmem:[%s3 + $0x278] sm:$0xff] %v6519
  %6720 = vst [vmem:[%s3 + $0x280] sm:$0xff] %v6520
  %6721 = vst [vmem:[%s3 + $0x288] sm:$0xff] %v6521
  %6722 = vst [vmem:[%s3 + $0x290] sm:$0xff] %v6522
  %6723 = vst [vmem:[%s3 + $0x298] sm:$0xff] %v6523
  %6724 = vst [vmem:[%s3 + $0x2a0] sm:$0xff] %v6524
  %6725 = vst [vmem:[%s3 + $0x2a8] sm:$0xff] %v6525
  %6726 = vst [vmem:[%s3 + $0x2b0] sm:$0xff] %v6526
  %6727 = vst [vmem:[%s3 + $0x2b8] sm:$0xff] %v6527
  %6728 = vst [vmem:[%s3 + $0x2c0] sm:$0xff] %v6528
  %6729 = vst [vmem:[%s3 + $0x2c8] sm:$0xff] %v6529
  %6730 = vst [vmem:[%s3 + $0x2d0] sm:$0xff] %v6530
  %6731 = vst [vmem:[%s3 + $0x2d8] sm:$0xff] %v6531
  %6732 = vst [vmem:[%s3 + $0x2e0] sm:$0xff] %v6532
  %6733 = vst [vmem:[%s3 + $0x2e8] sm:$0xff] %v6533
  %6734 = vst [vmem:[%s3 + $0x2f0] sm:$0xff] %v6534
  %6735 = vst [vmem:[%s3 + $0x2f8] sm:$0xff] %v6535
  %6736 = vst [vmem:[%s3 + $0x300] sm:$0xff] %v6536
  %6737 = vst [vmem:[%s3 + $0x308] sm:$0xff] %v6537
  %6738 = vst [vmem:[%s3 + $0x310] sm:$0xff] %v6538
  %6739 = vst [vmem:[%s3 + $0x318] sm:$0xff] %v6539
  %6740 = vst [vmem:[%s3 + $0x320] sm:$0xff] %v6540
  %6741 = vst [vmem:[%s3 + $0x328] sm:$0xff] %v6541
  %6742 = vst [vmem:[%s3 + $0x330] sm:$0xff] %v6542
  %6743 = vst [vmem:[%s3 + $0x338] sm:$0xff] %v6543
  %6744 = vst [vmem:[%s3 + $0x340] sm:$0xff] %v6544
  %6745 = vst [vmem:[%s3 + $0x348] sm:$0xff] %v6545
  %6746 = vst [vmem:[%s3 + $0x350] sm:$0xff] %v6546
  %6747 = vst [vmem:[%s3 + $0x358] sm:$0xff] %v6547
  %6748 = vst [vmem:[%s3 + $0x360] sm:$0xff] %v6548
  %6749 = vst [vmem:[%s3 + $0x368] sm:$0xff] %v6549
  %6750 = vst [vmem:[%s3 + $0x370] sm:$0xff] %v6550
  %6751 = vst [vmem:[%s3 + $0x378] sm:$0xff] %v6551
  %6752 = vst [vmem:[%s3 + $0x380] sm:$0xff] %v6552
  %6753 = vst [vmem:[%s3 + $0x388] sm:$0xff] %v6553
  %6754 = vst [vmem:[%s3 + $0x390] sm:$0xff] %v6554
  %6755 = vst [vmem:[%s3 + $0x398] sm:$0xff] %v6555
  %6756 = vst [vmem:[%s3 + $0x3a0] sm:$0xff] %v6556
  %6757 = vst [vmem:[%s3 + $0x3a8] sm:$0xff] %v6557
  %6758 = vst [vmem:[%s3 + $0x3b0] sm:$0xff] %v6558
  %6759 = vst [vmem:[%s3 + $0x3b8] sm:$0xff] %v6559
  %6760 = vst [vmem:[%s3 + $0x3c0] sm:$0xff] %v6560
  %6761 = vst [vmem:[%s3 + $0x3c8] sm:$0xff] %v6561
  %6762 = vst [vmem:[%s3 + $0x3d0] sm:$0xff] %v6562
  %6763 = vst [vmem:[%s3 + $0x3d8] sm:$0xff] %v6563
  %6764 = vst [vmem:[%s3 + $0x3e0] sm:$0xff] %v6564
  %6765 = vst [vmem:[%s3 + $0x3e8] sm:$0xff] %v6565
  %6766 = vst [vmem:[%s3 + $0x3f0] sm:$0xff] %v6566
  %6767 = vst [vmem:[%s3 + $0x3f8] sm:$0xff] %v6567
  %6768 = vst [vmem:[%s3 + $0x400] sm:$0xff] %v6568
  %6769 = vst [vmem:[%s3 + $0x408] sm:$0xff] %v6569
  %6770 = vst [vmem:[%s3 + $0x410] sm:$0xff] %v6570
  %6771 = vst [vmem:[%s3 + $0x418] sm:$0xff] %v6571
  %6772 = vst [vmem:[%s3 + $0x420] sm:$0xff] %v6572
  %6773 = vst [vmem:[%s3 + $0x428] sm:$0xff] %v6573
  %6774 = vst [vmem:[%s3 + $0x430] sm:$0xff] %v6574
  %6775 = vst [vmem:[%s3 + $0x438] sm:$0xff] %v6575
  %6776 = vst [vmem:[%s3 + $0x440] sm:$0xff] %v6576
  %6777 = vst [vmem:[%s3 + $0x448] sm:$0xff] %v6577
  %6778 = vst [vmem:[%s3 + $0x450] sm:$0xff] %v6578
  %6779 = vst [vmem:[%s3 + $0x458] sm:$0xff] %v6579
  %6780 = vst [vmem:[%s3 + $0x460] sm:$0xff] %v6580
  %6781 = vst [vmem:[%s3 + $0x468] sm:$0xff] %v6581
  %6782 = vst [vmem:[%s3 + $0x470] sm:$0xff] %v6582
  %6783 = vst [vmem:[%s3 + $0x478] sm:$0xff] %v6583
  %6784 = vst [vmem:[%s3 + $0x480] sm:$0xff] %v6584
  %6785 = vst [vmem:[%s3 + $0x488] sm:$0xff] %v6585
  %6786 = vst [vmem:[%s3 + $0x490] sm:$0xff] %v6586
  %6787 = vst [vmem:[%s3 + $0x498] sm:$0xff] %v6587
  %6788 = vst [vmem:[%s3 + $0x4a0] sm:$0xff] %v6588
  %6789 = vst [vmem:[%s3 + $0x4a8] sm:$0xff] %v6589
  %6790 = vst [vmem:[%s3 + $0x4b0] sm:$0xff] %v6590
  %6791 = vst [vmem:[%s3 + $0x4b8] sm:$0xff] %v6591
  %6792 = vst [vmem:[%s3 + $0x4c0] sm:$0xff] %v6592
  %6793 = vst [vmem:[%s3 + $0x4c8] sm:$0xff] %v6593
  %6794 = vst [vmem:[%s3 + $0x4d0] sm:$0xff] %v6594
  %6795 = vst [vmem:[%s3 + $0x4d8] sm:$0xff] %v6595
  %6796 = vst [vmem:[%s3 + $0x4e0] sm:$0xff] %v6596
  %6797 = vst [vmem:[%s3 + $0x4e8] sm:$0xff] %v6597
  %6798 = vst [vmem:[%s3 + $0x4f0] sm:$0xff] %v6598
  %6799 = vst [vmem:[%s3 + $0x4f8] sm:$0xff] %v6599
  %6800 = vst [vmem:[%s3 + $0x500] sm:$0xff] %v6600
  %6801 = vst [vmem:[%s3 + $0x508] sm:$0xff] %v6601
  %6802 = vst [vmem:[%s3 + $0x510] sm:$0xff] %v6602
  %6803 = vst [vmem:[%s3 + $0x518] sm:$0xff] %v6603
  %6804 = vst [vmem:[%s3 + $0x520] sm:$0xff] %v6604
  %6805 = vst [vmem:[%s3 + $0x528] sm:$0xff] %v6605
  %6806 = vst [vmem:[%s3 + $0x530] sm:$0xff] %v6606
  %6807 = vst [vmem:[%s3 + $0x538] sm:$0xff] %v6607
  %6808 = vst [vmem:[%s3 + $0x540] sm:$0xff] %v6608
  %6809 = vst [vmem:[%s3 + $0x548] sm:$0xff] %v6609
  %6810 = vst [vmem:[%s3 + $0x550] sm:$0xff] %v6610
  %6811 = vst [vmem:[%s3 + $0x558] sm:$0xff] %v6611
  %6812 = vst [vmem:[%s3 + $0x560] sm:$0xff] %v6612
  %6813 = vst [vmem:[%s3 + $0x568] sm:$0xff] %v6613
  %6814 = vst [vmem:[%s3 + $0x570] sm:$0xff] %v6614
  %6815 = vst [vmem:[%s3 + $0x578] sm:$0xff] %v6615
  %6816 = vst [vmem:[%s3 + $0x580] sm:$0xff] %v6616
  %6817 = vst [vmem:[%s3 + $0x588] sm:$0xff] %v6617
  %6818 = vst [vmem:[%s3 + $0x590] sm:$0xff] %v6618
  %6819 = vst [vmem:[%s3 + $0x598] sm:$0xff] %v6619
  %6820 = vst [vmem:[%s3 + $0x5a0] sm:$0xff] %v6620
  %6821 = vst [vmem:[%s3 + $0x5a8] sm:$0xff] %v6621
  %6822 = vst [vmem:[%s3 + $0x5b0] sm:$0xff] %v6622
  %6823 = vst [vmem:[%s3 + $0x5b8] sm:$0xff] %v6623
  %6824 = vst [vmem:[%s3 + $0x5c0] sm:$0xff] %v6624
  %6825 = vst [vmem:[%s3 + $0x5c8] sm:$0xff] %v6625
  %6826 = vst [vmem:[%s3 + $0x5d0] sm:$0xff] %v6626
  %6827 = vst [vmem:[%s3 + $0x5d8] sm:$0xff] %v6627
  %6828 = vst [vmem:[%s3 + $0x5e0] sm:$0xff] %v6628
  %6829 = vst [vmem:[%s3 + $0x5e8] sm:$0xff] %v6629
  %6830 = vst [vmem:[%s3 + $0x5f0] sm:$0xff] %v6630
  %6831 = vst [vmem:[%s3 + $0x5f8] sm:$0xff] %v6631
  %6832 = vst [vmem:[%s3 + $0x600] sm:$0xff] %v6632
  %6833 = vst [vmem:[%s3 + $0x608] sm:$0xff] %v6633
  %6834 = vst [vmem:[%s3 + $0x610] sm:$0xff] %v6634
  %6835 = vst [vmem:[%s3 + $0x618] sm:$0xff] %v6635
  %6836 = vst [vmem:[%s3 + $0x620] sm:$0xff] %v6636
  %6837 = vst [vmem:[%s3 + $0x628] sm:$0xff] %v6637
  %6838 = vst [vmem:[%s3 + $0x630] sm:$0xff] %v6638
  %6839 = vst [vmem:[%s3 + $0x638] sm:$0xff] %v6639
  // Predicated region
  $region14: #{net_forward.3} parent=0 // pred_check
    _
  $region15: #{net_forward.3} parent=0 // pred_check_branch
    %6841 = sbr.rel (0) target = $region17
  $region16: #{net_forward.3} parent=0 // pred_region
    _
  $region17: #{net_forward.3} parent=0 // pred_fallthru
    _
  // Predicated region
  $region18: #{net_forward.3} parent=0 // pred_check
    _
  $region19: #{net_forward.3} parent=0 // pred_check_branch
    %6843 = sbr.rel (0) target = $region21
  $region20: #{net_forward.3} parent=0 // pred_region
    _
  $region21: #{net_forward.3} parent=0 // pred_fallthru
    _

// kernel: net_forward.5
$region0: #{net_forward.5}
  #allocation0 [shape = 'u32[]', space=smem, size = 0x4, offset = 0x4, fixed_abs, tag = 'smem constant byte address 0x4 - core index']
  #allocation1 [shape = 'u32[72,128]{1,0:T(1,128)}', space=vmem, size = 0x9000, scoped, tag = 'internal scratch']
  %s0 = inlined_call_operand.vmem [shape: f32[8,400], index: 0, kind: input, shape index: {}]
  %s1 = inlined_call_operand.vmem [shape: f32[400,256], index: 1, kind: input, shape index: {}]
  %s2 = inlined_call_operand.vmem [shape: f32[1,256], index: 2, kind: input, shape index: {}]
  %s3 = inlined_call_operand.vmem [shape: f32[256,128], index: 3, kind: input, shape index: {}]
  %s4 = inlined_call_operand.vmem [shape: f32[1,128], index: 4, kind: input, shape index: {}]
  %s5 = inlined_call_operand.vmem [shape: f32[8,128], index: 5, kind: output, shape index: {}]
  %s6 = sld [smem:[#allocation0]]
  $region30: #{net_forward.5} parent=0
    _
  %s8 = ssub.s32 1, %s6
  %s9 = scalar_select 0, %s8, %s6
  // Predicated region
  $region2: #{net_forward.5} parent=0 // pred_check
    _
  $region3: #{net_forward.5} parent=0 // pred_check_branch
    %11 = sbr.rel (0) target = $region5
  $region4: #{net_forward.5} parent=0 // pred_region
    _
  $region5: #{net_forward.5} parent=0 // pred_fallthru
    _
  // Predicated region
  $region6: #{net_forward.5} parent=0 // pred_check
    _
  $region7: #{net_forward.5} parent=0 // pred_check_branch
    %13 = sbr.rel (0) target = $region9
  $region8: #{net_forward.5} parent=0 // pred_region
    _
  $region9: #{net_forward.5} parent=0 // pred_fallthru
    _
  // Predicated region
  $region10: #{net_forward.5} parent=0 // pred_check
    _
  $region11: #{net_forward.5} parent=0 // pred_check_branch
    %15 = sbr.rel (0) target = $region13
  $region12: #{net_forward.5} parent=0 // pred_region
    _
  $region13: #{net_forward.5} parent=0 // pred_fallthru
    _
  // Predicated region
  $region14: #{net_forward.5} parent=0 // pred_check
    _
  $region15: #{net_forward.5} parent=0 // pred_check_branch
    %17 = sbr.rel (0) target = $region17
  $region16: #{net_forward.5} parent=0 // pred_region
    _
  $region17: #{net_forward.5} parent=0 // pred_fallthru
    _
  // Predicated region
  $region18: #{net_forward.5} parent=0 // pred_check
    _
  $region19: #{net_forward.5} parent=0 // pred_check_branch
    %19 = sbr.rel (0) target = $region21
  $region20: #{net_forward.5} parent=0 // pred_region
    _
  $region21: #{net_forward.5} parent=0 // pred_fallthru
    _
  %v20 = vld [vmem:[%s0] sm:$0xff]
  %v21 = vld [vmem:[%s0 + $0x8] sm:$0xff]
  %v22 = vld [vmem:[%s0 + $0x10] sm:$0xff]
  %v23 = vld [vmem:[%s0 + $0x18] sm:$0xff]
  %v24 = vld [vmem:[%s1] sm:$0xff]
  %v25 = vld [vmem:[%s1 + $0x8] sm:$0xff]
  %v26 = vld [vmem:[%s1 + $0x10] sm:$0xff]
  %v27 = vld [vmem:[%s1 + $0x18] sm:$0xff]
  %v28 = vld [vmem:[%s1 + $0x20] sm:$0xff]
  %v29 = vld [vmem:[%s1 + $0x28] sm:$0xff]
  %v30 = vld [vmem:[%s1 + $0x30] sm:$0xff]
  %v31 = vld [vmem:[%s1 + $0x38] sm:$0xff]
  %v32 = vld [vmem:[%s1 + $0x40] sm:$0xff]
  %v33 = vld [vmem:[%s1 + $0x48] sm:$0xff]
  %v34 = vld [vmem:[%s1 + $0x50] sm:$0xff]
  %v35 = vld [vmem:[%s1 + $0x58] sm:$0xff]
  %v36 = vld [vmem:[%s1 + $0x60] sm:$0xff]
  %v37 = vld [vmem:[%s1 + $0x68] sm:$0xff]
  %v38 = vld [vmem:[%s1 + $0x70] sm:$0xff]
  %v39 = vld [vmem:[%s1 + $0x78] sm:$0xff]
  %v40 = vld [vmem:[%s1 + $0x80] sm:$0xff]
  %v41 = vld [vmem:[%s1 + $0x88] sm:$0xff]
  %v42 = vld [vmem:[%s1 + $0x90] sm:$0xff]
  %v43 = vld [vmem:[%s1 + $0x98] sm:$0xff]
  %v44 = vld [vmem:[%s1 + $0xa0] sm:$0xff]
  %v45 = vld [vmem:[%s1 + $0xa8] sm:$0xff]
  %v46 = vld [vmem:[%s1 + $0xb0] sm:$0xff]
  %v47 = vld [vmem:[%s1 + $0xb8] sm:$0xff]
  %v48 = vld [vmem:[%s1 + $0xc0] sm:$0xff]
  %v49 = vld [vmem:[%s1 + $0xc8] sm:$0xff]
  %v50 = vld [vmem:[%s1 + $0xd0] sm:$0xff]
  %v51 = vld [vmem:[%s1 + $0xd8] sm:$0xff]
  %v52 = vld [vmem:[%s1 + $0xe0] sm:$0xff]
  %v53 = vld [vmem:[%s1 + $0xe8] sm:$0xff]
  %v54 = vld [vmem:[%s1 + $0xf0] sm:$0xff]
  %v55 = vld [vmem:[%s1 + $0xf8] sm:$0xff]
  %v56 = vld [vmem:[%s1 + $0x100] sm:$0xff]
  %v57 = vld [vmem:[%s1 + $0x108] sm:$0xff]
  %v58 = vld [vmem:[%s1 + $0x110] sm:$0xff]
  %v59 = vld [vmem:[%s1 + $0x118] sm:$0xff]
  %v60 = vld [vmem:[%s1 + $0x120] sm:$0xff]
  %v61 = vld [vmem:[%s1 + $0x128] sm:$0xff]
  %v62 = vld [vmem:[%s1 + $0x130] sm:$0xff]
  %v63 = vld [vmem:[%s1 + $0x138] sm:$0xff]
  %v64 = vld [vmem:[%s1 + $0x140] sm:$0xff]
  %v65 = vld [vmem:[%s1 + $0x148] sm:$0xff]
  %v66 = vld [vmem:[%s1 + $0x150] sm:$0xff]
  %v67 = vld [vmem:[%s1 + $0x158] sm:$0xff]
  %v68 = vld [vmem:[%s1 + $0x160] sm:$0xff]
  %v69 = vld [vmem:[%s1 + $0x168] sm:$0xff]
  %v70 = vld [vmem:[%s1 + $0x170] sm:$0xff]
  %v71 = vld [vmem:[%s1 + $0x178] sm:$0xff]
  %v72 = vld [vmem:[%s1 + $0x180] sm:$0xff]
  %v73 = vld [vmem:[%s1 + $0x188] sm:$0xff]
  %v74 = vld [vmem:[%s1 + $0x190] sm:$0xff]
  %v75 = vld [vmem:[%s1 + $0x198] sm:$0xff]
  %v76 = vld [vmem:[%s1 + $0x1a0] sm:$0xff]
  %v77 = vld [vmem:[%s1 + $0x1a8] sm:$0xff]
  %v78 = vld [vmem:[%s1 + $0x1b0] sm:$0xff]
  %v79 = vld [vmem:[%s1 + $0x1b8] sm:$0xff]
  %v80 = vld [vmem:[%s1 + $0x1c0] sm:$0xff]
  %v81 = vld [vmem:[%s1 + $0x1c8] sm:$0xff]
  %v82 = vld [vmem:[%s1 + $0x1d0] sm:$0xff]
  %v83 = vld [vmem:[%s1 + $0x1d8] sm:$0xff]
  %v84 = vld [vmem:[%s1 + $0x1e0] sm:$0xff]
  %v85 = vld [vmem:[%s1 + $0x1e8] sm:$0xff]
  %v86 = vld [vmem:[%s1 + $0x1f0] sm:$0xff]
  %v87 = vld [vmem:[%s1 + $0x1f8] sm:$0xff]
  %v88 = vld [vmem:[%s1 + $0x200] sm:$0xff]
  %v89 = vld [vmem:[%s1 + $0x208] sm:$0xff]
  %v90 = vld [vmem:[%s1 + $0x210] sm:$0xff]
  %v91 = vld [vmem:[%s1 + $0x218] sm:$0xff]
  %v92 = vld [vmem:[%s1 + $0x220] sm:$0xff]
  %v93 = vld [vmem:[%s1 + $0x228] sm:$0xff]
  %v94 = vld [vmem:[%s1 + $0x230] sm:$0xff]
  %v95 = vld [vmem:[%s1 + $0x238] sm:$0xff]
  %v96 = vld [vmem:[%s1 + $0x240] sm:$0xff]
  %v97 = vld [vmem:[%s1 + $0x248] sm:$0xff]
  %v98 = vld [vmem:[%s1 + $0x250] sm:$0xff]
  %v99 = vld [vmem:[%s1 + $0x258] sm:$0xff]
  %v100 = vld [vmem:[%s1 + $0x260] sm:$0xff]
  %v101 = vld [vmem:[%s1 + $0x268] sm:$0xff]
  %v102 = vld [vmem:[%s1 + $0x270] sm:$0xff]
  %v103 = vld [vmem:[%s1 + $0x278] sm:$0xff]
  %v104 = vld [vmem:[%s1 + $0x280] sm:$0xff]
  %v105 = vld [vmem:[%s1 + $0x288] sm:$0xff]
  %v106 = vld [vmem:[%s1 + $0x290] sm:$0xff]
  %v107 = vld [vmem:[%s1 + $0x298] sm:$0xff]
  %v108 = vld [vmem:[%s1 + $0x2a0] sm:$0xff]
  %v109 = vld [vmem:[%s1 + $0x2a8] sm:$0xff]
  %v110 = vld [vmem:[%s1 + $0x2b0] sm:$0xff]
  %v111 = vld [vmem:[%s1 + $0x2b8] sm:$0xff]
  %v112 = vld [vmem:[%s1 + $0x2c0] sm:$0xff]
  %v113 = vld [vmem:[%s1 + $0x2c8] sm:$0xff]
  %v114 = vld [vmem:[%s1 + $0x2d0] sm:$0xff]
  %v115 = vld [vmem:[%s1 + $0x2d8] sm:$0xff]
  %v116 = vld [vmem:[%s1 + $0x2e0] sm:$0xff]
  %v117 = vld [vmem:[%s1 + $0x2e8] sm:$0xff]
  %v118 = vld [vmem:[%s1 + $0x2f0] sm:$0xff]
  %v119 = vld [vmem:[%s1 + $0x2f8] sm:$0xff]
  %v120 = vld [vmem:[%s1 + $0x300] sm:$0xff]
  %v121 = vld [vmem:[%s1 + $0x308] sm:$0xff]
  %v122 = vld [vmem:[%s1 + $0x310] sm:$0xff]
  %v123 = vld [vmem:[%s1 + $0x318] sm:$0xff]
  %v124 = vld [vmem:[%s2] sm:$0x3]
  %v126 = vperm.slane %v124, 0
  %v127 = vperm.slane %v124, 1
  %vm130 = vcmask 130048
  %v132 = vsel %vm130, %v23, 0
  %134 = vmatpush.msra.mxu0 %v54
  %135 = vmatpush.msra.mxu0 %v52
  %136 = vmatpush.msra.mxu0 %v50
  %137 = vmatpush.msra.mxu0 %v48
  %138 = vmatpush.msra.mxu0 %v46
  %139 = vmatpush.msra.mxu0 %v44
  %140 = vmatpush.msra.mxu0 %v42
  %141 = vmatpush.msra.mxu0 %v40
  %142 = vmatpush.msra.mxu0 %v38
  %143 = vmatpush.msra.mxu0 %v36
  %144 = vmatpush.msra.mxu0 %v34
  %145 = vmatpush.msra.mxu0 %v32
  %146 = vmatpush.msra.mxu0 %v30
  %147 = vmatpush.msra.mxu0 %v28
  %148 = vmatpush.msra.mxu0 %v26
  %149 = vmatpush.msra.mxu0 %v24
  %150 = vmatmul.f32.gmra.mxu0 %v20
  %v151 = vpop.f32.mrf.mxu0
  %v152 = vadd.f32 %v126, %v151
  %153 = vdwg.mxu0
  %154 = vmatpush.msra.mxu0 %v86
  %155 = vmatpush.msra.mxu0 %v84
  %156 = vmatpush.msra.mxu0 %v82
  %157 = vmatpush.msra.mxu0 %v80
  %158 = vmatpush.msra.mxu0 %v78
  %159 = vmatpush.msra.mxu0 %v76
  %160 = vmatpush.msra.mxu0 %v74
  %161 = vmatpush.msra.mxu0 %v72
  %162 = vmatpush.msra.mxu0 %v70
  %163 = vmatpush.msra.mxu0 %v68
  %164 = vmatpush.msra.mxu0 %v66
  %165 = vmatpush.msra.mxu0 %v64
  %166 = vmatpush.msra.mxu0 %v62
  %167 = vmatpush.msra.mxu0 %v60
  %168 = vmatpush.msra.mxu0 %v58
  %169 = vmatpush.msra.mxu0 %v56
  %170 = vmatmul.f32.gmra.mxu0 %v21
  %v171 = vpop.f32.mrf.mxu0
  %v172 = vadd.f32 %v152, %v171
  %173 = vdwg.mxu0
  %174 = vmatpush.msra.mxu0 %v118
  %175 = vmatpush.msra.mxu0 %v116
  %176 = vmatpush.msra.mxu0 %v114
  %177 = vmatpush.msra.mxu0 %v112
  %178 = vmatpush.msra.mxu0 %v110
  %179 = vmatpush.msra.mxu0 %v108
  %180 = vmatpush.msra.mxu0 %v106
  %181 = vmatpush.msra.mxu0 %v104
  %182 = vmatpush.msra.mxu0 %v102
  %183 = vmatpush.msra.mxu0 %v100
  %184 = vmatpush.msra.mxu0 %v98
  %185 = vmatpush.msra.mxu0 %v96
  %186 = vmatpush.msra.mxu0 %v94
  %187 = vmatpush.msra.mxu0 %v92
  %188 = vmatpush.msra.mxu0 %v90
  %189 = vmatpush.msra.mxu0 %v88
  %190 = vmatmul.f32.gmra.mxu0 %v22
  %v191 = vpop.f32.mrf.mxu0
  %v192 = vadd.f32 %v172, %v191
  %193 = vdwg.mxu0
  %194 = vmatpush.msra.mxu0 0.0
  %195 = vmatpush.msra.mxu0 0.0
  %196 = vmatpush.msra.mxu0 0.0
  %197 = vmatpush.msra.mxu0 0.0
  %198 = vmatpush.msra.mxu0 0.0
  %199 = vmatpush.msra.mxu0 0.0
  %200 = vmatpush.msra.mxu0 0.0
  %201 = vmatpush.msra.mxu0 0.0
  %202 = vmatpush.msra.mxu0 0.0
  %203 = vmatpush.msra.mxu0 0.0
  %204 = vmatpush.msra.mxu0 0.0
  %205 = vmatpush.msra.mxu0 0.0
  %206 = vmatpush.msra.mxu0 0.0
  %207 = vmatpush.msra.mxu0 0.0
  %208 = vmatpush.msra.mxu0 %v122
  %209 = vmatpush.msra.mxu0 %v120
  %210 = vmatmul.f32.gmra.mxu0 %v132
  %v211 = vpop.f32.mrf.mxu0
  %v212 = vadd.f32 %v192, %v211
  %213 = vdwg.mxu0
  %214 = vmatpush.msra.mxu0 %v55
  %215 = vmatpush.msra.mxu0 %v53
  %216 = vmatpush.msra.mxu0 %v51
  %217 = vmatpush.msra.mxu0 %v49
  %218 = vmatpush.msra.mxu0 %v47
  %219 = vmatpush.msra.mxu0 %v45
  %220 = vmatpush.msra.mxu0 %v43
  %221 = vmatpush.msra.mxu0 %v41
  %222 = vmatpush.msra.mxu0 %v39
  %223 = vmatpush.msra.mxu0 %v37
  %224 = vmatpush.msra.mxu0 %v35
  %225 = vmatpush.msra.mxu0 %v33
  %226 = vmatpush.msra.mxu0 %v31
  %227 = vmatpush.msra.mxu0 %v29
  %228 = vmatpush.msra.mxu0 %v27
  %229 = vmatpush.msra.mxu0 %v25
  %230 = vmatmul.f32.gmra.mxu0 %v20
  %v231 = vpop.f32.mrf.mxu0
  %v232 = vadd.f32 %v127, %v231
  %233 = vdwg.mxu0
  %234 = vmatpush.msra.mxu0 %v87
  %235 = vmatpush.msra.mxu0 %v85
  %236 = vmatpush.msra.mxu0 %v83
  %237 = vmatpush.msra.mxu0 %v81
  %238 = vmatpush.msra.mxu0 %v79
  %239 = vmatpush.msra.mxu0 %v77
  %240 = vmatpush.msra.mxu0 %v75
  %241 = vmatpush.msra.mxu0 %v73
  %242 = vmatpush.msra.mxu0 %v71
  %243 = vmatpush.msra.mxu0 %v69
  %244 = vmatpush.msra.mxu0 %v67
  %245 = vmatpush.msra.mxu0 %v65
  %246 = vmatpush.msra.mxu0 %v63
  %247 = vmatpush.msra.mxu0 %v61
  %248 = vmatpush.msra.mxu0 %v59
  %249 = vmatpush.msra.mxu0 %v57
  %250 = vmatmul.f32.gmra.mxu0 %v21
  %v251 = vpop.f32.mrf.mxu0
  %v252 = vadd.f32 %v232, %v251
  %253 = vdwg.mxu0
  %254 = vmatpush.msra.mxu0 %v119
  %255 = vmatpush.msra.mxu0 %v117
  %256 = vmatpush.msra.mxu0 %v115
  %257 = vmatpush.msra.mxu0 %v113
  %258 = vmatpush.msra.mxu0 %v111
  %259 = vmatpush.msra.mxu0 %v109
  %260 = vmatpush.msra.mxu0 %v107
  %261 = vmatpush.msra.mxu0 %v105
  %262 = vmatpush.msra.mxu0 %v103
  %263 = vmatpush.msra.mxu0 %v101
  %264 = vmatpush.msra.mxu0 %v99
  %265 = vmatpush.msra.mxu0 %v97
  %266 = vmatpush.msra.mxu0 %v95
  %267 = vmatpush.msra.mxu0 %v93
  %268 = vmatpush.msra.mxu0 %v91
  %269 = vmatpush.msra.mxu0 %v89
  %270 = vmatmul.f32.gmra.mxu0 %v22
  %v271 = vpop.f32.mrf.mxu0
  %v272 = vadd.f32 %v252, %v271
  %273 = vdwg.mxu0
  %274 = vmatpush.msra.mxu0 0.0
  %275 = vmatpush.msra.mxu0 0.0
  %276 = vmatpush.msra.mxu0 0.0
  %277 = vmatpush.msra.mxu0 0.0
  %278 = vmatpush.msra.mxu0 0.0
  %279 = vmatpush.msra.mxu0 0.0
  %280 = vmatpush.msra.mxu0 0.0
  %281 = vmatpush.msra.mxu0 0.0
  %282 = vmatpush.msra.mxu0 0.0
  %283 = vmatpush.msra.mxu0 0.0
  %284 = vmatpush.msra.mxu0 0.0
  %285 = vmatpush.msra.mxu0 0.0
  %286 = vmatpush.msra.mxu0 0.0
  %287 = vmatpush.msra.mxu0 0.0
  %288 = vmatpush.msra.mxu0 %v123
  %289 = vmatpush.msra.mxu0 %v121
  %290 = vmatmul.f32.gmra.mxu0 %v132
  %v291 = vpop.f32.mrf.mxu0
  %v292 = vadd.f32 %v272, %v291
  %293 = vdwg.mxu0
  %v294 = vmax.f32 %v212, 0.0
  %v295 = vmax.f32 %v292, 0.0
  %v296 = vld [vmem:[%s3] sm:$0xff]
  %v297 = vld [vmem:[%s3 + $0x8] sm:$0xff]
  %v298 = vld [vmem:[%s3 + $0x10] sm:$0xff]
  %v299 = vld [vmem:[%s3 + $0x18] sm:$0xff]
  %v300 = vld [vmem:[%s3 + $0x20] sm:$0xff]
  %v301 = vld [vmem:[%s3 + $0x28] sm:$0xff]
  %v302 = vld [vmem:[%s3 + $0x30] sm:$0xff]
  %v303 = vld [vmem:[%s3 + $0x38] sm:$0xff]
  %v304 = vld [vmem:[%s3 + $0x40] sm:$0xff]
  %v305 = vld [vmem:[%s3 + $0x48] sm:$0xff]
  %v306 = vld [vmem:[%s3 + $0x50] sm:$0xff]
  %v307 = vld [vmem:[%s3 + $0x58] sm:$0xff]
  %v308 = vld [vmem:[%s3 + $0x60] sm:$0xff]
  %v309 = vld [vmem:[%s3 + $0x68] sm:$0xff]
  %v310 = vld [vmem:[%s3 + $0x70] sm:$0xff]
  %v311 = vld [vmem:[%s3 + $0x78] sm:$0xff]
  %v312 = vld [vmem:[%s3 + $0x80] sm:$0xff]
  %v313 = vld [vmem:[%s3 + $0x88] sm:$0xff]
  %v314 = vld [vmem:[%s3 + $0x90] sm:$0xff]
  %v315 = vld [vmem:[%s3 + $0x98] sm:$0xff]
  %v316 = vld [vmem:[%s3 + $0xa0] sm:$0xff]
  %v317 = vld [vmem:[%s3 + $0xa8] sm:$0xff]
  %v318 = vld [vmem:[%s3 + $0xb0] sm:$0xff]
  %v319 = vld [vmem:[%s3 + $0xb8] sm:$0xff]
  %v320 = vld [vmem:[%s3 + $0xc0] sm:$0xff]
  %v321 = vld [vmem:[%s3 + $0xc8] sm:$0xff]
  %v322 = vld [vmem:[%s3 + $0xd0] sm:$0xff]
  %v323 = vld [vmem:[%s3 + $0xd8] sm:$0xff]
  %v324 = vld [vmem:[%s3 + $0xe0] sm:$0xff]
  %v325 = vld [vmem:[%s3 + $0xe8] sm:$0xff]
  %v326 = vld [vmem:[%s3 + $0xf0] sm:$0xff]
  %v327 = vld [vmem:[%s3 + $0xf8] sm:$0xff]
  %v328 = vld [vmem:[%s4] sm:$0x1]
  %v330 = vperm.slane %v328, 0
  %332 = vmatpush.msra.mxu0 %v311
  %333 = vmatpush.msra.mxu0 %v310
  %334 = vmatpush.msra.mxu0 %v309
  %335 = vmatpush.msra.mxu0 %v308
  %336 = vmatpush.msra.mxu0 %v307
  %337 = vmatpush.msra.mxu0 %v306
  %338 = vmatpush.msra.mxu0 %v305
  %339 = vmatpush.msra.mxu0 %v304
  %340 = vmatpush.msra.mxu0 %v303
  %341 = vmatpush.msra.mxu0 %v302
  %342 = vmatpush.msra.mxu0 %v301
  %343 = vmatpush.msra.mxu0 %v300
  %344 = vmatpush.msra.mxu0 %v299
  %345 = vmatpush.msra.mxu0 %v298
  %346 = vmatpush.msra.mxu0 %v297
  %347 = vmatpush.msra.mxu0 %v296
  %348 = vmatmul.f32.gmra.mxu0 %v294
  %v349 = vpop.f32.mrf.mxu0
  %v350 = vadd.f32 %v330, %v349
  %351 = vdwg.mxu0
  %352 = vmatpush.msra.mxu0 %v327
  %353 = vmatpush.msra.mxu0 %v326
  %354 = vmatpush.msra.mxu0 %v325
  %355 = vmatpush.msra.mxu0 %v324
  %356 = vmatpush.msra.mxu0 %v323
  %357 = vmatpush.msra.mxu0 %v322
  %358 = vmatpush.msra.mxu0 %v321
  %359 = vmatpush.msra.mxu0 %v320
  %360 = vmatpush.msra.mxu0 %v319
  %361 = vmatpush.msra.mxu0 %v318
  %362 = vmatpush.msra.mxu0 %v317
  %363 = vmatpush.msra.mxu0 %v316
  %364 = vmatpush.msra.mxu0 %v315
  %365 = vmatpush.msra.mxu0 %v314
  %366 = vmatpush.msra.mxu0 %v313
  %367 = vmatpush.msra.mxu0 %v312
  %368 = vmatmul.f32.gmra.mxu0 %v295
  %v369 = vpop.f32.mrf.mxu0
  %v370 = vadd.f32 %v350, %v369
  %371 = vdwg.mxu0
  %372 = vst [vmem:[%s5] sm:$0xff] %v370
  // Predicated region
  $region22: #{net_forward.5} parent=0 // pred_check
    _
  $region23: #{net_forward.5} parent=0 // pred_check_branch
    %374 = sbr.rel (0) target = $region25
  $region24: #{net_forward.5} parent=0 // pred_region
    _
  $region25: #{net_forward.5} parent=0 // pred_fallthru
    _
  // Predicated region
  $region26: #{net_forward.5} parent=0 // pred_check
    _
  $region27: #{net_forward.5} parent=0 // pred_check_branch
    %376 = sbr.rel (0) target = $region29
  $region28: #{net_forward.5} parent=0 // pred_region
    _
  $region29: #{net_forward.5} parent=0 // pred_fallthru
    _

// kernel: net_forward.4
$region0: #{net_forward.4}
  #allocation0 [shape = 'u32[]', space=smem, size = 0x4, offset = 0x4, fixed_abs, tag = 'smem constant byte address 0x4 - core index']
  #allocation1 [shape = 'u32[72,128]{1,0:T(1,128)}', space=vmem, size = 0x9000, scoped, tag = 'internal scratch']
  %s0 = inlined_call_operand.vmem [shape: f32[8,4,32,152], index: 0, kind: input, shape index: {}]
  %s1 = inlined_call_operand.vmem [shape: f32[152,128], index: 1, kind: input, shape index: {}]
  %s2 = inlined_call_operand.vmem [shape: f32[1,128], index: 2, kind: input, shape index: {}]
  %s3 = inlined_call_operand.vmem [shape: f32[8,32,128], index: 3, kind: output, shape index: {}]
  %s4 = sld [smem:[#allocation0]]
  $region22: #{net_forward.4} parent=0
    _
  %s6 = ssub.s32 1, %s4
  %s7 = scalar_select 0, %s6, %s4
  // Predicated region
  $region2: #{net_forward.4} parent=0 // pred_check
    _
  $region3: #{net_forward.4} parent=0 // pred_check_branch
    %9 = sbr.rel (0) target = $region5
  $region4: #{net_forward.4} parent=0 // pred_region
    _
  $region5: #{net_forward.4} parent=0 // pred_fallthru
    _
  // Predicated region
  $region6: #{net_forward.4} parent=0 // pred_check
    _
  $region7: #{net_forward.4} parent=0 // pred_check_branch
    %11 = sbr.rel (0) target = $region9
  $region8: #{net_forward.4} parent=0 // pred_region
    _
  $region9: #{net_forward.4} parent=0 // pred_fallthru
    _
  // Predicated region
  $region10: #{net_forward.4} parent=0 // pred_check
    _
  $region11: #{net_forward.4} parent=0 // pred_check_branch
    %13 = sbr.rel (0) target = $region13
  $region12: #{net_forward.4} parent=0 // pred_region
    _
  $region13: #{net_forward.4} parent=0 // pred_fallthru
    _
  %v14 = vld [vmem:[%s0] sm:$0xff]
  %v15 = vld [vmem:[%s0 + $0x8] sm:$0xff]
  %v16 = vld [vmem:[%s0 + $0x10] sm:$0xff]
  %v17 = vld [vmem:[%s0 + $0x18] sm:$0xff]
  %v18 = vld [vmem:[%s0 + $0x20] sm:$0xff]
  %v19 = vld [vmem:[%s0 + $0x28] sm:$0xff]
  %v20 = vld [vmem:[%s0 + $0x30] sm:$0xff]
  %v21 = vld [vmem:[%s0 + $0x38] sm:$0xff]
  %v22 = vld [vmem:[%s0 + $0x40] sm:$0xff]
  %v23 = vld [vmem:[%s0 + $0x48] sm:$0xff]
  %v24 = vld [vmem:[%s0 + $0x50] sm:$0xff]
  %v25 = vld [vmem:[%s0 + $0x58] sm:$0xff]
  %v26 = vld [vmem:[%s0 + $0x60] sm:$0xff]
  %v27 = vld [vmem:[%s0 + $0x68] sm:$0xff]
  %v28 = vld [vmem:[%s0 + $0x70] sm:$0xff]
  %v29 = vld [vmem:[%s0 + $0x78] sm:$0xff]
  %v30 = vld [vmem:[%s0 + $0x80] sm:$0xff]
  %v31 = vld [vmem:[%s0 + $0x88] sm:$0xff]
  %v32 = vld [vmem:[%s0 + $0x90] sm:$0xff]
  %v33 = vld [vmem:[%s0 + $0x98] sm:$0xff]
  %v34 = vld [vmem:[%s0 + $0xa0] sm:$0xff]
  %v35 = vld [vmem:[%s0 + $0xa8] sm:$0xff]
  %v36 = vld [vmem:[%s0 + $0xb0] sm:$0xff]
  %v37 = vld [vmem:[%s0 + $0xb8] sm:$0xff]
  %v38 = vld [vmem:[%s0 + $0xc0] sm:$0xff]
  %v39 = vld [vmem:[%s0 + $0xc8] sm:$0xff]
  %v40 = vld [vmem:[%s0 + $0xd0] sm:$0xff]
  %v41 = vld [vmem:[%s0 + $0xd8] sm:$0xff]
  %v42 = vld [vmem:[%s0 + $0xe0] sm:$0xff]
  %v43 = vld [vmem:[%s0 + $0xe8] sm:$0xff]
  %v44 = vld [vmem:[%s0 + $0xf0] sm:$0xff]
  %v45 = vld [vmem:[%s0 + $0xf8] sm:$0xff]
  %v46 = vld [vmem:[%s0 + $0x100] sm:$0xff]
  %v47 = vld [vmem:[%s0 + $0x108] sm:$0xff]
  %v48 = vld [vmem:[%s0 + $0x110] sm:$0xff]
  %v49 = vld [vmem:[%s0 + $0x118] sm:$0xff]
  %v50 = vld [vmem:[%s0 + $0x120] sm:$0xff]
  %v51 = vld [vmem:[%s0 + $0x128] sm:$0xff]
  %v52 = vld [vmem:[%s0 + $0x130] sm:$0xff]
  %v53 = vld [vmem:[%s0 + $0x138] sm:$0xff]
  %v54 = vld [vmem:[%s0 + $0x140] sm:$0xff]
  %v55 = vld [vmem:[%s0 + $0x148] sm:$0xff]
  %v56 = vld [vmem:[%s0 + $0x150] sm:$0xff]
  %v57 = vld [vmem:[%s0 + $0x158] sm:$0xff]
  %v58 = vld [vmem:[%s0 + $0x160] sm:$0xff]
  %v59 = vld [vmem:[%s0 + $0x168] sm:$0xff]
  %v60 = vld [vmem:[%s0 + $0x170] sm:$0xff]
  %v61 = vld [vmem:[%s0 + $0x178] sm:$0xff]
  %v62 = vld [vmem:[%s0 + $0x180] sm:$0xff]
  %v63 = vld [vmem:[%s0 + $0x188] sm:$0xff]
  %v64 = vld [vmem:[%s0 + $0x190] sm:$0xff]
  %v65 = vld [vmem:[%s0 + $0x198] sm:$0xff]
  %v66 = vld [vmem:[%s0 + $0x1a0] sm:$0xff]
  %v67 = vld [vmem:[%s0 + $0x1a8] sm:$0xff]
  %v68 = vld [vmem:[%s0 + $0x1b0] sm:$0xff]
  %v69 = vld [vmem:[%s0 + $0x1b8] sm:$0xff]
  %v70 = vld [vmem:[%s0 + $0x1c0] sm:$0xff]
  %v71 = vld [vmem:[%s0 + $0x1c8] sm:$0xff]
  %v72 = vld [vmem:[%s0 + $0x1d0] sm:$0xff]
  %v73 = vld [vmem:[%s0 + $0x1d8] sm:$0xff]
  %v74 = vld [vmem:[%s0 + $0x1e0] sm:$0xff]
  %v75 = vld [vmem:[%s0 + $0x1e8] sm:$0xff]
  %v76 = vld [vmem:[%s0 + $0x1f0] sm:$0xff]
  %v77 = vld [vmem:[%s0 + $0x1f8] sm:$0xff]
  %v78 = vld [vmem:[%s0 + $0x200] sm:$0xff]
  %v79 = vld [vmem:[%s0 + $0x208] sm:$0xff]
  %v80 = vld [vmem:[%s0 + $0x210] sm:$0xff]
  %v81 = vld [vmem:[%s0 + $0x218] sm:$0xff]
  %v82 = vld [vmem:[%s0 + $0x220] sm:$0xff]
  %v83 = vld [vmem:[%s0 + $0x228] sm:$0xff]
  %v84 = vld [vmem:[%s0 + $0x230] sm:$0xff]
  %v85 = vld [vmem:[%s0 + $0x238] sm:$0xff]
  %v86 = vld [vmem:[%s0 + $0x240] sm:$0xff]
  %v87 = vld [vmem:[%s0 + $0x248] sm:$0xff]
  %v88 = vld [vmem:[%s0 + $0x250] sm:$0xff]
  %v89 = vld [vmem:[%s0 + $0x258] sm:$0xff]
  %v90 = vld [vmem:[%s0 + $0x260] sm:$0xff]
  %v91 = vld [vmem:[%s0 + $0x268] sm:$0xff]
  %v92 = vld [vmem:[%s0 + $0x270] sm:$0xff]
  %v93 = vld [vmem:[%s0 + $0x278] sm:$0xff]
  %v94 = vld [vmem:[%s0 + $0x280] sm:$0xff]
  %v95 = vld [vmem:[%s0 + $0x288] sm:$0xff]
  %v96 = vld [vmem:[%s0 + $0x290] sm:$0xff]
  %v97 = vld [vmem:[%s0 + $0x298] sm:$0xff]
  %v98 = vld [vmem:[%s0 + $0x2a0] sm:$0xff]
  %v99 = vld [vmem:[%s0 + $0x2a8] sm:$0xff]
  %v100 = vld [vmem:[%s0 + $0x2b0] sm:$0xff]
  %v101 = vld [vmem:[%s0 + $0x2b8] sm:$0xff]
  %v102 = vld [vmem:[%s0 + $0x2c0] sm:$0xff]
  %v103 = vld [vmem:[%s0 + $0x2c8] sm:$0xff]
  %v104 = vld [vmem:[%s0 + $0x2d0] sm:$0xff]
  %v105 = vld [vmem:[%s0 + $0x2d8] sm:$0xff]
  %v106 = vld [vmem:[%s0 + $0x2e0] sm:$0xff]
  %v107 = vld [vmem:[%s0 + $0x2e8] sm:$0xff]
  %v108 = vld [vmem:[%s0 + $0x2f0] sm:$0xff]
  %v109 = vld [vmem:[%s0 + $0x2f8] sm:$0xff]
  %v110 = vld [vmem:[%s0 + $0x300] sm:$0xff]
  %v111 = vld [vmem:[%s0 + $0x308] sm:$0xff]
  %v112 = vld [vmem:[%s0 + $0x310] sm:$0xff]
  %v113 = vld [vmem:[%s0 + $0x318] sm:$0xff]
  %v114 = vld [vmem:[%s0 + $0x320] sm:$0xff]
  %v115 = vld [vmem:[%s0 + $0x328] sm:$0xff]
  %v116 = vld [vmem:[%s0 + $0x330] sm:$0xff]
  %v117 = vld [vmem:[%s0 + $0x338] sm:$0xff]
  %v118 = vld [vmem:[%s0 + $0x340] sm:$0xff]
  %v119 = vld [vmem:[%s0 + $0x348] sm:$0xff]
  %v120 = vld [vmem:[%s0 + $0x350] sm:$0xff]
  %v121 = vld [vmem:[%s0 + $0x358] sm:$0xff]
  %v122 = vld [vmem:[%s0 + $0x360] sm:$0xff]
  %v123 = vld [vmem:[%s0 + $0x368] sm:$0xff]
  %v124 = vld [vmem:[%s0 + $0x370] sm:$0xff]
  %v125 = vld [vmem:[%s0 + $0x378] sm:$0xff]
  %v126 = vld [vmem:[%s0 + $0x380] sm:$0xff]
  %v127 = vld [vmem:[%s0 + $0x388] sm:$0xff]
  %v128 = vld [vmem:[%s0 + $0x390] sm:$0xff]
  %v129 = vld [vmem:[%s0 + $0x398] sm:$0xff]
  %v130 = vld [vmem:[%s0 + $0x3a0] sm:$0xff]
  %v131 = vld [vmem:[%s0 + $0x3a8] sm:$0xff]
  %v132 = vld [vmem:[%s0 + $0x3b0] sm:$0xff]
  %v133 = vld [vmem:[%s0 + $0x3b8] sm:$0xff]
  %v134 = vld [vmem:[%s0 + $0x3c0] sm:$0xff]
  %v135 = vld [vmem:[%s0 + $0x3c8] sm:$0xff]
  %v136 = vld [vmem:[%s0 + $0x3d0] sm:$0xff]
  %v137 = vld [vmem:[%s0 + $0x3d8] sm:$0xff]
  %v138 = vld [vmem:[%s0 + $0x3e0] sm:$0xff]
  %v139 = vld [vmem:[%s0 + $0x3e8] sm:$0xff]
  %v140 = vld [vmem:[%s0 + $0x3f0] sm:$0xff]
  %v141 = vld [vmem:[%s0 + $0x3f8] sm:$0xff]
  %v142 = vld [vmem:[%s0 + $0x400] sm:$0xff]
  %v143 = vld [vmem:[%s0 + $0x408] sm:$0xff]
  %v144 = vld [vmem:[%s0 + $0x410] sm:$0xff]
  %v145 = vld [vmem:[%s0 + $0x418] sm:$0xff]
  %v146 = vld [vmem:[%s0 + $0x420] sm:$0xff]
  %v147 = vld [vmem:[%s0 + $0x428] sm:$0xff]
  %v148 = vld [vmem:[%s0 + $0x430] sm:$0xff]
  %v149 = vld [vmem:[%s0 + $0x438] sm:$0xff]
  %v150 = vld [vmem:[%s0 + $0x440] sm:$0xff]
  %v151 = vld [vmem:[%s0 + $0x448] sm:$0xff]
  %v152 = vld [vmem:[%s0 + $0x450] sm:$0xff]
  %v153 = vld [vmem:[%s0 + $0x458] sm:$0xff]
  %v154 = vld [vmem:[%s0 + $0x460] sm:$0xff]
  %v155 = vld [vmem:[%s0 + $0x468] sm:$0xff]
  %v156 = vld [vmem:[%s0 + $0x470] sm:$0xff]
  %v157 = vld [vmem:[%s0 + $0x478] sm:$0xff]
  %v158 = vld [vmem:[%s0 + $0x480] sm:$0xff]
  %v159 = vld [vmem:[%s0 + $0x488] sm:$0xff]
  %v160 = vld [vmem:[%s0 + $0x490] sm:$0xff]
  %v161 = vld [vmem:[%s0 + $0x498] sm:$0xff]
  %v162 = vld [vmem:[%s0 + $0x4a0] sm:$0xff]
  %v163 = vld [vmem:[%s0 + $0x4a8] sm:$0xff]
  %v164 = vld [vmem:[%s0 + $0x4b0] sm:$0xff]
  %v165 = vld [vmem:[%s0 + $0x4b8] sm:$0xff]
  %v166 = vld [vmem:[%s0 + $0x4c0] sm:$0xff]
  %v167 = vld [vmem:[%s0 + $0x4c8] sm:$0xff]
  %v168 = vld [vmem:[%s0 + $0x4d0] sm:$0xff]
  %v169 = vld [vmem:[%s0 + $0x4d8] sm:$0xff]
  %v170 = vld [vmem:[%s0 + $0x4e0] sm:$0xff]
  %v171 = vld [vmem:[%s0 + $0x4e8] sm:$0xff]
  %v172 = vld [vmem:[%s0 + $0x4f0] sm:$0xff]
  %v173 = vld [vmem:[%s0 + $0x4f8] sm:$0xff]
  %v174 = vld [vmem:[%s0 + $0x500] sm:$0xff]
  %v175 = vld [vmem:[%s0 + $0x508] sm:$0xff]
  %v176 = vld [vmem:[%s0 + $0x510] sm:$0xff]
  %v177 = vld [vmem:[%s0 + $0x518] sm:$0xff]
  %v178 = vld [vmem:[%s0 + $0x520] sm:$0xff]
  %v179 = vld [vmem:[%s0 + $0x528] sm:$0xff]
  %v180 = vld [vmem:[%s0 + $0x530] sm:$0xff]
  %v181 = vld [vmem:[%s0 + $0x538] sm:$0xff]
  %v182 = vld [vmem:[%s0 + $0x540] sm:$0xff]
  %v183 = vld [vmem:[%s0 + $0x548] sm:$0xff]
  %v184 = vld [vmem:[%s0 + $0x550] sm:$0xff]
  %v185 = vld [vmem:[%s0 + $0x558] sm:$0xff]
  %v186 = vld [vmem:[%s0 + $0x560] sm:$0xff]
  %v187 = vld [vmem:[%s0 + $0x568] sm:$0xff]
  %v188 = vld [vmem:[%s0 + $0x570] sm:$0xff]
  %v189 = vld [vmem:[%s0 + $0x578] sm:$0xff]
  %v190 = vld [vmem:[%s0 + $0x580] sm:$0xff]
  %v191 = vld [vmem:[%s0 + $0x588] sm:$0xff]
  %v192 = vld [vmem:[%s0 + $0x590] sm:$0xff]
  %v193 = vld [vmem:[%s0 + $0x598] sm:$0xff]
  %v194 = vld [vmem:[%s0 + $0x5a0] sm:$0xff]
  %v195 = vld [vmem:[%s0 + $0x5a8] sm:$0xff]
  %v196 = vld [vmem:[%s0 + $0x5b0] sm:$0xff]
  %v197 = vld [vmem:[%s0 + $0x5b8] sm:$0xff]
  %v198 = vld [vmem:[%s0 + $0x5c0] sm:$0xff]
  %v199 = vld [vmem:[%s0 + $0x5c8] sm:$0xff]
  %v200 = vld [vmem:[%s0 + $0x5d0] sm:$0xff]
  %v201 = vld [vmem:[%s0 + $0x5d8] sm:$0xff]
  %v202 = vld [vmem:[%s0 + $0x5e0] sm:$0xff]
  %v203 = vld [vmem:[%s0 + $0x5e8] sm:$0xff]
  %v204 = vld [vmem:[%s0 + $0x5f0] sm:$0xff]
  %v205 = vld [vmem:[%s0 + $0x5f8] sm:$0xff]
  %v206 = vld [vmem:[%s0 + $0x600] sm:$0xff]
  %v207 = vld [vmem:[%s0 + $0x608] sm:$0xff]
  %v208 = vld [vmem:[%s0 + $0x610] sm:$0xff]
  %v209 = vld [vmem:[%s0 + $0x618] sm:$0xff]
  %v210 = vld [vmem:[%s0 + $0x620] sm:$0xff]
  %v211 = vld [vmem:[%s0 + $0x628] sm:$0xff]
  %v212 = vld [vmem:[%s0 + $0x630] sm:$0xff]
  %v213 = vld [vmem:[%s0 + $0x638] sm:$0xff]
  %v214 = vld [vmem:[%s0 + $0x640] sm:$0xff]
  %v215 = vld [vmem:[%s0 + $0x648] sm:$0xff]
  %v216 = vld [vmem:[%s0 + $0x650] sm:$0xff]
  %v217 = vld [vmem:[%s0 + $0x658] sm:$0xff]
  %v218 = vld [vmem:[%s0 + $0x660] sm:$0xff]
  %v219 = vld [vmem:[%s0 + $0x668] sm:$0xff]
  %v220 = vld [vmem:[%s0 + $0x670] sm:$0xff]
  %v221 = vld [vmem:[%s0 + $0x678] sm:$0xff]
  %v222 = vld [vmem:[%s0 + $0x680] sm:$0xff]
  %v223 = vld [vmem:[%s0 + $0x688] sm:$0xff]
  %v224 = vld [vmem:[%s0 + $0x690] sm:$0xff]
  %v225 = vld [vmem:[%s0 + $0x698] sm:$0xff]
  %v226 = vld [vmem:[%s0 + $0x6a0] sm:$0xff]
  %v227 = vld [vmem:[%s0 + $0x6a8] sm:$0xff]
  %v228 = vld [vmem:[%s0 + $0x6b0] sm:$0xff]
  %v229 = vld [vmem:[%s0 + $0x6b8] sm:$0xff]
  %v230 = vld [vmem:[%s0 + $0x6c0] sm:$0xff]
  %v231 = vld [vmem:[%s0 + $0x6c8] sm:$0xff]
  %v232 = vld [vmem:[%s0 + $0x6d0] sm:$0xff]
  %v233 = vld [vmem:[%s0 + $0x6d8] sm:$0xff]
  %v234 = vld [vmem:[%s0 + $0x6e0] sm:$0xff]
  %v235 = vld [vmem:[%s0 + $0x6e8] sm:$0xff]
  %v236 = vld [vmem:[%s0 + $0x6f0] sm:$0xff]
  %v237 = vld [vmem:[%s0 + $0x6f8] sm:$0xff]
  %v238 = vld [vmem:[%s0 + $0x700] sm:$0xff]
  %v239 = vld [vmem:[%s0 + $0x708] sm:$0xff]
  %v240 = vld [vmem:[%s0 + $0x710] sm:$0xff]
  %v241 = vld [vmem:[%s0 + $0x718] sm:$0xff]
  %v242 = vld [vmem:[%s0 + $0x720] sm:$0xff]
  %v243 = vld [vmem:[%s0 + $0x728] sm:$0xff]
  %v244 = vld [vmem:[%s0 + $0x730] sm:$0xff]
  %v245 = vld [vmem:[%s0 + $0x738] sm:$0xff]
  %v246 = vld [vmem:[%s0 + $0x740] sm:$0xff]
  %v247 = vld [vmem:[%s0 + $0x748] sm:$0xff]
  %v248 = vld [vmem:[%s0 + $0x750] sm:$0xff]
  %v249 = vld [vmem:[%s0 + $0x758] sm:$0xff]
  %v250 = vld [vmem:[%s0 + $0x760] sm:$0xff]
  %v251 = vld [vmem:[%s0 + $0x768] sm:$0xff]
  %v252 = vld [vmem:[%s0 + $0x770] sm:$0xff]
  %v253 = vld [vmem:[%s0 + $0x778] sm:$0xff]
  %v254 = vld [vmem:[%s0 + $0x780] sm:$0xff]
  %v255 = vld [vmem:[%s0 + $0x788] sm:$0xff]
  %v256 = vld [vmem:[%s0 + $0x790] sm:$0xff]
  %v257 = vld [vmem:[%s0 + $0x798] sm:$0xff]
  %v258 = vld [vmem:[%s0 + $0x7a0] sm:$0xff]
  %v259 = vld [vmem:[%s0 + $0x7a8] sm:$0xff]
  %v260 = vld [vmem:[%s0 + $0x7b0] sm:$0xff]
  %v261 = vld [vmem:[%s0 + $0x7b8] sm:$0xff]
  %v262 = vld [vmem:[%s0 + $0x7c0] sm:$0xff]
  %v263 = vld [vmem:[%s0 + $0x7c8] sm:$0xff]
  %v264 = vld [vmem:[%s0 + $0x7d0] sm:$0xff]
  %v265 = vld [vmem:[%s0 + $0x7d8] sm:$0xff]
  %v266 = vld [vmem:[%s0 + $0x7e0] sm:$0xff]
  %v267 = vld [vmem:[%s0 + $0x7e8] sm:$0xff]
  %v268 = vld [vmem:[%s0 + $0x7f0] sm:$0xff]
  %v269 = vld [vmem:[%s0 + $0x7f8] sm:$0xff]
  %v270 = vld [vmem:[%s1] sm:$0xff]
  %v271 = vld [vmem:[%s1 + $0x8] sm:$0xff]
  %v272 = vld [vmem:[%s1 + $0x10] sm:$0xff]
  %v273 = vld [vmem:[%s1 + $0x18] sm:$0xff]
  %v274 = vld [vmem:[%s1 + $0x20] sm:$0xff]
  %v275 = vld [vmem:[%s1 + $0x28] sm:$0xff]
  %v276 = vld [vmem:[%s1 + $0x30] sm:$0xff]
  %v277 = vld [vmem:[%s1 + $0x38] sm:$0xff]
  %v278 = vld [vmem:[%s1 + $0x40] sm:$0xff]
  %v279 = vld [vmem:[%s1 + $0x48] sm:$0xff]
  %v280 = vld [vmem:[%s1 + $0x50] sm:$0xff]
  %v281 = vld [vmem:[%s1 + $0x58] sm:$0xff]
  %v282 = vld [vmem:[%s1 + $0x60] sm:$0xff]
  %v283 = vld [vmem:[%s1 + $0x68] sm:$0xff]
  %v284 = vld [vmem:[%s1 + $0x70] sm:$0xff]
  %v285 = vld [vmem:[%s1 + $0x78] sm:$0xff]
  %v286 = vld [vmem:[%s1 + $0x80] sm:$0xff]
  %v287 = vld [vmem:[%s1 + $0x88] sm:$0xff]
  %v288 = vld [vmem:[%s1 + $0x90] sm:$0xff]
  %vm289 = vcmask 195584
  %v291 = vsel %vm289, %v15, 0
  %v294 = vsel %vm289, %v17, 0
  %v297 = vsel %vm289, %v19, 0
  %v300 = vsel %vm289, %v21, 0
  %v303 = vsel %vm289, %v23, 0
  %v306 = vsel %vm289, %v25, 0
  %v309 = vsel %vm289, %v27, 0
  %v312 = vsel %vm289, %v29, 0
  %v315 = vsel %vm289, %v31, 0
  %v318 = vsel %vm289, %v33, 0
  %v321 = vsel %vm289, %v35, 0
  %v324 = vsel %vm289, %v37, 0
  %v327 = vsel %vm289, %v39, 0
  %v330 = vsel %vm289, %v41, 0
  %v333 = vsel %vm289, %v43, 0
  %v336 = vsel %vm289, %v45, 0
  %v339 = vsel %vm289, %v47, 0
  %v342 = vsel %vm289, %v49, 0
  %v345 = vsel %vm289, %v51, 0
  %v348 = vsel %vm289, %v53, 0
  %v351 = vsel %vm289, %v55, 0
  %v354 = vsel %vm289, %v57, 0
  %v357 = vsel %vm289, %v59, 0
  %v360 = vsel %vm289, %v61, 0
  %v363 = vsel %vm289, %v63, 0
  %v366 = vsel %vm289, %v65, 0
  %v369 = vsel %vm289, %v67, 0
  %v372 = vsel %vm289, %v69, 0
  %v375 = vsel %vm289, %v71, 0
  %v378 = vsel %vm289, %v73, 0
  %v381 = vsel %vm289, %v75, 0
  %v384 = vsel %vm289, %v77, 0
  %v387 = vsel %vm289, %v79, 0
  %v390 = vsel %vm289, %v81, 0
  %v393 = vsel %vm289, %v83, 0
  %v396 = vsel %vm289, %v85, 0
  %v399 = vsel %vm289, %v87, 0
  %v402 = vsel %vm289, %v89, 0
  %v405 = vsel %vm289, %v91, 0
  %v408 = vsel %vm289, %v93, 0
  %v411 = vsel %vm289, %v95, 0
  %v414 = vsel %vm289, %v97, 0
  %v417 = vsel %vm289, %v99, 0
  %v420 = vsel %vm289, %v101, 0
  %v423 = vsel %vm289, %v103, 0
  %v426 = vsel %vm289, %v105, 0
  %v429 = vsel %vm289, %v107, 0
  %v432 = vsel %vm289, %v109, 0
  %v435 = vsel %vm289, %v111, 0
  %v438 = vsel %vm289, %v113, 0
  %v441 = vsel %vm289, %v115, 0
  %v444 = vsel %vm289, %v117, 0
  %v447 = vsel %vm289, %v119, 0
  %v450 = vsel %vm289, %v121, 0
  %v453 = vsel %vm289, %v123, 0
  %v456 = vsel %vm289, %v125, 0
  %v459 = vsel %vm289, %v127, 0
  %v462 = vsel %vm289, %v129, 0
  %v465 = vsel %vm289, %v131, 0
  %v468 = vsel %vm289, %v133, 0
  %v471 = vsel %vm289, %v135, 0
  %v474 = vsel %vm289, %v137, 0
  %v477 = vsel %vm289, %v139, 0
  %v480 = vsel %vm289, %v141, 0
  %v483 = vsel %vm289, %v143, 0
  %v486 = vsel %vm289, %v145, 0
  %v489 = vsel %vm289, %v147, 0
  %v492 = vsel %vm289, %v149, 0
  %v495 = vsel %vm289, %v151, 0
  %v498 = vsel %vm289, %v153, 0
  %v501 = vsel %vm289, %v155, 0
  %v504 = vsel %vm289, %v157, 0
  %v507 = vsel %vm289, %v159, 0
  %v510 = vsel %vm289, %v161, 0
  %v513 = vsel %vm289, %v163, 0
  %v516 = vsel %vm289, %v165, 0
  %v519 = vsel %vm289, %v167, 0
  %v522 = vsel %vm289, %v169, 0
  %v525 = vsel %vm289, %v171, 0
  %v528 = vsel %vm289, %v173, 0
  %v531 = vsel %vm289, %v175, 0
  %v534 = vsel %vm289, %v177, 0
  %v537 = vsel %vm289, %v179, 0
  %v540 = vsel %vm289, %v181, 0
  %v543 = vsel %vm289, %v183, 0
  %v546 = vsel %vm289, %v185, 0
  %v549 = vsel %vm289, %v187, 0
  %v552 = vsel %vm289, %v189, 0
  %v555 = vsel %vm289, %v191, 0
  %v558 = vsel %vm289, %v193, 0
  %v561 = vsel %vm289, %v195, 0
  %v564 = vsel %vm289, %v197, 0
  %v567 = vsel %vm289, %v199, 0
  %v570 = vsel %vm289, %v201, 0
  %v573 = vsel %vm289, %v203, 0
  %v576 = vsel %vm289, %v205, 0
  %v579 = vsel %vm289, %v207, 0
  %v582 = vsel %vm289, %v209, 0
  %v585 = vsel %vm289, %v211, 0
  %v588 = vsel %vm289, %v213, 0
  %v591 = vsel %vm289, %v215, 0
  %v594 = vsel %vm289, %v217, 0
  %v597 = vsel %vm289, %v219, 0
  %v600 = vsel %vm289, %v221, 0
  %v603 = vsel %vm289, %v223, 0
  %v606 = vsel %vm289, %v225, 0
  %v609 = vsel %vm289, %v227, 0
  %v612 = vsel %vm289, %v229, 0
  %v615 = vsel %vm289, %v231, 0
  %v618 = vsel %vm289, %v233, 0
  %v621 = vsel %vm289, %v235, 0
  %v624 = vsel %vm289, %v237, 0
  %v627 = vsel %vm289, %v239, 0
  %v630 = vsel %vm289, %v241, 0
  %v633 = vsel %vm289, %v243, 0
  %v636 = vsel %vm289, %v245, 0
  %v639 = vsel %vm289, %v247, 0
  %v642 = vsel %vm289, %v249, 0
  %v645 = vsel %vm289, %v251, 0
  %v648 = vsel %vm289, %v253, 0
  %v651 = vsel %vm289, %v255, 0
  %v654 = vsel %vm289, %v257, 0
  %v657 = vsel %vm289, %v259, 0
  %v660 = vsel %vm289, %v261, 0
  %v663 = vsel %vm289, %v263, 0
  %v666 = vsel %vm289, %v265, 0
  %v669 = vsel %vm289, %v267, 0
  %v672 = vsel %vm289, %v269, 0
  %674 = vmatpush.msra.mxu0 %v285
  %675 = vmatpush.msra.mxu0 %v284
  %676 = vmatpush.msra.mxu0 %v283
  %677 = vmatpush.msra.mxu0 %v282
  %678 = vmatpush.msra.mxu0 %v281
  %679 = vmatpush.msra.mxu0 %v280
  %680 = vmatpush.msra.mxu0 %v279
  %681 = vmatpush.msra.mxu0 %v278
  %682 = vmatpush.msra.mxu0 %v277
  %683 = vmatpush.msra.mxu0 %v276
  %684 = vmatpush.msra.mxu0 %v275
  %685 = vmatpush.msra.mxu0 %v274
  %686 = vmatpush.msra.mxu0 %v273
  %687 = vmatpush.msra.mxu0 %v272
  %688 = vmatpush.msra.mxu0 %v271
  %689 = vmatpush.msra.mxu0 %v270
  %690 = vmatmul.f32.gmra.mxu0 %v14
  %v691 = vpop.f32.mrf.mxu0
  %v692 = vadd.f32 0.0, %v691
  %693 = vmatmul.f32.gmra.mxu0 %v16
  %v694 = vpop.f32.mrf.mxu0
  %v695 = vadd.f32 0.0, %v694
  %696 = vmatmul.f32.gmra.mxu0 %v18
  %v697 = vpop.f32.mrf.mxu0
  %v698 = vadd.f32 0.0, %v697
  %699 = vmatmul.f32.gmra.mxu0 %v20
  %v700 = vpop.f32.mrf.mxu0
  %v701 = vadd.f32 0.0, %v700
  %702 = vmatmul.f32.gmra.mxu0 %v22
  %v703 = vpop.f32.mrf.mxu0
  %v704 = vadd.f32 0.0, %v703
  %705 = vmatmul.f32.gmra.mxu0 %v24
  %v706 = vpop.f32.mrf.mxu0
  %v707 = vadd.f32 0.0, %v706
  %708 = vmatmul.f32.gmra.mxu0 %v26
  %v709 = vpop.f32.mrf.mxu0
  %v710 = vadd.f32 0.0, %v709
  %711 = vmatmul.f32.gmra.mxu0 %v28
  %v712 = vpop.f32.mrf.mxu0
  %v713 = vadd.f32 0.0, %v712
  %714 = vmatmul.f32.gmra.mxu0 %v30
  %v715 = vpop.f32.mrf.mxu0
  %v716 = vadd.f32 0.0, %v715
  %717 = vmatmul.f32.gmra.mxu0 %v32
  %v718 = vpop.f32.mrf.mxu0
  %v719 = vadd.f32 0.0, %v718
  %720 = vmatmul.f32.gmra.mxu0 %v34
  %v721 = vpop.f32.mrf.mxu0
  %v722 = vadd.f32 0.0, %v721
  %723 = vmatmul.f32.gmra.mxu0 %v36
  %v724 = vpop.f32.mrf.mxu0
  %v725 = vadd.f32 0.0, %v724
  %726 = vmatmul.f32.gmra.mxu0 %v38
  %v727 = vpop.f32.mrf.mxu0
  %v728 = vadd.f32 0.0, %v727
  %729 = vmatmul.f32.gmra.mxu0 %v40
  %v730 = vpop.f32.mrf.mxu0
  %v731 = vadd.f32 0.0, %v730
  %732 = vmatmul.f32.gmra.mxu0 %v42
  %v733 = vpop.f32.mrf.mxu0
  %v734 = vadd.f32 0.0, %v733
  %735 = vmatmul.f32.gmra.mxu0 %v44
  %v736 = vpop.f32.mrf.mxu0
  %v737 = vadd.f32 0.0, %v736
  %738 = vmatmul.f32.gmra.mxu0 %v46
  %v739 = vpop.f32.mrf.mxu0
  %v740 = vadd.f32 0.0, %v739
  %741 = vmatmul.f32.gmra.mxu0 %v48
  %v742 = vpop.f32.mrf.mxu0
  %v743 = vadd.f32 0.0, %v742
  %744 = vmatmul.f32.gmra.mxu0 %v50
  %v745 = vpop.f32.mrf.mxu0
  %v746 = vadd.f32 0.0, %v745
  %747 = vmatmul.f32.gmra.mxu0 %v52
  %v748 = vpop.f32.mrf.mxu0
  %v749 = vadd.f32 0.0, %v748
  %750 = vmatmul.f32.gmra.mxu0 %v54
  %v751 = vpop.f32.mrf.mxu0
  %v752 = vadd.f32 0.0, %v751
  %753 = vmatmul.f32.gmra.mxu0 %v56
  %v754 = vpop.f32.mrf.mxu0
  %v755 = vadd.f32 0.0, %v754
  %756 = vmatmul.f32.gmra.mxu0 %v58
  %v757 = vpop.f32.mrf.mxu0
  %v758 = vadd.f32 0.0, %v757
  %759 = vmatmul.f32.gmra.mxu0 %v60
  %v760 = vpop.f32.mrf.mxu0
  %v761 = vadd.f32 0.0, %v760
  %762 = vmatmul.f32.gmra.mxu0 %v62
  %v763 = vpop.f32.mrf.mxu0
  %v764 = vadd.f32 0.0, %v763
  %765 = vmatmul.f32.gmra.mxu0 %v64
  %v766 = vpop.f32.mrf.mxu0
  %v767 = vadd.f32 0.0, %v766
  %768 = vmatmul.f32.gmra.mxu0 %v66
  %v769 = vpop.f32.mrf.mxu0
  %v770 = vadd.f32 0.0, %v769
  %771 = vmatmul.f32.gmra.mxu0 %v68
  %v772 = vpop.f32.mrf.mxu0
  %v773 = vadd.f32 0.0, %v772
  %774 = vmatmul.f32.gmra.mxu0 %v70
  %v775 = vpop.f32.mrf.mxu0
  %v776 = vadd.f32 0.0, %v775
  %777 = vmatmul.f32.gmra.mxu0 %v72
  %v778 = vpop.f32.mrf.mxu0
  %v779 = vadd.f32 0.0, %v778
  %780 = vmatmul.f32.gmra.mxu0 %v74
  %v781 = vpop.f32.mrf.mxu0
  %v782 = vadd.f32 0.0, %v781
  %783 = vmatmul.f32.gmra.mxu0 %v76
  %v784 = vpop.f32.mrf.mxu0
  %v785 = vadd.f32 0.0, %v784
  %786 = vmatmul.f32.gmra.mxu0 %v78
  %v787 = vpop.f32.mrf.mxu0
  %v788 = vadd.f32 0.0, %v787
  %789 = vmatmul.f32.gmra.mxu0 %v80
  %v790 = vpop.f32.mrf.mxu0
  %v791 = vadd.f32 0.0, %v790
  %792 = vmatmul.f32.gmra.mxu0 %v82
  %v793 = vpop.f32.mrf.mxu0
  %v794 = vadd.f32 0.0, %v793
  %795 = vmatmul.f32.gmra.mxu0 %v84
  %v796 = vpop.f32.mrf.mxu0
  %v797 = vadd.f32 0.0, %v796
  %798 = vmatmul.f32.gmra.mxu0 %v86
  %v799 = vpop.f32.mrf.mxu0
  %v800 = vadd.f32 0.0, %v799
  %801 = vmatmul.f32.gmra.mxu0 %v88
  %v802 = vpop.f32.mrf.mxu0
  %v803 = vadd.f32 0.0, %v802
  %804 = vmatmul.f32.gmra.mxu0 %v90
  %v805 = vpop.f32.mrf.mxu0
  %v806 = vadd.f32 0.0, %v805
  %807 = vmatmul.f32.gmra.mxu0 %v92
  %v808 = vpop.f32.mrf.mxu0
  %v809 = vadd.f32 0.0, %v808
  %810 = vmatmul.f32.gmra.mxu0 %v94
  %v811 = vpop.f32.mrf.mxu0
  %v812 = vadd.f32 0.0, %v811
  %813 = vmatmul.f32.gmra.mxu0 %v96
  %v814 = vpop.f32.mrf.mxu0
  %v815 = vadd.f32 0.0, %v814
  %816 = vmatmul.f32.gmra.mxu0 %v98
  %v817 = vpop.f32.mrf.mxu0
  %v818 = vadd.f32 0.0, %v817
  %819 = vmatmul.f32.gmra.mxu0 %v100
  %v820 = vpop.f32.mrf.mxu0
  %v821 = vadd.f32 0.0, %v820
  %822 = vmatmul.f32.gmra.mxu0 %v102
  %v823 = vpop.f32.mrf.mxu0
  %v824 = vadd.f32 0.0, %v823
  %825 = vmatmul.f32.gmra.mxu0 %v104
  %v826 = vpop.f32.mrf.mxu0
  %v827 = vadd.f32 0.0, %v826
  %828 = vmatmul.f32.gmra.mxu0 %v106
  %v829 = vpop.f32.mrf.mxu0
  %v830 = vadd.f32 0.0, %v829
  %831 = vmatmul.f32.gmra.mxu0 %v108
  %v832 = vpop.f32.mrf.mxu0
  %v833 = vadd.f32 0.0, %v832
  %834 = vmatmul.f32.gmra.mxu0 %v110
  %v835 = vpop.f32.mrf.mxu0
  %v836 = vadd.f32 0.0, %v835
  %837 = vmatmul.f32.gmra.mxu0 %v112
  %v838 = vpop.f32.mrf.mxu0
  %v839 = vadd.f32 0.0, %v838
  %840 = vmatmul.f32.gmra.mxu0 %v114
  %v841 = vpop.f32.mrf.mxu0
  %v842 = vadd.f32 0.0, %v841
  %843 = vmatmul.f32.gmra.mxu0 %v116
  %v844 = vpop.f32.mrf.mxu0
  %v845 = vadd.f32 0.0, %v844
  %846 = vmatmul.f32.gmra.mxu0 %v118
  %v847 = vpop.f32.mrf.mxu0
  %v848 = vadd.f32 0.0, %v847
  %849 = vmatmul.f32.gmra.mxu0 %v120
  %v850 = vpop.f32.mrf.mxu0
  %v851 = vadd.f32 0.0, %v850
  %852 = vmatmul.f32.gmra.mxu0 %v122
  %v853 = vpop.f32.mrf.mxu0
  %v854 = vadd.f32 0.0, %v853
  %855 = vmatmul.f32.gmra.mxu0 %v124
  %v856 = vpop.f32.mrf.mxu0
  %v857 = vadd.f32 0.0, %v856
  %858 = vmatmul.f32.gmra.mxu0 %v126
  %v859 = vpop.f32.mrf.mxu0
  %v860 = vadd.f32 0.0, %v859
  %861 = vmatmul.f32.gmra.mxu0 %v128
  %v862 = vpop.f32.mrf.mxu0
  %v863 = vadd.f32 0.0, %v862
  %864 = vmatmul.f32.gmra.mxu0 %v130
  %v865 = vpop.f32.mrf.mxu0
  %v866 = vadd.f32 0.0, %v865
  %867 = vmatmul.f32.gmra.mxu0 %v132
  %v868 = vpop.f32.mrf.mxu0
  %v869 = vadd.f32 0.0, %v868
  %870 = vmatmul.f32.gmra.mxu0 %v134
  %v871 = vpop.f32.mrf.mxu0
  %v872 = vadd.f32 0.0, %v871
  %873 = vmatmul.f32.gmra.mxu0 %v136
  %v874 = vpop.f32.mrf.mxu0
  %v875 = vadd.f32 0.0, %v874
  %876 = vmatmul.f32.gmra.mxu0 %v138
  %v877 = vpop.f32.mrf.mxu0
  %v878 = vadd.f32 0.0, %v877
  %879 = vmatmul.f32.gmra.mxu0 %v140
  %v880 = vpop.f32.mrf.mxu0
  %v881 = vadd.f32 0.0, %v880
  %882 = vmatmul.f32.gmra.mxu0 %v142
  %v883 = vpop.f32.mrf.mxu0
  %v884 = vadd.f32 0.0, %v883
  %885 = vmatmul.f32.gmra.mxu0 %v144
  %v886 = vpop.f32.mrf.mxu0
  %v887 = vadd.f32 0.0, %v886
  %888 = vmatmul.f32.gmra.mxu0 %v146
  %v889 = vpop.f32.mrf.mxu0
  %v890 = vadd.f32 0.0, %v889
  %891 = vmatmul.f32.gmra.mxu0 %v148
  %v892 = vpop.f32.mrf.mxu0
  %v893 = vadd.f32 0.0, %v892
  %894 = vmatmul.f32.gmra.mxu0 %v150
  %v895 = vpop.f32.mrf.mxu0
  %v896 = vadd.f32 0.0, %v895
  %897 = vmatmul.f32.gmra.mxu0 %v152
  %v898 = vpop.f32.mrf.mxu0
  %v899 = vadd.f32 0.0, %v898
  %900 = vmatmul.f32.gmra.mxu0 %v154
  %v901 = vpop.f32.mrf.mxu0
  %v902 = vadd.f32 0.0, %v901
  %903 = vmatmul.f32.gmra.mxu0 %v156
  %v904 = vpop.f32.mrf.mxu0
  %v905 = vadd.f32 0.0, %v904
  %906 = vmatmul.f32.gmra.mxu0 %v158
  %v907 = vpop.f32.mrf.mxu0
  %v908 = vadd.f32 0.0, %v907
  %909 = vmatmul.f32.gmra.mxu0 %v160
  %v910 = vpop.f32.mrf.mxu0
  %v911 = vadd.f32 0.0, %v910
  %912 = vmatmul.f32.gmra.mxu0 %v162
  %v913 = vpop.f32.mrf.mxu0
  %v914 = vadd.f32 0.0, %v913
  %915 = vmatmul.f32.gmra.mxu0 %v164
  %v916 = vpop.f32.mrf.mxu0
  %v917 = vadd.f32 0.0, %v916
  %918 = vmatmul.f32.gmra.mxu0 %v166
  %v919 = vpop.f32.mrf.mxu0
  %v920 = vadd.f32 0.0, %v919
  %921 = vmatmul.f32.gmra.mxu0 %v168
  %v922 = vpop.f32.mrf.mxu0
  %v923 = vadd.f32 0.0, %v922
  %924 = vmatmul.f32.gmra.mxu0 %v170
  %v925 = vpop.f32.mrf.mxu0
  %v926 = vadd.f32 0.0, %v925
  %927 = vmatmul.f32.gmra.mxu0 %v172
  %v928 = vpop.f32.mrf.mxu0
  %v929 = vadd.f32 0.0, %v928
  %930 = vmatmul.f32.gmra.mxu0 %v174
  %v931 = vpop.f32.mrf.mxu0
  %v932 = vadd.f32 0.0, %v931
  %933 = vmatmul.f32.gmra.mxu0 %v176
  %v934 = vpop.f32.mrf.mxu0
  %v935 = vadd.f32 0.0, %v934
  %936 = vmatmul.f32.gmra.mxu0 %v178
  %v937 = vpop.f32.mrf.mxu0
  %v938 = vadd.f32 0.0, %v937
  %939 = vmatmul.f32.gmra.mxu0 %v180
  %v940 = vpop.f32.mrf.mxu0
  %v941 = vadd.f32 0.0, %v940
  %942 = vmatmul.f32.gmra.mxu0 %v182
  %v943 = vpop.f32.mrf.mxu0
  %v944 = vadd.f32 0.0, %v943
  %945 = vmatmul.f32.gmra.mxu0 %v184
  %v946 = vpop.f32.mrf.mxu0
  %v947 = vadd.f32 0.0, %v946
  %948 = vmatmul.f32.gmra.mxu0 %v186
  %v949 = vpop.f32.mrf.mxu0
  %v950 = vadd.f32 0.0, %v949
  %951 = vmatmul.f32.gmra.mxu0 %v188
  %v952 = vpop.f32.mrf.mxu0
  %v953 = vadd.f32 0.0, %v952
  %954 = vmatmul.f32.gmra.mxu0 %v190
  %v955 = vpop.f32.mrf.mxu0
  %v956 = vadd.f32 0.0, %v955
  %957 = vmatmul.f32.gmra.mxu0 %v192
  %v958 = vpop.f32.mrf.mxu0
  %v959 = vadd.f32 0.0, %v958
  %960 = vmatmul.f32.gmra.mxu0 %v194
  %v961 = vpop.f32.mrf.mxu0
  %v962 = vadd.f32 0.0, %v961
  %963 = vmatmul.f32.gmra.mxu0 %v196
  %v964 = vpop.f32.mrf.mxu0
  %v965 = vadd.f32 0.0, %v964
  %966 = vmatmul.f32.gmra.mxu0 %v198
  %v967 = vpop.f32.mrf.mxu0
  %v968 = vadd.f32 0.0, %v967
  %969 = vmatmul.f32.gmra.mxu0 %v200
  %v970 = vpop.f32.mrf.mxu0
  %v971 = vadd.f32 0.0, %v970
  %972 = vmatmul.f32.gmra.mxu0 %v202
  %v973 = vpop.f32.mrf.mxu0
  %v974 = vadd.f32 0.0, %v973
  %975 = vmatmul.f32.gmra.mxu0 %v204
  %v976 = vpop.f32.mrf.mxu0
  %v977 = vadd.f32 0.0, %v976
  %978 = vmatmul.f32.gmra.mxu0 %v206
  %v979 = vpop.f32.mrf.mxu0
  %v980 = vadd.f32 0.0, %v979
  %981 = vmatmul.f32.gmra.mxu0 %v208
  %v982 = vpop.f32.mrf.mxu0
  %v983 = vadd.f32 0.0, %v982
  %984 = vmatmul.f32.gmra.mxu0 %v210
  %v985 = vpop.f32.mrf.mxu0
  %v986 = vadd.f32 0.0, %v985
  %987 = vmatmul.f32.gmra.mxu0 %v212
  %v988 = vpop.f32.mrf.mxu0
  %v989 = vadd.f32 0.0, %v988
  %990 = vmatmul.f32.gmra.mxu0 %v214
  %v991 = vpop.f32.mrf.mxu0
  %v992 = vadd.f32 0.0, %v991
  %993 = vmatmul.f32.gmra.mxu0 %v216
  %v994 = vpop.f32.mrf.mxu0
  %v995 = vadd.f32 0.0, %v994
  %996 = vmatmul.f32.gmra.mxu0 %v218
  %v997 = vpop.f32.mrf.mxu0
  %v998 = vadd.f32 0.0, %v997
  %999 = vmatmul.f32.gmra.mxu0 %v220
  %v1000 = vpop.f32.mrf.mxu0
  %v1001 = vadd.f32 0.0, %v1000
  %1002 = vmatmul.f32.gmra.mxu0 %v222
  %v1003 = vpop.f32.mrf.mxu0
  %v1004 = vadd.f32 0.0, %v1003
  %1005 = vmatmul.f32.gmra.mxu0 %v224
  %v1006 = vpop.f32.mrf.mxu0
  %v1007 = vadd.f32 0.0, %v1006
  %1008 = vmatmul.f32.gmra.mxu0 %v226
  %v1009 = vpop.f32.mrf.mxu0
  %v1010 = vadd.f32 0.0, %v1009
  %1011 = vmatmul.f32.gmra.mxu0 %v228
  %v1012 = vpop.f32.mrf.mxu0
  %v1013 = vadd.f32 0.0, %v1012
  %1014 = vmatmul.f32.gmra.mxu0 %v230
  %v1015 = vpop.f32.mrf.mxu0
  %v1016 = vadd.f32 0.0, %v1015
  %1017 = vmatmul.f32.gmra.mxu0 %v232
  %v1018 = vpop.f32.mrf.mxu0
  %v1019 = vadd.f32 0.0, %v1018
  %1020 = vmatmul.f32.gmra.mxu0 %v234
  %v1021 = vpop.f32.mrf.mxu0
  %v1022 = vadd.f32 0.0, %v1021
  %1023 = vmatmul.f32.gmra.mxu0 %v236
  %v1024 = vpop.f32.mrf.mxu0
  %v1025 = vadd.f32 0.0, %v1024
  %1026 = vmatmul.f32.gmra.mxu0 %v238
  %v1027 = vpop.f32.mrf.mxu0
  %v1028 = vadd.f32 0.0, %v1027
  %1029 = vmatmul.f32.gmra.mxu0 %v240
  %v1030 = vpop.f32.mrf.mxu0
  %v1031 = vadd.f32 0.0, %v1030
  %1032 = vmatmul.f32.gmra.mxu0 %v242
  %v1033 = vpop.f32.mrf.mxu0
  %v1034 = vadd.f32 0.0, %v1033
  %1035 = vmatmul.f32.gmra.mxu0 %v244
  %v1036 = vpop.f32.mrf.mxu0
  %v1037 = vadd.f32 0.0, %v1036
  %1038 = vmatmul.f32.gmra.mxu0 %v246
  %v1039 = vpop.f32.mrf.mxu0
  %v1040 = vadd.f32 0.0, %v1039
  %1041 = vmatmul.f32.gmra.mxu0 %v248
  %v1042 = vpop.f32.mrf.mxu0
  %v1043 = vadd.f32 0.0, %v1042
  %1044 = vmatmul.f32.gmra.mxu0 %v250
  %v1045 = vpop.f32.mrf.mxu0
  %v1046 = vadd.f32 0.0, %v1045
  %1047 = vmatmul.f32.gmra.mxu0 %v252
  %v1048 = vpop.f32.mrf.mxu0
  %v1049 = vadd.f32 0.0, %v1048
  %1050 = vmatmul.f32.gmra.mxu0 %v254
  %v1051 = vpop.f32.mrf.mxu0
  %v1052 = vadd.f32 0.0, %v1051
  %1053 = vmatmul.f32.gmra.mxu0 %v256
  %v1054 = vpop.f32.mrf.mxu0
  %v1055 = vadd.f32 0.0, %v1054
  %1056 = vmatmul.f32.gmra.mxu0 %v258
  %v1057 = vpop.f32.mrf.mxu0
  %v1058 = vadd.f32 0.0, %v1057
  %1059 = vmatmul.f32.gmra.mxu0 %v260
  %v1060 = vpop.f32.mrf.mxu0
  %v1061 = vadd.f32 0.0, %v1060
  %1062 = vmatmul.f32.gmra.mxu0 %v262
  %v1063 = vpop.f32.mrf.mxu0
  %v1064 = vadd.f32 0.0, %v1063
  %1065 = vmatmul.f32.gmra.mxu0 %v264
  %v1066 = vpop.f32.mrf.mxu0
  %v1067 = vadd.f32 0.0, %v1066
  %1068 = vmatmul.f32.gmra.mxu0 %v266
  %v1069 = vpop.f32.mrf.mxu0
  %v1070 = vadd.f32 0.0, %v1069
  %1071 = vmatmul.f32.gmra.mxu0 %v268
  %v1072 = vpop.f32.mrf.mxu0
  %v1073 = vadd.f32 0.0, %v1072
  %1074 = vdwg.mxu0
  %1075 = vmatpush.msra.mxu0 0.0
  %1076 = vmatpush.msra.mxu0 0.0
  %1077 = vmatpush.msra.mxu0 0.0
  %1078 = vmatpush.msra.mxu0 0.0
  %1079 = vmatpush.msra.mxu0 0.0
  %1080 = vmatpush.msra.mxu0 0.0
  %1081 = vmatpush.msra.mxu0 0.0
  %1082 = vmatpush.msra.mxu0 0.0
  %1083 = vmatpush.msra.mxu0 0.0
  %1084 = vmatpush.msra.mxu0 0.0
  %1085 = vmatpush.msra.mxu0 0.0
  %1086 = vmatpush.msra.mxu0 0.0
  %1087 = vmatpush.msra.mxu0 0.0
  %1088 = vmatpush.msra.mxu0 %v288
  %1089 = vmatpush.msra.mxu0 %v287
  %1090 = vmatpush.msra.mxu0 %v286
  %1091 = vmatmul.f32.gmra.mxu0 %v291
  %v1092 = vpop.f32.mrf.mxu0
  %v1093 = vadd.f32 %v692, %v1092
  %1094 = vmatmul.f32.gmra.mxu0 %v294
  %v1095 = vpop.f32.mrf.mxu0
  %v1096 = vadd.f32 %v695, %v1095
  %1097 = vmatmul.f32.gmra.mxu0 %v297
  %v1098 = vpop.f32.mrf.mxu0
  %v1099 = vadd.f32 %v698, %v1098
  %1100 = vmatmul.f32.gmra.mxu0 %v300
  %v1101 = vpop.f32.mrf.mxu0
  %v1102 = vadd.f32 %v701, %v1101
  %1103 = vmatmul.f32.gmra.mxu0 %v303
  %v1104 = vpop.f32.mrf.mxu0
  %v1105 = vadd.f32 %v704, %v1104
  %1106 = vmatmul.f32.gmra.mxu0 %v306
  %v1107 = vpop.f32.mrf.mxu0
  %v1108 = vadd.f32 %v707, %v1107
  %1109 = vmatmul.f32.gmra.mxu0 %v309
  %v1110 = vpop.f32.mrf.mxu0
  %v1111 = vadd.f32 %v710, %v1110
  %1112 = vmatmul.f32.gmra.mxu0 %v312
  %v1113 = vpop.f32.mrf.mxu0
  %v1114 = vadd.f32 %v713, %v1113
  %1115 = vmatmul.f32.gmra.mxu0 %v315
  %v1116 = vpop.f32.mrf.mxu0
  %v1117 = vadd.f32 %v716, %v1116
  %1118 = vmatmul.f32.gmra.mxu0 %v318
  %v1119 = vpop.f32.mrf.mxu0
  %v1120 = vadd.f32 %v719, %v1119
  %1121 = vmatmul.f32.gmra.mxu0 %v321
  %v1122 = vpop.f32.mrf.mxu0
  %v1123 = vadd.f32 %v722, %v1122
  %1124 = vmatmul.f32.gmra.mxu0 %v324
  %v1125 = vpop.f32.mrf.mxu0
  %v1126 = vadd.f32 %v725, %v1125
  %1127 = vmatmul.f32.gmra.mxu0 %v327
  %v1128 = vpop.f32.mrf.mxu0
  %v1129 = vadd.f32 %v728, %v1128
  %1130 = vmatmul.f32.gmra.mxu0 %v330
  %v1131 = vpop.f32.mrf.mxu0
  %v1132 = vadd.f32 %v731, %v1131
  %1133 = vmatmul.f32.gmra.mxu0 %v333
  %v1134 = vpop.f32.mrf.mxu0
  %v1135 = vadd.f32 %v734, %v1134
  %1136 = vmatmul.f32.gmra.mxu0 %v336
  %v1137 = vpop.f32.mrf.mxu0
  %v1138 = vadd.f32 %v737, %v1137
  %1139 = vmatmul.f32.gmra.mxu0 %v339
  %v1140 = vpop.f32.mrf.mxu0
  %v1141 = vadd.f32 %v740, %v1140
  %1142 = vmatmul.f32.gmra.mxu0 %v342
  %v1143 = vpop.f32.mrf.mxu0
  %v1144 = vadd.f32 %v743, %v1143
  %1145 = vmatmul.f32.gmra.mxu0 %v345
  %v1146 = vpop.f32.mrf.mxu0
  %v1147 = vadd.f32 %v746, %v1146
  %1148 = vmatmul.f32.gmra.mxu0 %v348
  %v1149 = vpop.f32.mrf.mxu0
  %v1150 = vadd.f32 %v749, %v1149
  %1151 = vmatmul.f32.gmra.mxu0 %v351
  %v1152 = vpop.f32.mrf.mxu0
  %v1153 = vadd.f32 %v752, %v1152
  %1154 = vmatmul.f32.gmra.mxu0 %v354
  %v1155 = vpop.f32.mrf.mxu0
  %v1156 = vadd.f32 %v755, %v1155
  %1157 = vmatmul.f32.gmra.mxu0 %v357
  %v1158 = vpop.f32.mrf.mxu0
  %v1159 = vadd.f32 %v758, %v1158
  %1160 = vmatmul.f32.gmra.mxu0 %v360
  %v1161 = vpop.f32.mrf.mxu0
  %v1162 = vadd.f32 %v761, %v1161
  %1163 = vmatmul.f32.gmra.mxu0 %v363
  %v1164 = vpop.f32.mrf.mxu0
  %v1165 = vadd.f32 %v764, %v1164
  %1166 = vmatmul.f32.gmra.mxu0 %v366
  %v1167 = vpop.f32.mrf.mxu0
  %v1168 = vadd.f32 %v767, %v1167
  %1169 = vmatmul.f32.gmra.mxu0 %v369
  %v1170 = vpop.f32.mrf.mxu0
  %v1171 = vadd.f32 %v770, %v1170
  %1172 = vmatmul.f32.gmra.mxu0 %v372
  %v1173 = vpop.f32.mrf.mxu0
  %v1174 = vadd.f32 %v773, %v1173
  %1175 = vmatmul.f32.gmra.mxu0 %v375
  %v1176 = vpop.f32.mrf.mxu0
  %v1177 = vadd.f32 %v776, %v1176
  %1178 = vmatmul.f32.gmra.mxu0 %v378
  %v1179 = vpop.f32.mrf.mxu0
  %v1180 = vadd.f32 %v779, %v1179
  %1181 = vmatmul.f32.gmra.mxu0 %v381
  %v1182 = vpop.f32.mrf.mxu0
  %v1183 = vadd.f32 %v782, %v1182
  %1184 = vmatmul.f32.gmra.mxu0 %v384
  %v1185 = vpop.f32.mrf.mxu0
  %v1186 = vadd.f32 %v785, %v1185
  %1187 = vmatmul.f32.gmra.mxu0 %v387
  %v1188 = vpop.f32.mrf.mxu0
  %v1189 = vadd.f32 %v788, %v1188
  %1190 = vmatmul.f32.gmra.mxu0 %v390
  %v1191 = vpop.f32.mrf.mxu0
  %v1192 = vadd.f32 %v791, %v1191
  %1193 = vmatmul.f32.gmra.mxu0 %v393
  %v1194 = vpop.f32.mrf.mxu0
  %v1195 = vadd.f32 %v794, %v1194
  %1196 = vmatmul.f32.gmra.mxu0 %v396
  %v1197 = vpop.f32.mrf.mxu0
  %v1198 = vadd.f32 %v797, %v1197
  %1199 = vmatmul.f32.gmra.mxu0 %v399
  %v1200 = vpop.f32.mrf.mxu0
  %v1201 = vadd.f32 %v800, %v1200
  %1202 = vmatmul.f32.gmra.mxu0 %v402
  %v1203 = vpop.f32.mrf.mxu0
  %v1204 = vadd.f32 %v803, %v1203
  %1205 = vmatmul.f32.gmra.mxu0 %v405
  %v1206 = vpop.f32.mrf.mxu0
  %v1207 = vadd.f32 %v806, %v1206
  %1208 = vmatmul.f32.gmra.mxu0 %v408
  %v1209 = vpop.f32.mrf.mxu0
  %v1210 = vadd.f32 %v809, %v1209
  %1211 = vmatmul.f32.gmra.mxu0 %v411
  %v1212 = vpop.f32.mrf.mxu0
  %v1213 = vadd.f32 %v812, %v1212
  %1214 = vmatmul.f32.gmra.mxu0 %v414
  %v1215 = vpop.f32.mrf.mxu0
  %v1216 = vadd.f32 %v815, %v1215
  %1217 = vmatmul.f32.gmra.mxu0 %v417
  %v1218 = vpop.f32.mrf.mxu0
  %v1219 = vadd.f32 %v818, %v1218
  %1220 = vmatmul.f32.gmra.mxu0 %v420
  %v1221 = vpop.f32.mrf.mxu0
  %v1222 = vadd.f32 %v821, %v1221
  %1223 = vmatmul.f32.gmra.mxu0 %v423
  %v1224 = vpop.f32.mrf.mxu0
  %v1225 = vadd.f32 %v824, %v1224
  %1226 = vmatmul.f32.gmra.mxu0 %v426
  %v1227 = vpop.f32.mrf.mxu0
  %v1228 = vadd.f32 %v827, %v1227
  %1229 = vmatmul.f32.gmra.mxu0 %v429
  %v1230 = vpop.f32.mrf.mxu0
  %v1231 = vadd.f32 %v830, %v1230
  %1232 = vmatmul.f32.gmra.mxu0 %v432
  %v1233 = vpop.f32.mrf.mxu0
  %v1234 = vadd.f32 %v833, %v1233
  %1235 = vmatmul.f32.gmra.mxu0 %v435
  %v1236 = vpop.f32.mrf.mxu0
  %v1237 = vadd.f32 %v836, %v1236
  %1238 = vmatmul.f32.gmra.mxu0 %v438
  %v1239 = vpop.f32.mrf.mxu0
  %v1240 = vadd.f32 %v839, %v1239
  %1241 = vmatmul.f32.gmra.mxu0 %v441
  %v1242 = vpop.f32.mrf.mxu0
  %v1243 = vadd.f32 %v842, %v1242
  %1244 = vmatmul.f32.gmra.mxu0 %v444
  %v1245 = vpop.f32.mrf.mxu0
  %v1246 = vadd.f32 %v845, %v1245
  %1247 = vmatmul.f32.gmra.mxu0 %v447
  %v1248 = vpop.f32.mrf.mxu0
  %v1249 = vadd.f32 %v848, %v1248
  %1250 = vmatmul.f32.gmra.mxu0 %v450
  %v1251 = vpop.f32.mrf.mxu0
  %v1252 = vadd.f32 %v851, %v1251
  %1253 = vmatmul.f32.gmra.mxu0 %v453
  %v1254 = vpop.f32.mrf.mxu0
  %v1255 = vadd.f32 %v854, %v1254
  %1256 = vmatmul.f32.gmra.mxu0 %v456
  %v1257 = vpop.f32.mrf.mxu0
  %v1258 = vadd.f32 %v857, %v1257
  %1259 = vmatmul.f32.gmra.mxu0 %v459
  %v1260 = vpop.f32.mrf.mxu0
  %v1261 = vadd.f32 %v860, %v1260
  %1262 = vmatmul.f32.gmra.mxu0 %v462
  %v1263 = vpop.f32.mrf.mxu0
  %v1264 = vadd.f32 %v863, %v1263
  %1265 = vmatmul.f32.gmra.mxu0 %v465
  %v1266 = vpop.f32.mrf.mxu0
  %v1267 = vadd.f32 %v866, %v1266
  %1268 = vmatmul.f32.gmra.mxu0 %v468
  %v1269 = vpop.f32.mrf.mxu0
  %v1270 = vadd.f32 %v869, %v1269
  %1271 = vmatmul.f32.gmra.mxu0 %v471
  %v1272 = vpop.f32.mrf.mxu0
  %v1273 = vadd.f32 %v872, %v1272
  %1274 = vmatmul.f32.gmra.mxu0 %v474
  %v1275 = vpop.f32.mrf.mxu0
  %v1276 = vadd.f32 %v875, %v1275
  %1277 = vmatmul.f32.gmra.mxu0 %v477
  %v1278 = vpop.f32.mrf.mxu0
  %v1279 = vadd.f32 %v878, %v1278
  %1280 = vmatmul.f32.gmra.mxu0 %v480
  %v1281 = vpop.f32.mrf.mxu0
  %v1282 = vadd.f32 %v881, %v1281
  %1283 = vmatmul.f32.gmra.mxu0 %v483
  %v1284 = vpop.f32.mrf.mxu0
  %v1285 = vadd.f32 %v884, %v1284
  %1286 = vmatmul.f32.gmra.mxu0 %v486
  %v1287 = vpop.f32.mrf.mxu0
  %v1288 = vadd.f32 %v887, %v1287
  %1289 = vmatmul.f32.gmra.mxu0 %v489
  %v1290 = vpop.f32.mrf.mxu0
  %v1291 = vadd.f32 %v890, %v1290
  %1292 = vmatmul.f32.gmra.mxu0 %v492
  %v1293 = vpop.f32.mrf.mxu0
  %v1294 = vadd.f32 %v893, %v1293
  %1295 = vmatmul.f32.gmra.mxu0 %v495
  %v1296 = vpop.f32.mrf.mxu0
  %v1297 = vadd.f32 %v896, %v1296
  %1298 = vmatmul.f32.gmra.mxu0 %v498
  %v1299 = vpop.f32.mrf.mxu0
  %v1300 = vadd.f32 %v899, %v1299
  %1301 = vmatmul.f32.gmra.mxu0 %v501
  %v1302 = vpop.f32.mrf.mxu0
  %v1303 = vadd.f32 %v902, %v1302
  %1304 = vmatmul.f32.gmra.mxu0 %v504
  %v1305 = vpop.f32.mrf.mxu0
  %v1306 = vadd.f32 %v905, %v1305
  %1307 = vmatmul.f32.gmra.mxu0 %v507
  %v1308 = vpop.f32.mrf.mxu0
  %v1309 = vadd.f32 %v908, %v1308
  %1310 = vmatmul.f32.gmra.mxu0 %v510
  %v1311 = vpop.f32.mrf.mxu0
  %v1312 = vadd.f32 %v911, %v1311
  %1313 = vmatmul.f32.gmra.mxu0 %v513
  %v1314 = vpop.f32.mrf.mxu0
  %v1315 = vadd.f32 %v914, %v1314
  %1316 = vmatmul.f32.gmra.mxu0 %v516
  %v1317 = vpop.f32.mrf.mxu0
  %v1318 = vadd.f32 %v917, %v1317
  %1319 = vmatmul.f32.gmra.mxu0 %v519
  %v1320 = vpop.f32.mrf.mxu0
  %v1321 = vadd.f32 %v920, %v1320
  %1322 = vmatmul.f32.gmra.mxu0 %v522
  %v1323 = vpop.f32.mrf.mxu0
  %v1324 = vadd.f32 %v923, %v1323
  %1325 = vmatmul.f32.gmra.mxu0 %v525
  %v1326 = vpop.f32.mrf.mxu0
  %v1327 = vadd.f32 %v926, %v1326
  %1328 = vmatmul.f32.gmra.mxu0 %v528
  %v1329 = vpop.f32.mrf.mxu0
  %v1330 = vadd.f32 %v929, %v1329
  %1331 = vmatmul.f32.gmra.mxu0 %v531
  %v1332 = vpop.f32.mrf.mxu0
  %v1333 = vadd.f32 %v932, %v1332
  %1334 = vmatmul.f32.gmra.mxu0 %v534
  %v1335 = vpop.f32.mrf.mxu0
  %v1336 = vadd.f32 %v935, %v1335
  %1337 = vmatmul.f32.gmra.mxu0 %v537
  %v1338 = vpop.f32.mrf.mxu0
  %v1339 = vadd.f32 %v938, %v1338
  %1340 = vmatmul.f32.gmra.mxu0 %v540
  %v1341 = vpop.f32.mrf.mxu0
  %v1342 = vadd.f32 %v941, %v1341
  %1343 = vmatmul.f32.gmra.mxu0 %v543
  %v1344 = vpop.f32.mrf.mxu0
  %v1345 = vadd.f32 %v944, %v1344
  %1346 = vmatmul.f32.gmra.mxu0 %v546
  %v1347 = vpop.f32.mrf.mxu0
  %v1348 = vadd.f32 %v947, %v1347
  %1349 = vmatmul.f32.gmra.mxu0 %v549
  %v1350 = vpop.f32.mrf.mxu0
  %v1351 = vadd.f32 %v950, %v1350
  %1352 = vmatmul.f32.gmra.mxu0 %v552
  %v1353 = vpop.f32.mrf.mxu0
  %v1354 = vadd.f32 %v953, %v1353
  %1355 = vmatmul.f32.gmra.mxu0 %v555
  %v1356 = vpop.f32.mrf.mxu0
  %v1357 = vadd.f32 %v956, %v1356
  %1358 = vmatmul.f32.gmra.mxu0 %v558
  %v1359 = vpop.f32.mrf.mxu0
  %v1360 = vadd.f32 %v959, %v1359
  %1361 = vmatmul.f32.gmra.mxu0 %v561
  %v1362 = vpop.f32.mrf.mxu0
  %v1363 = vadd.f32 %v962, %v1362
  %1364 = vmatmul.f32.gmra.mxu0 %v564
  %v1365 = vpop.f32.mrf.mxu0
  %v1366 = vadd.f32 %v965, %v1365
  %1367 = vmatmul.f32.gmra.mxu0 %v567
  %v1368 = vpop.f32.mrf.mxu0
  %v1369 = vadd.f32 %v968, %v1368
  %1370 = vmatmul.f32.gmra.mxu0 %v570
  %v1371 = vpop.f32.mrf.mxu0
  %v1372 = vadd.f32 %v971, %v1371
  %1373 = vmatmul.f32.gmra.mxu0 %v573
  %v1374 = vpop.f32.mrf.mxu0
  %v1375 = vadd.f32 %v974, %v1374
  %1376 = vmatmul.f32.gmra.mxu0 %v576
  %v1377 = vpop.f32.mrf.mxu0
  %v1378 = vadd.f32 %v977, %v1377
  %1379 = vmatmul.f32.gmra.mxu0 %v579
  %v1380 = vpop.f32.mrf.mxu0
  %v1381 = vadd.f32 %v980, %v1380
  %1382 = vmatmul.f32.gmra.mxu0 %v582
  %v1383 = vpop.f32.mrf.mxu0
  %v1384 = vadd.f32 %v983, %v1383
  %1385 = vmatmul.f32.gmra.mxu0 %v585
  %v1386 = vpop.f32.mrf.mxu0
  %v1387 = vadd.f32 %v986, %v1386
  %1388 = vmatmul.f32.gmra.mxu0 %v588
  %v1389 = vpop.f32.mrf.mxu0
  %v1390 = vadd.f32 %v989, %v1389
  %1391 = vmatmul.f32.gmra.mxu0 %v591
  %v1392 = vpop.f32.mrf.mxu0
  %v1393 = vadd.f32 %v992, %v1392
  %1394 = vmatmul.f32.gmra.mxu0 %v594
  %v1395 = vpop.f32.mrf.mxu0
  %v1396 = vadd.f32 %v995, %v1395
  %1397 = vmatmul.f32.gmra.mxu0 %v597
  %v1398 = vpop.f32.mrf.mxu0
  %v1399 = vadd.f32 %v998, %v1398
  %1400 = vmatmul.f32.gmra.mxu0 %v600
  %v1401 = vpop.f32.mrf.mxu0
  %v1402 = vadd.f32 %v1001, %v1401
  %1403 = vmatmul.f32.gmra.mxu0 %v603
  %v1404 = vpop.f32.mrf.mxu0
  %v1405 = vadd.f32 %v1004, %v1404
  %1406 = vmatmul.f32.gmra.mxu0 %v606
  %v1407 = vpop.f32.mrf.mxu0
  %v1408 = vadd.f32 %v1007, %v1407
  %1409 = vmatmul.f32.gmra.mxu0 %v609
  %v1410 = vpop.f32.mrf.mxu0
  %v1411 = vadd.f32 %v1010, %v1410
  %1412 = vmatmul.f32.gmra.mxu0 %v612
  %v1413 = vpop.f32.mrf.mxu0
  %v1414 = vadd.f32 %v1013, %v1413
  %1415 = vmatmul.f32.gmra.mxu0 %v615
  %v1416 = vpop.f32.mrf.mxu0
  %v1417 = vadd.f32 %v1016, %v1416
  %1418 = vmatmul.f32.gmra.mxu0 %v618
  %v1419 = vpop.f32.mrf.mxu0
  %v1420 = vadd.f32 %v1019, %v1419
  %1421 = vmatmul.f32.gmra.mxu0 %v621
  %v1422 = vpop.f32.mrf.mxu0
  %v1423 = vadd.f32 %v1022, %v1422
  %1424 = vmatmul.f32.gmra.mxu0 %v624
  %v1425 = vpop.f32.mrf.mxu0
  %v1426 = vadd.f32 %v1025, %v1425
  %1427 = vmatmul.f32.gmra.mxu0 %v627
  %v1428 = vpop.f32.mrf.mxu0
  %v1429 = vadd.f32 %v1028, %v1428
  %1430 = vmatmul.f32.gmra.mxu0 %v630
  %v1431 = vpop.f32.mrf.mxu0
  %v1432 = vadd.f32 %v1031, %v1431
  %1433 = vmatmul.f32.gmra.mxu0 %v633
  %v1434 = vpop.f32.mrf.mxu0
  %v1435 = vadd.f32 %v1034, %v1434
  %1436 = vmatmul.f32.gmra.mxu0 %v636
  %v1437 = vpop.f32.mrf.mxu0
  %v1438 = vadd.f32 %v1037, %v1437
  %1439 = vmatmul.f32.gmra.mxu0 %v639
  %v1440 = vpop.f32.mrf.mxu0
  %v1441 = vadd.f32 %v1040, %v1440
  %1442 = vmatmul.f32.gmra.mxu0 %v642
  %v1443 = vpop.f32.mrf.mxu0
  %v1444 = vadd.f32 %v1043, %v1443
  %1445 = vmatmul.f32.gmra.mxu0 %v645
  %v1446 = vpop.f32.mrf.mxu0
  %v1447 = vadd.f32 %v1046, %v1446
  %1448 = vmatmul.f32.gmra.mxu0 %v648
  %v1449 = vpop.f32.mrf.mxu0
  %v1450 = vadd.f32 %v1049, %v1449
  %1451 = vmatmul.f32.gmra.mxu0 %v651
  %v1452 = vpop.f32.mrf.mxu0
  %v1453 = vadd.f32 %v1052, %v1452
  %1454 = vmatmul.f32.gmra.mxu0 %v654
  %v1455 = vpop.f32.mrf.mxu0
  %v1456 = vadd.f32 %v1055, %v1455
  %1457 = vmatmul.f32.gmra.mxu0 %v657
  %v1458 = vpop.f32.mrf.mxu0
  %v1459 = vadd.f32 %v1058, %v1458
  %1460 = vmatmul.f32.gmra.mxu0 %v660
  %v1461 = vpop.f32.mrf.mxu0
  %v1462 = vadd.f32 %v1061, %v1461
  %1463 = vmatmul.f32.gmra.mxu0 %v663
  %v1464 = vpop.f32.mrf.mxu0
  %v1465 = vadd.f32 %v1064, %v1464
  %1466 = vmatmul.f32.gmra.mxu0 %v666
  %v1467 = vpop.f32.mrf.mxu0
  %v1468 = vadd.f32 %v1067, %v1467
  %1469 = vmatmul.f32.gmra.mxu0 %v669
  %v1470 = vpop.f32.mrf.mxu0
  %v1471 = vadd.f32 %v1070, %v1470
  %1472 = vmatmul.f32.gmra.mxu0 %v672
  %v1473 = vpop.f32.mrf.mxu0
  %v1474 = vadd.f32 %v1073, %v1473
  %1475 = vdwg.mxu0
  %v1476 = vmax.f32 %v1093, %v1105
  %v1477 = vmax.f32 %v1096, %v1108
  %v1478 = vmax.f32 %v1099, %v1111
  %v1479 = vmax.f32 %v1102, %v1114
  %v1480 = vmax.f32 %v1141, %v1153
  %v1481 = vmax.f32 %v1144, %v1156
  %v1482 = vmax.f32 %v1147, %v1159
  %v1483 = vmax.f32 %v1150, %v1162
  %v1484 = vmax.f32 %v1189, %v1201
  %v1485 = vmax.f32 %v1192, %v1204
  %v1486 = vmax.f32 %v1195, %v1207
  %v1487 = vmax.f32 %v1198, %v1210
  %v1488 = vmax.f32 %v1237, %v1249
  %v1489 = vmax.f32 %v1240, %v1252
  %v1490 = vmax.f32 %v1243, %v1255
  %v1491 = vmax.f32 %v1246, %v1258
  %v1492 = vmax.f32 %v1285, %v1297
  %v1493 = vmax.f32 %v1288, %v1300
  %v1494 = vmax.f32 %v1291, %v1303
  %v1495 = vmax.f32 %v1294, %v1306
  %v1496 = vmax.f32 %v1333, %v1345
  %v1497 = vmax.f32 %v1336, %v1348
  %v1498 = vmax.f32 %v1339, %v1351
  %v1499 = vmax.f32 %v1342, %v1354
  %v1500 = vmax.f32 %v1381, %v1393
  %v1501 = vmax.f32 %v1384, %v1396
  %v1502 = vmax.f32 %v1387, %v1399
  %v1503 = vmax.f32 %v1390, %v1402
  %v1504 = vmax.f32 %v1429, %v1441
  %v1505 = vmax.f32 %v1432, %v1444
  %v1506 = vmax.f32 %v1435, %v1447
  %v1507 = vmax.f32 %v1438, %v1450
  %v1508 = vmax.f32 %v1117, %v1129
  %v1509 = vmax.f32 %v1120, %v1132
  %v1510 = vmax.f32 %v1123, %v1135
  %v1511 = vmax.f32 %v1126, %v1138
  %v1512 = vmax.f32 %v1165, %v1177
  %v1513 = vmax.f32 %v1168, %v1180
  %v1514 = vmax.f32 %v1171, %v1183
  %v1515 = vmax.f32 %v1174, %v1186
  %v1516 = vmax.f32 %v1213, %v1225
  %v1517 = vmax.f32 %v1216, %v1228
  %v1518 = vmax.f32 %v1219, %v1231
  %v1519 = vmax.f32 %v1222, %v1234
  %v1520 = vmax.f32 %v1261, %v1273
  %v1521 = vmax.f32 %v1264, %v1276
  %v1522 = vmax.f32 %v1267, %v1279
  %v1523 = vmax.f32 %v1270, %v1282
  %v1524 = vmax.f32 %v1309, %v1321
  %v1525 = vmax.f32 %v1312, %v1324
  %v1526 = vmax.f32 %v1315, %v1327
  %v1527 = vmax.f32 %v1318, %v1330
  %v1528 = vmax.f32 %v1357, %v1369
  %v1529 = vmax.f32 %v1360, %v1372
  %v1530 = vmax.f32 %v1363, %v1375
  %v1531 = vmax.f32 %v1366, %v1378
  %v1532 = vmax.f32 %v1405, %v1417
  %v1533 = vmax.f32 %v1408, %v1420
  %v1534 = vmax.f32 %v1411, %v1423
  %v1535 = vmax.f32 %v1414, %v1426
  %v1536 = vmax.f32 %v1453, %v1465
  %v1537 = vmax.f32 %v1456, %v1468
  %v1538 = vmax.f32 %v1459, %v1471
  %v1539 = vmax.f32 %v1462, %v1474
  %v1540 = vmax.f32 %v1476, %v1508
  %v1541 = vmax.f32 %v1477, %v1509
  %v1542 = vmax.f32 %v1478, %v1510
  %v1543 = vmax.f32 %v1479, %v1511
  %v1544 = vmax.f32 %v1480, %v1512
  %v1545 = vmax.f32 %v1481, %v1513
  %v1546 = vmax.f32 %v1482, %v1514
  %v1547 = vmax.f32 %v1483, %v1515
  %v1548 = vmax.f32 %v1484, %v1516
  %v1549 = vmax.f32 %v1485, %v1517
  %v1550 = vmax.f32 %v1486, %v1518
  %v1551 = vmax.f32 %v1487, %v1519
  %v1552 = vmax.f32 %v1488, %v1520
  %v1553 = vmax.f32 %v1489, %v1521
  %v1554 = vmax.f32 %v1490, %v1522
  %v1555 = vmax.f32 %v1491, %v1523
  %v1556 = vmax.f32 %v1492, %v1524
  %v1557 = vmax.f32 %v1493, %v1525
  %v1558 = vmax.f32 %v1494, %v1526
  %v1559 = vmax.f32 %v1495, %v1527
  %v1560 = vmax.f32 %v1496, %v1528
  %v1561 = vmax.f32 %v1497, %v1529
  %v1562 = vmax.f32 %v1498, %v1530
  %v1563 = vmax.f32 %v1499, %v1531
  %v1564 = vmax.f32 %v1500, %v1532
  %v1565 = vmax.f32 %v1501, %v1533
  %v1566 = vmax.f32 %v1502, %v1534
  %v1567 = vmax.f32 %v1503, %v1535
  %v1568 = vmax.f32 %v1504, %v1536
  %v1569 = vmax.f32 %v1505, %v1537
  %v1570 = vmax.f32 %v1506, %v1538
  %v1571 = vmax.f32 %v1507, %v1539
  %v1572 = vld [vmem:[%s2] sm:$0x1]
  %v1574 = vperm.slane %v1572, 0
  %v1576 = vadd.f32 %v1540, %v1574
  %v1577 = vadd.f32 %v1541, %v1574
  %v1578 = vadd.f32 %v1542, %v1574
  %v1579 = vadd.f32 %v1543, %v1574
  %v1580 = vadd.f32 %v1544, %v1574
  %v1581 = vadd.f32 %v1545, %v1574
  %v1582 = vadd.f32 %v1546, %v1574
  %v1583 = vadd.f32 %v1547, %v1574
  %v1584 = vadd.f32 %v1548, %v1574
  %v1585 = vadd.f32 %v1549, %v1574
  %v1586 = vadd.f32 %v1550, %v1574
  %v1587 = vadd.f32 %v1551, %v1574
  %v1588 = vadd.f32 %v1552, %v1574
  %v1589 = vadd.f32 %v1553, %v1574
  %v1590 = vadd.f32 %v1554, %v1574
  %v1591 = vadd.f32 %v1555, %v1574
  %v1592 = vadd.f32 %v1556, %v1574
  %v1593 = vadd.f32 %v1557, %v1574
  %v1594 = vadd.f32 %v1558, %v1574
  %v1595 = vadd.f32 %v1559, %v1574
  %v1596 = vadd.f32 %v1560, %v1574
  %v1597 = vadd.f32 %v1561, %v1574
  %v1598 = vadd.f32 %v1562, %v1574
  %v1599 = vadd.f32 %v1563, %v1574
  %v1600 = vadd.f32 %v1564, %v1574
  %v1601 = vadd.f32 %v1565, %v1574
  %v1602 = vadd.f32 %v1566, %v1574
  %v1603 = vadd.f32 %v1567, %v1574
  %v1604 = vadd.f32 %v1568, %v1574
  %v1605 = vadd.f32 %v1569, %v1574
  %v1606 = vadd.f32 %v1570, %v1574
  %v1607 = vadd.f32 %v1571, %v1574
  %v1608 = vmax.f32 %v1576, 0.0
  %v1609 = vmax.f32 %v1577, 0.0
  %v1610 = vmax.f32 %v1578, 0.0
  %v1611 = vmax.f32 %v1579, 0.0
  %v1612 = vmax.f32 %v1580, 0.0
  %v1613 = vmax.f32 %v1581, 0.0
  %v1614 = vmax.f32 %v1582, 0.0
  %v1615 = vmax.f32 %v1583, 0.0
  %v1616 = vmax.f32 %v1584, 0.0
  %v1617 = vmax.f32 %v1585, 0.0
  %v1618 = vmax.f32 %v1586, 0.0
  %v1619 = vmax.f32 %v1587, 0.0
  %v1620 = vmax.f32 %v1588, 0.0
  %v1621 = vmax.f32 %v1589, 0.0
  %v1622 = vmax.f32 %v1590, 0.0
  %v1623 = vmax.f32 %v1591, 0.0
  %v1624 = vmax.f32 %v1592, 0.0
  %v1625 = vmax.f32 %v1593, 0.0
  %v1626 = vmax.f32 %v1594, 0.0
  %v1627 = vmax.f32 %v1595, 0.0
  %v1628 = vmax.f32 %v1596, 0.0
  %v1629 = vmax.f32 %v1597, 0.0
  %v1630 = vmax.f32 %v1598, 0.0
  %v1631 = vmax.f32 %v1599, 0.0
  %v1632 = vmax.f32 %v1600, 0.0
  %v1633 = vmax.f32 %v1601, 0.0
  %v1634 = vmax.f32 %v1602, 0.0
  %v1635 = vmax.f32 %v1603, 0.0
  %v1636 = vmax.f32 %v1604, 0.0
  %v1637 = vmax.f32 %v1605, 0.0
  %v1638 = vmax.f32 %v1606, 0.0
  %v1639 = vmax.f32 %v1607, 0.0
  %1640 = vst [vmem:[%s3] sm:$0xff] %v1608
  %1641 = vst [vmem:[%s3 + $0x8] sm:$0xff] %v1609
  %1642 = vst [vmem:[%s3 + $0x10] sm:$0xff] %v1610
  %1643 = vst [vmem:[%s3 + $0x18] sm:$0xff] %v1611
  %1644 = vst [vmem:[%s3 + $0x20] sm:$0xff] %v1612
  %1645 = vst [vmem:[%s3 + $0x28] sm:$0xff] %v1613
  %1646 = vst [vmem:[%s3 + $0x30] sm:$0xff] %v1614
  %1647 = vst [vmem:[%s3 + $0x38] sm:$0xff] %v1615
  %1648 = vst [vmem:[%s3 + $0x40] sm:$0xff] %v1616
  %1649 = vst [vmem:[%s3 + $0x48] sm:$0xff] %v1617
  %1650 = vst [vmem:[%s3 + $0x50] sm:$0xff] %v1618
  %1651 = vst [vmem:[%s3 + $0x58] sm:$0xff] %v1619
  %1652 = vst [vmem:[%s3 + $0x60] sm:$0xff] %v1620
  %1653 = vst [vmem:[%s3 + $0x68] sm:$0xff] %v1621
  %1654 = vst [vmem:[%s3 + $0x70] sm:$0xff] %v1622
  %1655 = vst [vmem:[%s3 + $0x78] sm:$0xff] %v1623
  %1656 = vst [vmem:[%s3 + $0x80] sm:$0xff] %v1624
  %1657 = vst [vmem:[%s3 + $0x88] sm:$0xff] %v1625
  %1658 = vst [vmem:[%s3 + $0x90] sm:$0xff] %v1626
  %1659 = vst [vmem:[%s3 + $0x98] sm:$0xff] %v1627
  %1660 = vst [vmem:[%s3 + $0xa0] sm:$0xff] %v1628
  %1661 = vst [vmem:[%s3 + $0xa8] sm:$0xff] %v1629
  %1662 = vst [vmem:[%s3 + $0xb0] sm:$0xff] %v1630
  %1663 = vst [vmem:[%s3 + $0xb8] sm:$0xff] %v1631
  %1664 = vst [vmem:[%s3 + $0xc0] sm:$0xff] %v1632
  %1665 = vst [vmem:[%s3 + $0xc8] sm:$0xff] %v1633
  %1666 = vst [vmem:[%s3 + $0xd0] sm:$0xff] %v1634
  %1667 = vst [vmem:[%s3 + $0xd8] sm:$0xff] %v1635
  %1668 = vst [vmem:[%s3 + $0xe0] sm:$0xff] %v1636
  %1669 = vst [vmem:[%s3 + $0xe8] sm:$0xff] %v1637
  %1670 = vst [vmem:[%s3 + $0xf0] sm:$0xff] %v1638
  %1671 = vst [vmem:[%s3 + $0xf8] sm:$0xff] %v1639
  // Predicated region
  $region14: #{net_forward.4} parent=0 // pred_check
    _
  $region15: #{net_forward.4} parent=0 // pred_check_branch
    %1673 = sbr.rel (0) target = $region17
  $region16: #{net_forward.4} parent=0 // pred_region
    _
  $region17: #{net_forward.4} parent=0 // pred_fallthru
    _
  // Predicated region
  $region18: #{net_forward.4} parent=0 // pred_check
    _
  $region19: #{net_forward.4} parent=0 // pred_check_branch
    %1675 = sbr.rel (0) target = $region21
  $region20: #{net_forward.4} parent=0 // pred_region
    _
  $region21: #{net_forward.4} parent=0 // pred_fallthru
    _

</llo_original>
